<compile_context>
chip_gen: v5e
topology: v5e:2x2
jax: 0.10.0
libtpu: 0.0.40
codegen_flags: <defaults>
</compile_context>

<pallas_src>
import functools

import jax
import jax.numpy as jnp
from jax import lax
from jax.experimental import pallas as pl
from jax.experimental.pallas import tpu as pltpu

TAU = 1.5          # tau_thr in the reference code
BN_EPS = 1e-5
SPIKE_DTYPE = jnp.bfloat16   # spikes are exactly {0, 1}


def _round_up(x, mult):
    return ((x + mult - 1) // mult) * mult


# --------------------------------------------------------------------------
# Kernel 1: fused  [LIF] -> 1x1 conv (+ folded BN) -> [+ residual] -> [LIF]
# on the channel-major (T, C, M) layout.  One grid step owns a full
# (T, C, tile_m) slab so both LIF recurrences stay in registers and the
# activation makes exactly one HBM round trip.
#   LIF (spikingjelly MultiStepLIFNode, decay_input, v_reset=0):
#     v_t = v_{t-1} + (x_t - v_{t-1}) / tau ; s_t = (v_t >= th) ; v_t = 0 if s_t
# --------------------------------------------------------------------------
def _fused_lif_conv_kernel(x_ref, w_ref, shift_ref, *rest,
                           tau, in_th, out_th, has_res, n_split):
    if has_res:
        res_ref, out_refs = rest[0], rest[1:]
    else:
        res_ref, out_refs = None, rest

    T = x_ref.shape[0]
    c_in = x_ref.shape[1]
    m = x_ref.shape[2]
    w = w_ref[...]                       # (c_out, c_in) bf16, BN scale folded
    c_out = w.shape[0]
    c_split = c_out // n_split
    inv_tau = jnp.float32(1.0 / tau)
    # Hoist the per-channel shift broadcast out of the time loop (JAX does not
    # CSE broadcast_in_dim).
    shift_b = jnp.broadcast_to(shift_ref[...], (c_out, m))   # f32

    dummy = jnp.zeros((), jnp.float32)
    v_in0 = jnp.zeros((c_in, m), jnp.float32) if in_th is not None else dummy
    v_out0 = jnp.zeros((c_out, m), jnp.float32) if out_th is not None else dummy

    def step(t, v_in, v_out):
        xt = x_ref[t]
        if in_th is None:
            # Input is already spikes (bf16) -> feed the MXU directly.
            s = xt if xt.dtype == w.dtype else xt.astype(w.dtype)
        else:
            xf = xt.astype(jnp.float32)
            v_in = v_in + (xf - v_in) * inv_tau
            spk_in = v_in >= in_th
            s = spk_in.astype(w.dtype)            # bf16 spikes -> MXU operand
            v_in = jnp.where(spk_in, 0.0, v_in)   # hard reset via select
        y = jnp.dot(w, s, preferred_element_type=jnp.float32) + shift_b
        if has_res:
            y = y + res_ref[t].astype(jnp.float32)
        if out_th is not None:
            v_out = v_out + (y - v_out) * inv_tau
            spk_out = v_out >= out_th
            v_out = jnp.where(spk_out, 0.0, v_out)
            y = spk_out
        if n_split == 1:
            out_refs[0][t] = y.astype(out_refs[0].dtype)
        else:
            for j in range(n_split):
                out_refs[j][t] = y[j * c_split:(j + 1) * c_split, :].astype(
                    out_refs[j].dtype)
        return v_in, v_out

    if T <= 8:
        # Small static T -> fully unrolled (LLO scheduler visibility).
        v_in, v_out = v_in0, v_out0
        for t in range(T):
            v_in, v_out = step(t, v_in, v_out)
    else:
        # Larger T -> rolled loop with membrane carries to bound live ranges.
        def body(t, carry):
            return step(t, *carry)
        lax.fori_loop(0, T, body, (v_in0, v_out0))


def fused_lif_conv_bn(x_cm, w_scaled, shift, *, in_th=None, out_th=None,
                      residual=None, n_split=1, out_dtype=jnp.float32,
                      tau=TAU, vmem_budget_bytes=24 * 1024 * 1024):
    """x_cm: (T, C_in, M); w_scaled: (C_out, C_in); shift: (C_out,).
    Returns (T, C_out, M), or an n_split tuple of (T, C_out/n_split, M)."""
    T, c_in, m = x_cm.shape
    c_out = w_scaled.shape[0]
    assert c_out % n_split == 0
    c_split = c_out // n_split

    # VMEM budget per lane: double-buffered streamed blocks plus the kernel's
    # own per-lane state (membranes, f32 temporaries, hoisted shift broadcast).
    x_b = jnp.dtype(x_cm.dtype).itemsize
    o_b = jnp.dtype(out_dtype).itemsize
    r_b = jnp.dtype(residual.dtype).itemsize if residual is not None else 0
    per_lane = 2 * T * (c_in * x_b + c_out * o_b + c_out * r_b)
    per_lane += 4 * ((c_in if in_th is not None else 0)
                     + (c_out if out_th is not None else 0))      # membranes
    per_lane += 4 * (c_in + 3 * c_out)                            # f32 temps
    fixed = 2 * (c_out * c_in * 2 + c_out * 4)        # weight + shift (dbl buf)

    tile_m = ((vmem_budget_bytes - fixed) // max(per_lane, 1)) // 128 * 128
    # Keep >= ~4 grid steps when M is large enough (v7x megacore, pipelining).
    if m >= 4 * 128:
        tile_m = min(tile_m, _round_up(pl.cdiv(m, 4), 128))
    tile_m = max(128, min(tile_m, 2048, _round_up(m, 128)))
    grid = pl.cdiv(m, tile_m)
    m_pad = grid * tile_m

    vmem_limit = int(min(max(fixed + per_lane * tile_m + (4 << 20), 32 << 20),
                         56 << 20))

    def pad(a):
        return a if m_pad == m else jnp.pad(a, ((0, 0), (0, 0), (0, m_pad - m)))

    args = [pad(x_cm), w_scaled.astype(jnp.bfloat16),
            shift.reshape(c_out, 1).astype(jnp.float32)]
    in_specs = [
        pl.BlockSpec((T, c_in, tile_m), lambda i: (0, 0, i)),
        pl.BlockSpec((c_out, c_in), lambda i: (0, 0)),
        pl.BlockSpec((c_out, 1), lambda i: (0, 0)),
    ]
    if residual is not None:
        args.append(pad(residual))
        in_specs.append(pl.BlockSpec((T, c_out, tile_m), lambda i: (0, 0, i)))

    out_spec = pl.BlockSpec((T, c_split, tile_m), lambda i: (0, 0, i))
    out_struct = jax.ShapeDtypeStruct((T, c_split, m_pad), out_dtype)
    kernel = functools.partial(
        _fused_lif_conv_kernel, tau=tau, in_th=in_th, out_th=out_th,
        has_res=residual is not None, n_split=n_split)

    outs = pl.pallas_call(
        kernel,
        out_shape=out_struct if n_split == 1 else (out_struct,) * n_split,
        grid=(grid,),
        in_specs=in_specs,
        out_specs=out_spec if n_split == 1 else (out_spec,) * n_split,
        compiler_params=pltpu.CompilerParams(
            dimension_semantics=("parallel",),
            vmem_limit_bytes=vmem_limit),
    )(*args)

    if n_split == 1:
        return outs[:, :, :m]
    return tuple(o[:, :, :m] for o in outs)


# --------------------------------------------------------------------------
# Kernel 2: spiking attention core.  Many (t, b, head) matrices per block,
# output emitted already transposed to channel-major (head_dim, N) and in
# bf16.  The reference's * 0.125 is folded into attn_lif's threshold (exact,
# power-of-two scale), so it is not applied here.
# Both dots run bf16 x bf16 -> f32: spikes are {0,1} and the attention matrix
# holds integer spike counts <= head_dim (exact in bf16 up to 256).
# --------------------------------------------------------------------------
def _attn_kernel(q_ref, k_ref, v_ref, o_ref):
    q = q_ref[...]                     # (g, N, d)  spikes (bf16)
    k = k_ref[...]                     # (g, d, N)  spikes (bf16)
    v = v_ref[...]                     # (g, d, N)  spikes (bf16)
    # attn[g, i, j] = sum_d q[g, i, d] * k[g, d, j]      (== reference q @ k^T)
    attn = lax.dot_general(q, k, (((2,), (1,)), ((0,), (0,))),
                           preferred_element_type=jnp.float32)       # (g, N, N)
    attn = attn.astype(jnp.bfloat16)   # integer counts <= head_dim -> lossless
    # o[g, e, i] = sum_j v[g, e, j] * attn[g, i, j]      (== (attn @ v)^T)
    o = lax.dot_general(v, attn, (((2,), (2,)), ((0,), (0,))),
                        preferred_element_type=jnp.float32)          # (g, d, N)
    o_ref[...] = o.astype(o_ref.dtype)


def spiking_attention_core(q, k, v, *, out_dtype=SPIKE_DTYPE,
                           vmem_budget_bytes=8 * 1024 * 1024):
    """q: (G, N, d); k, v: (G, d, N) spikes -> (G, d, N) out_dtype (un-scaled)."""
    g_total, d, n = k.shape
    # Per-group VMEM: q/k/v/o blocks double-buffered + attn scratch (f32+bf16).
    per_g = 2 * (4 * n * d * 2) + n * n * (4 + 2)
    cap = max(1, vmem_budget_bytes // per_g)
    # Target >= 4 grid steps when possible (megacore + DMA/compute overlap)
    # while batching as many head-matmuls per step as the budget allows.
    min_steps = 4 if g_total >= 8 else (2 if g_total >= 2 else 1)
    gmax = max(1, min(cap, g_total // min_steps))
    gb = 1
    for cand in range(1, gmax + 1):
        if g_total % cand == 0:
            gb = cand
    q_spec = pl.BlockSpec((gb, n, d), lambda i: (i, 0, 0))
    cm_spec = pl.BlockSpec((gb, d, n), lambda i: (i, 0, 0))
    return pl.pallas_call(
        _attn_kernel,
        out_shape=jax.ShapeDtypeStruct((g_total, d, n), out_dtype),
        grid=(g_total // gb,),
        in_specs=[q_spec, cm_spec, cm_spec],
        out_specs=cm_spec,
        compiler_params=pltpu.CompilerParams(
            dimension_semantics=("parallel",)),
    )(q, k, v)


# --------------------------------------------------------------------------
# Parameters + module-level forward (trace-time folding + layout glue)
# --------------------------------------------------------------------------
def _bn_fold(bn, conv_bias=None):
    scale = bn["gamma"] / jnp.sqrt(bn["var"] + BN_EPS)
    bias = conv_bias if conv_bias is not None else 0.0
    shift = scale * (bias - bn["mean"]) + bn["beta"]
    return scale, shift


def _fold_into_weight(w, bn, conv_bias=None):
    scale, shift = _bn_fold(bn, conv_bias)
    return scale[:, None] * w, shift


def init_params(key, dim, num_heads, mlp_ratio=4.0):
    hidden = int(dim * mlp_ratio)
    keys = iter(jax.random.split(key, 48))

    def w(shape, s=0.2):
        return jax.random.normal(next(keys), shape, jnp.float32) * s

    def bn(c):
        return dict(
            gamma=1.0 + 0.1 * jax.random.normal(next(keys), (c,), jnp.float32),
            beta=0.1 * jax.random.normal(next(keys), (c,), jnp.float32),
            mean=0.05 * jax.random.normal(next(keys), (c,), jnp.float32),
            var=1.0 + 0.1 * jnp.abs(jax.random.normal(next(keys), (c,), jnp.float32)),
        )

    return {
        # SpikingSelfAttention (Conv1d kernel_size=1 weights squeezed to 2-D)
        "q_w": w((dim, dim)), "q_bn": bn(dim),
        "k_w": w((dim, dim)), "k_bn": bn(dim),
        "v_w": w((dim, dim)), "v_bn": bn(dim),
        "proj_w": w((dim, dim)), "proj_b": w((dim,), 0.05), "proj_bn": bn(dim),
        # MLP (Conv2d kernel_size=1 weights squeezed to 2-D)
        "mlp1_w": w((hidden, dim)), "mlp1_b": w((hidden,), 0.05), "mlp1_bn": bn(hidden),
        "mlp2_w": w((dim, hidden)), "mlp2_b": w((dim,), 0.05), "mlp2_bn": bn(dim),
        "num_heads": num_heads,
        "hidden": hidden,
    }


def spiking_self_attention(x_cm, p, B, N):
    """x_cm: block input in channel-major (T, C, B*N).  Returns x + attn(x)."""
    T, C, M = x_cm.shape
    nh = p["num_heads"]
    d = C // nh

    # proj_lif -> fused q/k/v 1x1 conv + BN (stacked (3C, C) weight, BN scale
    # folded into the weight) -> q/k/v LIF.  One MXU pass, spikes out in bf16.
    sc_q, sh_q = _bn_fold(p["q_bn"])
    sc_k, sh_k = _bn_fold(p["k_bn"])
    sc_v, sh_v = _bn_fold(p["v_bn"])
    w_qkv = jnp.concatenate([sc_q[:, None] * p["q_w"],
                             sc_k[:, None] * p["k_w"],
                             sc_v[:, None] * p["v_w"]], axis=0)       # (3C, C)
    shift_qkv = jnp.concatenate([sh_q, sh_k, sh_v])
    q_s, k_s, v_s = fused_lif_conv_bn(
        x_cm, w_qkv, shift_qkv, in_th=1.0, out_th=1.0, n_split=3,
        out_dtype=SPIKE_DTYPE)

    # Re-layout spike tensors (bf16) for the per-(t, b, head) matmuls.
    # TODO(synk): fold these relayouts into BlockSpec index_maps of kernel 2
    # (needs blocks with lane dim >= 128 or an in-kernel (d, B) relayout).
    def heads(s, token_major):
        s = s.reshape(T, nh, d, B, N)
        if token_major:
            s = jnp.transpose(s, (0, 3, 1, 4, 2))      # (T, B, nh, N, d)
            return s.reshape(T * B * nh, N, d)
        s = jnp.transpose(s, (0, 3, 1, 2, 4))          # (T, B, nh, d, N)
        return s.reshape(T * B * nh, d, N)

    o = spiking_attention_core(heads(q_s, True), heads(k_s, False),
                               heads(v_s, False))       # (T*B*nh, d, N) bf16
    o = o.reshape(T, B, nh, d, N)
    o = jnp.transpose(o, (0, 2, 3, 1, 4)).reshape(T, C, M)   # channel-major

    # attn_lif (threshold 0.5 with the * 0.125 scale folded -> 4.0)
    # -> proj conv + BN -> residual add of the block input.
    w_p, sh_p = _fold_into_weight(p["proj_w"], p["proj_bn"], p["proj_b"])
    return fused_lif_conv_bn(o, w_p, sh_p, in_th=0.5 / 0.125, residual=x_cm)


def mlp_block(x_cm, p):
    """x_cm: (T, C, M).  Returns x + mlp(x)."""
    w1, sh1 = _fold_into_weight(p["mlp1_w"], p["mlp1_bn"], p["mlp1_b"])
    w2, sh2 = _fold_into_weight(p["mlp2_w"], p["mlp2_bn"], p["mlp2_b"])
    # mlp1_lif -> mlp1 conv + BN -> mlp2_lif   (spike output, bf16)
    h_s = fused_lif_conv_bn(x_cm, w1, sh1, in_th=1.0, out_th=1.0,
                            out_dtype=SPIKE_DTYPE)
    # mlp2 conv + BN -> + residual
    return fused_lif_conv_bn(h_s, w2, sh2, residual=x_cm)


def spiking_transformer(x, p):
    """x: (T, B, C, H, W) float32 -> (T, B, C, H, W)."""
    T, B, C, H, W = x.shape
    N = H * W
    # One layout permute in, one out: everything in between is channel-major.
    x_cm = jnp.transpose(x.reshape(T, B, C, N), (0, 2, 1, 3)).reshape(T, C, B * N)
    x_cm = spiking_self_attention(x_cm, p, B, N)     # x + attn(x)
    x_cm = mlp_block(x_cm, p)                        # ... + mlp(...)
    return jnp.transpose(x_cm.reshape(T, C, B, N), (0, 2, 1, 3)).reshape(
        T, B, C, H, W)


if __name__ == "__main__":
    T, B, C, H, W = 4, 2, 64, 8, 8
    num_heads = 4

    key = jax.random.PRNGKey(0)
    kx, kp = jax.random.split(key)
    x = jax.random.normal(kx, (T, B, C, H, W), jnp.float32)
    params = init_params(kp, dim=C, num_heads=num_heads, mlp_ratio=4.0)

    fwd = jax.jit(lambda xx: spiking_transformer(xx, params))
    out = fwd(x)
    jax.block_until_ready(out)
    assert out.shape == (T, B, C, H, W)
    assert out.dtype == jnp.float32
    print("KERNEL_OK")
</pallas_src>

<mosaic_0001>
module attributes {stable_mosaic.version = 11 : i64} {
  func.func @_fused_lif_conv_kernel(%arg0: i32, %arg1: memref<4x64x128xf32, #tpu.memory_space<vmem>>, %arg2: memref<192x64xbf16, #tpu.memory_space<vmem>>, %arg3: memref<192x1xf32, #tpu.memory_space<vmem>>, %arg4: memref<4x64x128xbf16, #tpu.memory_space<vmem>>, %arg5: memref<4x64x128xbf16, #tpu.memory_space<vmem>>, %arg6: memref<4x64x128xbf16, #tpu.memory_space<vmem>>) attributes {dimension_semantics = [#tpu.dimension_semantics<parallel>], iteration_bounds = array<i64: 1>, scalar_prefetch = 0 : i64, scratch_operands = 0 : i64, tpu.core_type = #tpu.core_type<tc>, window_params = [{transform_indices = @transform_0, window_bounds = array<i64: 4, 64, 128>}, {pipeline_mode = #tpu.pipeline_mode<synchronous>, transform_indices = @transform_1, window_bounds = array<i64: 192, 64>}, {pipeline_mode = #tpu.pipeline_mode<synchronous>, transform_indices = @transform_2, window_bounds = array<i64: 192, 1>}, {transform_indices = @transform_3, window_bounds = array<i64: 4, 64, 128>}, {transform_indices = @transform_4, window_bounds = array<i64: 4, 64, 128>}, {transform_indices = @transform_5, window_bounds = array<i64: 4, 64, 128>}]} {
    %c0 = arith.constant 0 : index
    %c0_0 = arith.constant 0 : index
    %0 = vector.load %arg2[%c0, %c0_0] : memref<192x64xbf16, #tpu.memory_space<vmem>>, vector<192x64xbf16>
    %c0_1 = arith.constant 0 : index
    %c0_2 = arith.constant 0 : index
    %1 = vector.load %arg3[%c0_1, %c0_2] : memref<192x1xf32, #tpu.memory_space<vmem>>, vector<192x1xf32>
    %2 = vector.shape_cast %1 : vector<192x1xf32> to vector<192x1xf32>
    %3 = vector.broadcast %2 : vector<192x1xf32> to vector<192x128xf32>
    %cst = arith.constant 0.000000e+00 : f32
    %4 = vector.broadcast %cst : f32 to vector<64x128xf32>
    %cst_3 = arith.constant 0.000000e+00 : f32
    %5 = vector.broadcast %cst_3 : f32 to vector<192x128xf32>
    %c0_4 = arith.constant 0 : index
    %c0_5 = arith.constant 0 : index
    %c0_6 = arith.constant 0 : index
    %6 = vector.load %arg1[%c0_4, %c0_5, %c0_6] : memref<4x64x128xf32, #tpu.memory_space<vmem>>, vector<1x64x128xf32>
    %7 = vector.shape_cast %6 : vector<1x64x128xf32> to vector<64x128xf32>
    %8 = arith.subf %7, %4 : vector<64x128xf32>
    %cst_7 = arith.constant 0.666666686 : f32
    %9 = vector.broadcast %cst_7 : f32 to vector<64x128xf32>
    %10 = arith.mulf %8, %9 : vector<64x128xf32>
    %11 = arith.addf %4, %10 : vector<64x128xf32>
    %cst_8 = arith.constant 1.000000e+00 : f32
    %12 = vector.broadcast %cst_8 : f32 to vector<64x128xf32>
    %13 = arith.cmpf oge, %11, %12 : vector<64x128xf32>
    %14 = arith.extui %13 : vector<64x128xi1> to vector<64x128xi32>
    %15 = arith.sitofp %14 : vector<64x128xi32> to vector<64x128xf32>
    %16 = arith.truncf %15 : vector<64x128xf32> to vector<64x128xbf16>
    %cst_9 = arith.constant 0.000000e+00 : f32
    %17 = vector.broadcast %cst_9 : f32 to vector<64x128xf32>
    %18 = arith.select %13, %17, %11 : vector<64x128xi1>, vector<64x128xf32>
    %cst_10 = arith.constant dense<0.000000e+00> : vector<192x128xf32>
    %19 = tpu.matmul %0, %16, %cst_10 {dimension_numbers = #tpu.dot_dimension_numbers<[1], [0], [0], [1], [0, 0, 1, 1], [], []>} : vector<192x64xbf16>, vector<64x128xbf16>, vector<192x128xf32> -> vector<192x128xf32>
    %20 = arith.addf %19, %3 : vector<192x128xf32>
    %21 = arith.subf %20, %5 : vector<192x128xf32>
    %cst_11 = arith.constant 0.666666686 : f32
    %22 = vector.broadcast %cst_11 : f32 to vector<192x128xf32>
    %23 = arith.mulf %21, %22 : vector<192x128xf32>
    %24 = arith.addf %5, %23 : vector<192x128xf32>
    %cst_12 = arith.constant 1.000000e+00 : f32
    %25 = vector.broadcast %cst_12 : f32 to vector<192x128xf32>
    %26 = arith.cmpf oge, %24, %25 : vector<192x128xf32>
    %cst_13 = arith.constant 0.000000e+00 : f32
    %27 = vector.broadcast %cst_13 : f32 to vector<192x128xf32>
    %28 = arith.select %26, %27, %24 : vector<192x128xi1>, vector<192x128xf32>
    %29 = vector.extract_strided_slice %26 {offsets = [0, 0], sizes = [64, 128], strides = [1, 1]} : vector<192x128xi1> to vector<64x128xi1>
    %30 = arith.extui %29 : vector<64x128xi1> to vector<64x128xi32>
    %31 = arith.sitofp %30 : vector<64x128xi32> to vector<64x128xf32>
    %32 = arith.truncf %31 : vector<64x128xf32> to vector<64x128xbf16>
    %c0_14 = arith.constant 0 : index
    %c0_15 = arith.constant 0 : index
    %c0_16 = arith.constant 0 : index
    %33 = vector.load %arg4[%c0_14, %c0_15, %c0_16] : memref<4x64x128xbf16, #tpu.memory_space<vmem>>, vector<1x64x128xbf16>
    %34 = vector.shape_cast %33 : vector<1x64x128xbf16> to vector<64x128xbf16>
    %35 = vector.shape_cast %32 : vector<64x128xbf16> to vector<1x64x128xbf16>
    tpu.vector_store %arg4[%c0_14, %c0_15, %c0_16], %35 {strides = array<i32>} : memref<4x64x128xbf16, #tpu.memory_space<vmem>>, vector<1x64x128xbf16>,
    %36 = vector.extract_strided_slice %26 {offsets = [64, 0], sizes = [64, 128], strides = [1, 1]} : vector<192x128xi1> to vector<64x128xi1>
    %37 = arith.extui %36 : vector<64x128xi1> to vector<64x128xi32>
    %38 = arith.sitofp %37 : vector<64x128xi32> to vector<64x128xf32>
    %39 = arith.truncf %38 : vector<64x128xf32> to vector<64x128xbf16>
    %c0_17 = arith.constant 0 : index
    %c0_18 = arith.constant 0 : index
    %c0_19 = arith.constant 0 : index
    %40 = vector.load %arg5[%c0_17, %c0_18, %c0_19] : memref<4x64x128xbf16, #tpu.memory_space<vmem>>, vector<1x64x128xbf16>
    %41 = vector.shape_cast %40 : vector<1x64x128xbf16> to vector<64x128xbf16>
    %42 = vector.shape_cast %39 : vector<64x128xbf16> to vector<1x64x128xbf16>
    tpu.vector_store %arg5[%c0_17, %c0_18, %c0_19], %42 {strides = array<i32>} : memref<4x64x128xbf16, #tpu.memory_space<vmem>>, vector<1x64x128xbf16>,
    %43 = vector.extract_strided_slice %26 {offsets = [128, 0], sizes = [64, 128], strides = [1, 1]} : vector<192x128xi1> to vector<64x128xi1>
    %44 = arith.extui %43 : vector<64x128xi1> to vector<64x128xi32>
    %45 = arith.sitofp %44 : vector<64x128xi32> to vector<64x128xf32>
    %46 = arith.truncf %45 : vector<64x128xf32> to vector<64x128xbf16>
    %c0_20 = arith.constant 0 : index
    %c0_21 = arith.constant 0 : index
    %c0_22 = arith.constant 0 : index
    %47 = vector.load %arg6[%c0_20, %c0_21, %c0_22] : memref<4x64x128xbf16, #tpu.memory_space<vmem>>, vector<1x64x128xbf16>
    %48 = vector.shape_cast %47 : vector<1x64x128xbf16> to vector<64x128xbf16>
    %49 = vector.shape_cast %46 : vector<64x128xbf16> to vector<1x64x128xbf16>
    tpu.vector_store %arg6[%c0_20, %c0_21, %c0_22], %49 {strides = array<i32>} : memref<4x64x128xbf16, #tpu.memory_space<vmem>>, vector<1x64x128xbf16>,
    %c1 = arith.constant 1 : index
    %c0_23 = arith.constant 0 : index
    %c0_24 = arith.constant 0 : index
    %50 = vector.load %arg1[%c1, %c0_23, %c0_24] : memref<4x64x128xf32, #tpu.memory_space<vmem>>, vector<1x64x128xf32>
    %51 = vector.shape_cast %50 : vector<1x64x128xf32> to vector<64x128xf32>
    %52 = arith.subf %51, %18 : vector<64x128xf32>
    %cst_25 = arith.constant 0.666666686 : f32
    %53 = vector.broadcast %cst_25 : f32 to vector<64x128xf32>
    %54 = arith.mulf %52, %53 : vector<64x128xf32>
    %55 = arith.addf %18, %54 : vector<64x128xf32>
    %cst_26 = arith.constant 1.000000e+00 : f32
    %56 = vector.broadcast %cst_26 : f32 to vector<64x128xf32>
    %57 = arith.cmpf oge, %55, %56 : vector<64x128xf32>
    %58 = arith.extui %57 : vector<64x128xi1> to vector<64x128xi32>
    %59 = arith.sitofp %58 : vector<64x128xi32> to vector<64x128xf32>
    %60 = arith.truncf %59 : vector<64x128xf32> to vector<64x128xbf16>
    %cst_27 = arith.constant 0.000000e+00 : f32
    %61 = vector.broadcast %cst_27 : f32 to vector<64x128xf32>
    %62 = arith.select %57, %61, %55 : vector<64x128xi1>, vector<64x128xf32>
    %cst_28 = arith.constant dense<0.000000e+00> : vector<192x128xf32>
    %63 = tpu.matmul %0, %60, %cst_28 {dimension_numbers = #tpu.dot_dimension_numbers<[1], [0], [0], [1], [0, 0, 1, 1], [], []>} : vector<192x64xbf16>, vector<64x128xbf16>, vector<192x128xf32> -> vector<192x128xf32>
    %64 = arith.addf %63, %3 : vector<192x128xf32>
    %65 = arith.subf %64, %28 : vector<192x128xf32>
    %cst_29 = arith.constant 0.666666686 : f32
    %66 = vector.broadcast %cst_29 : f32 to vector<192x128xf32>
    %67 = arith.mulf %65, %66 : vector<192x128xf32>
    %68 = arith.addf %28, %67 : vector<192x128xf32>
    %cst_30 = arith.constant 1.000000e+00 : f32
    %69 = vector.broadcast %cst_30 : f32 to vector<192x128xf32>
    %70 = arith.cmpf oge, %68, %69 : vector<192x128xf32>
    %cst_31 = arith.constant 0.000000e+00 : f32
    %71 = vector.broadcast %cst_31 : f32 to vector<192x128xf32>
    %72 = arith.select %70, %71, %68 : vector<192x128xi1>, vector<192x128xf32>
    %73 = vector.extract_strided_slice %70 {offsets = [0, 0], sizes = [64, 128], strides = [1, 1]} : vector<192x128xi1> to vector<64x128xi1>
    %74 = arith.extui %73 : vector<64x128xi1> to vector<64x128xi32>
    %75 = arith.sitofp %74 : vector<64x128xi32> to vector<64x128xf32>
    %76 = arith.truncf %75 : vector<64x128xf32> to vector<64x128xbf16>
    %c1_32 = arith.constant 1 : index
    %c0_33 = arith.constant 0 : index
    %c0_34 = arith.constant 0 : index
    %77 = vector.load %arg4[%c1_32, %c0_33, %c0_34] : memref<4x64x128xbf16, #tpu.memory_space<vmem>>, vector<1x64x128xbf16>
    %78 = vector.shape_cast %77 : vector<1x64x128xbf16> to vector<64x128xbf16>
    %79 = vector.shape_cast %76 : vector<64x128xbf16> to vector<1x64x128xbf16>
    tpu.vector_store %arg4[%c1_32, %c0_33, %c0_34], %79 {strides = array<i32>} : memref<4x64x128xbf16, #tpu.memory_space<vmem>>, vector<1x64x128xbf16>,
    %80 = vector.extract_strided_slice %70 {offsets = [64, 0], sizes = [64, 128], strides = [1, 1]} : vector<192x128xi1> to vector<64x128xi1>
    %81 = arith.extui %80 : vector<64x128xi1> to vector<64x128xi32>
    %82 = arith.sitofp %81 : vector<64x128xi32> to vector<64x128xf32>
    %83 = arith.truncf %82 : vector<64x128xf32> to vector<64x128xbf16>
    %c1_35 = arith.constant 1 : index
    %c0_36 = arith.constant 0 : index
    %c0_37 = arith.constant 0 : index
    %84 = vector.load %arg5[%c1_35, %c0_36, %c0_37] : memref<4x64x128xbf16, #tpu.memory_space<vmem>>, vector<1x64x128xbf16>
    %85 = vector.shape_cast %84 : vector<1x64x128xbf16> to vector<64x128xbf16>
    %86 = vector.shape_cast %83 : vector<64x128xbf16> to vector<1x64x128xbf16>
    tpu.vector_store %arg5[%c1_35, %c0_36, %c0_37], %86 {strides = array<i32>} : memref<4x64x128xbf16, #tpu.memory_space<vmem>>, vector<1x64x128xbf16>,
    %87 = vector.extract_strided_slice %70 {offsets = [128, 0], sizes = [64, 128], strides = [1, 1]} : vector<192x128xi1> to vector<64x128xi1>
    %88 = arith.extui %87 : vector<64x128xi1> to vector<64x128xi32>
    %89 = arith.sitofp %88 : vector<64x128xi32> to vector<64x128xf32>
    %90 = arith.truncf %89 : vector<64x128xf32> to vector<64x128xbf16>
    %c1_38 = arith.constant 1 : index
    %c0_39 = arith.constant 0 : index
    %c0_40 = arith.constant 0 : index
    %91 = vector.load %arg6[%c1_38, %c0_39, %c0_40] : memref<4x64x128xbf16, #tpu.memory_space<vmem>>, vector<1x64x128xbf16>
    %92 = vector.shape_cast %91 : vector<1x64x128xbf16> to vector<64x128xbf16>
    %93 = vector.shape_cast %90 : vector<64x128xbf16> to vector<1x64x128xbf16>
    tpu.vector_store %arg6[%c1_38, %c0_39, %c0_40], %93 {strides = array<i32>} : memref<4x64x128xbf16, #tpu.memory_space<vmem>>, vector<1x64x128xbf16>,
    %c2 = arith.constant 2 : index
    %c0_41 = arith.constant 0 : index
    %c0_42 = arith.constant 0 : index
    %94 = vector.load %arg1[%c2, %c0_41, %c0_42] : memref<4x64x128xf32, #tpu.memory_space<vmem>>, vector<1x64x128xf32>
    %95 = vector.shape_cast %94 : vector<1x64x128xf32> to vector<64x128xf32>
    %96 = arith.subf %95, %62 : vector<64x128xf32>
    %cst_43 = arith.constant 0.666666686 : f32
    %97 = vector.broadcast %cst_43 : f32 to vector<64x128xf32>
    %98 = arith.mulf %96, %97 : vector<64x128xf32>
    %99 = arith.addf %62, %98 : vector<64x128xf32>
    %cst_44 = arith.constant 1.000000e+00 : f32
    %100 = vector.broadcast %cst_44 : f32 to vector<64x128xf32>
    %101 = arith.cmpf oge, %99, %100 : vector<64x128xf32>
    %102 = arith.extui %101 : vector<64x128xi1> to vector<64x128xi32>
    %103 = arith.sitofp %102 : vector<64x128xi32> to vector<64x128xf32>
    %104 = arith.truncf %103 : vector<64x128xf32> to vector<64x128xbf16>
    %cst_45 = arith.constant 0.000000e+00 : f32
    %105 = vector.broadcast %cst_45 : f32 to vector<64x128xf32>
    %106 = arith.select %101, %105, %99 : vector<64x128xi1>, vector<64x128xf32>
    %cst_46 = arith.constant dense<0.000000e+00> : vector<192x128xf32>
    %107 = tpu.matmul %0, %104, %cst_46 {dimension_numbers = #tpu.dot_dimension_numbers<[1], [0], [0], [1], [0, 0, 1, 1], [], []>} : vector<192x64xbf16>, vector<64x128xbf16>, vector<192x128xf32> -> vector<192x128xf32>
    %108 = arith.addf %107, %3 : vector<192x128xf32>
    %109 = arith.subf %108, %72 : vector<192x128xf32>
    %cst_47 = arith.constant 0.666666686 : f32
    %110 = vector.broadcast %cst_47 : f32 to vector<192x128xf32>
    %111 = arith.mulf %109, %110 : vector<192x128xf32>
    %112 = arith.addf %72, %111 : vector<192x128xf32>
    %cst_48 = arith.constant 1.000000e+00 : f32
    %113 = vector.broadcast %cst_48 : f32 to vector<192x128xf32>
    %114 = arith.cmpf oge, %112, %113 : vector<192x128xf32>
    %cst_49 = arith.constant 0.000000e+00 : f32
    %115 = vector.broadcast %cst_49 : f32 to vector<192x128xf32>
    %116 = arith.select %114, %115, %112 : vector<192x128xi1>, vector<192x128xf32>
    %117 = vector.extract_strided_slice %114 {offsets = [0, 0], sizes = [64, 128], strides = [1, 1]} : vector<192x128xi1> to vector<64x128xi1>
    %118 = arith.extui %117 : vector<64x128xi1> to vector<64x128xi32>
    %119 = arith.sitofp %118 : vector<64x128xi32> to vector<64x128xf32>
    %120 = arith.truncf %119 : vector<64x128xf32> to vector<64x128xbf16>
    %c2_50 = arith.constant 2 : index
    %c0_51 = arith.constant 0 : index
    %c0_52 = arith.constant 0 : index
    %121 = vector.load %arg4[%c2_50, %c0_51, %c0_52] : memref<4x64x128xbf16, #tpu.memory_space<vmem>>, vector<1x64x128xbf16>
    %122 = vector.shape_cast %121 : vector<1x64x128xbf16> to vector<64x128xbf16>
    %123 = vector.shape_cast %120 : vector<64x128xbf16> to vector<1x64x128xbf16>
    tpu.vector_store %arg4[%c2_50, %c0_51, %c0_52], %123 {strides = array<i32>} : memref<4x64x128xbf16, #tpu.memory_space<vmem>>, vector<1x64x128xbf16>,
    %124 = vector.extract_strided_slice %114 {offsets = [64, 0], sizes = [64, 128], strides = [1, 1]} : vector<192x128xi1> to vector<64x128xi1>
    %125 = arith.extui %124 : vector<64x128xi1> to vector<64x128xi32>
    %126 = arith.sitofp %125 : vector<64x128xi32> to vector<64x128xf32>
    %127 = arith.truncf %126 : vector<64x128xf32> to vector<64x128xbf16>
    %c2_53 = arith.constant 2 : index
    %c0_54 = arith.constant 0 : index
    %c0_55 = arith.constant 0 : index
    %128 = vector.load %arg5[%c2_53, %c0_54, %c0_55] : memref<4x64x128xbf16, #tpu.memory_space<vmem>>, vector<1x64x128xbf16>
    %129 = vector.shape_cast %128 : vector<1x64x128xbf16> to vector<64x128xbf16>
    %130 = vector.shape_cast %127 : vector<64x128xbf16> to vector<1x64x128xbf16>
    tpu.vector_store %arg5[%c2_53, %c0_54, %c0_55], %130 {strides = array<i32>} : memref<4x64x128xbf16, #tpu.memory_space<vmem>>, vector<1x64x128xbf16>,
    %131 = vector.extract_strided_slice %114 {offsets = [128, 0], sizes = [64, 128], strides = [1, 1]} : vector<192x128xi1> to vector<64x128xi1>
    %132 = arith.extui %131 : vector<64x128xi1> to vector<64x128xi32>
    %133 = arith.sitofp %132 : vector<64x128xi32> to vector<64x128xf32>
    %134 = arith.truncf %133 : vector<64x128xf32> to vector<64x128xbf16>
    %c2_56 = arith.constant 2 : index
    %c0_57 = arith.constant 0 : index
    %c0_58 = arith.constant 0 : index
    %135 = vector.load %arg6[%c2_56, %c0_57, %c0_58] : memref<4x64x128xbf16, #tpu.memory_space<vmem>>, vector<1x64x128xbf16>
    %136 = vector.shape_cast %135 : vector<1x64x128xbf16> to vector<64x128xbf16>
    %137 = vector.shape_cast %134 : vector<64x128xbf16> to vector<1x64x128xbf16>
    tpu.vector_store %arg6[%c2_56, %c0_57, %c0_58], %137 {strides = array<i32>} : memref<4x64x128xbf16, #tpu.memory_space<vmem>>, vector<1x64x128xbf16>,
    %c3 = arith.constant 3 : index
    %c0_59 = arith.constant 0 : index
    %c0_60 = arith.constant 0 : index
    %138 = vector.load %arg1[%c3, %c0_59, %c0_60] : memref<4x64x128xf32, #tpu.memory_space<vmem>>, vector<1x64x128xf32>
    %139 = vector.shape_cast %138 : vector<1x64x128xf32> to vector<64x128xf32>
    %140 = arith.subf %139, %106 : vector<64x128xf32>
    %cst_61 = arith.constant 0.666666686 : f32
    %141 = vector.broadcast %cst_61 : f32 to vector<64x128xf32>
    %142 = arith.mulf %140, %141 : vector<64x128xf32>
    %143 = arith.addf %106, %142 : vector<64x128xf32>
    %cst_62 = arith.constant 1.000000e+00 : f32
    %144 = vector.broadcast %cst_62 : f32 to vector<64x128xf32>
    %145 = arith.cmpf oge, %143, %144 : vector<64x128xf32>
    %146 = arith.extui %145 : vector<64x128xi1> to vector<64x128xi32>
    %147 = arith.sitofp %146 : vector<64x128xi32> to vector<64x128xf32>
    %148 = arith.truncf %147 : vector<64x128xf32> to vector<64x128xbf16>
    %cst_63 = arith.constant dense<0.000000e+00> : vector<192x128xf32>
    %149 = tpu.matmul %0, %148, %cst_63 {dimension_numbers = #tpu.dot_dimension_numbers<[1], [0], [0], [1], [0, 0, 1, 1], [], []>} : vector<192x64xbf16>, vector<64x128xbf16>, vector<192x128xf32> -> vector<192x128xf32>
    %150 = arith.addf %149, %3 : vector<192x128xf32>
    %151 = arith.subf %150, %116 : vector<192x128xf32>
    %cst_64 = arith.constant 0.666666686 : f32
    %152 = vector.broadcast %cst_64 : f32 to vector<192x128xf32>
    %153 = arith.mulf %151, %152 : vector<192x128xf32>
    %154 = arith.addf %116, %153 : vector<192x128xf32>
    %cst_65 = arith.constant 1.000000e+00 : f32
    %155 = vector.broadcast %cst_65 : f32 to vector<192x128xf32>
    %156 = arith.cmpf oge, %154, %155 : vector<192x128xf32>
    %157 = vector.extract_strided_slice %156 {offsets = [0, 0], sizes = [64, 128], strides = [1, 1]} : vector<192x128xi1> to vector<64x128xi1>
    %158 = arith.extui %157 : vector<64x128xi1> to vector<64x128xi32>
    %159 = arith.sitofp %158 : vector<64x128xi32> to vector<64x128xf32>
    %160 = arith.truncf %159 : vector<64x128xf32> to vector<64x128xbf16>
    %c3_66 = arith.constant 3 : index
    %c0_67 = arith.constant 0 : index
    %c0_68 = arith.constant 0 : index
    %161 = vector.load %arg4[%c3_66, %c0_67, %c0_68] : memref<4x64x128xbf16, #tpu.memory_space<vmem>>, vector<1x64x128xbf16>
    %162 = vector.shape_cast %161 : vector<1x64x128xbf16> to vector<64x128xbf16>
    %163 = vector.shape_cast %160 : vector<64x128xbf16> to vector<1x64x128xbf16>
    tpu.vector_store %arg4[%c3_66, %c0_67, %c0_68], %163 {strides = array<i32>} : memref<4x64x128xbf16, #tpu.memory_space<vmem>>, vector<1x64x128xbf16>,
    %164 = vector.extract_strided_slice %156 {offsets = [64, 0], sizes = [64, 128], strides = [1, 1]} : vector<192x128xi1> to vector<64x128xi1>
    %165 = arith.extui %164 : vector<64x128xi1> to vector<64x128xi32>
    %166 = arith.sitofp %165 : vector<64x128xi32> to vector<64x128xf32>
    %167 = arith.truncf %166 : vector<64x128xf32> to vector<64x128xbf16>
    %c3_69 = arith.constant 3 : index
    %c0_70 = arith.constant 0 : index
    %c0_71 = arith.constant 0 : index
    %168 = vector.load %arg5[%c3_69, %c0_70, %c0_71] : memref<4x64x128xbf16, #tpu.memory_space<vmem>>, vector<1x64x128xbf16>
    %169 = vector.shape_cast %168 : vector<1x64x128xbf16> to vector<64x128xbf16>
    %170 = vector.shape_cast %167 : vector<64x128xbf16> to vector<1x64x128xbf16>
    tpu.vector_store %arg5[%c3_69, %c0_70, %c0_71], %170 {strides = array<i32>} : memref<4x64x128xbf16, #tpu.memory_space<vmem>>, vector<1x64x128xbf16>,
    %171 = vector.extract_strided_slice %156 {offsets = [128, 0], sizes = [64, 128], strides = [1, 1]} : vector<192x128xi1> to vector<64x128xi1>
    %172 = arith.extui %171 : vector<64x128xi1> to vector<64x128xi32>
    %173 = arith.sitofp %172 : vector<64x128xi32> to vector<64x128xf32>
    %174 = arith.truncf %173 : vector<64x128xf32> to vector<64x128xbf16>
    %c3_72 = arith.constant 3 : index
    %c0_73 = arith.constant 0 : index
    %c0_74 = arith.constant 0 : index
    %175 = vector.load %arg6[%c3_72, %c0_73, %c0_74] : memref<4x64x128xbf16, #tpu.memory_space<vmem>>, vector<1x64x128xbf16>
    %176 = vector.shape_cast %175 : vector<1x64x128xbf16> to vector<64x128xbf16>
    %177 = vector.shape_cast %174 : vector<64x128xbf16> to vector<1x64x128xbf16>
    tpu.vector_store %arg6[%c3_72, %c0_73, %c0_74], %177 {strides = array<i32>} : memref<4x64x128xbf16, #tpu.memory_space<vmem>>, vector<1x64x128xbf16>,
    return
  }
  func.func @transform_0(%arg0: i32) -> (i32, i32, i32) {
    %c0_i32 = arith.constant 0 : i32
    %c0_i32_0 = arith.constant 0 : i32
    %c0_i32_1 = arith.constant 0 : i32
    return %c0_i32, %c0_i32_0, %arg0 : i32, i32, i32
  }
  func.func @transform_1(%arg0: i32) -> (i32, i32) {
    %c0_i32 = arith.constant 0 : i32
    %c0_i32_0 = arith.constant 0 : i32
    %c0_i32_1 = arith.constant 0 : i32
    return %c0_i32, %c0_i32_0 : i32, i32
  }
  func.func @transform_2(%arg0: i32) -> (i32, i32) {
    %c0_i32 = arith.constant 0 : i32
    %c0_i32_0 = arith.constant 0 : i32
    %c0_i32_1 = arith.constant 0 : i32
    return %c0_i32, %c0_i32_0 : i32, i32
  }
  func.func @transform_3(%arg0: i32) -> (i32, i32, i32) {
    %c0_i32 = arith.constant 0 : i32
    %c0_i32_0 = arith.constant 0 : i32
    %c0_i32_1 = arith.constant 0 : i32
    return %c0_i32, %c0_i32_0, %arg0 : i32, i32, i32
  }
  func.func @transform_4(%arg0: i32) -> (i32, i32, i32) {
    %c0_i32 = arith.constant 0 : i32
    %c0_i32_0 = arith.constant 0 : i32
    %c0_i32_1 = arith.constant 0 : i32
    return %c0_i32, %c0_i32_0, %arg0 : i32, i32, i32
  }
  func.func @transform_5(%arg0: i32) -> (i32, i32, i32) {
    %c0_i32 = arith.constant 0 : i32
    %c0_i32_0 = arith.constant 0 : i32
    %c0_i32_1 = arith.constant 0 : i32
    return %c0_i32, %c0_i32_0, %arg0 : i32, i32, i32
  }
}

module attributes {stable_mosaic.version = 11 : i64} {
  func.func @_attn_kernel(%arg0: i32, %arg1: memref<8x64x16xbf16, #tpu.memory_space<vmem>>, %arg2: memref<8x16x64xbf16, #tpu.memory_space<vmem>>, %arg3: memref<8x16x64xbf16, #tpu.memory_space<vmem>>, %arg4: memref<8x16x64xbf16, #tpu.memory_space<vmem>>) attributes {dimension_semantics = [#tpu.dimension_semantics<parallel>], iteration_bounds = array<i64: 4>, scalar_prefetch = 0 : i64, scratch_operands = 0 : i64, tpu.core_type = #tpu.core_type<tc>, window_params = [{transform_indices = @transform_0, window_bounds = array<i64: 8, 64, 16>}, {transform_indices = @transform_1, window_bounds = array<i64: 8, 16, 64>}, {transform_indices = @transform_2, window_bounds = array<i64: 8, 16, 64>}, {transform_indices = @transform_3, window_bounds = array<i64: 8, 16, 64>}]} {
    %c0 = arith.constant 0 : index
    %c0_0 = arith.constant 0 : index
    %c0_1 = arith.constant 0 : index
    %0 = vector.load %arg1[%c0, %c0_0, %c0_1] : memref<8x64x16xbf16, #tpu.memory_space<vmem>>, vector<8x64x16xbf16>
    %c0_2 = arith.constant 0 : index
    %c0_3 = arith.constant 0 : index
    %c0_4 = arith.constant 0 : index
    %1 = vector.load %arg2[%c0_2, %c0_3, %c0_4] : memref<8x16x64xbf16, #tpu.memory_space<vmem>>, vector<8x16x64xbf16>
    %c0_5 = arith.constant 0 : index
    %c0_6 = arith.constant 0 : index
    %c0_7 = arith.constant 0 : index
    %2 = vector.load %arg3[%c0_5, %c0_6, %c0_7] : memref<8x16x64xbf16, #tpu.memory_space<vmem>>, vector<8x16x64xbf16>
    %cst = arith.constant dense<0.000000e+00> : vector<8x64x64xf32>
    %3 = tpu.matmul %0, %1, %cst {dimension_numbers = #tpu.dot_dimension_numbers<[2], [1], [1], [2], [0, 0, 0, 1, 1, 2], [0], [0]>} : vector<8x64x16xbf16>, vector<8x16x64xbf16>, vector<8x64x64xf32> -> vector<8x64x64xf32>
    %4 = arith.truncf %3 : vector<8x64x64xf32> to vector<8x64x64xbf16>
    %cst_8 = arith.constant dense<0.000000e+00> : vector<8x16x64xf32>
    %5 = tpu.matmul %2, %4, %cst_8 {dimension_numbers = #tpu.dot_dimension_numbers<[2], [2], [1], [1], [0, 0, 0, 1, 1, 1], [0], [0]>} : vector<8x16x64xbf16>, vector<8x64x64xbf16>, vector<8x16x64xf32> -> vector<8x16x64xf32>
    %6 = arith.truncf %5 : vector<8x16x64xf32> to vector<8x16x64xbf16>
    %c0_9 = arith.constant 0 : index
    %c0_10 = arith.constant 0 : index
    %c0_11 = arith.constant 0 : index
    %7 = vector.load %arg4[%c0_9, %c0_10, %c0_11] : memref<8x16x64xbf16, #tpu.memory_space<vmem>>, vector<8x16x64xbf16>
    tpu.vector_store %arg4[%c0_9, %c0_10, %c0_11], %6 {strides = array<i32>} : memref<8x16x64xbf16, #tpu.memory_space<vmem>>, vector<8x16x64xbf16>,
    return
  }
  func.func @transform_0(%arg0: i32) -> (i32, i32, i32) {
    %c0_i32 = arith.constant 0 : i32
    %c0_i32_0 = arith.constant 0 : i32
    %c0_i32_1 = arith.constant 0 : i32
    return %arg0, %c0_i32, %c0_i32_0 : i32, i32, i32
  }
  func.func @transform_1(%arg0: i32) -> (i32, i32, i32) {
    %c0_i32 = arith.constant 0 : i32
    %c0_i32_0 = arith.constant 0 : i32
    %c0_i32_1 = arith.constant 0 : i32
    return %arg0, %c0_i32, %c0_i32_0 : i32, i32, i32
  }
  func.func @transform_2(%arg0: i32) -> (i32, i32, i32) {
    %c0_i32 = arith.constant 0 : i32
    %c0_i32_0 = arith.constant 0 : i32
    %c0_i32_1 = arith.constant 0 : i32
    return %arg0, %c0_i32, %c0_i32_0 : i32, i32, i32
  }
  func.func @transform_3(%arg0: i32) -> (i32, i32, i32) {
    %c0_i32 = arith.constant 0 : i32
    %c0_i32_0 = arith.constant 0 : i32
    %c0_i32_1 = arith.constant 0 : i32
    return %arg0, %c0_i32, %c0_i32_0 : i32, i32, i32
  }
}

module attributes {stable_mosaic.version = 11 : i64} {
  func.func @_fused_lif_conv_kernel(%arg0: i32, %arg1: memref<4x64x128xbf16, #tpu.memory_space<vmem>>, %arg2: memref<64x64xbf16, #tpu.memory_space<vmem>>, %arg3: memref<64x1xf32, #tpu.memory_space<vmem>>, %arg4: memref<4x64x128xf32, #tpu.memory_space<vmem>>, %arg5: memref<4x64x128xf32, #tpu.memory_space<vmem>>) attributes {dimension_semantics = [#tpu.dimension_semantics<parallel>], iteration_bounds = array<i64: 1>, scalar_prefetch = 0 : i64, scratch_operands = 0 : i64, tpu.core_type = #tpu.core_type<tc>, window_params = [{transform_indices = @transform_0, window_bounds = array<i64: 4, 64, 128>}, {pipeline_mode = #tpu.pipeline_mode<synchronous>, transform_indices = @transform_1, window_bounds = array<i64: 64, 64>}, {pipeline_mode = #tpu.pipeline_mode<synchronous>, transform_indices = @transform_2, window_bounds = array<i64: 64, 1>}, {transform_indices = @transform_3, window_bounds = array<i64: 4, 64, 128>}, {transform_indices = @transform_4, window_bounds = array<i64: 4, 64, 128>}]} {
    %c0 = arith.constant 0 : index
    %c0_0 = arith.constant 0 : index
    %0 = vector.load %arg2[%c0, %c0_0] : memref<64x64xbf16, #tpu.memory_space<vmem>>, vector<64x64xbf16>
    %c0_1 = arith.constant 0 : index
    %c0_2 = arith.constant 0 : index
    %1 = vector.load %arg3[%c0_1, %c0_2] : memref<64x1xf32, #tpu.memory_space<vmem>>, vector<64x1xf32>
    %2 = vector.shape_cast %1 : vector<64x1xf32> to vector<64x1xf32>
    %3 = vector.broadcast %2 : vector<64x1xf32> to vector<64x128xf32>
    %cst = arith.constant 0.000000e+00 : f32
    %4 = vector.broadcast %cst : f32 to vector<64x128xf32>
    %c0_3 = arith.constant 0 : index
    %c0_4 = arith.constant 0 : index
    %c0_5 = arith.constant 0 : index
    %5 = vector.load %arg1[%c0_3, %c0_4, %c0_5] : memref<4x64x128xbf16, #tpu.memory_space<vmem>>, vector<1x64x128xbf16>
    %6 = vector.shape_cast %5 : vector<1x64x128xbf16> to vector<64x128xbf16>
    %7 = arith.extf %6 : vector<64x128xbf16> to vector<64x128xf32>
    %8 = arith.subf %7, %4 : vector<64x128xf32>
    %cst_6 = arith.constant 0.666666686 : f32
    %9 = vector.broadcast %cst_6 : f32 to vector<64x128xf32>
    %10 = arith.mulf %8, %9 : vector<64x128xf32>
    %11 = arith.addf %4, %10 : vector<64x128xf32>
    %cst_7 = arith.constant 4.000000e+00 : f32
    %12 = vector.broadcast %cst_7 : f32 to vector<64x128xf32>
    %13 = arith.cmpf oge, %11, %12 : vector<64x128xf32>
    %14 = arith.extui %13 : vector<64x128xi1> to vector<64x128xi32>
    %15 = arith.sitofp %14 : vector<64x128xi32> to vector<64x128xf32>
    %16 = arith.truncf %15 : vector<64x128xf32> to vector<64x128xbf16>
    %cst_8 = arith.constant 0.000000e+00 : f32
    %17 = vector.broadcast %cst_8 : f32 to vector<64x128xf32>
    %18 = arith.select %13, %17, %11 : vector<64x128xi1>, vector<64x128xf32>
    %cst_9 = arith.constant dense<0.000000e+00> : vector<64x128xf32>
    %19 = tpu.matmul %0, %16, %cst_9 {dimension_numbers = #tpu.dot_dimension_numbers<[1], [0], [0], [1], [0, 0, 1, 1], [], []>} : vector<64x64xbf16>, vector<64x128xbf16>, vector<64x128xf32> -> vector<64x128xf32>
    %20 = arith.addf %19, %3 : vector<64x128xf32>
    %c0_10 = arith.constant 0 : index
    %c0_11 = arith.constant 0 : index
    %c0_12 = arith.constant 0 : index
    %21 = vector.load %arg4[%c0_10, %c0_11, %c0_12] : memref<4x64x128xf32, #tpu.memory_space<vmem>>, vector<1x64x128xf32>
    %22 = vector.shape_cast %21 : vector<1x64x128xf32> to vector<64x128xf32>
    %23 = arith.addf %20, %22 : vector<64x128xf32>
    %c0_13 = arith.constant 0 : index
    %c0_14 = arith.constant 0 : index
    %c0_15 = arith.constant 0 : index
    %24 = vector.load %arg5[%c0_13, %c0_14, %c0_15] : memref<4x64x128xf32, #tpu.memory_space<vmem>>, vector<1x64x128xf32>
    %25 = vector.shape_cast %24 : vector<1x64x128xf32> to vector<64x128xf32>
    %26 = vector.shape_cast %23 : vector<64x128xf32> to vector<1x64x128xf32>
    tpu.vector_store %arg5[%c0_13, %c0_14, %c0_15], %26 {strides = array<i32>} : memref<4x64x128xf32, #tpu.memory_space<vmem>>, vector<1x64x128xf32>,
    %c1 = arith.constant 1 : index
    %c0_16 = arith.constant 0 : index
    %c0_17 = arith.constant 0 : index
    %27 = vector.load %arg1[%c1, %c0_16, %c0_17] : memref<4x64x128xbf16, #tpu.memory_space<vmem>>, vector<1x64x128xbf16>
    %28 = vector.shape_cast %27 : vector<1x64x128xbf16> to vector<64x128xbf16>
    %29 = arith.extf %28 : vector<64x128xbf16> to vector<64x128xf32>
    %30 = arith.subf %29, %18 : vector<64x128xf32>
    %cst_18 = arith.constant 0.666666686 : f32
    %31 = vector.broadcast %cst_18 : f32 to vector<64x128xf32>
    %32 = arith.mulf %30, %31 : vector<64x128xf32>
    %33 = arith.addf %18, %32 : vector<64x128xf32>
    %cst_19 = arith.constant 4.000000e+00 : f32
    %34 = vector.broadcast %cst_19 : f32 to vector<64x128xf32>
    %35 = arith.cmpf oge, %33, %34 : vector<64x128xf32>
    %36 = arith.extui %35 : vector<64x128xi1> to vector<64x128xi32>
    %37 = arith.sitofp %36 : vector<64x128xi32> to vector<64x128xf32>
    %38 = arith.truncf %37 : vector<64x128xf32> to vector<64x128xbf16>
    %cst_20 = arith.constant 0.000000e+00 : f32
    %39 = vector.broadcast %cst_20 : f32 to vector<64x128xf32>
    %40 = arith.select %35, %39, %33 : vector<64x128xi1>, vector<64x128xf32>
    %cst_21 = arith.constant dense<0.000000e+00> : vector<64x128xf32>
    %41 = tpu.matmul %0, %38, %cst_21 {dimension_numbers = #tpu.dot_dimension_numbers<[1], [0], [0], [1], [0, 0, 1, 1], [], []>} : vector<64x64xbf16>, vector<64x128xbf16>, vector<64x128xf32> -> vector<64x128xf32>
    %42 = arith.addf %41, %3 : vector<64x128xf32>
    %c1_22 = arith.constant 1 : index
    %c0_23 = arith.constant 0 : index
    %c0_24 = arith.constant 0 : index
    %43 = vector.load %arg4[%c1_22, %c0_23, %c0_24] : memref<4x64x128xf32, #tpu.memory_space<vmem>>, vector<1x64x128xf32>
    %44 = vector.shape_cast %43 : vector<1x64x128xf32> to vector<64x128xf32>
    %45 = arith.addf %42, %44 : vector<64x128xf32>
    %c1_25 = arith.constant 1 : index
    %c0_26 = arith.constant 0 : index
    %c0_27 = arith.constant 0 : index
    %46 = vector.load %arg5[%c1_25, %c0_26, %c0_27] : memref<4x64x128xf32, #tpu.memory_space<vmem>>, vector<1x64x128xf32>
    %47 = vector.shape_cast %46 : vector<1x64x128xf32> to vector<64x128xf32>
    %48 = vector.shape_cast %45 : vector<64x128xf32> to vector<1x64x128xf32>
    tpu.vector_store %arg5[%c1_25, %c0_26, %c0_27], %48 {strides = array<i32>} : memref<4x64x128xf32, #tpu.memory_space<vmem>>, vector<1x64x128xf32>,
    %c2 = arith.constant 2 : index
    %c0_28 = arith.constant 0 : index
    %c0_29 = arith.constant 0 : index
    %49 = vector.load %arg1[%c2, %c0_28, %c0_29] : memref<4x64x128xbf16, #tpu.memory_space<vmem>>, vector<1x64x128xbf16>
    %50 = vector.shape_cast %49 : vector<1x64x128xbf16> to vector<64x128xbf16>
    %51 = arith.extf %50 : vector<64x128xbf16> to vector<64x128xf32>
    %52 = arith.subf %51, %40 : vector<64x128xf32>
    %cst_30 = arith.constant 0.666666686 : f32
    %53 = vector.broadcast %cst_30 : f32 to vector<64x128xf32>
    %54 = arith.mulf %52, %53 : vector<64x128xf32>
    %55 = arith.addf %40, %54 : vector<64x128xf32>
    %cst_31 = arith.constant 4.000000e+00 : f32
    %56 = vector.broadcast %cst_31 : f32 to vector<64x128xf32>
    %57 = arith.cmpf oge, %55, %56 : vector<64x128xf32>
    %58 = arith.extui %57 : vector<64x128xi1> to vector<64x128xi32>
    %59 = arith.sitofp %58 : vector<64x128xi32> to vector<64x128xf32>
    %60 = arith.truncf %59 : vector<64x128xf32> to vector<64x128xbf16>
    %cst_32 = arith.constant 0.000000e+00 : f32
    %61 = vector.broadcast %cst_32 : f32 to vector<64x128xf32>
    %62 = arith.select %57, %61, %55 : vector<64x128xi1>, vector<64x128xf32>
    %cst_33 = arith.constant dense<0.000000e+00> : vector<64x128xf32>
    %63 = tpu.matmul %0, %60, %cst_33 {dimension_numbers = #tpu.dot_dimension_numbers<[1], [0], [0], [1], [0, 0, 1, 1], [], []>} : vector<64x64xbf16>, vector<64x128xbf16>, vector<64x128xf32> -> vector<64x128xf32>
    %64 = arith.addf %63, %3 : vector<64x128xf32>
    %c2_34 = arith.constant 2 : index
    %c0_35 = arith.constant 0 : index
    %c0_36 = arith.constant 0 : index
    %65 = vector.load %arg4[%c2_34, %c0_35, %c0_36] : memref<4x64x128xf32, #tpu.memory_space<vmem>>, vector<1x64x128xf32>
    %66 = vector.shape_cast %65 : vector<1x64x128xf32> to vector<64x128xf32>
    %67 = arith.addf %64, %66 : vector<64x128xf32>
    %c2_37 = arith.constant 2 : index
    %c0_38 = arith.constant 0 : index
    %c0_39 = arith.constant 0 : index
    %68 = vector.load %arg5[%c2_37, %c0_38, %c0_39] : memref<4x64x128xf32, #tpu.memory_space<vmem>>, vector<1x64x128xf32>
    %69 = vector.shape_cast %68 : vector<1x64x128xf32> to vector<64x128xf32>
    %70 = vector.shape_cast %67 : vector<64x128xf32> to vector<1x64x128xf32>
    tpu.vector_store %arg5[%c2_37, %c0_38, %c0_39], %70 {strides = array<i32>} : memref<4x64x128xf32, #tpu.memory_space<vmem>>, vector<1x64x128xf32>,
    %c3 = arith.constant 3 : index
    %c0_40 = arith.constant 0 : index
    %c0_41 = arith.constant 0 : index
    %71 = vector.load %arg1[%c3, %c0_40, %c0_41] : memref<4x64x128xbf16, #tpu.memory_space<vmem>>, vector<1x64x128xbf16>
    %72 = vector.shape_cast %71 : vector<1x64x128xbf16> to vector<64x128xbf16>
    %73 = arith.extf %72 : vector<64x128xbf16> to vector<64x128xf32>
    %74 = arith.subf %73, %62 : vector<64x128xf32>
    %cst_42 = arith.constant 0.666666686 : f32
    %75 = vector.broadcast %cst_42 : f32 to vector<64x128xf32>
    %76 = arith.mulf %74, %75 : vector<64x128xf32>
    %77 = arith.addf %62, %76 : vector<64x128xf32>
    %cst_43 = arith.constant 4.000000e+00 : f32
    %78 = vector.broadcast %cst_43 : f32 to vector<64x128xf32>
    %79 = arith.cmpf oge, %77, %78 : vector<64x128xf32>
    %80 = arith.extui %79 : vector<64x128xi1> to vector<64x128xi32>
    %81 = arith.sitofp %80 : vector<64x128xi32> to vector<64x128xf32>
    %82 = arith.truncf %81 : vector<64x128xf32> to vector<64x128xbf16>
    %cst_44 = arith.constant dense<0.000000e+00> : vector<64x128xf32>
    %83 = tpu.matmul %0, %82, %cst_44 {dimension_numbers = #tpu.dot_dimension_numbers<[1], [0], [0], [1], [0, 0, 1, 1], [], []>} : vector<64x64xbf16>, vector<64x128xbf16>, vector<64x128xf32> -> vector<64x128xf32>
    %84 = arith.addf %83, %3 : vector<64x128xf32>
    %c3_45 = arith.constant 3 : index
    %c0_46 = arith.constant 0 : index
    %c0_47 = arith.constant 0 : index
    %85 = vector.load %arg4[%c3_45, %c0_46, %c0_47] : memref<4x64x128xf32, #tpu.memory_space<vmem>>, vector<1x64x128xf32>
    %86 = vector.shape_cast %85 : vector<1x64x128xf32> to vector<64x128xf32>
    %87 = arith.addf %84, %86 : vector<64x128xf32>
    %c3_48 = arith.constant 3 : index
    %c0_49 = arith.constant 0 : index
    %c0_50 = arith.constant 0 : index
    %88 = vector.load %arg5[%c3_48, %c0_49, %c0_50] : memref<4x64x128xf32, #tpu.memory_space<vmem>>, vector<1x64x128xf32>
    %89 = vector.shape_cast %88 : vector<1x64x128xf32> to vector<64x128xf32>
    %90 = vector.shape_cast %87 : vector<64x128xf32> to vector<1x64x128xf32>
    tpu.vector_store %arg5[%c3_48, %c0_49, %c0_50], %90 {strides = array<i32>} : memref<4x64x128xf32, #tpu.memory_space<vmem>>, vector<1x64x128xf32>,
    return
  }
  func.func @transform_0(%arg0: i32) -> (i32, i32, i32) {
    %c0_i32 = arith.constant 0 : i32
    %c0_i32_0 = arith.constant 0 : i32
    %c0_i32_1 = arith.constant 0 : i32
    return %c0_i32, %c0_i32_0, %arg0 : i32, i32, i32
  }
  func.func @transform_1(%arg0: i32) -> (i32, i32) {
    %c0_i32 = arith.constant 0 : i32
    %c0_i32_0 = arith.constant 0 : i32
    %c0_i32_1 = arith.constant 0 : i32
    return %c0_i32, %c0_i32_0 : i32, i32
  }
  func.func @transform_2(%arg0: i32) -> (i32, i32) {
    %c0_i32 = arith.constant 0 : i32
    %c0_i32_0 = arith.constant 0 : i32
    %c0_i32_1 = arith.constant 0 : i32
    return %c0_i32, %c0_i32_0 : i32, i32
  }
  func.func @transform_3(%arg0: i32) -> (i32, i32, i32) {
    %c0_i32 = arith.constant 0 : i32
    %c0_i32_0 = arith.constant 0 : i32
    %c0_i32_1 = arith.constant 0 : i32
    return %c0_i32, %c0_i32_0, %arg0 : i32, i32, i32
  }
  func.func @transform_4(%arg0: i32) -> (i32, i32, i32) {
    %c0_i32 = arith.constant 0 : i32
    %c0_i32_0 = arith.constant 0 : i32
    %c0_i32_1 = arith.constant 0 : i32
    return %c0_i32, %c0_i32_0, %arg0 : i32, i32, i32
  }
}

module attributes {stable_mosaic.version = 11 : i64} {
  func.func @_fused_lif_conv_kernel(%arg0: i32, %arg1: memref<4x64x128xf32, #tpu.memory_space<vmem>>, %arg2: memref<256x64xbf16, #tpu.memory_space<vmem>>, %arg3: memref<256x1xf32, #tpu.memory_space<vmem>>, %arg4: memref<4x256x128xbf16, #tpu.memory_space<vmem>>) attributes {dimension_semantics = [#tpu.dimension_semantics<parallel>], iteration_bounds = array<i64: 1>, scalar_prefetch = 0 : i64, scratch_operands = 0 : i64, tpu.core_type = #tpu.core_type<tc>, window_params = [{transform_indices = @transform_0, window_bounds = array<i64: 4, 64, 128>}, {pipeline_mode = #tpu.pipeline_mode<synchronous>, transform_indices = @transform_1, window_bounds = array<i64: 256, 64>}, {pipeline_mode = #tpu.pipeline_mode<synchronous>, transform_indices = @transform_2, window_bounds = array<i64: 256, 1>}, {transform_indices = @transform_3, window_bounds = array<i64: 4, 256, 128>}]} {
    %c0 = arith.constant 0 : index
    %c0_0 = arith.constant 0 : index
    %0 = vector.load %arg2[%c0, %c0_0] : memref<256x64xbf16, #tpu.memory_space<vmem>>, vector<256x64xbf16>
    %c0_1 = arith.constant 0 : index
    %c0_2 = arith.constant 0 : index
    %1 = vector.load %arg3[%c0_1, %c0_2] : memref<256x1xf32, #tpu.memory_space<vmem>>, vector<256x1xf32>
    %2 = vector.shape_cast %1 : vector<256x1xf32> to vector<256x1xf32>
    %3 = vector.broadcast %2 : vector<256x1xf32> to vector<256x128xf32>
    %cst = arith.constant 0.000000e+00 : f32
    %4 = vector.broadcast %cst : f32 to vector<64x128xf32>
    %cst_3 = arith.constant 0.000000e+00 : f32
    %5 = vector.broadcast %cst_3 : f32 to vector<256x128xf32>
    %c0_4 = arith.constant 0 : index
    %c0_5 = arith.constant 0 : index
    %c0_6 = arith.constant 0 : index
    %6 = vector.load %arg1[%c0_4, %c0_5, %c0_6] : memref<4x64x128xf32, #tpu.memory_space<vmem>>, vector<1x64x128xf32>
    %7 = vector.shape_cast %6 : vector<1x64x128xf32> to vector<64x128xf32>
    %8 = arith.subf %7, %4 : vector<64x128xf32>
    %cst_7 = arith.constant 0.666666686 : f32
    %9 = vector.broadcast %cst_7 : f32 to vector<64x128xf32>
    %10 = arith.mulf %8, %9 : vector<64x128xf32>
    %11 = arith.addf %4, %10 : vector<64x128xf32>
    %cst_8 = arith.constant 1.000000e+00 : f32
    %12 = vector.broadcast %cst_8 : f32 to vector<64x128xf32>
    %13 = arith.cmpf oge, %11, %12 : vector<64x128xf32>
    %14 = arith.extui %13 : vector<64x128xi1> to vector<64x128xi32>
    %15 = arith.sitofp %14 : vector<64x128xi32> to vector<64x128xf32>
    %16 = arith.truncf %15 : vector<64x128xf32> to vector<64x128xbf16>
    %cst_9 = arith.constant 0.000000e+00 : f32
    %17 = vector.broadcast %cst_9 : f32 to vector<64x128xf32>
    %18 = arith.select %13, %17, %11 : vector<64x128xi1>, vector<64x128xf32>
    %cst_10 = arith.constant dense<0.000000e+00> : vector<256x128xf32>
    %19 = tpu.matmul %0, %16, %cst_10 {dimension_numbers = #tpu.dot_dimension_numbers<[1], [0], [0], [1], [0, 0, 1, 1], [], []>} : vector<256x64xbf16>, vector<64x128xbf16>, vector<256x128xf32> -> vector<256x128xf32>
    %20 = arith.addf %19, %3 : vector<256x128xf32>
    %21 = arith.subf %20, %5 : vector<256x128xf32>
    %cst_11 = arith.constant 0.666666686 : f32
    %22 = vector.broadcast %cst_11 : f32 to vector<256x128xf32>
    %23 = arith.mulf %21, %22 : vector<256x128xf32>
    %24 = arith.addf %5, %23 : vector<256x128xf32>
    %cst_12 = arith.constant 1.000000e+00 : f32
    %25 = vector.broadcast %cst_12 : f32 to vector<256x128xf32>
    %26 = arith.cmpf oge, %24, %25 : vector<256x128xf32>
    %cst_13 = arith.constant 0.000000e+00 : f32
    %27 = vector.broadcast %cst_13 : f32 to vector<256x128xf32>
    %28 = arith.select %26, %27, %24 : vector<256x128xi1>, vector<256x128xf32>
    %29 = arith.extui %26 : vector<256x128xi1> to vector<256x128xi32>
    %30 = arith.sitofp %29 : vector<256x128xi32> to vector<256x128xf32>
    %31 = arith.truncf %30 : vector<256x128xf32> to vector<256x128xbf16>
    %c0_14 = arith.constant 0 : index
    %c0_15 = arith.constant 0 : index
    %c0_16 = arith.constant 0 : index
    %32 = vector.load %arg4[%c0_14, %c0_15, %c0_16] : memref<4x256x128xbf16, #tpu.memory_space<vmem>>, vector<1x256x128xbf16>
    %33 = vector.shape_cast %32 : vector<1x256x128xbf16> to vector<256x128xbf16>
    %34 = vector.shape_cast %31 : vector<256x128xbf16> to vector<1x256x128xbf16>
    tpu.vector_store %arg4[%c0_14, %c0_15, %c0_16], %34 {strides = array<i32>} : memref<4x256x128xbf16, #tpu.memory_space<vmem>>, vector<1x256x128xbf16>,
    %c1 = arith.constant 1 : index
    %c0_17 = arith.constant 0 : index
    %c0_18 = arith.constant 0 : index
    %35 = vector.load %arg1[%c1, %c0_17, %c0_18] : memref<4x64x128xf32, #tpu.memory_space<vmem>>, vector<1x64x128xf32>
    %36 = vector.shape_cast %35 : vector<1x64x128xf32> to vector<64x128xf32>
    %37 = arith.subf %36, %18 : vector<64x128xf32>
    %cst_19 = arith.constant 0.666666686 : f32
    %38 = vector.broadcast %cst_19 : f32 to vector<64x128xf32>
    %39 = arith.mulf %37, %38 : vector<64x128xf32>
    %40 = arith.addf %18, %39 : vector<64x128xf32>
    %cst_20 = arith.constant 1.000000e+00 : f32
    %41 = vector.broadcast %cst_20 : f32 to vector<64x128xf32>
    %42 = arith.cmpf oge, %40, %41 : vector<64x128xf32>
    %43 = arith.extui %42 : vector<64x128xi1> to vector<64x128xi32>
    %44 = arith.sitofp %43 : vector<64x128xi32> to vector<64x128xf32>
    %45 = arith.truncf %44 : vector<64x128xf32> to vector<64x128xbf16>
    %cst_21 = arith.constant 0.000000e+00 : f32
    %46 = vector.broadcast %cst_21 : f32 to vector<64x128xf32>
    %47 = arith.select %42, %46, %40 : vector<64x128xi1>, vector<64x128xf32>
    %cst_22 = arith.constant dense<0.000000e+00> : vector<256x128xf32>
    %48 = tpu.matmul %0, %45, %cst_22 {dimension_numbers = #tpu.dot_dimension_numbers<[1], [0], [0], [1], [0, 0, 1, 1], [], []>} : vector<256x64xbf16>, vector<64x128xbf16>, vector<256x128xf32> -> vector<256x128xf32>
    %49 = arith.addf %48, %3 : vector<256x128xf32>
    %50 = arith.subf %49, %28 : vector<256x128xf32>
    %cst_23 = arith.constant 0.666666686 : f32
    %51 = vector.broadcast %cst_23 : f32 to vector<256x128xf32>
    %52 = arith.mulf %50, %51 : vector<256x128xf32>
    %53 = arith.addf %28, %52 : vector<256x128xf32>
    %cst_24 = arith.constant 1.000000e+00 : f32
    %54 = vector.broadcast %cst_24 : f32 to vector<256x128xf32>
    %55 = arith.cmpf oge, %53, %54 : vector<256x128xf32>
    %cst_25 = arith.constant 0.000000e+00 : f32
    %56 = vector.broadcast %cst_25 : f32 to vector<256x128xf32>
    %57 = arith.select %55, %56, %53 : vector<256x128xi1>, vector<256x128xf32>
    %58 = arith.extui %55 : vector<256x128xi1> to vector<256x128xi32>
    %59 = arith.sitofp %58 : vector<256x128xi32> to vector<256x128xf32>
    %60 = arith.truncf %59 : vector<256x128xf32> to vector<256x128xbf16>
    %c1_26 = arith.constant 1 : index
    %c0_27 = arith.constant 0 : index
    %c0_28 = arith.constant 0 : index
    %61 = vector.load %arg4[%c1_26, %c0_27, %c0_28] : memref<4x256x128xbf16, #tpu.memory_space<vmem>>, vector<1x256x128xbf16>
    %62 = vector.shape_cast %61 : vector<1x256x128xbf16> to vector<256x128xbf16>
    %63 = vector.shape_cast %60 : vector<256x128xbf16> to vector<1x256x128xbf16>
    tpu.vector_store %arg4[%c1_26, %c0_27, %c0_28], %63 {strides = array<i32>} : memref<4x256x128xbf16, #tpu.memory_space<vmem>>, vector<1x256x128xbf16>,
    %c2 = arith.constant 2 : index
    %c0_29 = arith.constant 0 : index
    %c0_30 = arith.constant 0 : index
    %64 = vector.load %arg1[%c2, %c0_29, %c0_30] : memref<4x64x128xf32, #tpu.memory_space<vmem>>, vector<1x64x128xf32>
    %65 = vector.shape_cast %64 : vector<1x64x128xf32> to vector<64x128xf32>
    %66 = arith.subf %65, %47 : vector<64x128xf32>
    %cst_31 = arith.constant 0.666666686 : f32
    %67 = vector.broadcast %cst_31 : f32 to vector<64x128xf32>
    %68 = arith.mulf %66, %67 : vector<64x128xf32>
    %69 = arith.addf %47, %68 : vector<64x128xf32>
    %cst_32 = arith.constant 1.000000e+00 : f32
    %70 = vector.broadcast %cst_32 : f32 to vector<64x128xf32>
    %71 = arith.cmpf oge, %69, %70 : vector<64x128xf32>
    %72 = arith.extui %71 : vector<64x128xi1> to vector<64x128xi32>
    %73 = arith.sitofp %72 : vector<64x128xi32> to vector<64x128xf32>
    %74 = arith.truncf %73 : vector<64x128xf32> to vector<64x128xbf16>
    %cst_33 = arith.constant 0.000000e+00 : f32
    %75 = vector.broadcast %cst_33 : f32 to vector<64x128xf32>
    %76 = arith.select %71, %75, %69 : vector<64x128xi1>, vector<64x128xf32>
    %cst_34 = arith.constant dense<0.000000e+00> : vector<256x128xf32>
    %77 = tpu.matmul %0, %74, %cst_34 {dimension_numbers = #tpu.dot_dimension_numbers<[1], [0], [0], [1], [0, 0, 1, 1], [], []>} : vector<256x64xbf16>, vector<64x128xbf16>, vector<256x128xf32> -> vector<256x128xf32>
    %78 = arith.addf %77, %3 : vector<256x128xf32>
    %79 = arith.subf %78, %57 : vector<256x128xf32>
    %cst_35 = arith.constant 0.666666686 : f32
    %80 = vector.broadcast %cst_35 : f32 to vector<256x128xf32>
    %81 = arith.mulf %79, %80 : vector<256x128xf32>
    %82 = arith.addf %57, %81 : vector<256x128xf32>
    %cst_36 = arith.constant 1.000000e+00 : f32
    %83 = vector.broadcast %cst_36 : f32 to vector<256x128xf32>
    %84 = arith.cmpf oge, %82, %83 : vector<256x128xf32>
    %cst_37 = arith.constant 0.000000e+00 : f32
    %85 = vector.broadcast %cst_37 : f32 to vector<256x128xf32>
    %86 = arith.select %84, %85, %82 : vector<256x128xi1>, vector<256x128xf32>
    %87 = arith.extui %84 : vector<256x128xi1> to vector<256x128xi32>
    %88 = arith.sitofp %87 : vector<256x128xi32> to vector<256x128xf32>
    %89 = arith.truncf %88 : vector<256x128xf32> to vector<256x128xbf16>
    %c2_38 = arith.constant 2 : index
    %c0_39 = arith.constant 0 : index
    %c0_40 = arith.constant 0 : index
    %90 = vector.load %arg4[%c2_38, %c0_39, %c0_40] : memref<4x256x128xbf16, #tpu.memory_space<vmem>>, vector<1x256x128xbf16>
    %91 = vector.shape_cast %90 : vector<1x256x128xbf16> to vector<256x128xbf16>
    %92 = vector.shape_cast %89 : vector<256x128xbf16> to vector<1x256x128xbf16>
    tpu.vector_store %arg4[%c2_38, %c0_39, %c0_40], %92 {strides = array<i32>} : memref<4x256x128xbf16, #tpu.memory_space<vmem>>, vector<1x256x128xbf16>,
    %c3 = arith.constant 3 : index
    %c0_41 = arith.constant 0 : index
    %c0_42 = arith.constant 0 : index
    %93 = vector.load %arg1[%c3, %c0_41, %c0_42] : memref<4x64x128xf32, #tpu.memory_space<vmem>>, vector<1x64x128xf32>
    %94 = vector.shape_cast %93 : vector<1x64x128xf32> to vector<64x128xf32>
    %95 = arith.subf %94, %76 : vector<64x128xf32>
    %cst_43 = arith.constant 0.666666686 : f32
    %96 = vector.broadcast %cst_43 : f32 to vector<64x128xf32>
    %97 = arith.mulf %95, %96 : vector<64x128xf32>
    %98 = arith.addf %76, %97 : vector<64x128xf32>
    %cst_44 = arith.constant 1.000000e+00 : f32
    %99 = vector.broadcast %cst_44 : f32 to vector<64x128xf32>
    %100 = arith.cmpf oge, %98, %99 : vector<64x128xf32>
    %101 = arith.extui %100 : vector<64x128xi1> to vector<64x128xi32>
    %102 = arith.sitofp %101 : vector<64x128xi32> to vector<64x128xf32>
    %103 = arith.truncf %102 : vector<64x128xf32> to vector<64x128xbf16>
    %cst_45 = arith.constant dense<0.000000e+00> : vector<256x128xf32>
    %104 = tpu.matmul %0, %103, %cst_45 {dimension_numbers = #tpu.dot_dimension_numbers<[1], [0], [0], [1], [0, 0, 1, 1], [], []>} : vector<256x64xbf16>, vector<64x128xbf16>, vector<256x128xf32> -> vector<256x128xf32>
    %105 = arith.addf %104, %3 : vector<256x128xf32>
    %106 = arith.subf %105, %86 : vector<256x128xf32>
    %cst_46 = arith.constant 0.666666686 : f32
    %107 = vector.broadcast %cst_46 : f32 to vector<256x128xf32>
    %108 = arith.mulf %106, %107 : vector<256x128xf32>
    %109 = arith.addf %86, %108 : vector<256x128xf32>
    %cst_47 = arith.constant 1.000000e+00 : f32
    %110 = vector.broadcast %cst_47 : f32 to vector<256x128xf32>
    %111 = arith.cmpf oge, %109, %110 : vector<256x128xf32>
    %112 = arith.extui %111 : vector<256x128xi1> to vector<256x128xi32>
    %113 = arith.sitofp %112 : vector<256x128xi32> to vector<256x128xf32>
    %114 = arith.truncf %113 : vector<256x128xf32> to vector<256x128xbf16>
    %c3_48 = arith.constant 3 : index
    %c0_49 = arith.constant 0 : index
    %c0_50 = arith.constant 0 : index
    %115 = vector.load %arg4[%c3_48, %c0_49, %c0_50] : memref<4x256x128xbf16, #tpu.memory_space<vmem>>, vector<1x256x128xbf16>
    %116 = vector.shape_cast %115 : vector<1x256x128xbf16> to vector<256x128xbf16>
    %117 = vector.shape_cast %114 : vector<256x128xbf16> to vector<1x256x128xbf16>
    tpu.vector_store %arg4[%c3_48, %c0_49, %c0_50], %117 {strides = array<i32>} : memref<4x256x128xbf16, #tpu.memory_space<vmem>>, vector<1x256x128xbf16>,
    return
  }
  func.func @transform_0(%arg0: i32) -> (i32, i32, i32) {
    %c0_i32 = arith.constant 0 : i32
    %c0_i32_0 = arith.constant 0 : i32
    %c0_i32_1 = arith.constant 0 : i32
    return %c0_i32, %c0_i32_0, %arg0 : i32, i32, i32
  }
  func.func @transform_1(%arg0: i32) -> (i32, i32) {
    %c0_i32 = arith.constant 0 : i32
    %c0_i32_0 = arith.constant 0 : i32
    %c0_i32_1 = arith.constant 0 : i32
    return %c0_i32, %c0_i32_0 : i32, i32
  }
  func.func @transform_2(%arg0: i32) -> (i32, i32) {
    %c0_i32 = arith.constant 0 : i32
    %c0_i32_0 = arith.constant 0 : i32
    %c0_i32_1 = arith.constant 0 : i32
    return %c0_i32, %c0_i32_0 : i32, i32
  }
  func.func @transform_3(%arg0: i32) -> (i32, i32, i32) {
    %c0_i32 = arith.constant 0 : i32
    %c0_i32_0 = arith.constant 0 : i32
    %c0_i32_1 = arith.constant 0 : i32
    return %c0_i32, %c0_i32_0, %arg0 : i32, i32, i32
  }
}

module attributes {stable_mosaic.version = 11 : i64} {
  func.func @_fused_lif_conv_kernel(%arg0: i32, %arg1: memref<4x256x128xbf16, #tpu.memory_space<vmem>>, %arg2: memref<64x256xbf16, #tpu.memory_space<vmem>>, %arg3: memref<64x1xf32, #tpu.memory_space<vmem>>, %arg4: memref<4x64x128xf32, #tpu.memory_space<vmem>>, %arg5: memref<4x64x128xf32, #tpu.memory_space<vmem>>) attributes {dimension_semantics = [#tpu.dimension_semantics<parallel>], iteration_bounds = array<i64: 1>, scalar_prefetch = 0 : i64, scratch_operands = 0 : i64, tpu.core_type = #tpu.core_type<tc>, window_params = [{transform_indices = @transform_0, window_bounds = array<i64: 4, 256, 128>}, {pipeline_mode = #tpu.pipeline_mode<synchronous>, transform_indices = @transform_1, window_bounds = array<i64: 64, 256>}, {pipeline_mode = #tpu.pipeline_mode<synchronous>, transform_indices = @transform_2, window_bounds = array<i64: 64, 1>}, {transform_indices = @transform_3, window_bounds = array<i64: 4, 64, 128>}, {transform_indices = @transform_4, window_bounds = array<i64: 4, 64, 128>}]} {
    %c0 = arith.constant 0 : index
    %c0_0 = arith.constant 0 : index
    %0 = vector.load %arg2[%c0, %c0_0] : memref<64x256xbf16, #tpu.memory_space<vmem>>, vector<64x256xbf16>
    %c0_1 = arith.constant 0 : index
    %c0_2 = arith.constant 0 : index
    %1 = vector.load %arg3[%c0_1, %c0_2] : memref<64x1xf32, #tpu.memory_space<vmem>>, vector<64x1xf32>
    %2 = vector.shape_cast %1 : vector<64x1xf32> to vector<64x1xf32>
    %3 = vector.broadcast %2 : vector<64x1xf32> to vector<64x128xf32>
    %c0_3 = arith.constant 0 : index
    %c0_4 = arith.constant 0 : index
    %c0_5 = arith.constant 0 : index
    %4 = vector.load %arg1[%c0_3, %c0_4, %c0_5] : memref<4x256x128xbf16, #tpu.memory_space<vmem>>, vector<1x256x128xbf16>
    %5 = vector.shape_cast %4 : vector<1x256x128xbf16> to vector<256x128xbf16>
    %cst = arith.constant dense<0.000000e+00> : vector<64x128xf32>
    %6 = tpu.matmul %0, %5, %cst {dimension_numbers = #tpu.dot_dimension_numbers<[1], [0], [0], [1], [0, 0, 1, 1], [], []>} : vector<64x256xbf16>, vector<256x128xbf16>, vector<64x128xf32> -> vector<64x128xf32>
    %7 = arith.addf %6, %3 : vector<64x128xf32>
    %c0_6 = arith.constant 0 : index
    %c0_7 = arith.constant 0 : index
    %c0_8 = arith.constant 0 : index
    %8 = vector.load %arg4[%c0_6, %c0_7, %c0_8] : memref<4x64x128xf32, #tpu.memory_space<vmem>>, vector<1x64x128xf32>
    %9 = vector.shape_cast %8 : vector<1x64x128xf32> to vector<64x128xf32>
    %10 = arith.addf %7, %9 : vector<64x128xf32>
    %c0_9 = arith.constant 0 : index
    %c0_10 = arith.constant 0 : index
    %c0_11 = arith.constant 0 : index
    %11 = vector.load %arg5[%c0_9, %c0_10, %c0_11] : memref<4x64x128xf32, #tpu.memory_space<vmem>>, vector<1x64x128xf32>
    %12 = vector.shape_cast %11 : vector<1x64x128xf32> to vector<64x128xf32>
    %13 = vector.shape_cast %10 : vector<64x128xf32> to vector<1x64x128xf32>
    tpu.vector_store %arg5[%c0_9, %c0_10, %c0_11], %13 {strides = array<i32>} : memref<4x64x128xf32, #tpu.memory_space<vmem>>, vector<1x64x128xf32>,
    %c1 = arith.constant 1 : index
    %c0_12 = arith.constant 0 : index
    %c0_13 = arith.constant 0 : index
    %14 = vector.load %arg1[%c1, %c0_12, %c0_13] : memref<4x256x128xbf16, #tpu.memory_space<vmem>>, vector<1x256x128xbf16>
    %15 = vector.shape_cast %14 : vector<1x256x128xbf16> to vector<256x128xbf16>
    %cst_14 = arith.constant dense<0.000000e+00> : vector<64x128xf32>
    %16 = tpu.matmul %0, %15, %cst_14 {dimension_numbers = #tpu.dot_dimension_numbers<[1], [0], [0], [1], [0, 0, 1, 1], [], []>} : vector<64x256xbf16>, vector<256x128xbf16>, vector<64x128xf32> -> vector<64x128xf32>
    %17 = arith.addf %16, %3 : vector<64x128xf32>
    %c1_15 = arith.constant 1 : index
    %c0_16 = arith.constant 0 : index
    %c0_17 = arith.constant 0 : index
    %18 = vector.load %arg4[%c1_15, %c0_16, %c0_17] : memref<4x64x128xf32, #tpu.memory_space<vmem>>, vector<1x64x128xf32>
    %19 = vector.shape_cast %18 : vector<1x64x128xf32> to vector<64x128xf32>
    %20 = arith.addf %17, %19 : vector<64x128xf32>
    %c1_18 = arith.constant 1 : index
    %c0_19 = arith.constant 0 : index
    %c0_20 = arith.constant 0 : index
    %21 = vector.load %arg5[%c1_18, %c0_19, %c0_20] : memref<4x64x128xf32, #tpu.memory_space<vmem>>, vector<1x64x128xf32>
    %22 = vector.shape_cast %21 : vector<1x64x128xf32> to vector<64x128xf32>
    %23 = vector.shape_cast %20 : vector<64x128xf32> to vector<1x64x128xf32>
    tpu.vector_store %arg5[%c1_18, %c0_19, %c0_20], %23 {strides = array<i32>} : memref<4x64x128xf32, #tpu.memory_space<vmem>>, vector<1x64x128xf32>,
    %c2 = arith.constant 2 : index
    %c0_21 = arith.constant 0 : index
    %c0_22 = arith.constant 0 : index
    %24 = vector.load %arg1[%c2, %c0_21, %c0_22] : memref<4x256x128xbf16, #tpu.memory_space<vmem>>, vector<1x256x128xbf16>
    %25 = vector.shape_cast %24 : vector<1x256x128xbf16> to vector<256x128xbf16>
    %cst_23 = arith.constant dense<0.000000e+00> : vector<64x128xf32>
    %26 = tpu.matmul %0, %25, %cst_23 {dimension_numbers = #tpu.dot_dimension_numbers<[1], [0], [0], [1], [0, 0, 1, 1], [], []>} : vector<64x256xbf16>, vector<256x128xbf16>, vector<64x128xf32> -> vector<64x128xf32>
    %27 = arith.addf %26, %3 : vector<64x128xf32>
    %c2_24 = arith.constant 2 : index
    %c0_25 = arith.constant 0 : index
    %c0_26 = arith.constant 0 : index
    %28 = vector.load %arg4[%c2_24, %c0_25, %c0_26] : memref<4x64x128xf32, #tpu.memory_space<vmem>>, vector<1x64x128xf32>
    %29 = vector.shape_cast %28 : vector<1x64x128xf32> to vector<64x128xf32>
    %30 = arith.addf %27, %29 : vector<64x128xf32>
    %c2_27 = arith.constant 2 : index
    %c0_28 = arith.constant 0 : index
    %c0_29 = arith.constant 0 : index
    %31 = vector.load %arg5[%c2_27, %c0_28, %c0_29] : memref<4x64x128xf32, #tpu.memory_space<vmem>>, vector<1x64x128xf32>
    %32 = vector.shape_cast %31 : vector<1x64x128xf32> to vector<64x128xf32>
    %33 = vector.shape_cast %30 : vector<64x128xf32> to vector<1x64x128xf32>
    tpu.vector_store %arg5[%c2_27, %c0_28, %c0_29], %33 {strides = array<i32>} : memref<4x64x128xf32, #tpu.memory_space<vmem>>, vector<1x64x128xf32>,
    %c3 = arith.constant 3 : index
    %c0_30 = arith.constant 0 : index
    %c0_31 = arith.constant 0 : index
    %34 = vector.load %arg1[%c3, %c0_30, %c0_31] : memref<4x256x128xbf16, #tpu.memory_space<vmem>>, vector<1x256x128xbf16>
    %35 = vector.shape_cast %34 : vector<1x256x128xbf16> to vector<256x128xbf16>
    %cst_32 = arith.constant dense<0.000000e+00> : vector<64x128xf32>
    %36 = tpu.matmul %0, %35, %cst_32 {dimension_numbers = #tpu.dot_dimension_numbers<[1], [0], [0], [1], [0, 0, 1, 1], [], []>} : vector<64x256xbf16>, vector<256x128xbf16>, vector<64x128xf32> -> vector<64x128xf32>
    %37 = arith.addf %36, %3 : vector<64x128xf32>
    %c3_33 = arith.constant 3 : index
    %c0_34 = arith.constant 0 : index
    %c0_35 = arith.constant 0 : index
    %38 = vector.load %arg4[%c3_33, %c0_34, %c0_35] : memref<4x64x128xf32, #tpu.memory_space<vmem>>, vector<1x64x128xf32>
    %39 = vector.shape_cast %38 : vector<1x64x128xf32> to vector<64x128xf32>
    %40 = arith.addf %37, %39 : vector<64x128xf32>
    %c3_36 = arith.constant 3 : index
    %c0_37 = arith.constant 0 : index
    %c0_38 = arith.constant 0 : index
    %41 = vector.load %arg5[%c3_36, %c0_37, %c0_38] : memref<4x64x128xf32, #tpu.memory_space<vmem>>, vector<1x64x128xf32>
    %42 = vector.shape_cast %41 : vector<1x64x128xf32> to vector<64x128xf32>
    %43 = vector.shape_cast %40 : vector<64x128xf32> to vector<1x64x128xf32>
    tpu.vector_store %arg5[%c3_36, %c0_37, %c0_38], %43 {strides = array<i32>} : memref<4x64x128xf32, #tpu.memory_space<vmem>>, vector<1x64x128xf32>,
    return
  }
  func.func @transform_0(%arg0: i32) -> (i32, i32, i32) {
    %c0_i32 = arith.constant 0 : i32
    %c0_i32_0 = arith.constant 0 : i32
    %c0_i32_1 = arith.constant 0 : i32
    return %c0_i32, %c0_i32_0, %arg0 : i32, i32, i32
  }
  func.func @transform_1(%arg0: i32) -> (i32, i32) {
    %c0_i32 = arith.constant 0 : i32
    %c0_i32_0 = arith.constant 0 : i32
    %c0_i32_1 = arith.constant 0 : i32
    return %c0_i32, %c0_i32_0 : i32, i32
  }
  func.func @transform_2(%arg0: i32) -> (i32, i32) {
    %c0_i32 = arith.constant 0 : i32
    %c0_i32_0 = arith.constant 0 : i32
    %c0_i32_1 = arith.constant 0 : i32
    return %c0_i32, %c0_i32_0 : i32, i32
  }
  func.func @transform_3(%arg0: i32) -> (i32, i32, i32) {
    %c0_i32 = arith.constant 0 : i32
    %c0_i32_0 = arith.constant 0 : i32
    %c0_i32_1 = arith.constant 0 : i32
    return %c0_i32, %c0_i32_0, %arg0 : i32, i32, i32
  }
  func.func @transform_4(%arg0: i32) -> (i32, i32, i32) {
    %c0_i32 = arith.constant 0 : i32
    %c0_i32_0 = arith.constant 0 : i32
    %c0_i32_1 = arith.constant 0 : i32
    return %c0_i32, %c0_i32_0, %arg0 : i32, i32, i32
  }
}

</mosaic_0001>

<llo_original>
// kernel: _lambda_.5
$region0: #{_lambda_.5}
  #allocation0 [shape = 'u32[]', space=smem, size = 0x4, offset = 0x4, fixed_abs, tag = 'smem constant byte address 0x4 - core index']
  #allocation1 [shape = 'u32[72,128]{1,0:T(1,128)}', space=vmem, size = 0x9000, scoped, tag = 'internal scratch']
  %s0 = inlined_call_operand.vmem [shape: f32[4,64,128], index: 0, kind: input, shape index: {}]
  %s1 = inlined_call_operand.vmem [shape: bf16[192,64], index: 1, kind: input, shape index: {}]
  %s2 = inlined_call_operand.vmem [shape: f32[192,1], index: 2, kind: input, shape index: {}]
  %s3 = inlined_call_operand.vmem [shape: bf16[4,64,128], index: 3, kind: output, shape index: {0}]
  %s4 = inlined_call_operand.vmem [shape: bf16[4,64,128], index: 4, kind: output, shape index: {1}]
  %s5 = inlined_call_operand.vmem [shape: bf16[4,64,128], index: 5, kind: output, shape index: {2}]
  %6 = xla_tuple %s3, %s4, %s5
  %s7 = sld [smem:[#allocation0]]
  $region38: #{_lambda_.5} parent=0
    _
  %s9 = ssub.s32 1, %s7
  %s10 = scalar_select 0, %s9, %s7
  // Predicated region
  $region2: #{_lambda_.5} parent=0 // pred_check
    _
  $region3: #{_lambda_.5} parent=0 // pred_check_branch
    %12 = sbr.rel (0) target = $region5
  $region4: #{_lambda_.5} parent=0 // pred_region
    _
  $region5: #{_lambda_.5} parent=0 // pred_fallthru
    _
  // Predicated region
  $region6: #{_lambda_.5} parent=0 // pred_check
    _
  $region7: #{_lambda_.5} parent=0 // pred_check_branch
    %14 = sbr.rel (0) target = $region9
  $region8: #{_lambda_.5} parent=0 // pred_region
    _
  $region9: #{_lambda_.5} parent=0 // pred_fallthru
    _
  // Predicated region
  $region10: #{_lambda_.5} parent=0 // pred_check
    _
  $region11: #{_lambda_.5} parent=0 // pred_check_branch
    %16 = sbr.rel (0) target = $region13
  $region12: #{_lambda_.5} parent=0 // pred_region
    _
  $region13: #{_lambda_.5} parent=0 // pred_fallthru
    _
  %v18 = vld [vmem:[%s1] sm:$0xf]
  %v19 = vld [vmem:[%s1 + $0x4] sm:$0xf]
  %v20 = vld [vmem:[%s1 + $0x8] sm:$0xf]
  %v21 = vld [vmem:[%s1 + $0xc] sm:$0xf]
  %v22 = vld [vmem:[%s1 + $0x10] sm:$0xf]
  %v23 = vld [vmem:[%s1 + $0x14] sm:$0xf]
  %v24 = vld [vmem:[%s1 + $0x18] sm:$0xf]
  %v25 = vld [vmem:[%s1 + $0x1c] sm:$0xf]
  %v26 = vld [vmem:[%s1 + $0x20] sm:$0xf]
  %v27 = vld [vmem:[%s1 + $0x24] sm:$0xf]
  %v28 = vld [vmem:[%s1 + $0x28] sm:$0xf]
  %v29 = vld [vmem:[%s1 + $0x2c] sm:$0xf]
  %v30 = vld [vmem:[%s1 + $0x30] sm:$0xf]
  %v31 = vld [vmem:[%s1 + $0x34] sm:$0xf]
  %v32 = vld [vmem:[%s1 + $0x38] sm:$0xf]
  %v33 = vld [vmem:[%s1 + $0x3c] sm:$0xf]
  %v34 = vld [vmem:[%s1 + $0x40] sm:$0xf]
  %v35 = vld [vmem:[%s1 + $0x44] sm:$0xf]
  %v36 = vld [vmem:[%s1 + $0x48] sm:$0xf]
  %v37 = vld [vmem:[%s1 + $0x4c] sm:$0xf]
  %v38 = vld [vmem:[%s1 + $0x50] sm:$0xf]
  %v39 = vld [vmem:[%s1 + $0x54] sm:$0xf]
  %v40 = vld [vmem:[%s1 + $0x58] sm:$0xf]
  %v41 = vld [vmem:[%s1 + $0x5c] sm:$0xf]
  %v42 = vld [vmem:[%s2] sm:$0xff]
  %v43 = vld [vmem:[%s2 + $0x8] sm:$0xff]
  %v44 = vld [vmem:[%s2 + $0x10] sm:$0xff]
  %v45 = vld [vmem:[%s2 + $0x18] sm:$0xff]
  %v46 = vld [vmem:[%s2 + $0x20] sm:$0xff]
  %v47 = vld [vmem:[%s2 + $0x28] sm:$0xff]
  %v48 = vld [vmem:[%s2 + $0x30] sm:$0xff]
  %v49 = vld [vmem:[%s2 + $0x38] sm:$0xff]
  %v50 = vld [vmem:[%s2 + $0x40] sm:$0xff]
  %v51 = vld [vmem:[%s2 + $0x48] sm:$0xff]
  %v52 = vld [vmem:[%s2 + $0x50] sm:$0xff]
  %v53 = vld [vmem:[%s2 + $0x58] sm:$0xff]
  %v54 = vld [vmem:[%s2 + $0x60] sm:$0xff]
  %v55 = vld [vmem:[%s2 + $0x68] sm:$0xff]
  %v56 = vld [vmem:[%s2 + $0x70] sm:$0xff]
  %v57 = vld [vmem:[%s2 + $0x78] sm:$0xff]
  %v58 = vld [vmem:[%s2 + $0x80] sm:$0xff]
  %v59 = vld [vmem:[%s2 + $0x88] sm:$0xff]
  %v60 = vld [vmem:[%s2 + $0x90] sm:$0xff]
  %v61 = vld [vmem:[%s2 + $0x98] sm:$0xff]
  %v62 = vld [vmem:[%s2 + $0xa0] sm:$0xff]
  %v63 = vld [vmem:[%s2 + $0xa8] sm:$0xff]
  %v64 = vld [vmem:[%s2 + $0xb0] sm:$0xff]
  %v65 = vld [vmem:[%s2 + $0xb8] sm:$0xff]
  %67 = vset.pattern.permute.xlu0 0
  %68 = vperm.xlu0 %67, %v42
  %v69 = vpop.permute.xlu0 %68
  %72 = vset.pattern.permute.xlu0 0
  %73 = vperm.xlu0 %72, %v43
  %v74 = vpop.permute.xlu0 %73
  %77 = vset.pattern.permute.xlu0 0
  %78 = vperm.xlu0 %77, %v44
  %v79 = vpop.permute.xlu0 %78
  %82 = vset.pattern.permute.xlu0 0
  %83 = vperm.xlu0 %82, %v45
  %v84 = vpop.permute.xlu0 %83
  %87 = vset.pattern.permute.xlu0 0
  %88 = vperm.xlu0 %87, %v46
  %v89 = vpop.permute.xlu0 %88
  %92 = vset.pattern.permute.xlu0 0
  %93 = vperm.xlu0 %92, %v47
  %v94 = vpop.permute.xlu0 %93
  %97 = vset.pattern.permute.xlu0 0
  %98 = vperm.xlu0 %97, %v48
  %v99 = vpop.permute.xlu0 %98
  %102 = vset.pattern.permute.xlu0 0
  %103 = vperm.xlu0 %102, %v49
  %v104 = vpop.permute.xlu0 %103
  %107 = vset.pattern.permute.xlu0 0
  %108 = vperm.xlu0 %107, %v50
  %v109 = vpop.permute.xlu0 %108
  %112 = vset.pattern.permute.xlu0 0
  %113 = vperm.xlu0 %112, %v51
  %v114 = vpop.permute.xlu0 %113
  %117 = vset.pattern.permute.xlu0 0
  %118 = vperm.xlu0 %117, %v52
  %v119 = vpop.permute.xlu0 %118
  %122 = vset.pattern.permute.xlu0 0
  %123 = vperm.xlu0 %122, %v53
  %v124 = vpop.permute.xlu0 %123
  %127 = vset.pattern.permute.xlu0 0
  %128 = vperm.xlu0 %127, %v54
  %v129 = vpop.permute.xlu0 %128
  %132 = vset.pattern.permute.xlu0 0
  %133 = vperm.xlu0 %132, %v55
  %v134 = vpop.permute.xlu0 %133
  %137 = vset.pattern.permute.xlu0 0
  %138 = vperm.xlu0 %137, %v56
  %v139 = vpop.permute.xlu0 %138
  %142 = vset.pattern.permute.xlu0 0
  %143 = vperm.xlu0 %142, %v57
  %v144 = vpop.permute.xlu0 %143
  %147 = vset.pattern.permute.xlu0 0
  %148 = vperm.xlu0 %147, %v58
  %v149 = vpop.permute.xlu0 %148
  %152 = vset.pattern.permute.xlu0 0
  %153 = vperm.xlu0 %152, %v59
  %v154 = vpop.permute.xlu0 %153
  %157 = vset.pattern.permute.xlu0 0
  %158 = vperm.xlu0 %157, %v60
  %v159 = vpop.permute.xlu0 %158
  %162 = vset.pattern.permute.xlu0 0
  %163 = vperm.xlu0 %162, %v61
  %v164 = vpop.permute.xlu0 %163
  %167 = vset.pattern.permute.xlu0 0
  %168 = vperm.xlu0 %167, %v62
  %v169 = vpop.permute.xlu0 %168
  %172 = vset.pattern.permute.xlu0 0
  %173 = vperm.xlu0 %172, %v63
  %v174 = vpop.permute.xlu0 %173
  %177 = vset.pattern.permute.xlu0 0
  %178 = vperm.xlu0 %177, %v64
  %v179 = vpop.permute.xlu0 %178
  %182 = vset.pattern.permute.xlu0 0
  %183 = vperm.xlu0 %182, %v65
  %v184 = vpop.permute.xlu0 %183
  %v186 = vld [vmem:[%s0] sm:$0xff]
  %v187 = vld [vmem:[%s0 + $0x8] sm:$0xff]
  %v188 = vld [vmem:[%s0 + $0x10] sm:$0xff]
  %v189 = vld [vmem:[%s0 + $0x18] sm:$0xff]
  %v190 = vld [vmem:[%s0 + $0x20] sm:$0xff]
  %v191 = vld [vmem:[%s0 + $0x28] sm:$0xff]
  %v192 = vld [vmem:[%s0 + $0x30] sm:$0xff]
  %v193 = vld [vmem:[%s0 + $0x38] sm:$0xff]
  %v194 = vmul.f32 %v186, 0.6666667
  %v195 = vmul.f32 %v187, 0.6666667
  %v196 = vmul.f32 %v188, 0.6666667
  %v197 = vmul.f32 %v189, 0.6666667
  %v198 = vmul.f32 %v190, 0.6666667
  %v199 = vmul.f32 %v191, 0.6666667
  %v200 = vmul.f32 %v192, 0.6666667
  %v201 = vmul.f32 %v193, 0.6666667
  %v202 = vadd.f32 %v194, 0.0
  %v203 = vadd.f32 %v195, 0.0
  %v204 = vadd.f32 %v196, 0.0
  %v205 = vadd.f32 %v197, 0.0
  %v206 = vadd.f32 %v198, 0.0
  %v207 = vadd.f32 %v199, 0.0
  %v208 = vadd.f32 %v200, 0.0
  %v209 = vadd.f32 %v201, 0.0
  %vm210 = vcmp.ge.f32.partialorder %v202, 1.0
  %vm211 = vcmp.ge.f32.partialorder %v203, 1.0
  %vm212 = vcmp.ge.f32.partialorder %v204, 1.0
  %vm213 = vcmp.ge.f32.partialorder %v205, 1.0
  %vm214 = vcmp.ge.f32.partialorder %v206, 1.0
  %vm215 = vcmp.ge.f32.partialorder %v207, 1.0
  %vm216 = vcmp.ge.f32.partialorder %v208, 1.0
  %vm217 = vcmp.ge.f32.partialorder %v209, 1.0
  %v218 = vsel %vm210, 1, 0
  %v219 = vsel %vm211, 1, 0
  %v220 = vsel %vm212, 1, 0
  %v221 = vsel %vm213, 1, 0
  %v222 = vsel %vm214, 1, 0
  %v223 = vsel %vm215, 1, 0
  %v224 = vsel %vm216, 1, 0
  %v225 = vsel %vm217, 1, 0
  %v226 = vcvt.s32.f32 %v218
  %v227 = vcvt.s32.f32 %v219
  %v228 = vcvt.s32.f32 %v220
  %v229 = vcvt.s32.f32 %v221
  %v230 = vcvt.s32.f32 %v222
  %v231 = vcvt.s32.f32 %v223
  %v232 = vcvt.s32.f32 %v224
  %v233 = vcvt.s32.f32 %v225
  %v234 = vpack.c.bf16 %v227, %v226
  %v235 = vpack.c.bf16 %v229, %v228
  %v236 = vpack.c.bf16 %v231, %v230
  %v237 = vpack.c.bf16 %v233, %v232
  %v238 = vsel %vm210, 0.0, %v202
  %v239 = vsel %vm211, 0.0, %v203
  %v240 = vsel %vm212, 0.0, %v204
  %v241 = vsel %vm213, 0.0, %v205
  %v242 = vsel %vm214, 0.0, %v206
  %v243 = vsel %vm215, 0.0, %v207
  %v244 = vsel %vm216, 0.0, %v208
  %v245 = vsel %vm217, 0.0, %v209
  %v270 = vunpack.c.l.b16 %v18
  %v271 = vunpack.c.l.b16 %v19
  %v272 = vunpack.c.l.b16 %v20
  %v273 = vunpack.c.l.b16 %v21
  %v274 = vunpack.c.l.b16 %v22
  %v275 = vunpack.c.l.b16 %v23
  %v276 = vunpack.c.l.b16 %v24
  %v277 = vunpack.c.l.b16 %v25
  %v278 = vunpack.c.l.b16 %v26
  %v279 = vunpack.c.l.b16 %v27
  %v280 = vunpack.c.l.b16 %v28
  %v281 = vunpack.c.l.b16 %v29
  %v282 = vunpack.c.l.b16 %v30
  %v283 = vunpack.c.l.b16 %v31
  %v284 = vunpack.c.l.b16 %v32
  %v285 = vunpack.c.l.b16 %v33
  %v286 = vunpack.c.l.b16 %v34
  %v287 = vunpack.c.l.b16 %v35
  %v288 = vunpack.c.l.b16 %v36
  %v289 = vunpack.c.l.b16 %v37
  %v290 = vunpack.c.l.b16 %v38
  %v291 = vunpack.c.l.b16 %v39
  %v292 = vunpack.c.l.b16 %v40
  %v293 = vunpack.c.l.b16 %v41
  %v294 = vpack.c.b16 %v271, %v270
  %v295 = vpack.c.b16 %v273, %v272
  %v296 = vpack.c.b16 %v275, %v274
  %v297 = vpack.c.b16 %v277, %v276
  %v298 = vpack.c.b16 %v279, %v278
  %v299 = vpack.c.b16 %v281, %v280
  %v300 = vpack.c.b16 %v283, %v282
  %v301 = vpack.c.b16 %v285, %v284
  %v302 = vpack.c.b16 %v287, %v286
  %v303 = vpack.c.b16 %v289, %v288
  %v304 = vpack.c.b16 %v291, %v290
  %v305 = vpack.c.b16 %v293, %v292
  %vm306 = vcmask 523264
  %v308 = vsel %vm306, %v294, 0
  %v311 = vsel %vm306, %v295, 0
  %v314 = vsel %vm306, %v296, 0
  %v317 = vsel %vm306, %v297, 0
  %v320 = vsel %vm306, %v298, 0
  %v323 = vsel %vm306, %v299, 0
  %v326 = vsel %vm306, %v300, 0
  %v329 = vsel %vm306, %v301, 0
  %v332 = vsel %vm306, %v302, 0
  %v335 = vsel %vm306, %v303, 0
  %v338 = vsel %vm306, %v304, 0
  %v341 = vsel %vm306, %v305, 0
  %343 = vmatpush.bf16.msra.mxu0 0
  %344 = vmatpush.bf16.msra.mxu0 0
  %345 = vmatpush.bf16.msra.mxu0 0
  %346 = vmatpush.bf16.msra.mxu0 0
  %347 = vmatpush.bf16.msra.mxu0 %v237
  %348 = vmatpush.bf16.msra.mxu0 %v236
  %349 = vmatpush.bf16.msra.mxu0 %v235
  %350 = vmatpush.bf16.msra.mxu0 %v234
  %351 = vmatmul.bf16.gmra.mxu0 %v308
  %v352 = vpop.f32.mrf.mxu0
  %v353 = vadd.f32 %v69, %v352
  %v354 = vpop.f32.mrf.mxu0
  %v355 = vadd.f32 %v74, %v354
  %356 = vmatmul.bf16.gmra.mxu0 %v311
  %v357 = vpop.f32.mrf.mxu0
  %v358 = vadd.f32 %v79, %v357
  %v359 = vpop.f32.mrf.mxu0
  %v360 = vadd.f32 %v84, %v359
  %361 = vmatmul.bf16.gmra.mxu0 %v314
  %v362 = vpop.f32.mrf.mxu0
  %v363 = vadd.f32 %v89, %v362
  %v364 = vpop.f32.mrf.mxu0
  %v365 = vadd.f32 %v94, %v364
  %366 = vmatmul.bf16.gmra.mxu0 %v317
  %v367 = vpop.f32.mrf.mxu0
  %v368 = vadd.f32 %v99, %v367
  %v369 = vpop.f32.mrf.mxu0
  %v370 = vadd.f32 %v104, %v369
  %371 = vmatmul.bf16.gmra.mxu0 %v320
  %v372 = vpop.f32.mrf.mxu0
  %v373 = vadd.f32 %v109, %v372
  %v374 = vpop.f32.mrf.mxu0
  %v375 = vadd.f32 %v114, %v374
  %376 = vmatmul.bf16.gmra.mxu0 %v323
  %v377 = vpop.f32.mrf.mxu0
  %v378 = vadd.f32 %v119, %v377
  %v379 = vpop.f32.mrf.mxu0
  %v380 = vadd.f32 %v124, %v379
  %381 = vmatmul.bf16.gmra.mxu0 %v326
  %v382 = vpop.f32.mrf.mxu0
  %v383 = vadd.f32 %v129, %v382
  %v384 = vpop.f32.mrf.mxu0
  %v385 = vadd.f32 %v134, %v384
  %386 = vmatmul.bf16.gmra.mxu0 %v329
  %v387 = vpop.f32.mrf.mxu0
  %v388 = vadd.f32 %v139, %v387
  %v389 = vpop.f32.mrf.mxu0
  %v390 = vadd.f32 %v144, %v389
  %391 = vmatmul.bf16.gmra.mxu0 %v332
  %v392 = vpop.f32.mrf.mxu0
  %v393 = vadd.f32 %v149, %v392
  %v394 = vpop.f32.mrf.mxu0
  %v395 = vadd.f32 %v154, %v394
  %396 = vmatmul.bf16.gmra.mxu0 %v335
  %v397 = vpop.f32.mrf.mxu0
  %v398 = vadd.f32 %v159, %v397
  %v399 = vpop.f32.mrf.mxu0
  %v400 = vadd.f32 %v164, %v399
  %401 = vmatmul.bf16.gmra.mxu0 %v338
  %v402 = vpop.f32.mrf.mxu0
  %v403 = vadd.f32 %v169, %v402
  %v404 = vpop.f32.mrf.mxu0
  %v405 = vadd.f32 %v174, %v404
  %406 = vmatmul.bf16.gmra.mxu0 %v341
  %v407 = vpop.f32.mrf.mxu0
  %v408 = vadd.f32 %v179, %v407
  %v409 = vpop.f32.mrf.mxu0
  %v410 = vadd.f32 %v184, %v409
  %411 = vdwg.mxu0
  %v412 = vmul.f32 %v353, 0.6666667
  %v413 = vmul.f32 %v355, 0.6666667
  %v414 = vmul.f32 %v358, 0.6666667
  %v415 = vmul.f32 %v360, 0.6666667
  %v416 = vmul.f32 %v363, 0.6666667
  %v417 = vmul.f32 %v365, 0.6666667
  %v418 = vmul.f32 %v368, 0.6666667
  %v419 = vmul.f32 %v370, 0.6666667
  %v420 = vmul.f32 %v373, 0.6666667
  %v421 = vmul.f32 %v375, 0.6666667
  %v422 = vmul.f32 %v378, 0.6666667
  %v423 = vmul.f32 %v380, 0.6666667
  %v424 = vmul.f32 %v383, 0.6666667
  %v425 = vmul.f32 %v385, 0.6666667
  %v426 = vmul.f32 %v388, 0.6666667
  %v427 = vmul.f32 %v390, 0.6666667
  %v428 = vmul.f32 %v393, 0.6666667
  %v429 = vmul.f32 %v395, 0.6666667
  %v430 = vmul.f32 %v398, 0.6666667
  %v431 = vmul.f32 %v400, 0.6666667
  %v432 = vmul.f32 %v403, 0.6666667
  %v433 = vmul.f32 %v405, 0.6666667
  %v434 = vmul.f32 %v408, 0.6666667
  %v435 = vmul.f32 %v410, 0.6666667
  %v436 = vadd.f32 %v412, 0.0
  %v437 = vadd.f32 %v413, 0.0
  %v438 = vadd.f32 %v414, 0.0
  %v439 = vadd.f32 %v415, 0.0
  %v440 = vadd.f32 %v416, 0.0
  %v441 = vadd.f32 %v417, 0.0
  %v442 = vadd.f32 %v418, 0.0
  %v443 = vadd.f32 %v419, 0.0
  %v444 = vadd.f32 %v420, 0.0
  %v445 = vadd.f32 %v421, 0.0
  %v446 = vadd.f32 %v422, 0.0
  %v447 = vadd.f32 %v423, 0.0
  %v448 = vadd.f32 %v424, 0.0
  %v449 = vadd.f32 %v425, 0.0
  %v450 = vadd.f32 %v426, 0.0
  %v451 = vadd.f32 %v427, 0.0
  %v452 = vadd.f32 %v428, 0.0
  %v453 = vadd.f32 %v429, 0.0
  %v454 = vadd.f32 %v430, 0.0
  %v455 = vadd.f32 %v431, 0.0
  %v456 = vadd.f32 %v432, 0.0
  %v457 = vadd.f32 %v433, 0.0
  %v458 = vadd.f32 %v434, 0.0
  %v459 = vadd.f32 %v435, 0.0
  %vm460 = vcmp.ge.f32.partialorder %v436, 1.0
  %vm461 = vcmp.ge.f32.partialorder %v437, 1.0
  %vm462 = vcmp.ge.f32.partialorder %v438, 1.0
  %vm463 = vcmp.ge.f32.partialorder %v439, 1.0
  %vm464 = vcmp.ge.f32.partialorder %v440, 1.0
  %vm465 = vcmp.ge.f32.partialorder %v441, 1.0
  %vm466 = vcmp.ge.f32.partialorder %v442, 1.0
  %vm467 = vcmp.ge.f32.partialorder %v443, 1.0
  %vm468 = vcmp.ge.f32.partialorder %v444, 1.0
  %vm469 = vcmp.ge.f32.partialorder %v445, 1.0
  %vm470 = vcmp.ge.f32.partialorder %v446, 1.0
  %vm471 = vcmp.ge.f32.partialorder %v447, 1.0
  %vm472 = vcmp.ge.f32.partialorder %v448, 1.0
  %vm473 = vcmp.ge.f32.partialorder %v449, 1.0
  %vm474 = vcmp.ge.f32.partialorder %v450, 1.0
  %vm475 = vcmp.ge.f32.partialorder %v451, 1.0
  %vm476 = vcmp.ge.f32.partialorder %v452, 1.0
  %vm477 = vcmp.ge.f32.partialorder %v453, 1.0
  %vm478 = vcmp.ge.f32.partialorder %v454, 1.0
  %vm479 = vcmp.ge.f32.partialorder %v455, 1.0
  %vm480 = vcmp.ge.f32.partialorder %v456, 1.0
  %vm481 = vcmp.ge.f32.partialorder %v457, 1.0
  %vm482 = vcmp.ge.f32.partialorder %v458, 1.0
  %vm483 = vcmp.ge.f32.partialorder %v459, 1.0
  %v484 = vsel %vm460, 0.0, %v436
  %v485 = vsel %vm461, 0.0, %v437
  %v486 = vsel %vm462, 0.0, %v438
  %v487 = vsel %vm463, 0.0, %v439
  %v488 = vsel %vm464, 0.0, %v440
  %v489 = vsel %vm465, 0.0, %v441
  %v490 = vsel %vm466, 0.0, %v442
  %v491 = vsel %vm467, 0.0, %v443
  %v492 = vsel %vm468, 0.0, %v444
  %v493 = vsel %vm469, 0.0, %v445
  %v494 = vsel %vm470, 0.0, %v446
  %v495 = vsel %vm471, 0.0, %v447
  %v496 = vsel %vm472, 0.0, %v448
  %v497 = vsel %vm473, 0.0, %v449
  %v498 = vsel %vm474, 0.0, %v450
  %v499 = vsel %vm475, 0.0, %v451
  %v500 = vsel %vm476, 0.0, %v452
  %v501 = vsel %vm477, 0.0, %v453
  %v502 = vsel %vm478, 0.0, %v454
  %v503 = vsel %vm479, 0.0, %v455
  %v504 = vsel %vm480, 0.0, %v456
  %v505 = vsel %vm481, 0.0, %v457
  %v506 = vsel %vm482, 0.0, %v458
  %v507 = vsel %vm483, 0.0, %v459
  %v508 = vsel %vm460, 1, 0
  %v509 = vsel %vm461, 1, 0
  %v510 = vsel %vm462, 1, 0
  %v511 = vsel %vm463, 1, 0
  %v512 = vsel %vm464, 1, 0
  %v513 = vsel %vm465, 1, 0
  %v514 = vsel %vm466, 1, 0
  %v515 = vsel %vm467, 1, 0
  %v516 = vcvt.s32.f32 %v508
  %v517 = vcvt.s32.f32 %v509
  %v518 = vcvt.s32.f32 %v510
  %v519 = vcvt.s32.f32 %v511
  %v520 = vcvt.s32.f32 %v512
  %v521 = vcvt.s32.f32 %v513
  %v522 = vcvt.s32.f32 %v514
  %v523 = vcvt.s32.f32 %v515
  %v524 = vpack.c.bf16 %v516, %v516
  %v525 = vpack.c.bf16 %v517, %v517
  %v526 = vpack.c.bf16 %v518, %v518
  %v527 = vpack.c.bf16 %v519, %v519
  %v528 = vpack.c.bf16 %v520, %v520
  %v529 = vpack.c.bf16 %v521, %v521
  %v530 = vpack.c.bf16 %v522, %v522
  %v531 = vpack.c.bf16 %v523, %v523
  %532 = vst [vmem:[%s3] sm:$0xf] %v524
  %533 = vst [vmem:[%s3 + $0x4] sm:$0xf] %v525
  %534 = vst [vmem:[%s3 + $0x8] sm:$0xf] %v526
  %535 = vst [vmem:[%s3 + $0xc] sm:$0xf] %v527
  %536 = vst [vmem:[%s3 + $0x10] sm:$0xf] %v528
  %537 = vst [vmem:[%s3 + $0x14] sm:$0xf] %v529
  %538 = vst [vmem:[%s3 + $0x18] sm:$0xf] %v530
  %539 = vst [vmem:[%s3 + $0x1c] sm:$0xf] %v531
  %v540 = vsel %vm468, 1, 0
  %v541 = vsel %vm469, 1, 0
  %v542 = vsel %vm470, 1, 0
  %v543 = vsel %vm471, 1, 0
  %v544 = vsel %vm472, 1, 0
  %v545 = vsel %vm473, 1, 0
  %v546 = vsel %vm474, 1, 0
  %v547 = vsel %vm475, 1, 0
  %v548 = vcvt.s32.f32 %v540
  %v549 = vcvt.s32.f32 %v541
  %v550 = vcvt.s32.f32 %v542
  %v551 = vcvt.s32.f32 %v543
  %v552 = vcvt.s32.f32 %v544
  %v553 = vcvt.s32.f32 %v545
  %v554 = vcvt.s32.f32 %v546
  %v555 = vcvt.s32.f32 %v547
  %v556 = vpack.c.bf16 %v548, %v548
  %v557 = vpack.c.bf16 %v549, %v549
  %v558 = vpack.c.bf16 %v550, %v550
  %v559 = vpack.c.bf16 %v551, %v551
  %v560 = vpack.c.bf16 %v552, %v552
  %v561 = vpack.c.bf16 %v553, %v553
  %v562 = vpack.c.bf16 %v554, %v554
  %v563 = vpack.c.bf16 %v555, %v555
  %564 = vst [vmem:[%s4] sm:$0xf] %v556
  %565 = vst [vmem:[%s4 + $0x4] sm:$0xf] %v557
  %566 = vst [vmem:[%s4 + $0x8] sm:$0xf] %v558
  %567 = vst [vmem:[%s4 + $0xc] sm:$0xf] %v559
  %568 = vst [vmem:[%s4 + $0x10] sm:$0xf] %v560
  %569 = vst [vmem:[%s4 + $0x14] sm:$0xf] %v561
  %570 = vst [vmem:[%s4 + $0x18] sm:$0xf] %v562
  %571 = vst [vmem:[%s4 + $0x1c] sm:$0xf] %v563
  %v572 = vsel %vm476, 1, 0
  %v573 = vsel %vm477, 1, 0
  %v574 = vsel %vm478, 1, 0
  %v575 = vsel %vm479, 1, 0
  %v576 = vsel %vm480, 1, 0
  %v577 = vsel %vm481, 1, 0
  %v578 = vsel %vm482, 1, 0
  %v579 = vsel %vm483, 1, 0
  %v580 = vcvt.s32.f32 %v572
  %v581 = vcvt.s32.f32 %v573
  %v582 = vcvt.s32.f32 %v574
  %v583 = vcvt.s32.f32 %v575
  %v584 = vcvt.s32.f32 %v576
  %v585 = vcvt.s32.f32 %v577
  %v586 = vcvt.s32.f32 %v578
  %v587 = vcvt.s32.f32 %v579
  %v588 = vpack.c.bf16 %v580, %v580
  %v589 = vpack.c.bf16 %v581, %v581
  %v590 = vpack.c.bf16 %v582, %v582
  %v591 = vpack.c.bf16 %v583, %v583
  %v592 = vpack.c.bf16 %v584, %v584
  %v593 = vpack.c.bf16 %v585, %v585
  %v594 = vpack.c.bf16 %v586, %v586
  %v595 = vpack.c.bf16 %v587, %v587
  %596 = vst [vmem:[%s5] sm:$0xf] %v588
  %597 = vst [vmem:[%s5 + $0x4] sm:$0xf] %v589
  %598 = vst [vmem:[%s5 + $0x8] sm:$0xf] %v590
  %599 = vst [vmem:[%s5 + $0xc] sm:$0xf] %v591
  %600 = vst [vmem:[%s5 + $0x10] sm:$0xf] %v592
  %601 = vst [vmem:[%s5 + $0x14] sm:$0xf] %v593
  %602 = vst [vmem:[%s5 + $0x18] sm:$0xf] %v594
  %603 = vst [vmem:[%s5 + $0x1c] sm:$0xf] %v595
  %s604 = scalar_lea.vmem %s0, 64
  %v605 = vld [vmem:[%s604] sm:$0xff]
  %v606 = vld [vmem:[%s604 + $0x8] sm:$0xff]
  %v607 = vld [vmem:[%s604 + $0x10] sm:$0xff]
  %v608 = vld [vmem:[%s604 + $0x18] sm:$0xff]
  %v609 = vld [vmem:[%s604 + $0x20] sm:$0xff]
  %v610 = vld [vmem:[%s604 + $0x28] sm:$0xff]
  %v611 = vld [vmem:[%s604 + $0x30] sm:$0xff]
  %v612 = vld [vmem:[%s604 + $0x38] sm:$0xff]
  %v613 = vsub.f32 %v605, %v238
  %v614 = vsub.f32 %v606, %v239
  %v615 = vsub.f32 %v607, %v240
  %v616 = vsub.f32 %v608, %v241
  %v617 = vsub.f32 %v609, %v242
  %v618 = vsub.f32 %v610, %v243
  %v619 = vsub.f32 %v611, %v244
  %v620 = vsub.f32 %v612, %v245
  %v621 = vmul.f32 %v613, 0.6666667
  %v622 = vmul.f32 %v614, 0.6666667
  %v623 = vmul.f32 %v615, 0.6666667
  %v624 = vmul.f32 %v616, 0.6666667
  %v625 = vmul.f32 %v617, 0.6666667
  %v626 = vmul.f32 %v618, 0.6666667
  %v627 = vmul.f32 %v619, 0.6666667
  %v628 = vmul.f32 %v620, 0.6666667
  %v629 = vadd.f32 %v238, %v621
  %v630 = vadd.f32 %v239, %v622
  %v631 = vadd.f32 %v240, %v623
  %v632 = vadd.f32 %v241, %v624
  %v633 = vadd.f32 %v242, %v625
  %v634 = vadd.f32 %v243, %v626
  %v635 = vadd.f32 %v244, %v627
  %v636 = vadd.f32 %v245, %v628
  %vm637 = vcmp.ge.f32.partialorder %v629, 1.0
  %vm638 = vcmp.ge.f32.partialorder %v630, 1.0
  %vm639 = vcmp.ge.f32.partialorder %v631, 1.0
  %vm640 = vcmp.ge.f32.partialorder %v632, 1.0
  %vm641 = vcmp.ge.f32.partialorder %v633, 1.0
  %vm642 = vcmp.ge.f32.partialorder %v634, 1.0
  %vm643 = vcmp.ge.f32.partialorder %v635, 1.0
  %vm644 = vcmp.ge.f32.partialorder %v636, 1.0
  %v645 = vsel %vm637, 1, 0
  %v646 = vsel %vm638, 1, 0
  %v647 = vsel %vm639, 1, 0
  %v648 = vsel %vm640, 1, 0
  %v649 = vsel %vm641, 1, 0
  %v650 = vsel %vm642, 1, 0
  %v651 = vsel %vm643, 1, 0
  %v652 = vsel %vm644, 1, 0
  %v653 = vcvt.s32.f32 %v645
  %v654 = vcvt.s32.f32 %v646
  %v655 = vcvt.s32.f32 %v647
  %v656 = vcvt.s32.f32 %v648
  %v657 = vcvt.s32.f32 %v649
  %v658 = vcvt.s32.f32 %v650
  %v659 = vcvt.s32.f32 %v651
  %v660 = vcvt.s32.f32 %v652
  %v661 = vpack.c.bf16 %v654, %v653
  %v662 = vpack.c.bf16 %v656, %v655
  %v663 = vpack.c.bf16 %v658, %v657
  %v664 = vpack.c.bf16 %v660, %v659
  %v665 = vsel %vm637, 0.0, %v629
  %v666 = vsel %vm638, 0.0, %v630
  %v667 = vsel %vm639, 0.0, %v631
  %v668 = vsel %vm640, 0.0, %v632
  %v669 = vsel %vm641, 0.0, %v633
  %v670 = vsel %vm642, 0.0, %v634
  %v671 = vsel %vm643, 0.0, %v635
  %v672 = vsel %vm644, 0.0, %v636
  %673 = vmatpush.bf16.msra.mxu0 0
  %674 = vmatpush.bf16.msra.mxu0 0
  %675 = vmatpush.bf16.msra.mxu0 0
  %676 = vmatpush.bf16.msra.mxu0 0
  %677 = vmatpush.bf16.msra.mxu0 %v664
  %678 = vmatpush.bf16.msra.mxu0 %v663
  %679 = vmatpush.bf16.msra.mxu0 %v662
  %680 = vmatpush.bf16.msra.mxu0 %v661
  %681 = vmatmul.bf16.gmra.mxu0 %v308
  %v682 = vpop.f32.mrf.mxu0
  %v683 = vadd.f32 %v69, %v682
  %v684 = vpop.f32.mrf.mxu0
  %v685 = vadd.f32 %v74, %v684
  %686 = vmatmul.bf16.gmra.mxu0 %v311
  %v687 = vpop.f32.mrf.mxu0
  %v688 = vadd.f32 %v79, %v687
  %v689 = vpop.f32.mrf.mxu0
  %v690 = vadd.f32 %v84, %v689
  %691 = vmatmul.bf16.gmra.mxu0 %v314
  %v692 = vpop.f32.mrf.mxu0
  %v693 = vadd.f32 %v89, %v692
  %v694 = vpop.f32.mrf.mxu0
  %v695 = vadd.f32 %v94, %v694
  %696 = vmatmul.bf16.gmra.mxu0 %v317
  %v697 = vpop.f32.mrf.mxu0
  %v698 = vadd.f32 %v99, %v697
  %v699 = vpop.f32.mrf.mxu0
  %v700 = vadd.f32 %v104, %v699
  %701 = vmatmul.bf16.gmra.mxu0 %v320
  %v702 = vpop.f32.mrf.mxu0
  %v703 = vadd.f32 %v109, %v702
  %v704 = vpop.f32.mrf.mxu0
  %v705 = vadd.f32 %v114, %v704
  %706 = vmatmul.bf16.gmra.mxu0 %v323
  %v707 = vpop.f32.mrf.mxu0
  %v708 = vadd.f32 %v119, %v707
  %v709 = vpop.f32.mrf.mxu0
  %v710 = vadd.f32 %v124, %v709
  %711 = vmatmul.bf16.gmra.mxu0 %v326
  %v712 = vpop.f32.mrf.mxu0
  %v713 = vadd.f32 %v129, %v712
  %v714 = vpop.f32.mrf.mxu0
  %v715 = vadd.f32 %v134, %v714
  %716 = vmatmul.bf16.gmra.mxu0 %v329
  %v717 = vpop.f32.mrf.mxu0
  %v718 = vadd.f32 %v139, %v717
  %v719 = vpop.f32.mrf.mxu0
  %v720 = vadd.f32 %v144, %v719
  %721 = vmatmul.bf16.gmra.mxu0 %v332
  %v722 = vpop.f32.mrf.mxu0
  %v723 = vadd.f32 %v149, %v722
  %v724 = vpop.f32.mrf.mxu0
  %v725 = vadd.f32 %v154, %v724
  %726 = vmatmul.bf16.gmra.mxu0 %v335
  %v727 = vpop.f32.mrf.mxu0
  %v728 = vadd.f32 %v159, %v727
  %v729 = vpop.f32.mrf.mxu0
  %v730 = vadd.f32 %v164, %v729
  %731 = vmatmul.bf16.gmra.mxu0 %v338
  %v732 = vpop.f32.mrf.mxu0
  %v733 = vadd.f32 %v169, %v732
  %v734 = vpop.f32.mrf.mxu0
  %v735 = vadd.f32 %v174, %v734
  %736 = vmatmul.bf16.gmra.mxu0 %v341
  %v737 = vpop.f32.mrf.mxu0
  %v738 = vadd.f32 %v179, %v737
  %v739 = vpop.f32.mrf.mxu0
  %v740 = vadd.f32 %v184, %v739
  %741 = vdwg.mxu0
  %v742 = vsub.f32 %v683, %v484
  %v743 = vsub.f32 %v685, %v485
  %v744 = vsub.f32 %v688, %v486
  %v745 = vsub.f32 %v690, %v487
  %v746 = vsub.f32 %v693, %v488
  %v747 = vsub.f32 %v695, %v489
  %v748 = vsub.f32 %v698, %v490
  %v749 = vsub.f32 %v700, %v491
  %v750 = vsub.f32 %v703, %v492
  %v751 = vsub.f32 %v705, %v493
  %v752 = vsub.f32 %v708, %v494
  %v753 = vsub.f32 %v710, %v495
  %v754 = vsub.f32 %v713, %v496
  %v755 = vsub.f32 %v715, %v497
  %v756 = vsub.f32 %v718, %v498
  %v757 = vsub.f32 %v720, %v499
  %v758 = vsub.f32 %v723, %v500
  %v759 = vsub.f32 %v725, %v501
  %v760 = vsub.f32 %v728, %v502
  %v761 = vsub.f32 %v730, %v503
  %v762 = vsub.f32 %v733, %v504
  %v763 = vsub.f32 %v735, %v505
  %v764 = vsub.f32 %v738, %v506
  %v765 = vsub.f32 %v740, %v507
  %v766 = vmul.f32 %v742, 0.6666667
  %v767 = vmul.f32 %v743, 0.6666667
  %v768 = vmul.f32 %v744, 0.6666667
  %v769 = vmul.f32 %v745, 0.6666667
  %v770 = vmul.f32 %v746, 0.6666667
  %v771 = vmul.f32 %v747, 0.6666667
  %v772 = vmul.f32 %v748, 0.6666667
  %v773 = vmul.f32 %v749, 0.6666667
  %v774 = vmul.f32 %v750, 0.6666667
  %v775 = vmul.f32 %v751, 0.6666667
  %v776 = vmul.f32 %v752, 0.6666667
  %v777 = vmul.f32 %v753, 0.6666667
  %v778 = vmul.f32 %v754, 0.6666667
  %v779 = vmul.f32 %v755, 0.6666667
  %v780 = vmul.f32 %v756, 0.6666667
  %v781 = vmul.f32 %v757, 0.6666667
  %v782 = vmul.f32 %v758, 0.6666667
  %v783 = vmul.f32 %v759, 0.6666667
  %v784 = vmul.f32 %v760, 0.6666667
  %v785 = vmul.f32 %v761, 0.6666667
  %v786 = vmul.f32 %v762, 0.6666667
  %v787 = vmul.f32 %v763, 0.6666667
  %v788 = vmul.f32 %v764, 0.6666667
  %v789 = vmul.f32 %v765, 0.6666667
  %v790 = vadd.f32 %v484, %v766
  %v791 = vadd.f32 %v485, %v767
  %v792 = vadd.f32 %v486, %v768
  %v793 = vadd.f32 %v487, %v769
  %v794 = vadd.f32 %v488, %v770
  %v795 = vadd.f32 %v489, %v771
  %v796 = vadd.f32 %v490, %v772
  %v797 = vadd.f32 %v491, %v773
  %v798 = vadd.f32 %v492, %v774
  %v799 = vadd.f32 %v493, %v775
  %v800 = vadd.f32 %v494, %v776
  %v801 = vadd.f32 %v495, %v777
  %v802 = vadd.f32 %v496, %v778
  %v803 = vadd.f32 %v497, %v779
  %v804 = vadd.f32 %v498, %v780
  %v805 = vadd.f32 %v499, %v781
  %v806 = vadd.f32 %v500, %v782
  %v807 = vadd.f32 %v501, %v783
  %v808 = vadd.f32 %v502, %v784
  %v809 = vadd.f32 %v503, %v785
  %v810 = vadd.f32 %v504, %v786
  %v811 = vadd.f32 %v505, %v787
  %v812 = vadd.f32 %v506, %v788
  %v813 = vadd.f32 %v507, %v789
  %vm814 = vcmp.ge.f32.partialorder %v790, 1.0
  %vm815 = vcmp.ge.f32.partialorder %v791, 1.0
  %vm816 = vcmp.ge.f32.partialorder %v792, 1.0
  %vm817 = vcmp.ge.f32.partialorder %v793, 1.0
  %vm818 = vcmp.ge.f32.partialorder %v794, 1.0
  %vm819 = vcmp.ge.f32.partialorder %v795, 1.0
  %vm820 = vcmp.ge.f32.partialorder %v796, 1.0
  %vm821 = vcmp.ge.f32.partialorder %v797, 1.0
  %vm822 = vcmp.ge.f32.partialorder %v798, 1.0
  %vm823 = vcmp.ge.f32.partialorder %v799, 1.0
  %vm824 = vcmp.ge.f32.partialorder %v800, 1.0
  %vm825 = vcmp.ge.f32.partialorder %v801, 1.0
  %vm826 = vcmp.ge.f32.partialorder %v802, 1.0
  %vm827 = vcmp.ge.f32.partialorder %v803, 1.0
  %vm828 = vcmp.ge.f32.partialorder %v804, 1.0
  %vm829 = vcmp.ge.f32.partialorder %v805, 1.0
  %vm830 = vcmp.ge.f32.partialorder %v806, 1.0
  %vm831 = vcmp.ge.f32.partialorder %v807, 1.0
  %vm832 = vcmp.ge.f32.partialorder %v808, 1.0
  %vm833 = vcmp.ge.f32.partialorder %v809, 1.0
  %vm834 = vcmp.ge.f32.partialorder %v810, 1.0
  %vm835 = vcmp.ge.f32.partialorder %v811, 1.0
  %vm836 = vcmp.ge.f32.partialorder %v812, 1.0
  %vm837 = vcmp.ge.f32.partialorder %v813, 1.0
  %v838 = vsel %vm814, 0.0, %v790
  %v839 = vsel %vm815, 0.0, %v791
  %v840 = vsel %vm816, 0.0, %v792
  %v841 = vsel %vm817, 0.0, %v793
  %v842 = vsel %vm818, 0.0, %v794
  %v843 = vsel %vm819, 0.0, %v795
  %v844 = vsel %vm820, 0.0, %v796
  %v845 = vsel %vm821, 0.0, %v797
  %v846 = vsel %vm822, 0.0, %v798
  %v847 = vsel %vm823, 0.0, %v799
  %v848 = vsel %vm824, 0.0, %v800
  %v849 = vsel %vm825, 0.0, %v801
  %v850 = vsel %vm826, 0.0, %v802
  %v851 = vsel %vm827, 0.0, %v803
  %v852 = vsel %vm828, 0.0, %v804
  %v853 = vsel %vm829, 0.0, %v805
  %v854 = vsel %vm830, 0.0, %v806
  %v855 = vsel %vm831, 0.0, %v807
  %v856 = vsel %vm832, 0.0, %v808
  %v857 = vsel %vm833, 0.0, %v809
  %v858 = vsel %vm834, 0.0, %v810
  %v859 = vsel %vm835, 0.0, %v811
  %v860 = vsel %vm836, 0.0, %v812
  %v861 = vsel %vm837, 0.0, %v813
  %v862 = vsel %vm814, 1, 0
  %v863 = vsel %vm815, 1, 0
  %v864 = vsel %vm816, 1, 0
  %v865 = vsel %vm817, 1, 0
  %v866 = vsel %vm818, 1, 0
  %v867 = vsel %vm819, 1, 0
  %v868 = vsel %vm820, 1, 0
  %v869 = vsel %vm821, 1, 0
  %v870 = vcvt.s32.f32 %v862
  %v871 = vcvt.s32.f32 %v863
  %v872 = vcvt.s32.f32 %v864
  %v873 = vcvt.s32.f32 %v865
  %v874 = vcvt.s32.f32 %v866
  %v875 = vcvt.s32.f32 %v867
  %v876 = vcvt.s32.f32 %v868
  %v877 = vcvt.s32.f32 %v869
  %v878 = vpack.c.bf16 %v870, %v870
  %v879 = vpack.c.bf16 %v871, %v871
  %v880 = vpack.c.bf16 %v872, %v872
  %v881 = vpack.c.bf16 %v873, %v873
  %v882 = vpack.c.bf16 %v874, %v874
  %v883 = vpack.c.bf16 %v875, %v875
  %v884 = vpack.c.bf16 %v876, %v876
  %v885 = vpack.c.bf16 %v877, %v877
  %s886 = scalar_lea.vmem %s3, 32
  %887 = vst [vmem:[%s886] sm:$0xf] %v878
  %888 = vst [vmem:[%s886 + $0x4] sm:$0xf] %v879
  %889 = vst [vmem:[%s886 + $0x8] sm:$0xf] %v880
  %890 = vst [vmem:[%s886 + $0xc] sm:$0xf] %v881
  %891 = vst [vmem:[%s886 + $0x10] sm:$0xf] %v882
  %892 = vst [vmem:[%s886 + $0x14] sm:$0xf] %v883
  %893 = vst [vmem:[%s886 + $0x18] sm:$0xf] %v884
  %894 = vst [vmem:[%s886 + $0x1c] sm:$0xf] %v885
  %v895 = vsel %vm822, 1, 0
  %v896 = vsel %vm823, 1, 0
  %v897 = vsel %vm824, 1, 0
  %v898 = vsel %vm825, 1, 0
  %v899 = vsel %vm826, 1, 0
  %v900 = vsel %vm827, 1, 0
  %v901 = vsel %vm828, 1, 0
  %v902 = vsel %vm829, 1, 0
  %v903 = vcvt.s32.f32 %v895
  %v904 = vcvt.s32.f32 %v896
  %v905 = vcvt.s32.f32 %v897
  %v906 = vcvt.s32.f32 %v898
  %v907 = vcvt.s32.f32 %v899
  %v908 = vcvt.s32.f32 %v900
  %v909 = vcvt.s32.f32 %v901
  %v910 = vcvt.s32.f32 %v902
  %v911 = vpack.c.bf16 %v903, %v903
  %v912 = vpack.c.bf16 %v904, %v904
  %v913 = vpack.c.bf16 %v905, %v905
  %v914 = vpack.c.bf16 %v906, %v906
  %v915 = vpack.c.bf16 %v907, %v907
  %v916 = vpack.c.bf16 %v908, %v908
  %v917 = vpack.c.bf16 %v909, %v909
  %v918 = vpack.c.bf16 %v910, %v910
  %s919 = scalar_lea.vmem %s4, 32
  %920 = vst [vmem:[%s919] sm:$0xf] %v911
  %921 = vst [vmem:[%s919 + $0x4] sm:$0xf] %v912
  %922 = vst [vmem:[%s919 + $0x8] sm:$0xf] %v913
  %923 = vst [vmem:[%s919 + $0xc] sm:$0xf] %v914
  %924 = vst [vmem:[%s919 + $0x10] sm:$0xf] %v915
  %925 = vst [vmem:[%s919 + $0x14] sm:$0xf] %v916
  %926 = vst [vmem:[%s919 + $0x18] sm:$0xf] %v917
  %927 = vst [vmem:[%s919 + $0x1c] sm:$0xf] %v918
  %v928 = vsel %vm830, 1, 0
  %v929 = vsel %vm831, 1, 0
  %v930 = vsel %vm832, 1, 0
  %v931 = vsel %vm833, 1, 0
  %v932 = vsel %vm834, 1, 0
  %v933 = vsel %vm835, 1, 0
  %v934 = vsel %vm836, 1, 0
  %v935 = vsel %vm837, 1, 0
  %v936 = vcvt.s32.f32 %v928
  %v937 = vcvt.s32.f32 %v929
  %v938 = vcvt.s32.f32 %v930
  %v939 = vcvt.s32.f32 %v931
  %v940 = vcvt.s32.f32 %v932
  %v941 = vcvt.s32.f32 %v933
  %v942 = vcvt.s32.f32 %v934
  %v943 = vcvt.s32.f32 %v935
  %v944 = vpack.c.bf16 %v936, %v936
  %v945 = vpack.c.bf16 %v937, %v937
  %v946 = vpack.c.bf16 %v938, %v938
  %v947 = vpack.c.bf16 %v939, %v939
  %v948 = vpack.c.bf16 %v940, %v940
  %v949 = vpack.c.bf16 %v941, %v941
  %v950 = vpack.c.bf16 %v942, %v942
  %v951 = vpack.c.bf16 %v943, %v943
  %s952 = scalar_lea.vmem %s5, 32
  %953 = vst [vmem:[%s952] sm:$0xf] %v944
  %954 = vst [vmem:[%s952 + $0x4] sm:$0xf] %v945
  %955 = vst [vmem:[%s952 + $0x8] sm:$0xf] %v946
  %956 = vst [vmem:[%s952 + $0xc] sm:$0xf] %v947
  %957 = vst [vmem:[%s952 + $0x10] sm:$0xf] %v948
  %958 = vst [vmem:[%s952 + $0x14] sm:$0xf] %v949
  %959 = vst [vmem:[%s952 + $0x18] sm:$0xf] %v950
  %960 = vst [vmem:[%s952 + $0x1c] sm:$0xf] %v951
  %s961 = scalar_lea.vmem %s0, 128
  %v962 = vld [vmem:[%s961] sm:$0xff]
  %v963 = vld [vmem:[%s961 + $0x8] sm:$0xff]
  %v964 = vld [vmem:[%s961 + $0x10] sm:$0xff]
  %v965 = vld [vmem:[%s961 + $0x18] sm:$0xff]
  %v966 = vld [vmem:[%s961 + $0x20] sm:$0xff]
  %v967 = vld [vmem:[%s961 + $0x28] sm:$0xff]
  %v968 = vld [vmem:[%s961 + $0x30] sm:$0xff]
  %v969 = vld [vmem:[%s961 + $0x38] sm:$0xff]
  %v970 = vsub.f32 %v962, %v665
  %v971 = vsub.f32 %v963, %v666
  %v972 = vsub.f32 %v964, %v667
  %v973 = vsub.f32 %v965, %v668
  %v974 = vsub.f32 %v966, %v669
  %v975 = vsub.f32 %v967, %v670
  %v976 = vsub.f32 %v968, %v671
  %v977 = vsub.f32 %v969, %v672
  %v978 = vmul.f32 %v970, 0.6666667
  %v979 = vmul.f32 %v971, 0.6666667
  %v980 = vmul.f32 %v972, 0.6666667
  %v981 = vmul.f32 %v973, 0.6666667
  %v982 = vmul.f32 %v974, 0.6666667
  %v983 = vmul.f32 %v975, 0.6666667
  %v984 = vmul.f32 %v976, 0.6666667
  %v985 = vmul.f32 %v977, 0.6666667
  %v986 = vadd.f32 %v665, %v978
  %v987 = vadd.f32 %v666, %v979
  %v988 = vadd.f32 %v667, %v980
  %v989 = vadd.f32 %v668, %v981
  %v990 = vadd.f32 %v669, %v982
  %v991 = vadd.f32 %v670, %v983
  %v992 = vadd.f32 %v671, %v984
  %v993 = vadd.f32 %v672, %v985
  %vm994 = vcmp.ge.f32.partialorder %v986, 1.0
  %vm995 = vcmp.ge.f32.partialorder %v987, 1.0
  %vm996 = vcmp.ge.f32.partialorder %v988, 1.0
  %vm997 = vcmp.ge.f32.partialorder %v989, 1.0
  %vm998 = vcmp.ge.f32.partialorder %v990, 1.0
  %vm999 = vcmp.ge.f32.partialorder %v991, 1.0
  %vm1000 = vcmp.ge.f32.partialorder %v992, 1.0
  %vm1001 = vcmp.ge.f32.partialorder %v993, 1.0
  %v1002 = vsel %vm994, 1, 0
  %v1003 = vsel %vm995, 1, 0
  %v1004 = vsel %vm996, 1, 0
  %v1005 = vsel %vm997, 1, 0
  %v1006 = vsel %vm998, 1, 0
  %v1007 = vsel %vm999, 1, 0
  %v1008 = vsel %vm1000, 1, 0
  %v1009 = vsel %vm1001, 1, 0
  %v1010 = vcvt.s32.f32 %v1002
  %v1011 = vcvt.s32.f32 %v1003
  %v1012 = vcvt.s32.f32 %v1004
  %v1013 = vcvt.s32.f32 %v1005
  %v1014 = vcvt.s32.f32 %v1006
  %v1015 = vcvt.s32.f32 %v1007
  %v1016 = vcvt.s32.f32 %v1008
  %v1017 = vcvt.s32.f32 %v1009
  %v1018 = vpack.c.bf16 %v1011, %v1010
  %v1019 = vpack.c.bf16 %v1013, %v1012
  %v1020 = vpack.c.bf16 %v1015, %v1014
  %v1021 = vpack.c.bf16 %v1017, %v1016
  %v1022 = vsel %vm994, 0.0, %v986
  %v1023 = vsel %vm995, 0.0, %v987
  %v1024 = vsel %vm996, 0.0, %v988
  %v1025 = vsel %vm997, 0.0, %v989
  %v1026 = vsel %vm998, 0.0, %v990
  %v1027 = vsel %vm999, 0.0, %v991
  %v1028 = vsel %vm1000, 0.0, %v992
  %v1029 = vsel %vm1001, 0.0, %v993
  %1030 = vmatpush.bf16.msra.mxu0 0
  %1031 = vmatpush.bf16.msra.mxu0 0
  %1032 = vmatpush.bf16.msra.mxu0 0
  %1033 = vmatpush.bf16.msra.mxu0 0
  %1034 = vmatpush.bf16.msra.mxu0 %v1021
  %1035 = vmatpush.bf16.msra.mxu0 %v1020
  %1036 = vmatpush.bf16.msra.mxu0 %v1019
  %1037 = vmatpush.bf16.msra.mxu0 %v1018
  %1038 = vmatmul.bf16.gmra.mxu0 %v308
  %v1039 = vpop.f32.mrf.mxu0
  %v1040 = vadd.f32 %v69, %v1039
  %v1041 = vpop.f32.mrf.mxu0
  %v1042 = vadd.f32 %v74, %v1041
  %1043 = vmatmul.bf16.gmra.mxu0 %v311
  %v1044 = vpop.f32.mrf.mxu0
  %v1045 = vadd.f32 %v79, %v1044
  %v1046 = vpop.f32.mrf.mxu0
  %v1047 = vadd.f32 %v84, %v1046
  %1048 = vmatmul.bf16.gmra.mxu0 %v314
  %v1049 = vpop.f32.mrf.mxu0
  %v1050 = vadd.f32 %v89, %v1049
  %v1051 = vpop.f32.mrf.mxu0
  %v1052 = vadd.f32 %v94, %v1051
  %1053 = vmatmul.bf16.gmra.mxu0 %v317
  %v1054 = vpop.f32.mrf.mxu0
  %v1055 = vadd.f32 %v99, %v1054
  %v1056 = vpop.f32.mrf.mxu0
  %v1057 = vadd.f32 %v104, %v1056
  %1058 = vmatmul.bf16.gmra.mxu0 %v320
  %v1059 = vpop.f32.mrf.mxu0
  %v1060 = vadd.f32 %v109, %v1059
  %v1061 = vpop.f32.mrf.mxu0
  %v1062 = vadd.f32 %v114, %v1061
  %1063 = vmatmul.bf16.gmra.mxu0 %v323
  %v1064 = vpop.f32.mrf.mxu0
  %v1065 = vadd.f32 %v119, %v1064
  %v1066 = vpop.f32.mrf.mxu0
  %v1067 = vadd.f32 %v124, %v1066
  %1068 = vmatmul.bf16.gmra.mxu0 %v326
  %v1069 = vpop.f32.mrf.mxu0
  %v1070 = vadd.f32 %v129, %v1069
  %v1071 = vpop.f32.mrf.mxu0
  %v1072 = vadd.f32 %v134, %v1071
  %1073 = vmatmul.bf16.gmra.mxu0 %v329
  %v1074 = vpop.f32.mrf.mxu0
  %v1075 = vadd.f32 %v139, %v1074
  %v1076 = vpop.f32.mrf.mxu0
  %v1077 = vadd.f32 %v144, %v1076
  %1078 = vmatmul.bf16.gmra.mxu0 %v332
  %v1079 = vpop.f32.mrf.mxu0
  %v1080 = vadd.f32 %v149, %v1079
  %v1081 = vpop.f32.mrf.mxu0
  %v1082 = vadd.f32 %v154, %v1081
  %1083 = vmatmul.bf16.gmra.mxu0 %v335
  %v1084 = vpop.f32.mrf.mxu0
  %v1085 = vadd.f32 %v159, %v1084
  %v1086 = vpop.f32.mrf.mxu0
  %v1087 = vadd.f32 %v164, %v1086
  %1088 = vmatmul.bf16.gmra.mxu0 %v338
  %v1089 = vpop.f32.mrf.mxu0
  %v1090 = vadd.f32 %v169, %v1089
  %v1091 = vpop.f32.mrf.mxu0
  %v1092 = vadd.f32 %v174, %v1091
  %1093 = vmatmul.bf16.gmra.mxu0 %v341
  %v1094 = vpop.f32.mrf.mxu0
  %v1095 = vadd.f32 %v179, %v1094
  %v1096 = vpop.f32.mrf.mxu0
  %v1097 = vadd.f32 %v184, %v1096
  %1098 = vdwg.mxu0
  %v1099 = vsub.f32 %v1040, %v838
  %v1100 = vsub.f32 %v1042, %v839
  %v1101 = vsub.f32 %v1045, %v840
  %v1102 = vsub.f32 %v1047, %v841
  %v1103 = vsub.f32 %v1050, %v842
  %v1104 = vsub.f32 %v1052, %v843
  %v1105 = vsub.f32 %v1055, %v844
  %v1106 = vsub.f32 %v1057, %v845
  %v1107 = vsub.f32 %v1060, %v846
  %v1108 = vsub.f32 %v1062, %v847
  %v1109 = vsub.f32 %v1065, %v848
  %v1110 = vsub.f32 %v1067, %v849
  %v1111 = vsub.f32 %v1070, %v850
  %v1112 = vsub.f32 %v1072, %v851
  %v1113 = vsub.f32 %v1075, %v852
  %v1114 = vsub.f32 %v1077, %v853
  %v1115 = vsub.f32 %v1080, %v854
  %v1116 = vsub.f32 %v1082, %v855
  %v1117 = vsub.f32 %v1085, %v856
  %v1118 = vsub.f32 %v1087, %v857
  %v1119 = vsub.f32 %v1090, %v858
  %v1120 = vsub.f32 %v1092, %v859
  %v1121 = vsub.f32 %v1095, %v860
  %v1122 = vsub.f32 %v1097, %v861
  %v1123 = vmul.f32 %v1099, 0.6666667
  %v1124 = vmul.f32 %v1100, 0.6666667
  %v1125 = vmul.f32 %v1101, 0.6666667
  %v1126 = vmul.f32 %v1102, 0.6666667
  %v1127 = vmul.f32 %v1103, 0.6666667
  %v1128 = vmul.f32 %v1104, 0.6666667
  %v1129 = vmul.f32 %v1105, 0.6666667
  %v1130 = vmul.f32 %v1106, 0.6666667
  %v1131 = vmul.f32 %v1107, 0.6666667
  %v1132 = vmul.f32 %v1108, 0.6666667
  %v1133 = vmul.f32 %v1109, 0.6666667
  %v1134 = vmul.f32 %v1110, 0.6666667
  %v1135 = vmul.f32 %v1111, 0.6666667
  %v1136 = vmul.f32 %v1112, 0.6666667
  %v1137 = vmul.f32 %v1113, 0.6666667
  %v1138 = vmul.f32 %v1114, 0.6666667
  %v1139 = vmul.f32 %v1115, 0.6666667
  %v1140 = vmul.f32 %v1116, 0.6666667
  %v1141 = vmul.f32 %v1117, 0.6666667
  %v1142 = vmul.f32 %v1118, 0.6666667
  %v1143 = vmul.f32 %v1119, 0.6666667
  %v1144 = vmul.f32 %v1120, 0.6666667
  %v1145 = vmul.f32 %v1121, 0.6666667
  %v1146 = vmul.f32 %v1122, 0.6666667
  %v1147 = vadd.f32 %v838, %v1123
  %v1148 = vadd.f32 %v839, %v1124
  %v1149 = vadd.f32 %v840, %v1125
  %v1150 = vadd.f32 %v841, %v1126
  %v1151 = vadd.f32 %v842, %v1127
  %v1152 = vadd.f32 %v843, %v1128
  %v1153 = vadd.f32 %v844, %v1129
  %v1154 = vadd.f32 %v845, %v1130
  %v1155 = vadd.f32 %v846, %v1131
  %v1156 = vadd.f32 %v847, %v1132
  %v1157 = vadd.f32 %v848, %v1133
  %v1158 = vadd.f32 %v849, %v1134
  %v1159 = vadd.f32 %v850, %v1135
  %v1160 = vadd.f32 %v851, %v1136
  %v1161 = vadd.f32 %v852, %v1137
  %v1162 = vadd.f32 %v853, %v1138
  %v1163 = vadd.f32 %v854, %v1139
  %v1164 = vadd.f32 %v855, %v1140
  %v1165 = vadd.f32 %v856, %v1141
  %v1166 = vadd.f32 %v857, %v1142
  %v1167 = vadd.f32 %v858, %v1143
  %v1168 = vadd.f32 %v859, %v1144
  %v1169 = vadd.f32 %v860, %v1145
  %v1170 = vadd.f32 %v861, %v1146
  %vm1171 = vcmp.ge.f32.partialorder %v1147, 1.0
  %vm1172 = vcmp.ge.f32.partialorder %v1148, 1.0
  %vm1173 = vcmp.ge.f32.partialorder %v1149, 1.0
  %vm1174 = vcmp.ge.f32.partialorder %v1150, 1.0
  %vm1175 = vcmp.ge.f32.partialorder %v1151, 1.0
  %vm1176 = vcmp.ge.f32.partialorder %v1152, 1.0
  %vm1177 = vcmp.ge.f32.partialorder %v1153, 1.0
  %vm1178 = vcmp.ge.f32.partialorder %v1154, 1.0
  %vm1179 = vcmp.ge.f32.partialorder %v1155, 1.0
  %vm1180 = vcmp.ge.f32.partialorder %v1156, 1.0
  %vm1181 = vcmp.ge.f32.partialorder %v1157, 1.0
  %vm1182 = vcmp.ge.f32.partialorder %v1158, 1.0
  %vm1183 = vcmp.ge.f32.partialorder %v1159, 1.0
  %vm1184 = vcmp.ge.f32.partialorder %v1160, 1.0
  %vm1185 = vcmp.ge.f32.partialorder %v1161, 1.0
  %vm1186 = vcmp.ge.f32.partialorder %v1162, 1.0
  %vm1187 = vcmp.ge.f32.partialorder %v1163, 1.0
  %vm1188 = vcmp.ge.f32.partialorder %v1164, 1.0
  %vm1189 = vcmp.ge.f32.partialorder %v1165, 1.0
  %vm1190 = vcmp.ge.f32.partialorder %v1166, 1.0
  %vm1191 = vcmp.ge.f32.partialorder %v1167, 1.0
  %vm1192 = vcmp.ge.f32.partialorder %v1168, 1.0
  %vm1193 = vcmp.ge.f32.partialorder %v1169, 1.0
  %vm1194 = vcmp.ge.f32.partialorder %v1170, 1.0
  %v1195 = vsel %vm1171, 0.0, %v1147
  %v1196 = vsel %vm1172, 0.0, %v1148
  %v1197 = vsel %vm1173, 0.0, %v1149
  %v1198 = vsel %vm1174, 0.0, %v1150
  %v1199 = vsel %vm1175, 0.0, %v1151
  %v1200 = vsel %vm1176, 0.0, %v1152
  %v1201 = vsel %vm1177, 0.0, %v1153
  %v1202 = vsel %vm1178, 0.0, %v1154
  %v1203 = vsel %vm1179, 0.0, %v1155
  %v1204 = vsel %vm1180, 0.0, %v1156
  %v1205 = vsel %vm1181, 0.0, %v1157
  %v1206 = vsel %vm1182, 0.0, %v1158
  %v1207 = vsel %vm1183, 0.0, %v1159
  %v1208 = vsel %vm1184, 0.0, %v1160
  %v1209 = vsel %vm1185, 0.0, %v1161
  %v1210 = vsel %vm1186, 0.0, %v1162
  %v1211 = vsel %vm1187, 0.0, %v1163
  %v1212 = vsel %vm1188, 0.0, %v1164
  %v1213 = vsel %vm1189, 0.0, %v1165
  %v1214 = vsel %vm1190, 0.0, %v1166
  %v1215 = vsel %vm1191, 0.0, %v1167
  %v1216 = vsel %vm1192, 0.0, %v1168
  %v1217 = vsel %vm1193, 0.0, %v1169
  %v1218 = vsel %vm1194, 0.0, %v1170
  %v1219 = vsel %vm1171, 1, 0
  %v1220 = vsel %vm1172, 1, 0
  %v1221 = vsel %vm1173, 1, 0
  %v1222 = vsel %vm1174, 1, 0
  %v1223 = vsel %vm1175, 1, 0
  %v1224 = vsel %vm1176, 1, 0
  %v1225 = vsel %vm1177, 1, 0
  %v1226 = vsel %vm1178, 1, 0
  %v1227 = vcvt.s32.f32 %v1219
  %v1228 = vcvt.s32.f32 %v1220
  %v1229 = vcvt.s32.f32 %v1221
  %v1230 = vcvt.s32.f32 %v1222
  %v1231 = vcvt.s32.f32 %v1223
  %v1232 = vcvt.s32.f32 %v1224
  %v1233 = vcvt.s32.f32 %v1225
  %v1234 = vcvt.s32.f32 %v1226
  %v1235 = vpack.c.bf16 %v1227, %v1227
  %v1236 = vpack.c.bf16 %v1228, %v1228
  %v1237 = vpack.c.bf16 %v1229, %v1229
  %v1238 = vpack.c.bf16 %v1230, %v1230
  %v1239 = vpack.c.bf16 %v1231, %v1231
  %v1240 = vpack.c.bf16 %v1232, %v1232
  %v1241 = vpack.c.bf16 %v1233, %v1233
  %v1242 = vpack.c.bf16 %v1234, %v1234
  %s1243 = scalar_lea.vmem %s3, 64
  %1244 = vst [vmem:[%s1243] sm:$0xf] %v1235
  %1245 = vst [vmem:[%s1243 + $0x4] sm:$0xf] %v1236
  %1246 = vst [vmem:[%s1243 + $0x8] sm:$0xf] %v1237
  %1247 = vst [vmem:[%s1243 + $0xc] sm:$0xf] %v1238
  %1248 = vst [vmem:[%s1243 + $0x10] sm:$0xf] %v1239
  %1249 = vst [vmem:[%s1243 + $0x14] sm:$0xf] %v1240
  %1250 = vst [vmem:[%s1243 + $0x18] sm:$0xf] %v1241
  %1251 = vst [vmem:[%s1243 + $0x1c] sm:$0xf] %v1242
  %v1252 = vsel %vm1179, 1, 0
  %v1253 = vsel %vm1180, 1, 0
  %v1254 = vsel %vm1181, 1, 0
  %v1255 = vsel %vm1182, 1, 0
  %v1256 = vsel %vm1183, 1, 0
  %v1257 = vsel %vm1184, 1, 0
  %v1258 = vsel %vm1185, 1, 0
  %v1259 = vsel %vm1186, 1, 0
  %v1260 = vcvt.s32.f32 %v1252
  %v1261 = vcvt.s32.f32 %v1253
  %v1262 = vcvt.s32.f32 %v1254
  %v1263 = vcvt.s32.f32 %v1255
  %v1264 = vcvt.s32.f32 %v1256
  %v1265 = vcvt.s32.f32 %v1257
  %v1266 = vcvt.s32.f32 %v1258
  %v1267 = vcvt.s32.f32 %v1259
  %v1268 = vpack.c.bf16 %v1260, %v1260
  %v1269 = vpack.c.bf16 %v1261, %v1261
  %v1270 = vpack.c.bf16 %v1262, %v1262
  %v1271 = vpack.c.bf16 %v1263, %v1263
  %v1272 = vpack.c.bf16 %v1264, %v1264
  %v1273 = vpack.c.bf16 %v1265, %v1265
  %v1274 = vpack.c.bf16 %v1266, %v1266
  %v1275 = vpack.c.bf16 %v1267, %v1267
  %s1276 = scalar_lea.vmem %s4, 64
  %1277 = vst [vmem:[%s1276] sm:$0xf] %v1268
  %1278 = vst [vmem:[%s1276 + $0x4] sm:$0xf] %v1269
  %1279 = vst [vmem:[%s1276 + $0x8] sm:$0xf] %v1270
  %1280 = vst [vmem:[%s1276 + $0xc] sm:$0xf] %v1271
  %1281 = vst [vmem:[%s1276 + $0x10] sm:$0xf] %v1272
  %1282 = vst [vmem:[%s1276 + $0x14] sm:$0xf] %v1273
  %1283 = vst [vmem:[%s1276 + $0x18] sm:$0xf] %v1274
  %1284 = vst [vmem:[%s1276 + $0x1c] sm:$0xf] %v1275
  %v1285 = vsel %vm1187, 1, 0
  %v1286 = vsel %vm1188, 1, 0
  %v1287 = vsel %vm1189, 1, 0
  %v1288 = vsel %vm1190, 1, 0
  %v1289 = vsel %vm1191, 1, 0
  %v1290 = vsel %vm1192, 1, 0
  %v1291 = vsel %vm1193, 1, 0
  %v1292 = vsel %vm1194, 1, 0
  %v1293 = vcvt.s32.f32 %v1285
  %v1294 = vcvt.s32.f32 %v1286
  %v1295 = vcvt.s32.f32 %v1287
  %v1296 = vcvt.s32.f32 %v1288
  %v1297 = vcvt.s32.f32 %v1289
  %v1298 = vcvt.s32.f32 %v1290
  %v1299 = vcvt.s32.f32 %v1291
  %v1300 = vcvt.s32.f32 %v1292
  %v1301 = vpack.c.bf16 %v1293, %v1293
  %v1302 = vpack.c.bf16 %v1294, %v1294
  %v1303 = vpack.c.bf16 %v1295, %v1295
  %v1304 = vpack.c.bf16 %v1296, %v1296
  %v1305 = vpack.c.bf16 %v1297, %v1297
  %v1306 = vpack.c.bf16 %v1298, %v1298
  %v1307 = vpack.c.bf16 %v1299, %v1299
  %v1308 = vpack.c.bf16 %v1300, %v1300
  %s1309 = scalar_lea.vmem %s5, 64
  %1310 = vst [vmem:[%s1309] sm:$0xf] %v1301
  %1311 = vst [vmem:[%s1309 + $0x4] sm:$0xf] %v1302
  %1312 = vst [vmem:[%s1309 + $0x8] sm:$0xf] %v1303
  %1313 = vst [vmem:[%s1309 + $0xc] sm:$0xf] %v1304
  %1314 = vst [vmem:[%s1309 + $0x10] sm:$0xf] %v1305
  %1315 = vst [vmem:[%s1309 + $0x14] sm:$0xf] %v1306
  %1316 = vst [vmem:[%s1309 + $0x18] sm:$0xf] %v1307
  %1317 = vst [vmem:[%s1309 + $0x1c] sm:$0xf] %v1308
  %s1318 = scalar_lea.vmem %s0, 192
  %v1319 = vld [vmem:[%s1318] sm:$0xff]
  %v1320 = vld [vmem:[%s1318 + $0x8] sm:$0xff]
  %v1321 = vld [vmem:[%s1318 + $0x10] sm:$0xff]
  %v1322 = vld [vmem:[%s1318 + $0x18] sm:$0xff]
  %v1323 = vld [vmem:[%s1318 + $0x20] sm:$0xff]
  %v1324 = vld [vmem:[%s1318 + $0x28] sm:$0xff]
  %v1325 = vld [vmem:[%s1318 + $0x30] sm:$0xff]
  %v1326 = vld [vmem:[%s1318 + $0x38] sm:$0xff]
  %v1327 = vsub.f32 %v1319, %v1022
  %v1328 = vsub.f32 %v1320, %v1023
  %v1329 = vsub.f32 %v1321, %v1024
  %v1330 = vsub.f32 %v1322, %v1025
  %v1331 = vsub.f32 %v1323, %v1026
  %v1332 = vsub.f32 %v1324, %v1027
  %v1333 = vsub.f32 %v1325, %v1028
  %v1334 = vsub.f32 %v1326, %v1029
  %v1335 = vmul.f32 %v1327, 0.6666667
  %v1336 = vmul.f32 %v1328, 0.6666667
  %v1337 = vmul.f32 %v1329, 0.6666667
  %v1338 = vmul.f32 %v1330, 0.6666667
  %v1339 = vmul.f32 %v1331, 0.6666667
  %v1340 = vmul.f32 %v1332, 0.6666667
  %v1341 = vmul.f32 %v1333, 0.6666667
  %v1342 = vmul.f32 %v1334, 0.6666667
  %v1343 = vadd.f32 %v1022, %v1335
  %v1344 = vadd.f32 %v1023, %v1336
  %v1345 = vadd.f32 %v1024, %v1337
  %v1346 = vadd.f32 %v1025, %v1338
  %v1347 = vadd.f32 %v1026, %v1339
  %v1348 = vadd.f32 %v1027, %v1340
  %v1349 = vadd.f32 %v1028, %v1341
  %v1350 = vadd.f32 %v1029, %v1342
  %vm1351 = vcmp.ge.f32.partialorder %v1343, 1.0
  %vm1352 = vcmp.ge.f32.partialorder %v1344, 1.0
  %vm1353 = vcmp.ge.f32.partialorder %v1345, 1.0
  %vm1354 = vcmp.ge.f32.partialorder %v1346, 1.0
  %vm1355 = vcmp.ge.f32.partialorder %v1347, 1.0
  %vm1356 = vcmp.ge.f32.partialorder %v1348, 1.0
  %vm1357 = vcmp.ge.f32.partialorder %v1349, 1.0
  %vm1358 = vcmp.ge.f32.partialorder %v1350, 1.0
  %v1359 = vsel %vm1351, 1, 0
  %v1360 = vsel %vm1352, 1, 0
  %v1361 = vsel %vm1353, 1, 0
  %v1362 = vsel %vm1354, 1, 0
  %v1363 = vsel %vm1355, 1, 0
  %v1364 = vsel %vm1356, 1, 0
  %v1365 = vsel %vm1357, 1, 0
  %v1366 = vsel %vm1358, 1, 0
  %v1367 = vcvt.s32.f32 %v1359
  %v1368 = vcvt.s32.f32 %v1360
  %v1369 = vcvt.s32.f32 %v1361
  %v1370 = vcvt.s32.f32 %v1362
  %v1371 = vcvt.s32.f32 %v1363
  %v1372 = vcvt.s32.f32 %v1364
  %v1373 = vcvt.s32.f32 %v1365
  %v1374 = vcvt.s32.f32 %v1366
  %v1375 = vpack.c.bf16 %v1368, %v1367
  %v1376 = vpack.c.bf16 %v1370, %v1369
  %v1377 = vpack.c.bf16 %v1372, %v1371
  %v1378 = vpack.c.bf16 %v1374, %v1373
  %1379 = vmatpush.bf16.msra.mxu0 0
  %1380 = vmatpush.bf16.msra.mxu0 0
  %1381 = vmatpush.bf16.msra.mxu0 0
  %1382 = vmatpush.bf16.msra.mxu0 0
  %1383 = vmatpush.bf16.msra.mxu0 %v1378
  %1384 = vmatpush.bf16.msra.mxu0 %v1377
  %1385 = vmatpush.bf16.msra.mxu0 %v1376
  %1386 = vmatpush.bf16.msra.mxu0 %v1375
  %1387 = vmatmul.bf16.gmra.mxu0 %v308
  %v1388 = vpop.f32.mrf.mxu0
  %v1389 = vadd.f32 %v69, %v1388
  %v1390 = vpop.f32.mrf.mxu0
  %v1391 = vadd.f32 %v74, %v1390
  %1392 = vmatmul.bf16.gmra.mxu0 %v311
  %v1393 = vpop.f32.mrf.mxu0
  %v1394 = vadd.f32 %v79, %v1393
  %v1395 = vpop.f32.mrf.mxu0
  %v1396 = vadd.f32 %v84, %v1395
  %1397 = vmatmul.bf16.gmra.mxu0 %v314
  %v1398 = vpop.f32.mrf.mxu0
  %v1399 = vadd.f32 %v89, %v1398
  %v1400 = vpop.f32.mrf.mxu0
  %v1401 = vadd.f32 %v94, %v1400
  %1402 = vmatmul.bf16.gmra.mxu0 %v317
  %v1403 = vpop.f32.mrf.mxu0
  %v1404 = vadd.f32 %v99, %v1403
  %v1405 = vpop.f32.mrf.mxu0
  %v1406 = vadd.f32 %v104, %v1405
  %1407 = vmatmul.bf16.gmra.mxu0 %v320
  %v1408 = vpop.f32.mrf.mxu0
  %v1409 = vadd.f32 %v109, %v1408
  %v1410 = vpop.f32.mrf.mxu0
  %v1411 = vadd.f32 %v114, %v1410
  %1412 = vmatmul.bf16.gmra.mxu0 %v323
  %v1413 = vpop.f32.mrf.mxu0
  %v1414 = vadd.f32 %v119, %v1413
  %v1415 = vpop.f32.mrf.mxu0
  %v1416 = vadd.f32 %v124, %v1415
  %1417 = vmatmul.bf16.gmra.mxu0 %v326
  %v1418 = vpop.f32.mrf.mxu0
  %v1419 = vadd.f32 %v129, %v1418
  %v1420 = vpop.f32.mrf.mxu0
  %v1421 = vadd.f32 %v134, %v1420
  %1422 = vmatmul.bf16.gmra.mxu0 %v329
  %v1423 = vpop.f32.mrf.mxu0
  %v1424 = vadd.f32 %v139, %v1423
  %v1425 = vpop.f32.mrf.mxu0
  %v1426 = vadd.f32 %v144, %v1425
  %1427 = vmatmul.bf16.gmra.mxu0 %v332
  %v1428 = vpop.f32.mrf.mxu0
  %v1429 = vadd.f32 %v149, %v1428
  %v1430 = vpop.f32.mrf.mxu0
  %v1431 = vadd.f32 %v154, %v1430
  %1432 = vmatmul.bf16.gmra.mxu0 %v335
  %v1433 = vpop.f32.mrf.mxu0
  %v1434 = vadd.f32 %v159, %v1433
  %v1435 = vpop.f32.mrf.mxu0
  %v1436 = vadd.f32 %v164, %v1435
  %1437 = vmatmul.bf16.gmra.mxu0 %v338
  %v1438 = vpop.f32.mrf.mxu0
  %v1439 = vadd.f32 %v169, %v1438
  %v1440 = vpop.f32.mrf.mxu0
  %v1441 = vadd.f32 %v174, %v1440
  %1442 = vmatmul.bf16.gmra.mxu0 %v341
  %v1443 = vpop.f32.mrf.mxu0
  %v1444 = vadd.f32 %v179, %v1443
  %v1445 = vpop.f32.mrf.mxu0
  %v1446 = vadd.f32 %v184, %v1445
  %1447 = vdwg.mxu0
  %v1448 = vsub.f32 %v1389, %v1195
  %v1449 = vsub.f32 %v1391, %v1196
  %v1450 = vsub.f32 %v1394, %v1197
  %v1451 = vsub.f32 %v1396, %v1198
  %v1452 = vsub.f32 %v1399, %v1199
  %v1453 = vsub.f32 %v1401, %v1200
  %v1454 = vsub.f32 %v1404, %v1201
  %v1455 = vsub.f32 %v1406, %v1202
  %v1456 = vsub.f32 %v1409, %v1203
  %v1457 = vsub.f32 %v1411, %v1204
  %v1458 = vsub.f32 %v1414, %v1205
  %v1459 = vsub.f32 %v1416, %v1206
  %v1460 = vsub.f32 %v1419, %v1207
  %v1461 = vsub.f32 %v1421, %v1208
  %v1462 = vsub.f32 %v1424, %v1209
  %v1463 = vsub.f32 %v1426, %v1210
  %v1464 = vsub.f32 %v1429, %v1211
  %v1465 = vsub.f32 %v1431, %v1212
  %v1466 = vsub.f32 %v1434, %v1213
  %v1467 = vsub.f32 %v1436, %v1214
  %v1468 = vsub.f32 %v1439, %v1215
  %v1469 = vsub.f32 %v1441, %v1216
  %v1470 = vsub.f32 %v1444, %v1217
  %v1471 = vsub.f32 %v1446, %v1218
  %v1472 = vmul.f32 %v1448, 0.6666667
  %v1473 = vmul.f32 %v1449, 0.6666667
  %v1474 = vmul.f32 %v1450, 0.6666667
  %v1475 = vmul.f32 %v1451, 0.6666667
  %v1476 = vmul.f32 %v1452, 0.6666667
  %v1477 = vmul.f32 %v1453, 0.6666667
  %v1478 = vmul.f32 %v1454, 0.6666667
  %v1479 = vmul.f32 %v1455, 0.6666667
  %v1480 = vmul.f32 %v1456, 0.6666667
  %v1481 = vmul.f32 %v1457, 0.6666667
  %v1482 = vmul.f32 %v1458, 0.6666667
  %v1483 = vmul.f32 %v1459, 0.6666667
  %v1484 = vmul.f32 %v1460, 0.6666667
  %v1485 = vmul.f32 %v1461, 0.6666667
  %v1486 = vmul.f32 %v1462, 0.6666667
  %v1487 = vmul.f32 %v1463, 0.6666667
  %v1488 = vmul.f32 %v1464, 0.6666667
  %v1489 = vmul.f32 %v1465, 0.6666667
  %v1490 = vmul.f32 %v1466, 0.6666667
  %v1491 = vmul.f32 %v1467, 0.6666667
  %v1492 = vmul.f32 %v1468, 0.6666667
  %v1493 = vmul.f32 %v1469, 0.6666667
  %v1494 = vmul.f32 %v1470, 0.6666667
  %v1495 = vmul.f32 %v1471, 0.6666667
  %v1496 = vadd.f32 %v1195, %v1472
  %v1497 = vadd.f32 %v1196, %v1473
  %v1498 = vadd.f32 %v1197, %v1474
  %v1499 = vadd.f32 %v1198, %v1475
  %v1500 = vadd.f32 %v1199, %v1476
  %v1501 = vadd.f32 %v1200, %v1477
  %v1502 = vadd.f32 %v1201, %v1478
  %v1503 = vadd.f32 %v1202, %v1479
  %v1504 = vadd.f32 %v1203, %v1480
  %v1505 = vadd.f32 %v1204, %v1481
  %v1506 = vadd.f32 %v1205, %v1482
  %v1507 = vadd.f32 %v1206, %v1483
  %v1508 = vadd.f32 %v1207, %v1484
  %v1509 = vadd.f32 %v1208, %v1485
  %v1510 = vadd.f32 %v1209, %v1486
  %v1511 = vadd.f32 %v1210, %v1487
  %v1512 = vadd.f32 %v1211, %v1488
  %v1513 = vadd.f32 %v1212, %v1489
  %v1514 = vadd.f32 %v1213, %v1490
  %v1515 = vadd.f32 %v1214, %v1491
  %v1516 = vadd.f32 %v1215, %v1492
  %v1517 = vadd.f32 %v1216, %v1493
  %v1518 = vadd.f32 %v1217, %v1494
  %v1519 = vadd.f32 %v1218, %v1495
  %vm1520 = vcmp.ge.f32.partialorder %v1496, 1.0
  %vm1521 = vcmp.ge.f32.partialorder %v1497, 1.0
  %vm1522 = vcmp.ge.f32.partialorder %v1498, 1.0
  %vm1523 = vcmp.ge.f32.partialorder %v1499, 1.0
  %vm1524 = vcmp.ge.f32.partialorder %v1500, 1.0
  %vm1525 = vcmp.ge.f32.partialorder %v1501, 1.0
  %vm1526 = vcmp.ge.f32.partialorder %v1502, 1.0
  %vm1527 = vcmp.ge.f32.partialorder %v1503, 1.0
  %vm1528 = vcmp.ge.f32.partialorder %v1504, 1.0
  %vm1529 = vcmp.ge.f32.partialorder %v1505, 1.0
  %vm1530 = vcmp.ge.f32.partialorder %v1506, 1.0
  %vm1531 = vcmp.ge.f32.partialorder %v1507, 1.0
  %vm1532 = vcmp.ge.f32.partialorder %v1508, 1.0
  %vm1533 = vcmp.ge.f32.partialorder %v1509, 1.0
  %vm1534 = vcmp.ge.f32.partialorder %v1510, 1.0
  %vm1535 = vcmp.ge.f32.partialorder %v1511, 1.0
  %vm1536 = vcmp.ge.f32.partialorder %v1512, 1.0
  %vm1537 = vcmp.ge.f32.partialorder %v1513, 1.0
  %vm1538 = vcmp.ge.f32.partialorder %v1514, 1.0
  %vm1539 = vcmp.ge.f32.partialorder %v1515, 1.0
  %vm1540 = vcmp.ge.f32.partialorder %v1516, 1.0
  %vm1541 = vcmp.ge.f32.partialorder %v1517, 1.0
  %vm1542 = vcmp.ge.f32.partialorder %v1518, 1.0
  %vm1543 = vcmp.ge.f32.partialorder %v1519, 1.0
  %v1544 = vsel %vm1520, 1, 0
  %v1545 = vsel %vm1521, 1, 0
  %v1546 = vsel %vm1522, 1, 0
  %v1547 = vsel %vm1523, 1, 0
  %v1548 = vsel %vm1524, 1, 0
  %v1549 = vsel %vm1525, 1, 0
  %v1550 = vsel %vm1526, 1, 0
  %v1551 = vsel %vm1527, 1, 0
  %v1552 = vcvt.s32.f32 %v1544
  %v1553 = vcvt.s32.f32 %v1545
  %v1554 = vcvt.s32.f32 %v1546
  %v1555 = vcvt.s32.f32 %v1547
  %v1556 = vcvt.s32.f32 %v1548
  %v1557 = vcvt.s32.f32 %v1549
  %v1558 = vcvt.s32.f32 %v1550
  %v1559 = vcvt.s32.f32 %v1551
  %v1560 = vpack.c.bf16 %v1552, %v1552
  %v1561 = vpack.c.bf16 %v1553, %v1553
  %v1562 = vpack.c.bf16 %v1554, %v1554
  %v1563 = vpack.c.bf16 %v1555, %v1555
  %v1564 = vpack.c.bf16 %v1556, %v1556
  %v1565 = vpack.c.bf16 %v1557, %v1557
  %v1566 = vpack.c.bf16 %v1558, %v1558
  %v1567 = vpack.c.bf16 %v1559, %v1559
  %s1568 = scalar_lea.vmem %s3, 96
  %1569 = vst [vmem:[%s1568] sm:$0xf] %v1560
  %1570 = vst [vmem:[%s1568 + $0x4] sm:$0xf] %v1561
  %1571 = vst [vmem:[%s1568 + $0x8] sm:$0xf] %v1562
  %1572 = vst [vmem:[%s1568 + $0xc] sm:$0xf] %v1563
  %1573 = vst [vmem:[%s1568 + $0x10] sm:$0xf] %v1564
  %1574 = vst [vmem:[%s1568 + $0x14] sm:$0xf] %v1565
  %1575 = vst [vmem:[%s1568 + $0x18] sm:$0xf] %v1566
  %1576 = vst [vmem:[%s1568 + $0x1c] sm:$0xf] %v1567
  %v1577 = vsel %vm1528, 1, 0
  %v1578 = vsel %vm1529, 1, 0
  %v1579 = vsel %vm1530, 1, 0
  %v1580 = vsel %vm1531, 1, 0
  %v1581 = vsel %vm1532, 1, 0
  %v1582 = vsel %vm1533, 1, 0
  %v1583 = vsel %vm1534, 1, 0
  %v1584 = vsel %vm1535, 1, 0
  %v1585 = vcvt.s32.f32 %v1577
  %v1586 = vcvt.s32.f32 %v1578
  %v1587 = vcvt.s32.f32 %v1579
  %v1588 = vcvt.s32.f32 %v1580
  %v1589 = vcvt.s32.f32 %v1581
  %v1590 = vcvt.s32.f32 %v1582
  %v1591 = vcvt.s32.f32 %v1583
  %v1592 = vcvt.s32.f32 %v1584
  %v1593 = vpack.c.bf16 %v1585, %v1585
  %v1594 = vpack.c.bf16 %v1586, %v1586
  %v1595 = vpack.c.bf16 %v1587, %v1587
  %v1596 = vpack.c.bf16 %v1588, %v1588
  %v1597 = vpack.c.bf16 %v1589, %v1589
  %v1598 = vpack.c.bf16 %v1590, %v1590
  %v1599 = vpack.c.bf16 %v1591, %v1591
  %v1600 = vpack.c.bf16 %v1592, %v1592
  %s1601 = scalar_lea.vmem %s4, 96
  %1602 = vst [vmem:[%s1601] sm:$0xf] %v1593
  %1603 = vst [vmem:[%s1601 + $0x4] sm:$0xf] %v1594
  %1604 = vst [vmem:[%s1601 + $0x8] sm:$0xf] %v1595
  %1605 = vst [vmem:[%s1601 + $0xc] sm:$0xf] %v1596
  %1606 = vst [vmem:[%s1601 + $0x10] sm:$0xf] %v1597
  %1607 = vst [vmem:[%s1601 + $0x14] sm:$0xf] %v1598
  %1608 = vst [vmem:[%s1601 + $0x18] sm:$0xf] %v1599
  %1609 = vst [vmem:[%s1601 + $0x1c] sm:$0xf] %v1600
  %v1610 = vsel %vm1536, 1, 0
  %v1611 = vsel %vm1537, 1, 0
  %v1612 = vsel %vm1538, 1, 0
  %v1613 = vsel %vm1539, 1, 0
  %v1614 = vsel %vm1540, 1, 0
  %v1615 = vsel %vm1541, 1, 0
  %v1616 = vsel %vm1542, 1, 0
  %v1617 = vsel %vm1543, 1, 0
  %v1618 = vcvt.s32.f32 %v1610
  %v1619 = vcvt.s32.f32 %v1611
  %v1620 = vcvt.s32.f32 %v1612
  %v1621 = vcvt.s32.f32 %v1613
  %v1622 = vcvt.s32.f32 %v1614
  %v1623 = vcvt.s32.f32 %v1615
  %v1624 = vcvt.s32.f32 %v1616
  %v1625 = vcvt.s32.f32 %v1617
  %v1626 = vpack.c.bf16 %v1618, %v1618
  %v1627 = vpack.c.bf16 %v1619, %v1619
  %v1628 = vpack.c.bf16 %v1620, %v1620
  %v1629 = vpack.c.bf16 %v1621, %v1621
  %v1630 = vpack.c.bf16 %v1622, %v1622
  %v1631 = vpack.c.bf16 %v1623, %v1623
  %v1632 = vpack.c.bf16 %v1624, %v1624
  %v1633 = vpack.c.bf16 %v1625, %v1625
  %s1634 = scalar_lea.vmem %s5, 96
  %1635 = vst [vmem:[%s1634] sm:$0xf] %v1626
  %1636 = vst [vmem:[%s1634 + $0x4] sm:$0xf] %v1627
  %1637 = vst [vmem:[%s1634 + $0x8] sm:$0xf] %v1628
  %1638 = vst [vmem:[%s1634 + $0xc] sm:$0xf] %v1629
  %1639 = vst [vmem:[%s1634 + $0x10] sm:$0xf] %v1630
  %1640 = vst [vmem:[%s1634 + $0x14] sm:$0xf] %v1631
  %1641 = vst [vmem:[%s1634 + $0x18] sm:$0xf] %v1632
  %1642 = vst [vmem:[%s1634 + $0x1c] sm:$0xf] %v1633
  // Predicated region
  $region14: #{_lambda_.5} parent=0 // pred_check
    _
  $region15: #{_lambda_.5} parent=0 // pred_check_branch
    %1644 = sbr.rel (0) target = $region17
  $region16: #{_lambda_.5} parent=0 // pred_region
    _
  $region17: #{_lambda_.5} parent=0 // pred_fallthru
    _
  // Predicated region
  $region18: #{_lambda_.5} parent=0 // pred_check
    _
  $region19: #{_lambda_.5} parent=0 // pred_check_branch
    %1646 = sbr.rel (0) target = $region21
  $region20: #{_lambda_.5} parent=0 // pred_region
    _
  $region21: #{_lambda_.5} parent=0 // pred_fallthru
    _
  // Predicated region
  $region22: #{_lambda_.5} parent=0 // pred_check
    _
  $region23: #{_lambda_.5} parent=0 // pred_check_branch
    %1648 = sbr.rel (0) target = $region25
  $region24: #{_lambda_.5} parent=0 // pred_region
    _
  $region25: #{_lambda_.5} parent=0 // pred_fallthru
    _
  // Predicated region
  $region26: #{_lambda_.5} parent=0 // pred_check
    _
  $region27: #{_lambda_.5} parent=0 // pred_check_branch
    %1650 = sbr.rel (0) target = $region29
  $region28: #{_lambda_.5} parent=0 // pred_region
    _
  $region29: #{_lambda_.5} parent=0 // pred_fallthru
    _
  // Predicated region
  $region30: #{_lambda_.5} parent=0 // pred_check
    _
  $region31: #{_lambda_.5} parent=0 // pred_check_branch
    %1652 = sbr.rel (0) target = $region33
  $region32: #{_lambda_.5} parent=0 // pred_region
    _
  $region33: #{_lambda_.5} parent=0 // pred_fallthru
    _
  // Predicated region
  $region34: #{_lambda_.5} parent=0 // pred_check
    _
  $region35: #{_lambda_.5} parent=0 // pred_check_branch
    %1654 = sbr.rel (0) target = $region37
  $region36: #{_lambda_.5} parent=0 // pred_region
    _
  $region37: #{_lambda_.5} parent=0 // pred_fallthru
    _

// kernel: _lambda_.6
$region0: #{_lambda_.6}
  #allocation0 [shape = 'u32[]', space=smem, size = 0x4, offset = 0x4, fixed_abs, tag = 'smem constant byte address 0x4 - core index']
  #allocation1 [shape = 'u32[72,128]{1,0:T(1,128)}', space=vmem, size = 0x9000, scoped, tag = 'internal scratch']
  %s0 = inlined_call_operand.vmem [shape: bf16[32,64,16], index: 0, kind: input, shape index: {}]
  %s1 = inlined_call_operand.vmem [shape: bf16[32,16,64], index: 1, kind: input, shape index: {}]
  %s2 = inlined_call_operand.vmem [shape: bf16[32,16,64], index: 2, kind: input, shape index: {}]
  %s3 = inlined_call_operand.vmem [shape: bf16[32,16,64], index: 3, kind: output, shape index: {}]
  %s4 = sld [smem:[#allocation0]]
  $region45: #{_lambda_.6} parent=0
    _
  %s6 = ssub.s32 1, %s4
  %s7 = scalar_select 0, %s6, %s4
  loop: start=0, step=1, limit=6
  $region2: #{_lambda_.6} parent=0 // loop_pre_header
    _
  $region3: #{_lambda_.6} parent=0 // loop_header
    %s9 = sphi 0, %s13
    %p10 = scmp.ge.s32.totalorder %s9, 6
    %s19 = sphi 0, %s21
    %s22 = sphi 0, %s19
    %s23 = sphi 0, %s22
    %s39 = sphi 0, %s23
    %s45 = sphi 0, %s47
    %s48 = sphi 0, %s45
    %s49 = sphi 0, %s48
    %s65 = sphi 0, %s49
    %s71 = sphi 0, %s73
    %s74 = sphi 0, %s71
    %s75 = sphi 0, %s74
    %s91 = sphi 0, %s75
    %s97 = sphi 0, %s99
    %s100 = sphi 0, %s97
    %s101 = sphi 0, %s100
    %s117 = sphi 0, %s101
  $region4: #{_lambda_.6} parent=0 // loop_header_branch
    %12 = sbr.rel (%p10) target = $region8
  $region5: #{_lambda_.6} parent=0 // loop_body
    %s14 = ssub.s32 %s9, 1
    %s15 = ssub.s32 %s9, 2
    %s16 = sadd.s32 %s9, 1
    %s17 = ssub.s32 %s9, %s16
    %p18 = scmp.eq.s32.totalorder %s17, 0
    %s20 = sadd.s32 %s19, 1
    %s21 = scalar_select %p18, %s19, %s20
    %p24 = pneg %p18
    %p25 = scmp.eq.s32.totalorder %s9, 3
    %p26 = por %p24, %p25
    %p27 = scmp.ne.s32.totalorder %s19, %s22
    %p28 = scmp.eq.s32.totalorder %s9, 0
    %p29 = por %p27, %p28
    %p30 = scmp.ne.s32.totalorder %s19, %s22
    %p31 = scmp.eq.s32.totalorder %s14, 3
    %p32 = por %p30, %p31
    %p33 = scmp.ne.s32.totalorder %s22, %s23
    %p34 = scmp.eq.s32.totalorder %s14, 0
    %p35 = por %p33, %p34
    %p36 = scmp.ne.s32.totalorder %s22, %s23
    %p37 = scmp.eq.s32.totalorder %s15, 3
    %p38 = por %p36, %p37
    %p40 = scmp.ne.s32.totalorder %s23, %s39
    %p41 = scmp.eq.s32.totalorder %s15, 0
    %p42 = por %p40, %p41
    %s43 = ssub.s32 %s9, %s16
    %p44 = scmp.eq.s32.totalorder %s43, 0
    %s46 = sadd.s32 %s45, 1
    %s47 = scalar_select %p44, %s45, %s46
    %p50 = pneg %p44
    %p51 = scmp.eq.s32.totalorder %s9, 3
    %p52 = por %p50, %p51
    %p53 = scmp.ne.s32.totalorder %s45, %s48
    %p54 = scmp.eq.s32.totalorder %s9, 0
    %p55 = por %p53, %p54
    %p56 = scmp.ne.s32.totalorder %s45, %s48
    %p57 = scmp.eq.s32.totalorder %s14, 3
    %p58 = por %p56, %p57
    %p59 = scmp.ne.s32.totalorder %s48, %s49
    %p60 = scmp.eq.s32.totalorder %s14, 0
    %p61 = por %p59, %p60
    %p62 = scmp.ne.s32.totalorder %s48, %s49
    %p63 = scmp.eq.s32.totalorder %s15, 3
    %p64 = por %p62, %p63
    %p66 = scmp.ne.s32.totalorder %s49, %s65
    %p67 = scmp.eq.s32.totalorder %s15, 0
    %p68 = por %p66, %p67
    %s69 = ssub.s32 %s9, %s16
    %p70 = scmp.eq.s32.totalorder %s69, 0
    %s72 = sadd.s32 %s71, 1
    %s73 = scalar_select %p70, %s71, %s72
    %p76 = pneg %p70
    %p77 = scmp.eq.s32.totalorder %s9, 3
    %p78 = por %p76, %p77
    %p79 = scmp.ne.s32.totalorder %s71, %s74
    %p80 = scmp.eq.s32.totalorder %s9, 0
    %p81 = por %p79, %p80
    %p82 = scmp.ne.s32.totalorder %s71, %s74
    %p83 = scmp.eq.s32.totalorder %s14, 3
    %p84 = por %p82, %p83
    %p85 = scmp.ne.s32.totalorder %s74, %s75
    %p86 = scmp.eq.s32.totalorder %s14, 0
    %p87 = por %p85, %p86
    %p88 = scmp.ne.s32.totalorder %s74, %s75
    %p89 = scmp.eq.s32.totalorder %s15, 3
    %p90 = por %p88, %p89
    %p92 = scmp.ne.s32.totalorder %s75, %s91
    %p93 = scmp.eq.s32.totalorder %s15, 0
    %p94 = por %p92, %p93
    %s95 = ssub.s32 %s9, %s16
    %p96 = scmp.eq.s32.totalorder %s95, 0
    %s98 = sadd.s32 %s97, 1
    %s99 = scalar_select %p96, %s97, %s98
    %p102 = pneg %p96
    %p103 = scmp.eq.s32.totalorder %s9, 3
    %p104 = por %p102, %p103
    %p105 = scmp.ne.s32.totalorder %s97, %s100
    %p106 = scmp.eq.s32.totalorder %s9, 0
    %p107 = por %p105, %p106
    %p108 = scmp.ne.s32.totalorder %s97, %s100
    %p109 = scmp.eq.s32.totalorder %s14, 3
    %p110 = por %p108, %p109
    %p111 = scmp.ne.s32.totalorder %s100, %s101
    %p112 = scmp.eq.s32.totalorder %s14, 0
    %p113 = por %p111, %p112
    %p114 = scmp.ne.s32.totalorder %s100, %s101
    %p115 = scmp.eq.s32.totalorder %s15, 3
    %p116 = por %p114, %p115
    %p118 = scmp.ne.s32.totalorder %s101, %s117
    %p119 = scmp.eq.s32.totalorder %s15, 0
    %p120 = por %p118, %p119
    %p121 = scmp.le.s32.totalorder 1, %s9
    %p122 = scmp.lt.s32.totalorder %s9, 5
    %p123 = pnand %p121, %p122
    %p124 = pneg %p123
    // Predicated region
    $region9: #{_lambda_.6} parent=5 // pred_check
      _
    $region10: #{_lambda_.6} parent=5 // pred_check_branch
      %126 = sbr.rel (%p123) target = $region12
    $region11: #{_lambda_.6} parent=5 // pred_region
      %s127 = ssub.s32 %s9, 1
    $region12: #{_lambda_.6} parent=5 // pred_fallthru
      _
    %p128 = scmp.lt.s32.totalorder %s9, 4
    // Predicated region
    $region13: #{_lambda_.6} parent=5 // pred_check
      %p129 = pneg %p128
    $region14: #{_lambda_.6} parent=5 // pred_check_branch
      %131 = sbr.rel (%p129) target = $region16
    $region15: #{_lambda_.6} parent=5 // pred_region
      // Predicated region
      $region17: #{_lambda_.6} parent=15 // pred_check
        %p132 = pneg %p29
      $region18: #{_lambda_.6} parent=15 // pred_check_branch
        %134 = sbr.rel (%p132) target = $region20
      $region19: #{_lambda_.6} parent=15 // pred_region
        %s135 = smul.u32 8, %s9
        %p136 = scmp.lt.s32.totalorder %s135, 31
        %s137 = scalar_select %p136, %s135, 31
        %s138 = smul.addr %s137, 8
        %s139 = smul.addr %s138, 4
        %s140 = scalar_lea.vmem %s0, %s139
        %s141 = smul.u32 8, %s9
      $region20: #{_lambda_.6} parent=15 // pred_fallthru
        _
      // Predicated region
      $region21: #{_lambda_.6} parent=15 // pred_check
        %p142 = pneg %p55
      $region22: #{_lambda_.6} parent=15 // pred_check_branch
        %144 = sbr.rel (%p142) target = $region24
      $region23: #{_lambda_.6} parent=15 // pred_region
        %s145 = smul.u32 8, %s9
        %p146 = scmp.lt.s32.totalorder %s145, 31
        %s147 = scalar_select %p146, %s145, 31
        %s148 = smul.addr %s147, 2
        %s149 = smul.addr %s148, 4
        %s150 = scalar_lea.vmem %s1, %s149
        %s151 = smul.u32 8, %s9
      $region24: #{_lambda_.6} parent=15 // pred_fallthru
        _
      // Predicated region
      $region25: #{_lambda_.6} parent=15 // pred_check
        %p152 = pneg %p81
      $region26: #{_lambda_.6} parent=15 // pred_check_branch
        %154 = sbr.rel (%p152) target = $region28
      $region27: #{_lambda_.6} parent=15 // pred_region
        %s155 = smul.u32 8, %s9
        %p156 = scmp.lt.s32.totalorder %s155, 31
        %s157 = scalar_select %p156, %s155, 31
        %s158 = smul.addr %s157, 2
        %s159 = smul.addr %s158, 4
        %s160 = scalar_lea.vmem %s2, %s159
        %s161 = smul.u32 8, %s9
      $region28: #{_lambda_.6} parent=15 // pred_fallthru
        _
    $region16: #{_lambda_.6} parent=5 // pred_fallthru
      _
    %p162 = scmp.le.s32.totalorder 1, %s9
    %p163 = scmp.lt.s32.totalorder %s9, 5
    %p164 = pnand %p162, %p163
    %p165 = pneg %p164
    // Predicated region
    $region29: #{_lambda_.6} parent=5 // pred_check
      _
    $region30: #{_lambda_.6} parent=5 // pred_check_branch
      %167 = sbr.rel (%p164) target = $region32
    $region31: #{_lambda_.6} parent=5 // pred_region
      %s168 = ssub.s32 %s9, 1
      %s169 = smul.u32 8, %s14
      %p170 = scmp.lt.s32.totalorder %s169, 31
      %s171 = scalar_select %p170, %s169, 31
      %s172 = smul.addr %s171, 8
      %s173 = smul.addr %s172, 4
      %s174 = scalar_lea.vmem %s0, %s173
      %p175 = pneg %p35
      %p176 = pneg %p32
      %s177 = smul.u32 8, %s14
      %p178 = scmp.lt.s32.totalorder %s177, 31
      %s179 = scalar_select %p178, %s177, 31
      %s180 = smul.addr %s179, 2
      %s181 = smul.addr %s180, 4
      %s182 = scalar_lea.vmem %s1, %s181
      %p183 = pneg %p61
      %p184 = pneg %p58
      %s185 = smul.u32 8, %s14
      %p186 = scmp.lt.s32.totalorder %s185, 31
      %s187 = scalar_select %p186, %s185, 31
      %s188 = smul.addr %s187, 2
      %s189 = smul.addr %s188, 4
      %s190 = scalar_lea.vmem %s2, %s189
      %p191 = pneg %p87
      %p192 = pneg %p84
      %p193 = pneg %p113
      %p194 = pneg %p110
      %s195 = smul.u32 8, %s14
      %p196 = scmp.lt.s32.totalorder %s195, 31
      %s197 = scalar_select %p196, %s195, 31
      %s198 = smul.addr %s197, 2
      %s199 = smul.addr %s198, 4
      %s200 = scalar_lea.vmem %s3, %s199
      %s201 = smul.u32 8, %s14
      %p202 = scmp.lt.s32.totalorder %s201, 31
      %s203 = scalar_select %p202, %s201, 31
      %s204 = smul.addr %s203, 8
      %s205 = smul.addr %s204, 4
      %s206 = scalar_lea.vmem %s0, %s205
      %s207 = smul.u32 8, %s14
      %s208 = smul.u32 8, %s14
      %p209 = scmp.lt.s32.totalorder %s208, 31
      %s210 = scalar_select %p209, %s208, 31
      %s211 = smul.addr %s210, 2
      %s212 = smul.addr %s211, 4
      %s213 = scalar_lea.vmem %s1, %s212
      %s214 = smul.u32 8, %s14
      %s215 = smul.u32 8, %s14
      %p216 = scmp.lt.s32.totalorder %s215, 31
      %s217 = scalar_select %p216, %s215, 31
      %s218 = smul.addr %s217, 2
      %s219 = smul.addr %s218, 4
      %s220 = scalar_lea.vmem %s2, %s219
      %s221 = smul.u32 8, %s14
      %s222 = smul.u32 8, %s14
      %p223 = scmp.lt.s32.totalorder %s222, 31
      %s224 = scalar_select %p223, %s222, 31
      %s225 = smul.addr %s224, 2
      %s226 = smul.addr %s225, 4
      %s227 = scalar_lea.vmem %s3, %s226
      %s228 = smul.u32 8, %s14
      %v230 = vld [vmem:[%s206] sm:$0xf]
      %v231 = vld [vmem:[%s206 + $0x4] sm:$0xf]
      %v232 = vld [vmem:[%s206 + $0x8] sm:$0xf]
      %v233 = vld [vmem:[%s206 + $0xc] sm:$0xf]
      %v234 = vld [vmem:[%s206 + $0x10] sm:$0xf]
      %v235 = vld [vmem:[%s206 + $0x14] sm:$0xf]
      %v236 = vld [vmem:[%s206 + $0x18] sm:$0xf]
      %v237 = vld [vmem:[%s206 + $0x1c] sm:$0xf]
      %v238 = vld [vmem:[%s206 + $0x20] sm:$0xf]
      %v239 = vld [vmem:[%s206 + $0x24] sm:$0xf]
      %v240 = vld [vmem:[%s206 + $0x28] sm:$0xf]
      %v241 = vld [vmem:[%s206 + $0x2c] sm:$0xf]
      %v242 = vld [vmem:[%s206 + $0x30] sm:$0xf]
      %v243 = vld [vmem:[%s206 + $0x34] sm:$0xf]
      %v244 = vld [vmem:[%s206 + $0x38] sm:$0xf]
      %v245 = vld [vmem:[%s206 + $0x3c] sm:$0xf]
      %v246 = vld [vmem:[%s206 + $0x40] sm:$0xf]
      %v247 = vld [vmem:[%s206 + $0x44] sm:$0xf]
      %v248 = vld [vmem:[%s206 + $0x48] sm:$0xf]
      %v249 = vld [vmem:[%s206 + $0x4c] sm:$0xf]
      %v250 = vld [vmem:[%s206 + $0x50] sm:$0xf]
      %v251 = vld [vmem:[%s206 + $0x54] sm:$0xf]
      %v252 = vld [vmem:[%s206 + $0x58] sm:$0xf]
      %v253 = vld [vmem:[%s206 + $0x5c] sm:$0xf]
      %v254 = vld [vmem:[%s206 + $0x60] sm:$0xf]
      %v255 = vld [vmem:[%s206 + $0x64] sm:$0xf]
      %v256 = vld [vmem:[%s206 + $0x68] sm:$0xf]
      %v257 = vld [vmem:[%s206 + $0x6c] sm:$0xf]
      %v258 = vld [vmem:[%s206 + $0x70] sm:$0xf]
      %v259 = vld [vmem:[%s206 + $0x74] sm:$0xf]
      %v260 = vld [vmem:[%s206 + $0x78] sm:$0xf]
      %v261 = vld [vmem:[%s206 + $0x7c] sm:$0xf]
      %v262 = vld [vmem:[%s206 + $0x80] sm:$0xf]
      %v263 = vld [vmem:[%s206 + $0x84] sm:$0xf]
      %v264 = vld [vmem:[%s206 + $0x88] sm:$0xf]
      %v265 = vld [vmem:[%s206 + $0x8c] sm:$0xf]
      %v266 = vld [vmem:[%s206 + $0x90] sm:$0xf]
      %v267 = vld [vmem:[%s206 + $0x94] sm:$0xf]
      %v268 = vld [vmem:[%s206 + $0x98] sm:$0xf]
      %v269 = vld [vmem:[%s206 + $0x9c] sm:$0xf]
      %v270 = vld [vmem:[%s206 + $0xa0] sm:$0xf]
      %v271 = vld [vmem:[%s206 + $0xa4] sm:$0xf]
      %v272 = vld [vmem:[%s206 + $0xa8] sm:$0xf]
      %v273 = vld [vmem:[%s206 + $0xac] sm:$0xf]
      %v274 = vld [vmem:[%s206 + $0xb0] sm:$0xf]
      %v275 = vld [vmem:[%s206 + $0xb4] sm:$0xf]
      %v276 = vld [vmem:[%s206 + $0xb8] sm:$0xf]
      %v277 = vld [vmem:[%s206 + $0xbc] sm:$0xf]
      %v278 = vld [vmem:[%s206 + $0xc0] sm:$0xf]
      %v279 = vld [vmem:[%s206 + $0xc4] sm:$0xf]
      %v280 = vld [vmem:[%s206 + $0xc8] sm:$0xf]
      %v281 = vld [vmem:[%s206 + $0xcc] sm:$0xf]
      %v282 = vld [vmem:[%s206 + $0xd0] sm:$0xf]
      %v283 = vld [vmem:[%s206 + $0xd4] sm:$0xf]
      %v284 = vld [vmem:[%s206 + $0xd8] sm:$0xf]
      %v285 = vld [vmem:[%s206 + $0xdc] sm:$0xf]
      %v286 = vld [vmem:[%s206 + $0xe0] sm:$0xf]
      %v287 = vld [vmem:[%s206 + $0xe4] sm:$0xf]
      %v288 = vld [vmem:[%s206 + $0xe8] sm:$0xf]
      %v289 = vld [vmem:[%s206 + $0xec] sm:$0xf]
      %v290 = vld [vmem:[%s206 + $0xf0] sm:$0xf]
      %v291 = vld [vmem:[%s206 + $0xf4] sm:$0xf]
      %v292 = vld [vmem:[%s206 + $0xf8] sm:$0xf]
      %v293 = vld [vmem:[%s206 + $0xfc] sm:$0xf]
      %v294 = vld [vmem:[%s213] sm:$0xf]
      %v295 = vld [vmem:[%s213 + $0x4] sm:$0xf]
      %v296 = vld [vmem:[%s213 + $0x8] sm:$0xf]
      %v297 = vld [vmem:[%s213 + $0xc] sm:$0xf]
      %v298 = vld [vmem:[%s213 + $0x10] sm:$0xf]
      %v299 = vld [vmem:[%s213 + $0x14] sm:$0xf]
      %v300 = vld [vmem:[%s213 + $0x18] sm:$0xf]
      %v301 = vld [vmem:[%s213 + $0x1c] sm:$0xf]
      %v302 = vld [vmem:[%s213 + $0x20] sm:$0xf]
      %v303 = vld [vmem:[%s213 + $0x24] sm:$0xf]
      %v304 = vld [vmem:[%s213 + $0x28] sm:$0xf]
      %v305 = vld [vmem:[%s213 + $0x2c] sm:$0xf]
      %v306 = vld [vmem:[%s213 + $0x30] sm:$0xf]
      %v307 = vld [vmem:[%s213 + $0x34] sm:$0xf]
      %v308 = vld [vmem:[%s213 + $0x38] sm:$0xf]
      %v309 = vld [vmem:[%s213 + $0x3c] sm:$0xf]
      %v310 = vld [vmem:[%s220] sm:$0xf]
      %v311 = vld [vmem:[%s220 + $0x4] sm:$0xf]
      %v312 = vld [vmem:[%s220 + $0x8] sm:$0xf]
      %v313 = vld [vmem:[%s220 + $0xc] sm:$0xf]
      %v314 = vld [vmem:[%s220 + $0x10] sm:$0xf]
      %v315 = vld [vmem:[%s220 + $0x14] sm:$0xf]
      %v316 = vld [vmem:[%s220 + $0x18] sm:$0xf]
      %v317 = vld [vmem:[%s220 + $0x1c] sm:$0xf]
      %v318 = vld [vmem:[%s220 + $0x20] sm:$0xf]
      %v319 = vld [vmem:[%s220 + $0x24] sm:$0xf]
      %v320 = vld [vmem:[%s220 + $0x28] sm:$0xf]
      %v321 = vld [vmem:[%s220 + $0x2c] sm:$0xf]
      %v322 = vld [vmem:[%s220 + $0x30] sm:$0xf]
      %v323 = vld [vmem:[%s220 + $0x34] sm:$0xf]
      %v324 = vld [vmem:[%s220 + $0x38] sm:$0xf]
      %v325 = vld [vmem:[%s220 + $0x3c] sm:$0xf]
      %v334 = vunpack.c.l.b16 %v230
      %v335 = vunpack.c.l.b16 %v231
      %v336 = vunpack.c.l.b16 %v232
      %v337 = vunpack.c.l.b16 %v233
      %v338 = vunpack.c.l.b16 %v234
      %v339 = vunpack.c.l.b16 %v235
      %v340 = vunpack.c.l.b16 %v236
      %v341 = vunpack.c.l.b16 %v237
      %v342 = vpack.c.b16 %v335, %v334
      %v343 = vpack.c.b16 %v337, %v336
      %v344 = vpack.c.b16 %v339, %v338
      %v345 = vpack.c.b16 %v341, %v340
      %v348 = vunpack.c.l.b16 %v294
      %v349 = vunpack.c.l.b16 %v295
      %v350 = vpack.c.b16 %v349, %v348
      %vm352 = vcmask 130048
      %v354 = vsel %vm352, %v342, 0
      %v357 = vsel %vm352, %v343, 0
      %v360 = vsel %vm352, %v344, 0
      %v363 = vsel %vm352, %v345, 0
      %365 = vmatpush.bf16.msra.mxu0 0
      %366 = vmatpush.bf16.msra.mxu0 0
      %367 = vmatpush.bf16.msra.mxu0 0
      %368 = vmatpush.bf16.msra.mxu0 0
      %369 = vmatpush.bf16.msra.mxu0 0
      %370 = vmatpush.bf16.msra.mxu0 0
      %371 = vmatpush.bf16.msra.mxu0 0
      %372 = vmatpush.bf16.msra.mxu0 %v350
      %373 = vmatmul.bf16.gmra.mxu0 %v354
      %v374 = vpop.f32.mrf.mxu0
      %v375 = vadd.f32 0.0, %v374
      %v376 = vpop.f32.mrf.mxu0
      %v377 = vadd.f32 0.0, %v376
      %378 = vmatmul.bf16.gmra.mxu0 %v357
      %v379 = vpop.f32.mrf.mxu0
      %v380 = vadd.f32 0.0, %v379
      %v381 = vpop.f32.mrf.mxu0
      %v382 = vadd.f32 0.0, %v381
      %383 = vmatmul.bf16.gmra.mxu0 %v360
      %v384 = vpop.f32.mrf.mxu0
      %v385 = vadd.f32 0.0, %v384
      %v386 = vpop.f32.mrf.mxu0
      %v387 = vadd.f32 0.0, %v386
      %388 = vmatmul.bf16.gmra.mxu0 %v363
      %v389 = vpop.f32.mrf.mxu0
      %v390 = vadd.f32 0.0, %v389
      %v391 = vpop.f32.mrf.mxu0
      %v392 = vadd.f32 0.0, %v391
      %393 = vdwg.mxu0
      %v402 = vunpack.c.l.b16 %v238
      %v403 = vunpack.c.l.b16 %v239
      %v404 = vunpack.c.l.b16 %v240
      %v405 = vunpack.c.l.b16 %v241
      %v406 = vunpack.c.l.b16 %v242
      %v407 = vunpack.c.l.b16 %v243
      %v408 = vunpack.c.l.b16 %v244
      %v409 = vunpack.c.l.b16 %v245
      %v410 = vpack.c.b16 %v403, %v402
      %v411 = vpack.c.b16 %v405, %v404
      %v412 = vpack.c.b16 %v407, %v406
      %v413 = vpack.c.b16 %v409, %v408
      %v416 = vunpack.c.l.b16 %v296
      %v417 = vunpack.c.l.b16 %v297
      %v418 = vpack.c.b16 %v417, %v416
      %v421 = vsel %vm352, %v410, 0
      %v424 = vsel %vm352, %v411, 0
      %v427 = vsel %vm352, %v412, 0
      %v430 = vsel %vm352, %v413, 0
      %432 = vmatpush.bf16.msra.mxu0 0
      %433 = vmatpush.bf16.msra.mxu0 0
      %434 = vmatpush.bf16.msra.mxu0 0
      %435 = vmatpush.bf16.msra.mxu0 0
      %436 = vmatpush.bf16.msra.mxu0 0
      %437 = vmatpush.bf16.msra.mxu0 0
      %438 = vmatpush.bf16.msra.mxu0 0
      %439 = vmatpush.bf16.msra.mxu0 %v418
      %440 = vmatmul.bf16.gmra.mxu0 %v421
      %v441 = vpop.f32.mrf.mxu0
      %v442 = vadd.f32 0.0, %v441
      %v443 = vpop.f32.mrf.mxu0
      %v444 = vadd.f32 0.0, %v443
      %445 = vmatmul.bf16.gmra.mxu0 %v424
      %v446 = vpop.f32.mrf.mxu0
      %v447 = vadd.f32 0.0, %v446
      %v448 = vpop.f32.mrf.mxu0
      %v449 = vadd.f32 0.0, %v448
      %450 = vmatmul.bf16.gmra.mxu0 %v427
      %v451 = vpop.f32.mrf.mxu0
      %v452 = vadd.f32 0.0, %v451
      %v453 = vpop.f32.mrf.mxu0
      %v454 = vadd.f32 0.0, %v453
      %455 = vmatmul.bf16.gmra.mxu0 %v430
      %v456 = vpop.f32.mrf.mxu0
      %v457 = vadd.f32 0.0, %v456
      %v458 = vpop.f32.mrf.mxu0
      %v459 = vadd.f32 0.0, %v458
      %460 = vdwg.mxu0
      %v469 = vunpack.c.l.b16 %v246
      %v470 = vunpack.c.l.b16 %v247
      %v471 = vunpack.c.l.b16 %v248
      %v472 = vunpack.c.l.b16 %v249
      %v473 = vunpack.c.l.b16 %v250
      %v474 = vunpack.c.l.b16 %v251
      %v475 = vunpack.c.l.b16 %v252
      %v476 = vunpack.c.l.b16 %v253
      %v477 = vpack.c.b16 %v470, %v469
      %v478 = vpack.c.b16 %v472, %v471
      %v479 = vpack.c.b16 %v474, %v473
      %v480 = vpack.c.b16 %v476, %v475
      %v483 = vunpack.c.l.b16 %v298
      %v484 = vunpack.c.l.b16 %v299
      %v485 = vpack.c.b16 %v484, %v483
      %v488 = vsel %vm352, %v477, 0
      %v491 = vsel %vm352, %v478, 0
      %v494 = vsel %vm352, %v479, 0
      %v497 = vsel %vm352, %v480, 0
      %499 = vmatpush.bf16.msra.mxu0 0
      %500 = vmatpush.bf16.msra.mxu0 0
      %501 = vmatpush.bf16.msra.mxu0 0
      %502 = vmatpush.bf16.msra.mxu0 0
      %503 = vmatpush.bf16.msra.mxu0 0
      %504 = vmatpush.bf16.msra.mxu0 0
      %505 = vmatpush.bf16.msra.mxu0 0
      %506 = vmatpush.bf16.msra.mxu0 %v485
      %507 = vmatmul.bf16.gmra.mxu0 %v488
      %v508 = vpop.f32.mrf.mxu0
      %v509 = vadd.f32 0.0, %v508
      %v510 = vpop.f32.mrf.mxu0
      %v511 = vadd.f32 0.0, %v510
      %512 = vmatmul.bf16.gmra.mxu0 %v491
      %v513 = vpop.f32.mrf.mxu0
      %v514 = vadd.f32 0.0, %v513
      %v515 = vpop.f32.mrf.mxu0
      %v516 = vadd.f32 0.0, %v515
      %517 = vmatmul.bf16.gmra.mxu0 %v494
      %v518 = vpop.f32.mrf.mxu0
      %v519 = vadd.f32 0.0, %v518
      %v520 = vpop.f32.mrf.mxu0
      %v521 = vadd.f32 0.0, %v520
      %522 = vmatmul.bf16.gmra.mxu0 %v497
      %v523 = vpop.f32.mrf.mxu0
      %v524 = vadd.f32 0.0, %v523
      %v525 = vpop.f32.mrf.mxu0
      %v526 = vadd.f32 0.0, %v525
      %527 = vdwg.mxu0
      %v536 = vunpack.c.l.b16 %v254
      %v537 = vunpack.c.l.b16 %v255
      %v538 = vunpack.c.l.b16 %v256
      %v539 = vunpack.c.l.b16 %v257
      %v540 = vunpack.c.l.b16 %v258
      %v541 = vunpack.c.l.b16 %v259
      %v542 = vunpack.c.l.b16 %v260
      %v543 = vunpack.c.l.b16 %v261
      %v544 = vpack.c.b16 %v537, %v536
      %v545 = vpack.c.b16 %v539, %v538
      %v546 = vpack.c.b16 %v541, %v540
      %v547 = vpack.c.b16 %v543, %v542
      %v550 = vunpack.c.l.b16 %v300
      %v551 = vunpack.c.l.b16 %v301
      %v552 = vpack.c.b16 %v551, %v550
      %v555 = vsel %vm352, %v544, 0
      %v558 = vsel %vm352, %v545, 0
      %v561 = vsel %vm352, %v546, 0
      %v564 = vsel %vm352, %v547, 0
      %566 = vmatpush.bf16.msra.mxu0 0
      %567 = vmatpush.bf16.msra.mxu0 0
      %568 = vmatpush.bf16.msra.mxu0 0
      %569 = vmatpush.bf16.msra.mxu0 0
      %570 = vmatpush.bf16.msra.mxu0 0
      %571 = vmatpush.bf16.msra.mxu0 0
      %572 = vmatpush.bf16.msra.mxu0 0
      %573 = vmatpush.bf16.msra.mxu0 %v552
      %574 = vmatmul.bf16.gmra.mxu0 %v555
      %v575 = vpop.f32.mrf.mxu0
      %v576 = vadd.f32 0.0, %v575
      %v577 = vpop.f32.mrf.mxu0
      %v578 = vadd.f32 0.0, %v577
      %579 = vmatmul.bf16.gmra.mxu0 %v558
      %v580 = vpop.f32.mrf.mxu0
      %v581 = vadd.f32 0.0, %v580
      %v582 = vpop.f32.mrf.mxu0
      %v583 = vadd.f32 0.0, %v582
      %584 = vmatmul.bf16.gmra.mxu0 %v561
      %v585 = vpop.f32.mrf.mxu0
      %v586 = vadd.f32 0.0, %v585
      %v587 = vpop.f32.mrf.mxu0
      %v588 = vadd.f32 0.0, %v587
      %589 = vmatmul.bf16.gmra.mxu0 %v564
      %v590 = vpop.f32.mrf.mxu0
      %v591 = vadd.f32 0.0, %v590
      %v592 = vpop.f32.mrf.mxu0
      %v593 = vadd.f32 0.0, %v592
      %594 = vdwg.mxu0
      %v603 = vunpack.c.l.b16 %v262
      %v604 = vunpack.c.l.b16 %v263
      %v605 = vunpack.c.l.b16 %v264
      %v606 = vunpack.c.l.b16 %v265
      %v607 = vunpack.c.l.b16 %v266
      %v608 = vunpack.c.l.b16 %v267
      %v609 = vunpack.c.l.b16 %v268
      %v610 = vunpack.c.l.b16 %v269
      %v611 = vpack.c.b16 %v604, %v603
      %v612 = vpack.c.b16 %v606, %v605
      %v613 = vpack.c.b16 %v608, %v607
      %v614 = vpack.c.b16 %v610, %v609
      %v617 = vunpack.c.l.b16 %v302
      %v618 = vunpack.c.l.b16 %v303
      %v619 = vpack.c.b16 %v618, %v617
      %v622 = vsel %vm352, %v611, 0
      %v625 = vsel %vm352, %v612, 0
      %v628 = vsel %vm352, %v613, 0
      %v631 = vsel %vm352, %v614, 0
      %633 = vmatpush.bf16.msra.mxu0 0
      %634 = vmatpush.bf16.msra.mxu0 0
      %635 = vmatpush.bf16.msra.mxu0 0
      %636 = vmatpush.bf16.msra.mxu0 0
      %637 = vmatpush.bf16.msra.mxu0 0
      %638 = vmatpush.bf16.msra.mxu0 0
      %639 = vmatpush.bf16.msra.mxu0 0
      %640 = vmatpush.bf16.msra.mxu0 %v619
      %641 = vmatmul.bf16.gmra.mxu0 %v622
      %v642 = vpop.f32.mrf.mxu0
      %v643 = vadd.f32 0.0, %v642
      %v644 = vpop.f32.mrf.mxu0
      %v645 = vadd.f32 0.0, %v644
      %646 = vmatmul.bf16.gmra.mxu0 %v625
      %v647 = vpop.f32.mrf.mxu0
      %v648 = vadd.f32 0.0, %v647
      %v649 = vpop.f32.mrf.mxu0
      %v650 = vadd.f32 0.0, %v649
      %651 = vmatmul.bf16.gmra.mxu0 %v628
      %v652 = vpop.f32.mrf.mxu0
      %v653 = vadd.f32 0.0, %v652
      %v654 = vpop.f32.mrf.mxu0
      %v655 = vadd.f32 0.0, %v654
      %656 = vmatmul.bf16.gmra.mxu0 %v631
      %v657 = vpop.f32.mrf.mxu0
      %v658 = vadd.f32 0.0, %v657
      %v659 = vpop.f32.mrf.mxu0
      %v660 = vadd.f32 0.0, %v659
      %661 = vdwg.mxu0
      %v670 = vunpack.c.l.b16 %v270
      %v671 = vunpack.c.l.b16 %v271
      %v672 = vunpack.c.l.b16 %v272
      %v673 = vunpack.c.l.b16 %v273
      %v674 = vunpack.c.l.b16 %v274
      %v675 = vunpack.c.l.b16 %v275
      %v676 = vunpack.c.l.b16 %v276
      %v677 = vunpack.c.l.b16 %v277
      %v678 = vpack.c.b16 %v671, %v670
      %v679 = vpack.c.b16 %v673, %v672
      %v680 = vpack.c.b16 %v675, %v674
      %v681 = vpack.c.b16 %v677, %v676
      %v684 = vunpack.c.l.b16 %v304
      %v685 = vunpack.c.l.b16 %v305
      %v686 = vpack.c.b16 %v685, %v684
      %v689 = vsel %vm352, %v678, 0
      %v692 = vsel %vm352, %v679, 0
      %v695 = vsel %vm352, %v680, 0
      %v698 = vsel %vm352, %v681, 0
      %700 = vmatpush.bf16.msra.mxu0 0
      %701 = vmatpush.bf16.msra.mxu0 0
      %702 = vmatpush.bf16.msra.mxu0 0
      %703 = vmatpush.bf16.msra.mxu0 0
      %704 = vmatpush.bf16.msra.mxu0 0
      %705 = vmatpush.bf16.msra.mxu0 0
      %706 = vmatpush.bf16.msra.mxu0 0
      %707 = vmatpush.bf16.msra.mxu0 %v686
      %708 = vmatmul.bf16.gmra.mxu0 %v689
      %v709 = vpop.f32.mrf.mxu0
      %v710 = vadd.f32 0.0, %v709
      %v711 = vpop.f32.mrf.mxu0
      %v712 = vadd.f32 0.0, %v711
      %713 = vmatmul.bf16.gmra.mxu0 %v692
      %v714 = vpop.f32.mrf.mxu0
      %v715 = vadd.f32 0.0, %v714
      %v716 = vpop.f32.mrf.mxu0
      %v717 = vadd.f32 0.0, %v716
      %718 = vmatmul.bf16.gmra.mxu0 %v695
      %v719 = vpop.f32.mrf.mxu0
      %v720 = vadd.f32 0.0, %v719
      %v721 = vpop.f32.mrf.mxu0
      %v722 = vadd.f32 0.0, %v721
      %723 = vmatmul.bf16.gmra.mxu0 %v698
      %v724 = vpop.f32.mrf.mxu0
      %v725 = vadd.f32 0.0, %v724
      %v726 = vpop.f32.mrf.mxu0
      %v727 = vadd.f32 0.0, %v726
      %728 = vdwg.mxu0
      %v737 = vunpack.c.l.b16 %v278
      %v738 = vunpack.c.l.b16 %v279
      %v739 = vunpack.c.l.b16 %v280
      %v740 = vunpack.c.l.b16 %v281
      %v741 = vunpack.c.l.b16 %v282
      %v742 = vunpack.c.l.b16 %v283
      %v743 = vunpack.c.l.b16 %v284
      %v744 = vunpack.c.l.b16 %v285
      %v745 = vpack.c.b16 %v738, %v737
      %v746 = vpack.c.b16 %v740, %v739
      %v747 = vpack.c.b16 %v742, %v741
      %v748 = vpack.c.b16 %v744, %v743
      %v751 = vunpack.c.l.b16 %v306
      %v752 = vunpack.c.l.b16 %v307
      %v753 = vpack.c.b16 %v752, %v751
      %v756 = vsel %vm352, %v745, 0
      %v759 = vsel %vm352, %v746, 0
      %v762 = vsel %vm352, %v747, 0
      %v765 = vsel %vm352, %v748, 0
      %767 = vmatpush.bf16.msra.mxu0 0
      %768 = vmatpush.bf16.msra.mxu0 0
      %769 = vmatpush.bf16.msra.mxu0 0
      %770 = vmatpush.bf16.msra.mxu0 0
      %771 = vmatpush.bf16.msra.mxu0 0
      %772 = vmatpush.bf16.msra.mxu0 0
      %773 = vmatpush.bf16.msra.mxu0 0
      %774 = vmatpush.bf16.msra.mxu0 %v753
      %775 = vmatmul.bf16.gmra.mxu0 %v756
      %v776 = vpop.f32.mrf.mxu0
      %v777 = vadd.f32 0.0, %v776
      %v778 = vpop.f32.mrf.mxu0
      %v779 = vadd.f32 0.0, %v778
      %780 = vmatmul.bf16.gmra.mxu0 %v759
      %v781 = vpop.f32.mrf.mxu0
      %v782 = vadd.f32 0.0, %v781
      %v783 = vpop.f32.mrf.mxu0
      %v784 = vadd.f32 0.0, %v783
      %785 = vmatmul.bf16.gmra.mxu0 %v762
      %v786 = vpop.f32.mrf.mxu0
      %v787 = vadd.f32 0.0, %v786
      %v788 = vpop.f32.mrf.mxu0
      %v789 = vadd.f32 0.0, %v788
      %790 = vmatmul.bf16.gmra.mxu0 %v765
      %v791 = vpop.f32.mrf.mxu0
      %v792 = vadd.f32 0.0, %v791
      %v793 = vpop.f32.mrf.mxu0
      %v794 = vadd.f32 0.0, %v793
      %795 = vdwg.mxu0
      %v804 = vunpack.c.l.b16 %v286
      %v805 = vunpack.c.l.b16 %v287
      %v806 = vunpack.c.l.b16 %v288
      %v807 = vunpack.c.l.b16 %v289
      %v808 = vunpack.c.l.b16 %v290
      %v809 = vunpack.c.l.b16 %v291
      %v810 = vunpack.c.l.b16 %v292
      %v811 = vunpack.c.l.b16 %v293
      %v812 = vpack.c.b16 %v805, %v804
      %v813 = vpack.c.b16 %v807, %v806
      %v814 = vpack.c.b16 %v809, %v808
      %v815 = vpack.c.b16 %v811, %v810
      %v818 = vunpack.c.l.b16 %v308
      %v819 = vunpack.c.l.b16 %v309
      %v820 = vpack.c.b16 %v819, %v818
      %v823 = vsel %vm352, %v812, 0
      %v826 = vsel %vm352, %v813, 0
      %v829 = vsel %vm352, %v814, 0
      %v832 = vsel %vm352, %v815, 0
      %834 = vmatpush.bf16.msra.mxu0 0
      %835 = vmatpush.bf16.msra.mxu0 0
      %836 = vmatpush.bf16.msra.mxu0 0
      %837 = vmatpush.bf16.msra.mxu0 0
      %838 = vmatpush.bf16.msra.mxu0 0
      %839 = vmatpush.bf16.msra.mxu0 0
      %840 = vmatpush.bf16.msra.mxu0 0
      %841 = vmatpush.bf16.msra.mxu0 %v820
      %842 = vmatmul.bf16.gmra.mxu0 %v823
      %v843 = vpop.f32.mrf.mxu0
      %v844 = vadd.f32 0.0, %v843
      %v845 = vpop.f32.mrf.mxu0
      %v846 = vadd.f32 0.0, %v845
      %847 = vmatmul.bf16.gmra.mxu0 %v826
      %v848 = vpop.f32.mrf.mxu0
      %v849 = vadd.f32 0.0, %v848
      %v850 = vpop.f32.mrf.mxu0
      %v851 = vadd.f32 0.0, %v850
      %852 = vmatmul.bf16.gmra.mxu0 %v829
      %v853 = vpop.f32.mrf.mxu0
      %v854 = vadd.f32 0.0, %v853
      %v855 = vpop.f32.mrf.mxu0
      %v856 = vadd.f32 0.0, %v855
      %857 = vmatmul.bf16.gmra.mxu0 %v832
      %v858 = vpop.f32.mrf.mxu0
      %v859 = vadd.f32 0.0, %v858
      %v860 = vpop.f32.mrf.mxu0
      %v861 = vadd.f32 0.0, %v860
      %862 = vdwg.mxu0
      %v863 = vpack.c.bf16 %v375, %v375
      %v864 = vpack.c.bf16 %v377, %v377
      %v865 = vpack.c.bf16 %v380, %v380
      %v866 = vpack.c.bf16 %v382, %v382
      %v867 = vpack.c.bf16 %v385, %v385
      %v868 = vpack.c.bf16 %v387, %v387
      %v869 = vpack.c.bf16 %v390, %v390
      %v870 = vpack.c.bf16 %v392, %v392
      %v871 = vpack.c.bf16 %v442, %v442
      %v872 = vpack.c.bf16 %v444, %v444
      %v873 = vpack.c.bf16 %v447, %v447
      %v874 = vpack.c.bf16 %v449, %v449
      %v875 = vpack.c.bf16 %v452, %v452
      %v876 = vpack.c.bf16 %v454, %v454
      %v877 = vpack.c.bf16 %v457, %v457
      %v878 = vpack.c.bf16 %v459, %v459
      %v879 = vpack.c.bf16 %v509, %v509
      %v880 = vpack.c.bf16 %v511, %v511
      %v881 = vpack.c.bf16 %v514, %v514
      %v882 = vpack.c.bf16 %v516, %v516
      %v883 = vpack.c.bf16 %v519, %v519
      %v884 = vpack.c.bf16 %v521, %v521
      %v885 = vpack.c.bf16 %v524, %v524
      %v886 = vpack.c.bf16 %v526, %v526
      %v887 = vpack.c.bf16 %v576, %v576
      %v888 = vpack.c.bf16 %v578, %v578
      %v889 = vpack.c.bf16 %v581, %v581
      %v890 = vpack.c.bf16 %v583, %v583
      %v891 = vpack.c.bf16 %v586, %v586
      %v892 = vpack.c.bf16 %v588, %v588
      %v893 = vpack.c.bf16 %v591, %v591
      %v894 = vpack.c.bf16 %v593, %v593
      %v895 = vpack.c.bf16 %v643, %v643
      %v896 = vpack.c.bf16 %v645, %v645
      %v897 = vpack.c.bf16 %v648, %v648
      %v898 = vpack.c.bf16 %v650, %v650
      %v899 = vpack.c.bf16 %v653, %v653
      %v900 = vpack.c.bf16 %v655, %v655
      %v901 = vpack.c.bf16 %v658, %v658
      %v902 = vpack.c.bf16 %v660, %v660
      %v903 = vpack.c.bf16 %v710, %v710
      %v904 = vpack.c.bf16 %v712, %v712
      %v905 = vpack.c.bf16 %v715, %v715
      %v906 = vpack.c.bf16 %v717, %v717
      %v907 = vpack.c.bf16 %v720, %v720
      %v908 = vpack.c.bf16 %v722, %v722
      %v909 = vpack.c.bf16 %v725, %v725
      %v910 = vpack.c.bf16 %v727, %v727
      %v911 = vpack.c.bf16 %v777, %v777
      %v912 = vpack.c.bf16 %v779, %v779
      %v913 = vpack.c.bf16 %v782, %v782
      %v914 = vpack.c.bf16 %v784, %v784
      %v915 = vpack.c.bf16 %v787, %v787
      %v916 = vpack.c.bf16 %v789, %v789
      %v917 = vpack.c.bf16 %v792, %v792
      %v918 = vpack.c.bf16 %v794, %v794
      %v919 = vpack.c.bf16 %v844, %v844
      %v920 = vpack.c.bf16 %v846, %v846
      %v921 = vpack.c.bf16 %v849, %v849
      %v922 = vpack.c.bf16 %v851, %v851
      %v923 = vpack.c.bf16 %v854, %v854
      %v924 = vpack.c.bf16 %v856, %v856
      %v925 = vpack.c.bf16 %v859, %v859
      %v926 = vpack.c.bf16 %v861, %v861
      %v929 = vunpack.c.l.b16 %v310
      %v930 = vunpack.c.l.b16 %v311
      %v931 = vpack.c.b16 %v930, %v929
      %v940 = vunpack.c.l.b16 %v863
      %v941 = vunpack.c.l.b16 %v864
      %v942 = vunpack.c.l.b16 %v865
      %v943 = vunpack.c.l.b16 %v866
      %v944 = vunpack.c.l.b16 %v867
      %v945 = vunpack.c.l.b16 %v868
      %v946 = vunpack.c.l.b16 %v869
      %v947 = vunpack.c.l.b16 %v870
      %v948 = vpack.c.b16 %v941, %v940
      %v949 = vpack.c.b16 %v943, %v942
      %v950 = vpack.c.b16 %v945, %v944
      %v951 = vpack.c.b16 %v947, %v946
      %vm952 = vcmask 523264
      %v954 = vsel %vm952, %v931, 0
      %v957 = vsel %vm952, %v948, 0
      %v960 = vsel %vm952, %v949, 0
      %v963 = vsel %vm952, %v950, 0
      %v966 = vsel %vm952, %v951, 0
      %968 = vmatpush.bf16.xpose.msra.mxu0 0
      %969 = vmatpush.bf16.xpose.msra.mxu0 0
      %970 = vmatpush.bf16.xpose.msra.mxu0 0
      %971 = vmatpush.bf16.xpose.msra.mxu0 0
      %972 = vmatpush.bf16.xpose.msra.mxu0 %v966
      %973 = vmatpush.bf16.xpose.msra.mxu0 %v963
      %974 = vmatpush.bf16.xpose.msra.mxu0 %v960
      %975 = vmatpush.bf16.xpose.msra.mxu0 %v957
      %976 = vmatmul.bf16.gmra.mxu0 %v954
      %v977 = vpop.f32.mrf.mxu0
      %v978 = vadd.f32 0.0, %v977
      %v979 = vpop.f32.mrf.mxu0
      %v980 = vadd.f32 0.0, %v979
      %981 = vdwg.mxu0
      %v984 = vunpack.c.l.b16 %v312
      %v985 = vunpack.c.l.b16 %v313
      %v986 = vpack.c.b16 %v985, %v984
      %v995 = vunpack.c.l.b16 %v871
      %v996 = vunpack.c.l.b16 %v872
      %v997 = vunpack.c.l.b16 %v873
      %v998 = vunpack.c.l.b16 %v874
      %v999 = vunpack.c.l.b16 %v875
      %v1000 = vunpack.c.l.b16 %v876
      %v1001 = vunpack.c.l.b16 %v877
      %v1002 = vunpack.c.l.b16 %v878
      %v1003 = vpack.c.b16 %v996, %v995
      %v1004 = vpack.c.b16 %v998, %v997
      %v1005 = vpack.c.b16 %v1000, %v999
      %v1006 = vpack.c.b16 %v1002, %v1001
      %v1008 = vsel %vm952, %v986, 0
      %v1011 = vsel %vm952, %v1003, 0
      %v1014 = vsel %vm952, %v1004, 0
      %v1017 = vsel %vm952, %v1005, 0
      %v1020 = vsel %vm952, %v1006, 0
      %1022 = vmatpush.bf16.xpose.msra.mxu0 0
      %1023 = vmatpush.bf16.xpose.msra.mxu0 0
      %1024 = vmatpush.bf16.xpose.msra.mxu0 0
      %1025 = vmatpush.bf16.xpose.msra.mxu0 0
      %1026 = vmatpush.bf16.xpose.msra.mxu0 %v1020
      %1027 = vmatpush.bf16.xpose.msra.mxu0 %v1017
      %1028 = vmatpush.bf16.xpose.msra.mxu0 %v1014
      %1029 = vmatpush.bf16.xpose.msra.mxu0 %v1011
      %1030 = vmatmul.bf16.gmra.mxu0 %v1008
      %v1031 = vpop.f32.mrf.mxu0
      %v1032 = vadd.f32 0.0, %v1031
      %v1033 = vpop.f32.mrf.mxu0
      %v1034 = vadd.f32 0.0, %v1033
      %1035 = vdwg.mxu0
      %v1038 = vunpack.c.l.b16 %v314
      %v1039 = vunpack.c.l.b16 %v315
      %v1040 = vpack.c.b16 %v1039, %v1038
      %v1049 = vunpack.c.l.b16 %v879
      %v1050 = vunpack.c.l.b16 %v880
      %v1051 = vunpack.c.l.b16 %v881
      %v1052 = vunpack.c.l.b16 %v882
      %v1053 = vunpack.c.l.b16 %v883
      %v1054 = vunpack.c.l.b16 %v884
      %v1055 = vunpack.c.l.b16 %v885
      %v1056 = vunpack.c.l.b16 %v886
      %v1057 = vpack.c.b16 %v1050, %v1049
      %v1058 = vpack.c.b16 %v1052, %v1051
      %v1059 = vpack.c.b16 %v1054, %v1053
      %v1060 = vpack.c.b16 %v1056, %v1055
      %v1062 = vsel %vm952, %v1040, 0
      %v1065 = vsel %vm952, %v1057, 0
      %v1068 = vsel %vm952, %v1058, 0
      %v1071 = vsel %vm952, %v1059, 0
      %v1074 = vsel %vm952, %v1060, 0
      %1076 = vmatpush.bf16.xpose.msra.mxu0 0
      %1077 = vmatpush.bf16.xpose.msra.mxu0 0
      %1078 = vmatpush.bf16.xpose.msra.mxu0 0
      %1079 = vmatpush.bf16.xpose.msra.mxu0 0
      %1080 = vmatpush.bf16.xpose.msra.mxu0 %v1074
      %1081 = vmatpush.bf16.xpose.msra.mxu0 %v1071
      %1082 = vmatpush.bf16.xpose.msra.mxu0 %v1068
      %1083 = vmatpush.bf16.xpose.msra.mxu0 %v1065
      %1084 = vmatmul.bf16.gmra.mxu0 %v1062
      %v1085 = vpop.f32.mrf.mxu0
      %v1086 = vadd.f32 0.0, %v1085
      %v1087 = vpop.f32.mrf.mxu0
      %v1088 = vadd.f32 0.0, %v1087
      %1089 = vdwg.mxu0
      %v1092 = vunpack.c.l.b16 %v316
      %v1093 = vunpack.c.l.b16 %v317
      %v1094 = vpack.c.b16 %v1093, %v1092
      %v1103 = vunpack.c.l.b16 %v887
      %v1104 = vunpack.c.l.b16 %v888
      %v1105 = vunpack.c.l.b16 %v889
      %v1106 = vunpack.c.l.b16 %v890
      %v1107 = vunpack.c.l.b16 %v891
      %v1108 = vunpack.c.l.b16 %v892
      %v1109 = vunpack.c.l.b16 %v893
      %v1110 = vunpack.c.l.b16 %v894
      %v1111 = vpack.c.b16 %v1104, %v1103
      %v1112 = vpack.c.b16 %v1106, %v1105
      %v1113 = vpack.c.b16 %v1108, %v1107
      %v1114 = vpack.c.b16 %v1110, %v1109
      %v1116 = vsel %vm952, %v1094, 0
      %v1119 = vsel %vm952, %v1111, 0
      %v1122 = vsel %vm952, %v1112, 0
      %v1125 = vsel %vm952, %v1113, 0
      %v1128 = vsel %vm952, %v1114, 0
      %1130 = vmatpush.bf16.xpose.msra.mxu0 0
      %1131 = vmatpush.bf16.xpose.msra.mxu0 0
      %1132 = vmatpush.bf16.xpose.msra.mxu0 0
      %1133 = vmatpush.bf16.xpose.msra.mxu0 0
      %1134 = vmatpush.bf16.xpose.msra.mxu0 %v1128
      %1135 = vmatpush.bf16.xpose.msra.mxu0 %v1125
      %1136 = vmatpush.bf16.xpose.msra.mxu0 %v1122
      %1137 = vmatpush.bf16.xpose.msra.mxu0 %v1119
      %1138 = vmatmul.bf16.gmra.mxu0 %v1116
      %v1139 = vpop.f32.mrf.mxu0
      %v1140 = vadd.f32 0.0, %v1139
      %v1141 = vpop.f32.mrf.mxu0
      %v1142 = vadd.f32 0.0, %v1141
      %1143 = vdwg.mxu0
      %v1146 = vunpack.c.l.b16 %v318
      %v1147 = vunpack.c.l.b16 %v319
      %v1148 = vpack.c.b16 %v1147, %v1146
      %v1157 = vunpack.c.l.b16 %v895
      %v1158 = vunpack.c.l.b16 %v896
      %v1159 = vunpack.c.l.b16 %v897
      %v1160 = vunpack.c.l.b16 %v898
      %v1161 = vunpack.c.l.b16 %v899
      %v1162 = vunpack.c.l.b16 %v900
      %v1163 = vunpack.c.l.b16 %v901
      %v1164 = vunpack.c.l.b16 %v902
      %v1165 = vpack.c.b16 %v1158, %v1157
      %v1166 = vpack.c.b16 %v1160, %v1159
      %v1167 = vpack.c.b16 %v1162, %v1161
      %v1168 = vpack.c.b16 %v1164, %v1163
      %v1170 = vsel %vm952, %v1148, 0
      %v1173 = vsel %vm952, %v1165, 0
      %v1176 = vsel %vm952, %v1166, 0
      %v1179 = vsel %vm952, %v1167, 0
      %v1182 = vsel %vm952, %v1168, 0
      %1184 = vmatpush.bf16.xpose.msra.mxu0 0
      %1185 = vmatpush.bf16.xpose.msra.mxu0 0
      %1186 = vmatpush.bf16.xpose.msra.mxu0 0
      %1187 = vmatpush.bf16.xpose.msra.mxu0 0
      %1188 = vmatpush.bf16.xpose.msra.mxu0 %v1182
      %1189 = vmatpush.bf16.xpose.msra.mxu0 %v1179
      %1190 = vmatpush.bf16.xpose.msra.mxu0 %v1176
      %1191 = vmatpush.bf16.xpose.msra.mxu0 %v1173
      %1192 = vmatmul.bf16.gmra.mxu0 %v1170
      %v1193 = vpop.f32.mrf.mxu0
      %v1194 = vadd.f32 0.0, %v1193
      %v1195 = vpop.f32.mrf.mxu0
      %v1196 = vadd.f32 0.0, %v1195
      %1197 = vdwg.mxu0
      %v1200 = vunpack.c.l.b16 %v320
      %v1201 = vunpack.c.l.b16 %v321
      %v1202 = vpack.c.b16 %v1201, %v1200
      %v1211 = vunpack.c.l.b16 %v903
      %v1212 = vunpack.c.l.b16 %v904
      %v1213 = vunpack.c.l.b16 %v905
      %v1214 = vunpack.c.l.b16 %v906
      %v1215 = vunpack.c.l.b16 %v907
      %v1216 = vunpack.c.l.b16 %v908
      %v1217 = vunpack.c.l.b16 %v909
      %v1218 = vunpack.c.l.b16 %v910
      %v1219 = vpack.c.b16 %v1212, %v1211
      %v1220 = vpack.c.b16 %v1214, %v1213
      %v1221 = vpack.c.b16 %v1216, %v1215
      %v1222 = vpack.c.b16 %v1218, %v1217
      %v1224 = vsel %vm952, %v1202, 0
      %v1227 = vsel %vm952, %v1219, 0
      %v1230 = vsel %vm952, %v1220, 0
      %v1233 = vsel %vm952, %v1221, 0
      %v1236 = vsel %vm952, %v1222, 0
      %1238 = vmatpush.bf16.xpose.msra.mxu0 0
      %1239 = vmatpush.bf16.xpose.msra.mxu0 0
      %1240 = vmatpush.bf16.xpose.msra.mxu0 0
      %1241 = vmatpush.bf16.xpose.msra.mxu0 0
      %1242 = vmatpush.bf16.xpose.msra.mxu0 %v1236
      %1243 = vmatpush.bf16.xpose.msra.mxu0 %v1233
      %1244 = vmatpush.bf16.xpose.msra.mxu0 %v1230
      %1245 = vmatpush.bf16.xpose.msra.mxu0 %v1227
      %1246 = vmatmul.bf16.gmra.mxu0 %v1224
      %v1247 = vpop.f32.mrf.mxu0
      %v1248 = vadd.f32 0.0, %v1247
      %v1249 = vpop.f32.mrf.mxu0
      %v1250 = vadd.f32 0.0, %v1249
      %1251 = vdwg.mxu0
      %v1254 = vunpack.c.l.b16 %v322
      %v1255 = vunpack.c.l.b16 %v323
      %v1256 = vpack.c.b16 %v1255, %v1254
      %v1265 = vunpack.c.l.b16 %v911
      %v1266 = vunpack.c.l.b16 %v912
      %v1267 = vunpack.c.l.b16 %v913
      %v1268 = vunpack.c.l.b16 %v914
      %v1269 = vunpack.c.l.b16 %v915
      %v1270 = vunpack.c.l.b16 %v916
      %v1271 = vunpack.c.l.b16 %v917
      %v1272 = vunpack.c.l.b16 %v918
      %v1273 = vpack.c.b16 %v1266, %v1265
      %v1274 = vpack.c.b16 %v1268, %v1267
      %v1275 = vpack.c.b16 %v1270, %v1269
      %v1276 = vpack.c.b16 %v1272, %v1271
      %v1278 = vsel %vm952, %v1256, 0
      %v1281 = vsel %vm952, %v1273, 0
      %v1284 = vsel %vm952, %v1274, 0
      %v1287 = vsel %vm952, %v1275, 0
      %v1290 = vsel %vm952, %v1276, 0
      %1292 = vmatpush.bf16.xpose.msra.mxu0 0
      %1293 = vmatpush.bf16.xpose.msra.mxu0 0
      %1294 = vmatpush.bf16.xpose.msra.mxu0 0
      %1295 = vmatpush.bf16.xpose.msra.mxu0 0
      %1296 = vmatpush.bf16.xpose.msra.mxu0 %v1290
      %1297 = vmatpush.bf16.xpose.msra.mxu0 %v1287
      %1298 = vmatpush.bf16.xpose.msra.mxu0 %v1284
      %1299 = vmatpush.bf16.xpose.msra.mxu0 %v1281
      %1300 = vmatmul.bf16.gmra.mxu0 %v1278
      %v1301 = vpop.f32.mrf.mxu0
      %v1302 = vadd.f32 0.0, %v1301
      %v1303 = vpop.f32.mrf.mxu0
      %v1304 = vadd.f32 0.0, %v1303
      %1305 = vdwg.mxu0
      %v1308 = vunpack.c.l.b16 %v324
      %v1309 = vunpack.c.l.b16 %v325
      %v1310 = vpack.c.b16 %v1309, %v1308
      %v1319 = vunpack.c.l.b16 %v919
      %v1320 = vunpack.c.l.b16 %v920
      %v1321 = vunpack.c.l.b16 %v921
      %v1322 = vunpack.c.l.b16 %v922
      %v1323 = vunpack.c.l.b16 %v923
      %v1324 = vunpack.c.l.b16 %v924
      %v1325 = vunpack.c.l.b16 %v925
      %v1326 = vunpack.c.l.b16 %v926
      %v1327 = vpack.c.b16 %v1320, %v1319
      %v1328 = vpack.c.b16 %v1322, %v1321
      %v1329 = vpack.c.b16 %v1324, %v1323
      %v1330 = vpack.c.b16 %v1326, %v1325
      %v1332 = vsel %vm952, %v1310, 0
      %v1335 = vsel %vm952, %v1327, 0
      %v1338 = vsel %vm952, %v1328, 0
      %v1341 = vsel %vm952, %v1329, 0
      %v1344 = vsel %vm952, %v1330, 0
      %1346 = vmatpush.bf16.xpose.msra.mxu0 0
      %1347 = vmatpush.bf16.xpose.msra.mxu0 0
      %1348 = vmatpush.bf16.xpose.msra.mxu0 0
      %1349 = vmatpush.bf16.xpose.msra.mxu0 0
      %1350 = vmatpush.bf16.xpose.msra.mxu0 %v1344
      %1351 = vmatpush.bf16.xpose.msra.mxu0 %v1341
      %1352 = vmatpush.bf16.xpose.msra.mxu0 %v1338
      %1353 = vmatpush.bf16.xpose.msra.mxu0 %v1335
      %1354 = vmatmul.bf16.gmra.mxu0 %v1332
      %v1355 = vpop.f32.mrf.mxu0
      %v1356 = vadd.f32 0.0, %v1355
      %v1357 = vpop.f32.mrf.mxu0
      %v1358 = vadd.f32 0.0, %v1357
      %1359 = vdwg.mxu0
      %v1360 = vpack.c.bf16 %v978, %v978
      %v1361 = vpack.c.bf16 %v980, %v980
      %v1362 = vpack.c.bf16 %v1032, %v1032
      %v1363 = vpack.c.bf16 %v1034, %v1034
      %v1364 = vpack.c.bf16 %v1086, %v1086
      %v1365 = vpack.c.bf16 %v1088, %v1088
      %v1366 = vpack.c.bf16 %v1140, %v1140
      %v1367 = vpack.c.bf16 %v1142, %v1142
      %v1368 = vpack.c.bf16 %v1194, %v1194
      %v1369 = vpack.c.bf16 %v1196, %v1196
      %v1370 = vpack.c.bf16 %v1248, %v1248
      %v1371 = vpack.c.bf16 %v1250, %v1250
      %v1372 = vpack.c.bf16 %v1302, %v1302
      %v1373 = vpack.c.bf16 %v1304, %v1304
      %v1374 = vpack.c.bf16 %v1356, %v1356
      %v1375 = vpack.c.bf16 %v1358, %v1358
      %vm1376 = vcmask 519168
      %1377 = vst.msk [vmem:[%s227] sm:$0xf] %vm1376, %v1360
      %1378 = vst.msk [vmem:[%s227 + $0x4] sm:$0xf] %vm1376, %v1361
      %1379 = vst.msk [vmem:[%s227 + $0x8] sm:$0xf] %vm1376, %v1362
      %1380 = vst.msk [vmem:[%s227 + $0xc] sm:$0xf] %vm1376, %v1363
      %1381 = vst.msk [vmem:[%s227 + $0x10] sm:$0xf] %vm1376, %v1364
      %1382 = vst.msk [vmem:[%s227 + $0x14] sm:$0xf] %vm1376, %v1365
      %1383 = vst.msk [vmem:[%s227 + $0x18] sm:$0xf] %vm1376, %v1366
      %1384 = vst.msk [vmem:[%s227 + $0x1c] sm:$0xf] %vm1376, %v1367
      %1385 = vst.msk [vmem:[%s227 + $0x20] sm:$0xf] %vm1376, %v1368
      %1386 = vst.msk [vmem:[%s227 + $0x24] sm:$0xf] %vm1376, %v1369
      %1387 = vst.msk [vmem:[%s227 + $0x28] sm:$0xf] %vm1376, %v1370
      %1388 = vst.msk [vmem:[%s227 + $0x2c] sm:$0xf] %vm1376, %v1371
      %1389 = vst.msk [vmem:[%s227 + $0x30] sm:$0xf] %vm1376, %v1372
      %1390 = vst.msk [vmem:[%s227 + $0x34] sm:$0xf] %vm1376, %v1373
      %1391 = vst.msk [vmem:[%s227 + $0x38] sm:$0xf] %vm1376, %v1374
      %1392 = vst.msk [vmem:[%s227 + $0x3c] sm:$0xf] %vm1376, %v1375
      %s1393 = smul.u32 8, %s14
      %p1394 = scmp.lt.s32.totalorder %s1393, 31
      %s1395 = scalar_select %p1394, %s1393, 31
      %s1396 = smul.addr %s1395, 2
      %s1397 = smul.addr %s1396, 4
      %s1398 = scalar_lea.vmem %s3, %s1397
      // Predicated region
      $region33: #{_lambda_.6} parent=31 // pred_check
        %p1399 = pneg %p110
      $region34: #{_lambda_.6} parent=31 // pred_check_branch
        %1401 = sbr.rel (%p1399) target = $region36
      $region35: #{_lambda_.6} parent=31 // pred_region
        %s1402 = smul.u32 8, %s14
      $region36: #{_lambda_.6} parent=31 // pred_fallthru
        _
    $region32: #{_lambda_.6} parent=5 // pred_fallthru
      _
    %p1403 = scmp.le.s32.totalorder 2, %s9
    // Predicated region
    $region37: #{_lambda_.6} parent=5 // pred_check
      %p1404 = pneg %p1403
    $region38: #{_lambda_.6} parent=5 // pred_check_branch
      %1406 = sbr.rel (%p1404) target = $region40
    $region39: #{_lambda_.6} parent=5 // pred_region
      %s1407 = ssub.s32 %s9, 2
      // Predicated region
      $region41: #{_lambda_.6} parent=39 // pred_check
        %p1408 = pneg %p116
      $region42: #{_lambda_.6} parent=39 // pred_check_branch
        %1410 = sbr.rel (%p1408) target = $region44
      $region43: #{_lambda_.6} parent=39 // pred_region
        %s1411 = smul.u32 8, %s15
        %p1412 = scmp.lt.s32.totalorder %s1411, 31
        %s1413 = scalar_select %p1412, %s1411, 31
        %s1414 = smul.addr %s1413, 2
        %s1415 = smul.addr %s1414, 4
        %s1416 = scalar_lea.vmem %s3, %s1415
      $region44: #{_lambda_.6} parent=39 // pred_fallthru
        _
    $region40: #{_lambda_.6} parent=5 // pred_fallthru
      _
  $region6: #{_lambda_.6} parent=0 // loop_footer
    %s13 = sadd.s32 1, %s9
  $region7: #{_lambda_.6} parent=0 // loop_footer_branch
    %8 = sbr.rel target = $region3
  $region8: #{_lambda_.6} parent=0 // loop_exit
    _

// kernel: _lambda_.7
$region0: #{_lambda_.7}
  #allocation0 [shape = 'u32[]', space=smem, size = 0x4, offset = 0x4, fixed_abs, tag = 'smem constant byte address 0x4 - core index']
  #allocation1 [shape = 'u32[72,128]{1,0:T(1,128)}', space=vmem, size = 0x9000, scoped, tag = 'internal scratch']
  %s0 = inlined_call_operand.vmem [shape: bf16[4,64,128], index: 0, kind: input, shape index: {}]
  %s1 = inlined_call_operand.vmem [shape: bf16[64,64], index: 1, kind: input, shape index: {}]
  %s2 = inlined_call_operand.vmem [shape: f32[64,1], index: 2, kind: input, shape index: {}]
  %s3 = inlined_call_operand.vmem [shape: f32[4,64,128], index: 3, kind: input, shape index: {}]
  %s4 = inlined_call_operand.vmem [shape: f32[4,64,128], index: 4, kind: output, shape index: {}]
  %s5 = sld [smem:[#allocation0]]
  $region26: #{_lambda_.7} parent=0
    _
  %s7 = ssub.s32 1, %s5
  %s8 = scalar_select 0, %s7, %s5
  // Predicated region
  $region2: #{_lambda_.7} parent=0 // pred_check
    _
  $region3: #{_lambda_.7} parent=0 // pred_check_branch
    %10 = sbr.rel (0) target = $region5
  $region4: #{_lambda_.7} parent=0 // pred_region
    _
  $region5: #{_lambda_.7} parent=0 // pred_fallthru
    _
  // Predicated region
  $region6: #{_lambda_.7} parent=0 // pred_check
    _
  $region7: #{_lambda_.7} parent=0 // pred_check_branch
    %12 = sbr.rel (0) target = $region9
  $region8: #{_lambda_.7} parent=0 // pred_region
    _
  $region9: #{_lambda_.7} parent=0 // pred_fallthru
    _
  // Predicated region
  $region10: #{_lambda_.7} parent=0 // pred_check
    _
  $region11: #{_lambda_.7} parent=0 // pred_check_branch
    %14 = sbr.rel (0) target = $region13
  $region12: #{_lambda_.7} parent=0 // pred_region
    _
  $region13: #{_lambda_.7} parent=0 // pred_fallthru
    _
  // Predicated region
  $region14: #{_lambda_.7} parent=0 // pred_check
    _
  $region15: #{_lambda_.7} parent=0 // pred_check_branch
    %16 = sbr.rel (0) target = $region17
  $region16: #{_lambda_.7} parent=0 // pred_region
    _
  $region17: #{_lambda_.7} parent=0 // pred_fallthru
    _
  %v18 = vld [vmem:[%s1] sm:$0xf]
  %v19 = vld [vmem:[%s1 + $0x4] sm:$0xf]
  %v20 = vld [vmem:[%s1 + $0x8] sm:$0xf]
  %v21 = vld [vmem:[%s1 + $0xc] sm:$0xf]
  %v22 = vld [vmem:[%s1 + $0x10] sm:$0xf]
  %v23 = vld [vmem:[%s1 + $0x14] sm:$0xf]
  %v24 = vld [vmem:[%s1 + $0x18] sm:$0xf]
  %v25 = vld [vmem:[%s1 + $0x1c] sm:$0xf]
  %v26 = vld [vmem:[%s2] sm:$0xff]
  %v27 = vld [vmem:[%s2 + $0x8] sm:$0xff]
  %v28 = vld [vmem:[%s2 + $0x10] sm:$0xff]
  %v29 = vld [vmem:[%s2 + $0x18] sm:$0xff]
  %v30 = vld [vmem:[%s2 + $0x20] sm:$0xff]
  %v31 = vld [vmem:[%s2 + $0x28] sm:$0xff]
  %v32 = vld [vmem:[%s2 + $0x30] sm:$0xff]
  %v33 = vld [vmem:[%s2 + $0x38] sm:$0xff]
  %35 = vset.pattern.permute.xlu0 0
  %36 = vperm.xlu0 %35, %v26
  %v37 = vpop.permute.xlu0 %36
  %40 = vset.pattern.permute.xlu0 0
  %41 = vperm.xlu0 %40, %v27
  %v42 = vpop.permute.xlu0 %41
  %45 = vset.pattern.permute.xlu0 0
  %46 = vperm.xlu0 %45, %v28
  %v47 = vpop.permute.xlu0 %46
  %50 = vset.pattern.permute.xlu0 0
  %51 = vperm.xlu0 %50, %v29
  %v52 = vpop.permute.xlu0 %51
  %55 = vset.pattern.permute.xlu0 0
  %56 = vperm.xlu0 %55, %v30
  %v57 = vpop.permute.xlu0 %56
  %60 = vset.pattern.permute.xlu0 0
  %61 = vperm.xlu0 %60, %v31
  %v62 = vpop.permute.xlu0 %61
  %65 = vset.pattern.permute.xlu0 0
  %66 = vperm.xlu0 %65, %v32
  %v67 = vpop.permute.xlu0 %66
  %70 = vset.pattern.permute.xlu0 0
  %71 = vperm.xlu0 %70, %v33
  %v72 = vpop.permute.xlu0 %71
  %v74 = vld [vmem:[%s0] sm:$0xf]
  %v75 = vld [vmem:[%s0 + $0x4] sm:$0xf]
  %v76 = vld [vmem:[%s0 + $0x8] sm:$0xf]
  %v77 = vld [vmem:[%s0 + $0xc] sm:$0xf]
  %v78 = vld [vmem:[%s0 + $0x10] sm:$0xf]
  %v79 = vld [vmem:[%s0 + $0x14] sm:$0xf]
  %v80 = vld [vmem:[%s0 + $0x18] sm:$0xf]
  %v81 = vld [vmem:[%s0 + $0x1c] sm:$0xf]
  %v82 = vunpack.c.l.bf16 %v74
  %v83 = vunpack.c.l.bf16 %v75
  %v84 = vunpack.c.l.bf16 %v76
  %v85 = vunpack.c.l.bf16 %v77
  %v86 = vunpack.c.l.bf16 %v78
  %v87 = vunpack.c.l.bf16 %v79
  %v88 = vunpack.c.l.bf16 %v80
  %v89 = vunpack.c.l.bf16 %v81
  %v90 = vmul.f32 %v82, 0.6666667
  %v91 = vmul.f32 %v83, 0.6666667
  %v92 = vmul.f32 %v84, 0.6666667
  %v93 = vmul.f32 %v85, 0.6666667
  %v94 = vmul.f32 %v86, 0.6666667
  %v95 = vmul.f32 %v87, 0.6666667
  %v96 = vmul.f32 %v88, 0.6666667
  %v97 = vmul.f32 %v89, 0.6666667
  %v98 = vadd.f32 %v90, 0.0
  %v99 = vadd.f32 %v91, 0.0
  %v100 = vadd.f32 %v92, 0.0
  %v101 = vadd.f32 %v93, 0.0
  %v102 = vadd.f32 %v94, 0.0
  %v103 = vadd.f32 %v95, 0.0
  %v104 = vadd.f32 %v96, 0.0
  %v105 = vadd.f32 %v97, 0.0
  %vm106 = vcmp.ge.f32.partialorder %v98, 4.0
  %vm107 = vcmp.ge.f32.partialorder %v99, 4.0
  %vm108 = vcmp.ge.f32.partialorder %v100, 4.0
  %vm109 = vcmp.ge.f32.partialorder %v101, 4.0
  %vm110 = vcmp.ge.f32.partialorder %v102, 4.0
  %vm111 = vcmp.ge.f32.partialorder %v103, 4.0
  %vm112 = vcmp.ge.f32.partialorder %v104, 4.0
  %vm113 = vcmp.ge.f32.partialorder %v105, 4.0
  %v114 = vsel %vm106, 1, 0
  %v115 = vsel %vm107, 1, 0
  %v116 = vsel %vm108, 1, 0
  %v117 = vsel %vm109, 1, 0
  %v118 = vsel %vm110, 1, 0
  %v119 = vsel %vm111, 1, 0
  %v120 = vsel %vm112, 1, 0
  %v121 = vsel %vm113, 1, 0
  %v122 = vcvt.s32.f32 %v114
  %v123 = vcvt.s32.f32 %v115
  %v124 = vcvt.s32.f32 %v116
  %v125 = vcvt.s32.f32 %v117
  %v126 = vcvt.s32.f32 %v118
  %v127 = vcvt.s32.f32 %v119
  %v128 = vcvt.s32.f32 %v120
  %v129 = vcvt.s32.f32 %v121
  %v130 = vpack.c.bf16 %v123, %v122
  %v131 = vpack.c.bf16 %v125, %v124
  %v132 = vpack.c.bf16 %v127, %v126
  %v133 = vpack.c.bf16 %v129, %v128
  %v134 = vsel %vm106, 0.0, %v98
  %v135 = vsel %vm107, 0.0, %v99
  %v136 = vsel %vm108, 0.0, %v100
  %v137 = vsel %vm109, 0.0, %v101
  %v138 = vsel %vm110, 0.0, %v102
  %v139 = vsel %vm111, 0.0, %v103
  %v140 = vsel %vm112, 0.0, %v104
  %v141 = vsel %vm113, 0.0, %v105
  %v150 = vunpack.c.l.b16 %v18
  %v151 = vunpack.c.l.b16 %v19
  %v152 = vunpack.c.l.b16 %v20
  %v153 = vunpack.c.l.b16 %v21
  %v154 = vunpack.c.l.b16 %v22
  %v155 = vunpack.c.l.b16 %v23
  %v156 = vunpack.c.l.b16 %v24
  %v157 = vunpack.c.l.b16 %v25
  %v158 = vpack.c.b16 %v151, %v150
  %v159 = vpack.c.b16 %v153, %v152
  %v160 = vpack.c.b16 %v155, %v154
  %v161 = vpack.c.b16 %v157, %v156
  %vm162 = vcmask 523264
  %v164 = vsel %vm162, %v158, 0
  %v167 = vsel %vm162, %v159, 0
  %v170 = vsel %vm162, %v160, 0
  %v173 = vsel %vm162, %v161, 0
  %175 = vmatpush.bf16.msra.mxu0 0
  %176 = vmatpush.bf16.msra.mxu0 0
  %177 = vmatpush.bf16.msra.mxu0 0
  %178 = vmatpush.bf16.msra.mxu0 0
  %179 = vmatpush.bf16.msra.mxu0 %v133
  %180 = vmatpush.bf16.msra.mxu0 %v132
  %181 = vmatpush.bf16.msra.mxu0 %v131
  %182 = vmatpush.bf16.msra.mxu0 %v130
  %183 = vmatmul.bf16.gmra.mxu0 %v164
  %v184 = vpop.f32.mrf.mxu0
  %v185 = vadd.f32 %v37, %v184
  %v186 = vpop.f32.mrf.mxu0
  %v187 = vadd.f32 %v42, %v186
  %188 = vmatmul.bf16.gmra.mxu0 %v167
  %v189 = vpop.f32.mrf.mxu0
  %v190 = vadd.f32 %v47, %v189
  %v191 = vpop.f32.mrf.mxu0
  %v192 = vadd.f32 %v52, %v191
  %193 = vmatmul.bf16.gmra.mxu0 %v170
  %v194 = vpop.f32.mrf.mxu0
  %v195 = vadd.f32 %v57, %v194
  %v196 = vpop.f32.mrf.mxu0
  %v197 = vadd.f32 %v62, %v196
  %198 = vmatmul.bf16.gmra.mxu0 %v173
  %v199 = vpop.f32.mrf.mxu0
  %v200 = vadd.f32 %v67, %v199
  %v201 = vpop.f32.mrf.mxu0
  %v202 = vadd.f32 %v72, %v201
  %203 = vdwg.mxu0
  %v204 = vld [vmem:[%s3] sm:$0xff]
  %v205 = vld [vmem:[%s3 + $0x8] sm:$0xff]
  %v206 = vld [vmem:[%s3 + $0x10] sm:$0xff]
  %v207 = vld [vmem:[%s3 + $0x18] sm:$0xff]
  %v208 = vld [vmem:[%s3 + $0x20] sm:$0xff]
  %v209 = vld [vmem:[%s3 + $0x28] sm:$0xff]
  %v210 = vld [vmem:[%s3 + $0x30] sm:$0xff]
  %v211 = vld [vmem:[%s3 + $0x38] sm:$0xff]
  %v212 = vadd.f32 %v185, %v204
  %v213 = vadd.f32 %v187, %v205
  %v214 = vadd.f32 %v190, %v206
  %v215 = vadd.f32 %v192, %v207
  %v216 = vadd.f32 %v195, %v208
  %v217 = vadd.f32 %v197, %v209
  %v218 = vadd.f32 %v200, %v210
  %v219 = vadd.f32 %v202, %v211
  %220 = vst [vmem:[%s4] sm:$0xff] %v212
  %221 = vst [vmem:[%s4 + $0x8] sm:$0xff] %v213
  %222 = vst [vmem:[%s4 + $0x10] sm:$0xff] %v214
  %223 = vst [vmem:[%s4 + $0x18] sm:$0xff] %v215
  %224 = vst [vmem:[%s4 + $0x20] sm:$0xff] %v216
  %225 = vst [vmem:[%s4 + $0x28] sm:$0xff] %v217
  %226 = vst [vmem:[%s4 + $0x30] sm:$0xff] %v218
  %227 = vst [vmem:[%s4 + $0x38] sm:$0xff] %v219
  %s228 = scalar_lea.vmem %s0, 32
  %v229 = vld [vmem:[%s228] sm:$0xf]
  %v230 = vld [vmem:[%s228 + $0x4] sm:$0xf]
  %v231 = vld [vmem:[%s228 + $0x8] sm:$0xf]
  %v232 = vld [vmem:[%s228 + $0xc] sm:$0xf]
  %v233 = vld [vmem:[%s228 + $0x10] sm:$0xf]
  %v234 = vld [vmem:[%s228 + $0x14] sm:$0xf]
  %v235 = vld [vmem:[%s228 + $0x18] sm:$0xf]
  %v236 = vld [vmem:[%s228 + $0x1c] sm:$0xf]
  %v237 = vunpack.c.l.bf16 %v229
  %v238 = vunpack.c.l.bf16 %v230
  %v239 = vunpack.c.l.bf16 %v231
  %v240 = vunpack.c.l.bf16 %v232
  %v241 = vunpack.c.l.bf16 %v233
  %v242 = vunpack.c.l.bf16 %v234
  %v243 = vunpack.c.l.bf16 %v235
  %v244 = vunpack.c.l.bf16 %v236
  %v245 = vsub.f32 %v237, %v134
  %v246 = vsub.f32 %v238, %v135
  %v247 = vsub.f32 %v239, %v136
  %v248 = vsub.f32 %v240, %v137
  %v249 = vsub.f32 %v241, %v138
  %v250 = vsub.f32 %v242, %v139
  %v251 = vsub.f32 %v243, %v140
  %v252 = vsub.f32 %v244, %v141
  %v253 = vmul.f32 %v245, 0.6666667
  %v254 = vmul.f32 %v246, 0.6666667
  %v255 = vmul.f32 %v247, 0.6666667
  %v256 = vmul.f32 %v248, 0.6666667
  %v257 = vmul.f32 %v249, 0.6666667
  %v258 = vmul.f32 %v250, 0.6666667
  %v259 = vmul.f32 %v251, 0.6666667
  %v260 = vmul.f32 %v252, 0.6666667
  %v261 = vadd.f32 %v134, %v253
  %v262 = vadd.f32 %v135, %v254
  %v263 = vadd.f32 %v136, %v255
  %v264 = vadd.f32 %v137, %v256
  %v265 = vadd.f32 %v138, %v257
  %v266 = vadd.f32 %v139, %v258
  %v267 = vadd.f32 %v140, %v259
  %v268 = vadd.f32 %v141, %v260
  %vm269 = vcmp.ge.f32.partialorder %v261, 4.0
  %vm270 = vcmp.ge.f32.partialorder %v262, 4.0
  %vm271 = vcmp.ge.f32.partialorder %v263, 4.0
  %vm272 = vcmp.ge.f32.partialorder %v264, 4.0
  %vm273 = vcmp.ge.f32.partialorder %v265, 4.0
  %vm274 = vcmp.ge.f32.partialorder %v266, 4.0
  %vm275 = vcmp.ge.f32.partialorder %v267, 4.0
  %vm276 = vcmp.ge.f32.partialorder %v268, 4.0
  %v277 = vsel %vm269, 1, 0
  %v278 = vsel %vm270, 1, 0
  %v279 = vsel %vm271, 1, 0
  %v280 = vsel %vm272, 1, 0
  %v281 = vsel %vm273, 1, 0
  %v282 = vsel %vm274, 1, 0
  %v283 = vsel %vm275, 1, 0
  %v284 = vsel %vm276, 1, 0
  %v285 = vcvt.s32.f32 %v277
  %v286 = vcvt.s32.f32 %v278
  %v287 = vcvt.s32.f32 %v279
  %v288 = vcvt.s32.f32 %v280
  %v289 = vcvt.s32.f32 %v281
  %v290 = vcvt.s32.f32 %v282
  %v291 = vcvt.s32.f32 %v283
  %v292 = vcvt.s32.f32 %v284
  %v293 = vpack.c.bf16 %v286, %v285
  %v294 = vpack.c.bf16 %v288, %v287
  %v295 = vpack.c.bf16 %v290, %v289
  %v296 = vpack.c.bf16 %v292, %v291
  %v297 = vsel %vm269, 0.0, %v261
  %v298 = vsel %vm270, 0.0, %v262
  %v299 = vsel %vm271, 0.0, %v263
  %v300 = vsel %vm272, 0.0, %v264
  %v301 = vsel %vm273, 0.0, %v265
  %v302 = vsel %vm274, 0.0, %v266
  %v303 = vsel %vm275, 0.0, %v267
  %v304 = vsel %vm276, 0.0, %v268
  %305 = vmatpush.bf16.msra.mxu0 0
  %306 = vmatpush.bf16.msra.mxu0 0
  %307 = vmatpush.bf16.msra.mxu0 0
  %308 = vmatpush.bf16.msra.mxu0 0
  %309 = vmatpush.bf16.msra.mxu0 %v296
  %310 = vmatpush.bf16.msra.mxu0 %v295
  %311 = vmatpush.bf16.msra.mxu0 %v294
  %312 = vmatpush.bf16.msra.mxu0 %v293
  %313 = vmatmul.bf16.gmra.mxu0 %v164
  %v314 = vpop.f32.mrf.mxu0
  %v315 = vadd.f32 %v37, %v314
  %v316 = vpop.f32.mrf.mxu0
  %v317 = vadd.f32 %v42, %v316
  %318 = vmatmul.bf16.gmra.mxu0 %v167
  %v319 = vpop.f32.mrf.mxu0
  %v320 = vadd.f32 %v47, %v319
  %v321 = vpop.f32.mrf.mxu0
  %v322 = vadd.f32 %v52, %v321
  %323 = vmatmul.bf16.gmra.mxu0 %v170
  %v324 = vpop.f32.mrf.mxu0
  %v325 = vadd.f32 %v57, %v324
  %v326 = vpop.f32.mrf.mxu0
  %v327 = vadd.f32 %v62, %v326
  %328 = vmatmul.bf16.gmra.mxu0 %v173
  %v329 = vpop.f32.mrf.mxu0
  %v330 = vadd.f32 %v67, %v329
  %v331 = vpop.f32.mrf.mxu0
  %v332 = vadd.f32 %v72, %v331
  %333 = vdwg.mxu0
  %s334 = scalar_lea.vmem %s3, 64
  %v335 = vld [vmem:[%s334] sm:$0xff]
  %v336 = vld [vmem:[%s334 + $0x8] sm:$0xff]
  %v337 = vld [vmem:[%s334 + $0x10] sm:$0xff]
  %v338 = vld [vmem:[%s334 + $0x18] sm:$0xff]
  %v339 = vld [vmem:[%s334 + $0x20] sm:$0xff]
  %v340 = vld [vmem:[%s334 + $0x28] sm:$0xff]
  %v341 = vld [vmem:[%s334 + $0x30] sm:$0xff]
  %v342 = vld [vmem:[%s334 + $0x38] sm:$0xff]
  %v343 = vadd.f32 %v315, %v335
  %v344 = vadd.f32 %v317, %v336
  %v345 = vadd.f32 %v320, %v337
  %v346 = vadd.f32 %v322, %v338
  %v347 = vadd.f32 %v325, %v339
  %v348 = vadd.f32 %v327, %v340
  %v349 = vadd.f32 %v330, %v341
  %v350 = vadd.f32 %v332, %v342
  %s351 = scalar_lea.vmem %s4, 64
  %352 = vst [vmem:[%s351] sm:$0xff] %v343
  %353 = vst [vmem:[%s351 + $0x8] sm:$0xff] %v344
  %354 = vst [vmem:[%s351 + $0x10] sm:$0xff] %v345
  %355 = vst [vmem:[%s351 + $0x18] sm:$0xff] %v346
  %356 = vst [vmem:[%s351 + $0x20] sm:$0xff] %v347
  %357 = vst [vmem:[%s351 + $0x28] sm:$0xff] %v348
  %358 = vst [vmem:[%s351 + $0x30] sm:$0xff] %v349
  %359 = vst [vmem:[%s351 + $0x38] sm:$0xff] %v350
  %s360 = scalar_lea.vmem %s0, 64
  %v361 = vld [vmem:[%s360] sm:$0xf]
  %v362 = vld [vmem:[%s360 + $0x4] sm:$0xf]
  %v363 = vld [vmem:[%s360 + $0x8] sm:$0xf]
  %v364 = vld [vmem:[%s360 + $0xc] sm:$0xf]
  %v365 = vld [vmem:[%s360 + $0x10] sm:$0xf]
  %v366 = vld [vmem:[%s360 + $0x14] sm:$0xf]
  %v367 = vld [vmem:[%s360 + $0x18] sm:$0xf]
  %v368 = vld [vmem:[%s360 + $0x1c] sm:$0xf]
  %v369 = vunpack.c.l.bf16 %v361
  %v370 = vunpack.c.l.bf16 %v362
  %v371 = vunpack.c.l.bf16 %v363
  %v372 = vunpack.c.l.bf16 %v364
  %v373 = vunpack.c.l.bf16 %v365
  %v374 = vunpack.c.l.bf16 %v366
  %v375 = vunpack.c.l.bf16 %v367
  %v376 = vunpack.c.l.bf16 %v368
  %v377 = vsub.f32 %v369, %v297
  %v378 = vsub.f32 %v370, %v298
  %v379 = vsub.f32 %v371, %v299
  %v380 = vsub.f32 %v372, %v300
  %v381 = vsub.f32 %v373, %v301
  %v382 = vsub.f32 %v374, %v302
  %v383 = vsub.f32 %v375, %v303
  %v384 = vsub.f32 %v376, %v304
  %v385 = vmul.f32 %v377, 0.6666667
  %v386 = vmul.f32 %v378, 0.6666667
  %v387 = vmul.f32 %v379, 0.6666667
  %v388 = vmul.f32 %v380, 0.6666667
  %v389 = vmul.f32 %v381, 0.6666667
  %v390 = vmul.f32 %v382, 0.6666667
  %v391 = vmul.f32 %v383, 0.6666667
  %v392 = vmul.f32 %v384, 0.6666667
  %v393 = vadd.f32 %v297, %v385
  %v394 = vadd.f32 %v298, %v386
  %v395 = vadd.f32 %v299, %v387
  %v396 = vadd.f32 %v300, %v388
  %v397 = vadd.f32 %v301, %v389
  %v398 = vadd.f32 %v302, %v390
  %v399 = vadd.f32 %v303, %v391
  %v400 = vadd.f32 %v304, %v392
  %vm401 = vcmp.ge.f32.partialorder %v393, 4.0
  %vm402 = vcmp.ge.f32.partialorder %v394, 4.0
  %vm403 = vcmp.ge.f32.partialorder %v395, 4.0
  %vm404 = vcmp.ge.f32.partialorder %v396, 4.0
  %vm405 = vcmp.ge.f32.partialorder %v397, 4.0
  %vm406 = vcmp.ge.f32.partialorder %v398, 4.0
  %vm407 = vcmp.ge.f32.partialorder %v399, 4.0
  %vm408 = vcmp.ge.f32.partialorder %v400, 4.0
  %v409 = vsel %vm401, 1, 0
  %v410 = vsel %vm402, 1, 0
  %v411 = vsel %vm403, 1, 0
  %v412 = vsel %vm404, 1, 0
  %v413 = vsel %vm405, 1, 0
  %v414 = vsel %vm406, 1, 0
  %v415 = vsel %vm407, 1, 0
  %v416 = vsel %vm408, 1, 0
  %v417 = vcvt.s32.f32 %v409
  %v418 = vcvt.s32.f32 %v410
  %v419 = vcvt.s32.f32 %v411
  %v420 = vcvt.s32.f32 %v412
  %v421 = vcvt.s32.f32 %v413
  %v422 = vcvt.s32.f32 %v414
  %v423 = vcvt.s32.f32 %v415
  %v424 = vcvt.s32.f32 %v416
  %v425 = vpack.c.bf16 %v418, %v417
  %v426 = vpack.c.bf16 %v420, %v419
  %v427 = vpack.c.bf16 %v422, %v421
  %v428 = vpack.c.bf16 %v424, %v423
  %v429 = vsel %vm401, 0.0, %v393
  %v430 = vsel %vm402, 0.0, %v394
  %v431 = vsel %vm403, 0.0, %v395
  %v432 = vsel %vm404, 0.0, %v396
  %v433 = vsel %vm405, 0.0, %v397
  %v434 = vsel %vm406, 0.0, %v398
  %v435 = vsel %vm407, 0.0, %v399
  %v436 = vsel %vm408, 0.0, %v400
  %437 = vmatpush.bf16.msra.mxu0 0
  %438 = vmatpush.bf16.msra.mxu0 0
  %439 = vmatpush.bf16.msra.mxu0 0
  %440 = vmatpush.bf16.msra.mxu0 0
  %441 = vmatpush.bf16.msra.mxu0 %v428
  %442 = vmatpush.bf16.msra.mxu0 %v427
  %443 = vmatpush.bf16.msra.mxu0 %v426
  %444 = vmatpush.bf16.msra.mxu0 %v425
  %445 = vmatmul.bf16.gmra.mxu0 %v164
  %v446 = vpop.f32.mrf.mxu0
  %v447 = vadd.f32 %v37, %v446
  %v448 = vpop.f32.mrf.mxu0
  %v449 = vadd.f32 %v42, %v448
  %450 = vmatmul.bf16.gmra.mxu0 %v167
  %v451 = vpop.f32.mrf.mxu0
  %v452 = vadd.f32 %v47, %v451
  %v453 = vpop.f32.mrf.mxu0
  %v454 = vadd.f32 %v52, %v453
  %455 = vmatmul.bf16.gmra.mxu0 %v170
  %v456 = vpop.f32.mrf.mxu0
  %v457 = vadd.f32 %v57, %v456
  %v458 = vpop.f32.mrf.mxu0
  %v459 = vadd.f32 %v62, %v458
  %460 = vmatmul.bf16.gmra.mxu0 %v173
  %v461 = vpop.f32.mrf.mxu0
  %v462 = vadd.f32 %v67, %v461
  %v463 = vpop.f32.mrf.mxu0
  %v464 = vadd.f32 %v72, %v463
  %465 = vdwg.mxu0
  %s466 = scalar_lea.vmem %s3, 128
  %v467 = vld [vmem:[%s466] sm:$0xff]
  %v468 = vld [vmem:[%s466 + $0x8] sm:$0xff]
  %v469 = vld [vmem:[%s466 + $0x10] sm:$0xff]
  %v470 = vld [vmem:[%s466 + $0x18] sm:$0xff]
  %v471 = vld [vmem:[%s466 + $0x20] sm:$0xff]
  %v472 = vld [vmem:[%s466 + $0x28] sm:$0xff]
  %v473 = vld [vmem:[%s466 + $0x30] sm:$0xff]
  %v474 = vld [vmem:[%s466 + $0x38] sm:$0xff]
  %v475 = vadd.f32 %v447, %v467
  %v476 = vadd.f32 %v449, %v468
  %v477 = vadd.f32 %v452, %v469
  %v478 = vadd.f32 %v454, %v470
  %v479 = vadd.f32 %v457, %v471
  %v480 = vadd.f32 %v459, %v472
  %v481 = vadd.f32 %v462, %v473
  %v482 = vadd.f32 %v464, %v474
  %s483 = scalar_lea.vmem %s4, 128
  %484 = vst [vmem:[%s483] sm:$0xff] %v475
  %485 = vst [vmem:[%s483 + $0x8] sm:$0xff] %v476
  %486 = vst [vmem:[%s483 + $0x10] sm:$0xff] %v477
  %487 = vst [vmem:[%s483 + $0x18] sm:$0xff] %v478
  %488 = vst [vmem:[%s483 + $0x20] sm:$0xff] %v479
  %489 = vst [vmem:[%s483 + $0x28] sm:$0xff] %v480
  %490 = vst [vmem:[%s483 + $0x30] sm:$0xff] %v481
  %491 = vst [vmem:[%s483 + $0x38] sm:$0xff] %v482
  %s492 = scalar_lea.vmem %s0, 96
  %v493 = vld [vmem:[%s492] sm:$0xf]
  %v494 = vld [vmem:[%s492 + $0x4] sm:$0xf]
  %v495 = vld [vmem:[%s492 + $0x8] sm:$0xf]
  %v496 = vld [vmem:[%s492 + $0xc] sm:$0xf]
  %v497 = vld [vmem:[%s492 + $0x10] sm:$0xf]
  %v498 = vld [vmem:[%s492 + $0x14] sm:$0xf]
  %v499 = vld [vmem:[%s492 + $0x18] sm:$0xf]
  %v500 = vld [vmem:[%s492 + $0x1c] sm:$0xf]
  %v501 = vunpack.c.l.bf16 %v493
  %v502 = vunpack.c.l.bf16 %v494
  %v503 = vunpack.c.l.bf16 %v495
  %v504 = vunpack.c.l.bf16 %v496
  %v505 = vunpack.c.l.bf16 %v497
  %v506 = vunpack.c.l.bf16 %v498
  %v507 = vunpack.c.l.bf16 %v499
  %v508 = vunpack.c.l.bf16 %v500
  %v509 = vsub.f32 %v501, %v429
  %v510 = vsub.f32 %v502, %v430
  %v511 = vsub.f32 %v503, %v431
  %v512 = vsub.f32 %v504, %v432
  %v513 = vsub.f32 %v505, %v433
  %v514 = vsub.f32 %v506, %v434
  %v515 = vsub.f32 %v507, %v435
  %v516 = vsub.f32 %v508, %v436
  %v517 = vmul.f32 %v509, 0.6666667
  %v518 = vmul.f32 %v510, 0.6666667
  %v519 = vmul.f32 %v511, 0.6666667
  %v520 = vmul.f32 %v512, 0.6666667
  %v521 = vmul.f32 %v513, 0.6666667
  %v522 = vmul.f32 %v514, 0.6666667
  %v523 = vmul.f32 %v515, 0.6666667
  %v524 = vmul.f32 %v516, 0.6666667
  %v525 = vadd.f32 %v429, %v517
  %v526 = vadd.f32 %v430, %v518
  %v527 = vadd.f32 %v431, %v519
  %v528 = vadd.f32 %v432, %v520
  %v529 = vadd.f32 %v433, %v521
  %v530 = vadd.f32 %v434, %v522
  %v531 = vadd.f32 %v435, %v523
  %v532 = vadd.f32 %v436, %v524
  %vm533 = vcmp.ge.f32.partialorder %v525, 4.0
  %vm534 = vcmp.ge.f32.partialorder %v526, 4.0
  %vm535 = vcmp.ge.f32.partialorder %v527, 4.0
  %vm536 = vcmp.ge.f32.partialorder %v528, 4.0
  %vm537 = vcmp.ge.f32.partialorder %v529, 4.0
  %vm538 = vcmp.ge.f32.partialorder %v530, 4.0
  %vm539 = vcmp.ge.f32.partialorder %v531, 4.0
  %vm540 = vcmp.ge.f32.partialorder %v532, 4.0
  %v541 = vsel %vm533, 1, 0
  %v542 = vsel %vm534, 1, 0
  %v543 = vsel %vm535, 1, 0
  %v544 = vsel %vm536, 1, 0
  %v545 = vsel %vm537, 1, 0
  %v546 = vsel %vm538, 1, 0
  %v547 = vsel %vm539, 1, 0
  %v548 = vsel %vm540, 1, 0
  %v549 = vcvt.s32.f32 %v541
  %v550 = vcvt.s32.f32 %v542
  %v551 = vcvt.s32.f32 %v543
  %v552 = vcvt.s32.f32 %v544
  %v553 = vcvt.s32.f32 %v545
  %v554 = vcvt.s32.f32 %v546
  %v555 = vcvt.s32.f32 %v547
  %v556 = vcvt.s32.f32 %v548
  %v557 = vpack.c.bf16 %v550, %v549
  %v558 = vpack.c.bf16 %v552, %v551
  %v559 = vpack.c.bf16 %v554, %v553
  %v560 = vpack.c.bf16 %v556, %v555
  %561 = vmatpush.bf16.msra.mxu0 0
  %562 = vmatpush.bf16.msra.mxu0 0
  %563 = vmatpush.bf16.msra.mxu0 0
  %564 = vmatpush.bf16.msra.mxu0 0
  %565 = vmatpush.bf16.msra.mxu0 %v560
  %566 = vmatpush.bf16.msra.mxu0 %v559
  %567 = vmatpush.bf16.msra.mxu0 %v558
  %568 = vmatpush.bf16.msra.mxu0 %v557
  %569 = vmatmul.bf16.gmra.mxu0 %v164
  %v570 = vpop.f32.mrf.mxu0
  %v571 = vadd.f32 %v37, %v570
  %v572 = vpop.f32.mrf.mxu0
  %v573 = vadd.f32 %v42, %v572
  %574 = vmatmul.bf16.gmra.mxu0 %v167
  %v575 = vpop.f32.mrf.mxu0
  %v576 = vadd.f32 %v47, %v575
  %v577 = vpop.f32.mrf.mxu0
  %v578 = vadd.f32 %v52, %v577
  %579 = vmatmul.bf16.gmra.mxu0 %v170
  %v580 = vpop.f32.mrf.mxu0
  %v581 = vadd.f32 %v57, %v580
  %v582 = vpop.f32.mrf.mxu0
  %v583 = vadd.f32 %v62, %v582
  %584 = vmatmul.bf16.gmra.mxu0 %v173
  %v585 = vpop.f32.mrf.mxu0
  %v586 = vadd.f32 %v67, %v585
  %v587 = vpop.f32.mrf.mxu0
  %v588 = vadd.f32 %v72, %v587
  %589 = vdwg.mxu0
  %s590 = scalar_lea.vmem %s3, 192
  %v591 = vld [vmem:[%s590] sm:$0xff]
  %v592 = vld [vmem:[%s590 + $0x8] sm:$0xff]
  %v593 = vld [vmem:[%s590 + $0x10] sm:$0xff]
  %v594 = vld [vmem:[%s590 + $0x18] sm:$0xff]
  %v595 = vld [vmem:[%s590 + $0x20] sm:$0xff]
  %v596 = vld [vmem:[%s590 + $0x28] sm:$0xff]
  %v597 = vld [vmem:[%s590 + $0x30] sm:$0xff]
  %v598 = vld [vmem:[%s590 + $0x38] sm:$0xff]
  %v599 = vadd.f32 %v571, %v591
  %v600 = vadd.f32 %v573, %v592
  %v601 = vadd.f32 %v576, %v593
  %v602 = vadd.f32 %v578, %v594
  %v603 = vadd.f32 %v581, %v595
  %v604 = vadd.f32 %v583, %v596
  %v605 = vadd.f32 %v586, %v597
  %v606 = vadd.f32 %v588, %v598
  %s607 = scalar_lea.vmem %s4, 192
  %608 = vst [vmem:[%s607] sm:$0xff] %v599
  %609 = vst [vmem:[%s607 + $0x8] sm:$0xff] %v600
  %610 = vst [vmem:[%s607 + $0x10] sm:$0xff] %v601
  %611 = vst [vmem:[%s607 + $0x18] sm:$0xff] %v602
  %612 = vst [vmem:[%s607 + $0x20] sm:$0xff] %v603
  %613 = vst [vmem:[%s607 + $0x28] sm:$0xff] %v604
  %614 = vst [vmem:[%s607 + $0x30] sm:$0xff] %v605
  %615 = vst [vmem:[%s607 + $0x38] sm:$0xff] %v606
  // Predicated region
  $region18: #{_lambda_.7} parent=0 // pred_check
    _
  $region19: #{_lambda_.7} parent=0 // pred_check_branch
    %617 = sbr.rel (0) target = $region21
  $region20: #{_lambda_.7} parent=0 // pred_region
    _
  $region21: #{_lambda_.7} parent=0 // pred_fallthru
    _
  // Predicated region
  $region22: #{_lambda_.7} parent=0 // pred_check
    _
  $region23: #{_lambda_.7} parent=0 // pred_check_branch
    %619 = sbr.rel (0) target = $region25
  $region24: #{_lambda_.7} parent=0 // pred_region
    _
  $region25: #{_lambda_.7} parent=0 // pred_fallthru
    _

// kernel: _lambda_.9
$region0: #{_lambda_.9}
  #allocation0 [shape = 'u32[]', space=smem, size = 0x4, offset = 0x4, fixed_abs, tag = 'smem constant byte address 0x4 - core index']
  #allocation1 [shape = 'u32[72,128]{1,0:T(1,128)}', space=vmem, size = 0x9000, scoped, tag = 'internal scratch']
  %s0 = inlined_call_operand.vmem [shape: bf16[4,256,128], index: 0, kind: input, shape index: {}]
  %s1 = inlined_call_operand.vmem [shape: bf16[64,256], index: 1, kind: input, shape index: {}]
  %s2 = inlined_call_operand.vmem [shape: f32[64,1], index: 2, kind: input, shape index: {}]
  %s3 = inlined_call_operand.vmem [shape: f32[4,64,128], index: 3, kind: input, shape index: {}]
  %s4 = inlined_call_operand.vmem [shape: f32[4,64,128], index: 4, kind: output, shape index: {}]
  %s5 = sld [smem:[#allocation0]]
  $region26: #{_lambda_.9} parent=0
    _
  %s7 = ssub.s32 1, %s5
  %s8 = scalar_select 0, %s7, %s5
  // Predicated region
  $region2: #{_lambda_.9} parent=0 // pred_check
    _
  $region3: #{_lambda_.9} parent=0 // pred_check_branch
    %10 = sbr.rel (0) target = $region5
  $region4: #{_lambda_.9} parent=0 // pred_region
    _
  $region5: #{_lambda_.9} parent=0 // pred_fallthru
    _
  // Predicated region
  $region6: #{_lambda_.9} parent=0 // pred_check
    _
  $region7: #{_lambda_.9} parent=0 // pred_check_branch
    %12 = sbr.rel (0) target = $region9
  $region8: #{_lambda_.9} parent=0 // pred_region
    _
  $region9: #{_lambda_.9} parent=0 // pred_fallthru
    _
  // Predicated region
  $region10: #{_lambda_.9} parent=0 // pred_check
    _
  $region11: #{_lambda_.9} parent=0 // pred_check_branch
    %14 = sbr.rel (0) target = $region13
  $region12: #{_lambda_.9} parent=0 // pred_region
    _
  $region13: #{_lambda_.9} parent=0 // pred_fallthru
    _
  // Predicated region
  $region14: #{_lambda_.9} parent=0 // pred_check
    _
  $region15: #{_lambda_.9} parent=0 // pred_check_branch
    %16 = sbr.rel (0) target = $region17
  $region16: #{_lambda_.9} parent=0 // pred_region
    _
  $region17: #{_lambda_.9} parent=0 // pred_fallthru
    _
  %v17 = vld [vmem:[%s1] sm:$0xff]
  %v18 = vld [vmem:[%s1 + $0x8] sm:$0xff]
  %v19 = vld [vmem:[%s1 + $0x10] sm:$0xff]
  %v20 = vld [vmem:[%s1 + $0x18] sm:$0xff]
  %v21 = vld [vmem:[%s1 + $0x20] sm:$0xff]
  %v22 = vld [vmem:[%s1 + $0x28] sm:$0xff]
  %v23 = vld [vmem:[%s1 + $0x30] sm:$0xff]
  %v24 = vld [vmem:[%s1 + $0x38] sm:$0xff]
  %v25 = vld [vmem:[%s2] sm:$0xff]
  %v26 = vld [vmem:[%s2 + $0x8] sm:$0xff]
  %v27 = vld [vmem:[%s2 + $0x10] sm:$0xff]
  %v28 = vld [vmem:[%s2 + $0x18] sm:$0xff]
  %v29 = vld [vmem:[%s2 + $0x20] sm:$0xff]
  %v30 = vld [vmem:[%s2 + $0x28] sm:$0xff]
  %v31 = vld [vmem:[%s2 + $0x30] sm:$0xff]
  %v32 = vld [vmem:[%s2 + $0x38] sm:$0xff]
  %34 = vset.pattern.permute.xlu0 0
  %35 = vperm.xlu0 %34, %v25
  %v36 = vpop.permute.xlu0 %35
  %39 = vset.pattern.permute.xlu0 0
  %40 = vperm.xlu0 %39, %v26
  %v41 = vpop.permute.xlu0 %40
  %44 = vset.pattern.permute.xlu0 0
  %45 = vperm.xlu0 %44, %v27
  %v46 = vpop.permute.xlu0 %45
  %49 = vset.pattern.permute.xlu0 0
  %50 = vperm.xlu0 %49, %v28
  %v51 = vpop.permute.xlu0 %50
  %54 = vset.pattern.permute.xlu0 0
  %55 = vperm.xlu0 %54, %v29
  %v56 = vpop.permute.xlu0 %55
  %59 = vset.pattern.permute.xlu0 0
  %60 = vperm.xlu0 %59, %v30
  %v61 = vpop.permute.xlu0 %60
  %64 = vset.pattern.permute.xlu0 0
  %65 = vperm.xlu0 %64, %v31
  %v66 = vpop.permute.xlu0 %65
  %69 = vset.pattern.permute.xlu0 0
  %70 = vperm.xlu0 %69, %v32
  %v71 = vpop.permute.xlu0 %70
  %v73 = vld [vmem:[%s0] sm:$0xf]
  %v74 = vld [vmem:[%s0 + $0x4] sm:$0xf]
  %v75 = vld [vmem:[%s0 + $0x8] sm:$0xf]
  %v76 = vld [vmem:[%s0 + $0xc] sm:$0xf]
  %v77 = vld [vmem:[%s0 + $0x10] sm:$0xf]
  %v78 = vld [vmem:[%s0 + $0x14] sm:$0xf]
  %v79 = vld [vmem:[%s0 + $0x18] sm:$0xf]
  %v80 = vld [vmem:[%s0 + $0x1c] sm:$0xf]
  %v81 = vld [vmem:[%s0 + $0x20] sm:$0xf]
  %v82 = vld [vmem:[%s0 + $0x24] sm:$0xf]
  %v83 = vld [vmem:[%s0 + $0x28] sm:$0xf]
  %v84 = vld [vmem:[%s0 + $0x2c] sm:$0xf]
  %v85 = vld [vmem:[%s0 + $0x30] sm:$0xf]
  %v86 = vld [vmem:[%s0 + $0x34] sm:$0xf]
  %v87 = vld [vmem:[%s0 + $0x38] sm:$0xf]
  %v88 = vld [vmem:[%s0 + $0x3c] sm:$0xf]
  %v89 = vld [vmem:[%s0 + $0x40] sm:$0xf]
  %v90 = vld [vmem:[%s0 + $0x44] sm:$0xf]
  %v91 = vld [vmem:[%s0 + $0x48] sm:$0xf]
  %v92 = vld [vmem:[%s0 + $0x4c] sm:$0xf]
  %v93 = vld [vmem:[%s0 + $0x50] sm:$0xf]
  %v94 = vld [vmem:[%s0 + $0x54] sm:$0xf]
  %v95 = vld [vmem:[%s0 + $0x58] sm:$0xf]
  %v96 = vld [vmem:[%s0 + $0x5c] sm:$0xf]
  %v97 = vld [vmem:[%s0 + $0x60] sm:$0xf]
  %v98 = vld [vmem:[%s0 + $0x64] sm:$0xf]
  %v99 = vld [vmem:[%s0 + $0x68] sm:$0xf]
  %v100 = vld [vmem:[%s0 + $0x6c] sm:$0xf]
  %v101 = vld [vmem:[%s0 + $0x70] sm:$0xf]
  %v102 = vld [vmem:[%s0 + $0x74] sm:$0xf]
  %v103 = vld [vmem:[%s0 + $0x78] sm:$0xf]
  %v104 = vld [vmem:[%s0 + $0x7c] sm:$0xf]
  %v113 = vunpack.c.l.b16 %v17
  %v114 = vunpack.c.h.b16 %v17
  %v115 = vunpack.c.l.b16 %v18
  %v116 = vunpack.c.h.b16 %v18
  %v117 = vunpack.c.l.b16 %v19
  %v118 = vunpack.c.h.b16 %v19
  %v119 = vunpack.c.l.b16 %v20
  %v120 = vunpack.c.h.b16 %v20
  %v121 = vunpack.c.l.b16 %v21
  %v122 = vunpack.c.h.b16 %v21
  %v123 = vunpack.c.l.b16 %v22
  %v124 = vunpack.c.h.b16 %v22
  %v125 = vunpack.c.l.b16 %v23
  %v126 = vunpack.c.h.b16 %v23
  %v127 = vunpack.c.l.b16 %v24
  %v128 = vunpack.c.h.b16 %v24
  %v129 = vpack.c.b16 %v115, %v113
  %v130 = vpack.c.b16 %v116, %v114
  %v131 = vpack.c.b16 %v119, %v117
  %v132 = vpack.c.b16 %v120, %v118
  %v133 = vpack.c.b16 %v123, %v121
  %v134 = vpack.c.b16 %v124, %v122
  %v135 = vpack.c.b16 %v127, %v125
  %v136 = vpack.c.b16 %v128, %v126
  %v177 = vunpack.c.l.b16 %v73
  %v178 = vunpack.c.l.b16 %v74
  %v179 = vunpack.c.l.b16 %v75
  %v180 = vunpack.c.l.b16 %v76
  %v181 = vunpack.c.l.b16 %v77
  %v182 = vunpack.c.l.b16 %v78
  %v183 = vunpack.c.l.b16 %v79
  %v184 = vunpack.c.l.b16 %v80
  %v185 = vunpack.c.l.b16 %v81
  %v186 = vunpack.c.l.b16 %v82
  %v187 = vunpack.c.l.b16 %v83
  %v188 = vunpack.c.l.b16 %v84
  %v189 = vunpack.c.l.b16 %v85
  %v190 = vunpack.c.l.b16 %v86
  %v191 = vunpack.c.l.b16 %v87
  %v192 = vunpack.c.l.b16 %v88
  %v193 = vunpack.c.l.b16 %v89
  %v194 = vunpack.c.l.b16 %v90
  %v195 = vunpack.c.l.b16 %v91
  %v196 = vunpack.c.l.b16 %v92
  %v197 = vunpack.c.l.b16 %v93
  %v198 = vunpack.c.l.b16 %v94
  %v199 = vunpack.c.l.b16 %v95
  %v200 = vunpack.c.l.b16 %v96
  %v201 = vunpack.c.l.b16 %v97
  %v202 = vunpack.c.l.b16 %v98
  %v203 = vunpack.c.l.b16 %v99
  %v204 = vunpack.c.l.b16 %v100
  %v205 = vunpack.c.l.b16 %v101
  %v206 = vunpack.c.l.b16 %v102
  %v207 = vunpack.c.l.b16 %v103
  %v208 = vunpack.c.l.b16 %v104
  %v209 = vpack.c.b16 %v178, %v177
  %v210 = vpack.c.b16 %v180, %v179
  %v211 = vpack.c.b16 %v182, %v181
  %v212 = vpack.c.b16 %v184, %v183
  %v213 = vpack.c.b16 %v186, %v185
  %v214 = vpack.c.b16 %v188, %v187
  %v215 = vpack.c.b16 %v190, %v189
  %v216 = vpack.c.b16 %v192, %v191
  %v217 = vpack.c.b16 %v194, %v193
  %v218 = vpack.c.b16 %v196, %v195
  %v219 = vpack.c.b16 %v198, %v197
  %v220 = vpack.c.b16 %v200, %v199
  %v221 = vpack.c.b16 %v202, %v201
  %v222 = vpack.c.b16 %v204, %v203
  %v223 = vpack.c.b16 %v206, %v205
  %v224 = vpack.c.b16 %v208, %v207
  %241 = vmatpush.bf16.msra.mxu0 %v216
  %242 = vmatpush.bf16.msra.mxu0 %v215
  %243 = vmatpush.bf16.msra.mxu0 %v214
  %244 = vmatpush.bf16.msra.mxu0 %v213
  %245 = vmatpush.bf16.msra.mxu0 %v212
  %246 = vmatpush.bf16.msra.mxu0 %v211
  %247 = vmatpush.bf16.msra.mxu0 %v210
  %248 = vmatpush.bf16.msra.mxu0 %v209
  %249 = vmatmul.bf16.gmra.mxu0 %v129
  %v250 = vpop.f32.mrf.mxu0
  %v251 = vadd.f32 %v36, %v250
  %v252 = vpop.f32.mrf.mxu0
  %v253 = vadd.f32 %v41, %v252
  %254 = vmatmul.bf16.gmra.mxu0 %v131
  %v255 = vpop.f32.mrf.mxu0
  %v256 = vadd.f32 %v46, %v255
  %v257 = vpop.f32.mrf.mxu0
  %v258 = vadd.f32 %v51, %v257
  %259 = vmatmul.bf16.gmra.mxu0 %v133
  %v260 = vpop.f32.mrf.mxu0
  %v261 = vadd.f32 %v56, %v260
  %v262 = vpop.f32.mrf.mxu0
  %v263 = vadd.f32 %v61, %v262
  %264 = vmatmul.bf16.gmra.mxu0 %v135
  %v265 = vpop.f32.mrf.mxu0
  %v266 = vadd.f32 %v66, %v265
  %v267 = vpop.f32.mrf.mxu0
  %v268 = vadd.f32 %v71, %v267
  %269 = vdwg.mxu0
  %270 = vmatpush.bf16.msra.mxu0 %v224
  %271 = vmatpush.bf16.msra.mxu0 %v223
  %272 = vmatpush.bf16.msra.mxu0 %v222
  %273 = vmatpush.bf16.msra.mxu0 %v221
  %274 = vmatpush.bf16.msra.mxu0 %v220
  %275 = vmatpush.bf16.msra.mxu0 %v219
  %276 = vmatpush.bf16.msra.mxu0 %v218
  %277 = vmatpush.bf16.msra.mxu0 %v217
  %278 = vmatmul.bf16.gmra.mxu0 %v130
  %v279 = vpop.f32.mrf.mxu0
  %v280 = vadd.f32 %v251, %v279
  %v281 = vpop.f32.mrf.mxu0
  %v282 = vadd.f32 %v253, %v281
  %283 = vmatmul.bf16.gmra.mxu0 %v132
  %v284 = vpop.f32.mrf.mxu0
  %v285 = vadd.f32 %v256, %v284
  %v286 = vpop.f32.mrf.mxu0
  %v287 = vadd.f32 %v258, %v286
  %288 = vmatmul.bf16.gmra.mxu0 %v134
  %v289 = vpop.f32.mrf.mxu0
  %v290 = vadd.f32 %v261, %v289
  %v291 = vpop.f32.mrf.mxu0
  %v292 = vadd.f32 %v263, %v291
  %293 = vmatmul.bf16.gmra.mxu0 %v136
  %v294 = vpop.f32.mrf.mxu0
  %v295 = vadd.f32 %v266, %v294
  %v296 = vpop.f32.mrf.mxu0
  %v297 = vadd.f32 %v268, %v296
  %298 = vdwg.mxu0
  %v299 = vld [vmem:[%s3] sm:$0xff]
  %v300 = vld [vmem:[%s3 + $0x8] sm:$0xff]
  %v301 = vld [vmem:[%s3 + $0x10] sm:$0xff]
  %v302 = vld [vmem:[%s3 + $0x18] sm:$0xff]
  %v303 = vld [vmem:[%s3 + $0x20] sm:$0xff]
  %v304 = vld [vmem:[%s3 + $0x28] sm:$0xff]
  %v305 = vld [vmem:[%s3 + $0x30] sm:$0xff]
  %v306 = vld [vmem:[%s3 + $0x38] sm:$0xff]
  %v307 = vadd.f32 %v280, %v299
  %v308 = vadd.f32 %v282, %v300
  %v309 = vadd.f32 %v285, %v301
  %v310 = vadd.f32 %v287, %v302
  %v311 = vadd.f32 %v290, %v303
  %v312 = vadd.f32 %v292, %v304
  %v313 = vadd.f32 %v295, %v305
  %v314 = vadd.f32 %v297, %v306
  %315 = vst [vmem:[%s4] sm:$0xff] %v307
  %316 = vst [vmem:[%s4 + $0x8] sm:$0xff] %v308
  %317 = vst [vmem:[%s4 + $0x10] sm:$0xff] %v309
  %318 = vst [vmem:[%s4 + $0x18] sm:$0xff] %v310
  %319 = vst [vmem:[%s4 + $0x20] sm:$0xff] %v311
  %320 = vst [vmem:[%s4 + $0x28] sm:$0xff] %v312
  %321 = vst [vmem:[%s4 + $0x30] sm:$0xff] %v313
  %322 = vst [vmem:[%s4 + $0x38] sm:$0xff] %v314
  %s323 = scalar_lea.vmem %s0, 128
  %v324 = vld [vmem:[%s323] sm:$0xf]
  %v325 = vld [vmem:[%s323 + $0x4] sm:$0xf]
  %v326 = vld [vmem:[%s323 + $0x8] sm:$0xf]
  %v327 = vld [vmem:[%s323 + $0xc] sm:$0xf]
  %v328 = vld [vmem:[%s323 + $0x10] sm:$0xf]
  %v329 = vld [vmem:[%s323 + $0x14] sm:$0xf]
  %v330 = vld [vmem:[%s323 + $0x18] sm:$0xf]
  %v331 = vld [vmem:[%s323 + $0x1c] sm:$0xf]
  %v332 = vld [vmem:[%s323 + $0x20] sm:$0xf]
  %v333 = vld [vmem:[%s323 + $0x24] sm:$0xf]
  %v334 = vld [vmem:[%s323 + $0x28] sm:$0xf]
  %v335 = vld [vmem:[%s323 + $0x2c] sm:$0xf]
  %v336 = vld [vmem:[%s323 + $0x30] sm:$0xf]
  %v337 = vld [vmem:[%s323 + $0x34] sm:$0xf]
  %v338 = vld [vmem:[%s323 + $0x38] sm:$0xf]
  %v339 = vld [vmem:[%s323 + $0x3c] sm:$0xf]
  %v340 = vld [vmem:[%s323 + $0x40] sm:$0xf]
  %v341 = vld [vmem:[%s323 + $0x44] sm:$0xf]
  %v342 = vld [vmem:[%s323 + $0x48] sm:$0xf]
  %v343 = vld [vmem:[%s323 + $0x4c] sm:$0xf]
  %v344 = vld [vmem:[%s323 + $0x50] sm:$0xf]
  %v345 = vld [vmem:[%s323 + $0x54] sm:$0xf]
  %v346 = vld [vmem:[%s323 + $0x58] sm:$0xf]
  %v347 = vld [vmem:[%s323 + $0x5c] sm:$0xf]
  %v348 = vld [vmem:[%s323 + $0x60] sm:$0xf]
  %v349 = vld [vmem:[%s323 + $0x64] sm:$0xf]
  %v350 = vld [vmem:[%s323 + $0x68] sm:$0xf]
  %v351 = vld [vmem:[%s323 + $0x6c] sm:$0xf]
  %v352 = vld [vmem:[%s323 + $0x70] sm:$0xf]
  %v353 = vld [vmem:[%s323 + $0x74] sm:$0xf]
  %v354 = vld [vmem:[%s323 + $0x78] sm:$0xf]
  %v355 = vld [vmem:[%s323 + $0x7c] sm:$0xf]
  %v388 = vunpack.c.l.b16 %v324
  %v389 = vunpack.c.l.b16 %v325
  %v390 = vunpack.c.l.b16 %v326
  %v391 = vunpack.c.l.b16 %v327
  %v392 = vunpack.c.l.b16 %v328
  %v393 = vunpack.c.l.b16 %v329
  %v394 = vunpack.c.l.b16 %v330
  %v395 = vunpack.c.l.b16 %v331
  %v396 = vunpack.c.l.b16 %v332
  %v397 = vunpack.c.l.b16 %v333
  %v398 = vunpack.c.l.b16 %v334
  %v399 = vunpack.c.l.b16 %v335
  %v400 = vunpack.c.l.b16 %v336
  %v401 = vunpack.c.l.b16 %v337
  %v402 = vunpack.c.l.b16 %v338
  %v403 = vunpack.c.l.b16 %v339
  %v404 = vunpack.c.l.b16 %v340
  %v405 = vunpack.c.l.b16 %v341
  %v406 = vunpack.c.l.b16 %v342
  %v407 = vunpack.c.l.b16 %v343
  %v408 = vunpack.c.l.b16 %v344
  %v409 = vunpack.c.l.b16 %v345
  %v410 = vunpack.c.l.b16 %v346
  %v411 = vunpack.c.l.b16 %v347
  %v412 = vunpack.c.l.b16 %v348
  %v413 = vunpack.c.l.b16 %v349
  %v414 = vunpack.c.l.b16 %v350
  %v415 = vunpack.c.l.b16 %v351
  %v416 = vunpack.c.l.b16 %v352
  %v417 = vunpack.c.l.b16 %v353
  %v418 = vunpack.c.l.b16 %v354
  %v419 = vunpack.c.l.b16 %v355
  %v420 = vpack.c.b16 %v389, %v388
  %v421 = vpack.c.b16 %v391, %v390
  %v422 = vpack.c.b16 %v393, %v392
  %v423 = vpack.c.b16 %v395, %v394
  %v424 = vpack.c.b16 %v397, %v396
  %v425 = vpack.c.b16 %v399, %v398
  %v426 = vpack.c.b16 %v401, %v400
  %v427 = vpack.c.b16 %v403, %v402
  %v428 = vpack.c.b16 %v405, %v404
  %v429 = vpack.c.b16 %v407, %v406
  %v430 = vpack.c.b16 %v409, %v408
  %v431 = vpack.c.b16 %v411, %v410
  %v432 = vpack.c.b16 %v413, %v412
  %v433 = vpack.c.b16 %v415, %v414
  %v434 = vpack.c.b16 %v417, %v416
  %v435 = vpack.c.b16 %v419, %v418
  %452 = vmatpush.bf16.msra.mxu0 %v427
  %453 = vmatpush.bf16.msra.mxu0 %v426
  %454 = vmatpush.bf16.msra.mxu0 %v425
  %455 = vmatpush.bf16.msra.mxu0 %v424
  %456 = vmatpush.bf16.msra.mxu0 %v423
  %457 = vmatpush.bf16.msra.mxu0 %v422
  %458 = vmatpush.bf16.msra.mxu0 %v421
  %459 = vmatpush.bf16.msra.mxu0 %v420
  %460 = vmatmul.bf16.gmra.mxu0 %v129
  %v461 = vpop.f32.mrf.mxu0
  %v462 = vadd.f32 %v36, %v461
  %v463 = vpop.f32.mrf.mxu0
  %v464 = vadd.f32 %v41, %v463
  %465 = vmatmul.bf16.gmra.mxu0 %v131
  %v466 = vpop.f32.mrf.mxu0
  %v467 = vadd.f32 %v46, %v466
  %v468 = vpop.f32.mrf.mxu0
  %v469 = vadd.f32 %v51, %v468
  %470 = vmatmul.bf16.gmra.mxu0 %v133
  %v471 = vpop.f32.mrf.mxu0
  %v472 = vadd.f32 %v56, %v471
  %v473 = vpop.f32.mrf.mxu0
  %v474 = vadd.f32 %v61, %v473
  %475 = vmatmul.bf16.gmra.mxu0 %v135
  %v476 = vpop.f32.mrf.mxu0
  %v477 = vadd.f32 %v66, %v476
  %v478 = vpop.f32.mrf.mxu0
  %v479 = vadd.f32 %v71, %v478
  %480 = vdwg.mxu0
  %481 = vmatpush.bf16.msra.mxu0 %v435
  %482 = vmatpush.bf16.msra.mxu0 %v434
  %483 = vmatpush.bf16.msra.mxu0 %v433
  %484 = vmatpush.bf16.msra.mxu0 %v432
  %485 = vmatpush.bf16.msra.mxu0 %v431
  %486 = vmatpush.bf16.msra.mxu0 %v430
  %487 = vmatpush.bf16.msra.mxu0 %v429
  %488 = vmatpush.bf16.msra.mxu0 %v428
  %489 = vmatmul.bf16.gmra.mxu0 %v130
  %v490 = vpop.f32.mrf.mxu0
  %v491 = vadd.f32 %v462, %v490
  %v492 = vpop.f32.mrf.mxu0
  %v493 = vadd.f32 %v464, %v492
  %494 = vmatmul.bf16.gmra.mxu0 %v132
  %v495 = vpop.f32.mrf.mxu0
  %v496 = vadd.f32 %v467, %v495
  %v497 = vpop.f32.mrf.mxu0
  %v498 = vadd.f32 %v469, %v497
  %499 = vmatmul.bf16.gmra.mxu0 %v134
  %v500 = vpop.f32.mrf.mxu0
  %v501 = vadd.f32 %v472, %v500
  %v502 = vpop.f32.mrf.mxu0
  %v503 = vadd.f32 %v474, %v502
  %504 = vmatmul.bf16.gmra.mxu0 %v136
  %v505 = vpop.f32.mrf.mxu0
  %v506 = vadd.f32 %v477, %v505
  %v507 = vpop.f32.mrf.mxu0
  %v508 = vadd.f32 %v479, %v507
  %509 = vdwg.mxu0
  %s510 = scalar_lea.vmem %s3, 64
  %v511 = vld [vmem:[%s510] sm:$0xff]
  %v512 = vld [vmem:[%s510 + $0x8] sm:$0xff]
  %v513 = vld [vmem:[%s510 + $0x10] sm:$0xff]
  %v514 = vld [vmem:[%s510 + $0x18] sm:$0xff]
  %v515 = vld [vmem:[%s510 + $0x20] sm:$0xff]
  %v516 = vld [vmem:[%s510 + $0x28] sm:$0xff]
  %v517 = vld [vmem:[%s510 + $0x30] sm:$0xff]
  %v518 = vld [vmem:[%s510 + $0x38] sm:$0xff]
  %v519 = vadd.f32 %v491, %v511
  %v520 = vadd.f32 %v493, %v512
  %v521 = vadd.f32 %v496, %v513
  %v522 = vadd.f32 %v498, %v514
  %v523 = vadd.f32 %v501, %v515
  %v524 = vadd.f32 %v503, %v516
  %v525 = vadd.f32 %v506, %v517
  %v526 = vadd.f32 %v508, %v518
  %s527 = scalar_lea.vmem %s4, 64
  %528 = vst [vmem:[%s527] sm:$0xff] %v519
  %529 = vst [vmem:[%s527 + $0x8] sm:$0xff] %v520
  %530 = vst [vmem:[%s527 + $0x10] sm:$0xff] %v521
  %531 = vst [vmem:[%s527 + $0x18] sm:$0xff] %v522
  %532 = vst [vmem:[%s527 + $0x20] sm:$0xff] %v523
  %533 = vst [vmem:[%s527 + $0x28] sm:$0xff] %v524
  %534 = vst [vmem:[%s527 + $0x30] sm:$0xff] %v525
  %535 = vst [vmem:[%s527 + $0x38] sm:$0xff] %v526
  %s536 = scalar_lea.vmem %s0, 256
  %v537 = vld [vmem:[%s536] sm:$0xf]
  %v538 = vld [vmem:[%s536 + $0x4] sm:$0xf]
  %v539 = vld [vmem:[%s536 + $0x8] sm:$0xf]
  %v540 = vld [vmem:[%s536 + $0xc] sm:$0xf]
  %v541 = vld [vmem:[%s536 + $0x10] sm:$0xf]
  %v542 = vld [vmem:[%s536 + $0x14] sm:$0xf]
  %v543 = vld [vmem:[%s536 + $0x18] sm:$0xf]
  %v544 = vld [vmem:[%s536 + $0x1c] sm:$0xf]
  %v545 = vld [vmem:[%s536 + $0x20] sm:$0xf]
  %v546 = vld [vmem:[%s536 + $0x24] sm:$0xf]
  %v547 = vld [vmem:[%s536 + $0x28] sm:$0xf]
  %v548 = vld [vmem:[%s536 + $0x2c] sm:$0xf]
  %v549 = vld [vmem:[%s536 + $0x30] sm:$0xf]
  %v550 = vld [vmem:[%s536 + $0x34] sm:$0xf]
  %v551 = vld [vmem:[%s536 + $0x38] sm:$0xf]
  %v552 = vld [vmem:[%s536 + $0x3c] sm:$0xf]
  %v553 = vld [vmem:[%s536 + $0x40] sm:$0xf]
  %v554 = vld [vmem:[%s536 + $0x44] sm:$0xf]
  %v555 = vld [vmem:[%s536 + $0x48] sm:$0xf]
  %v556 = vld [vmem:[%s536 + $0x4c] sm:$0xf]
  %v557 = vld [vmem:[%s536 + $0x50] sm:$0xf]
  %v558 = vld [vmem:[%s536 + $0x54] sm:$0xf]
  %v559 = vld [vmem:[%s536 + $0x58] sm:$0xf]
  %v560 = vld [vmem:[%s536 + $0x5c] sm:$0xf]
  %v561 = vld [vmem:[%s536 + $0x60] sm:$0xf]
  %v562 = vld [vmem:[%s536 + $0x64] sm:$0xf]
  %v563 = vld [vmem:[%s536 + $0x68] sm:$0xf]
  %v564 = vld [vmem:[%s536 + $0x6c] sm:$0xf]
  %v565 = vld [vmem:[%s536 + $0x70] sm:$0xf]
  %v566 = vld [vmem:[%s536 + $0x74] sm:$0xf]
  %v567 = vld [vmem:[%s536 + $0x78] sm:$0xf]
  %v568 = vld [vmem:[%s536 + $0x7c] sm:$0xf]
  %v601 = vunpack.c.l.b16 %v537
  %v602 = vunpack.c.l.b16 %v538
  %v603 = vunpack.c.l.b16 %v539
  %v604 = vunpack.c.l.b16 %v540
  %v605 = vunpack.c.l.b16 %v541
  %v606 = vunpack.c.l.b16 %v542
  %v607 = vunpack.c.l.b16 %v543
  %v608 = vunpack.c.l.b16 %v544
  %v609 = vunpack.c.l.b16 %v545
  %v610 = vunpack.c.l.b16 %v546
  %v611 = vunpack.c.l.b16 %v547
  %v612 = vunpack.c.l.b16 %v548
  %v613 = vunpack.c.l.b16 %v549
  %v614 = vunpack.c.l.b16 %v550
  %v615 = vunpack.c.l.b16 %v551
  %v616 = vunpack.c.l.b16 %v552
  %v617 = vunpack.c.l.b16 %v553
  %v618 = vunpack.c.l.b16 %v554
  %v619 = vunpack.c.l.b16 %v555
  %v620 = vunpack.c.l.b16 %v556
  %v621 = vunpack.c.l.b16 %v557
  %v622 = vunpack.c.l.b16 %v558
  %v623 = vunpack.c.l.b16 %v559
  %v624 = vunpack.c.l.b16 %v560
  %v625 = vunpack.c.l.b16 %v561
  %v626 = vunpack.c.l.b16 %v562
  %v627 = vunpack.c.l.b16 %v563
  %v628 = vunpack.c.l.b16 %v564
  %v629 = vunpack.c.l.b16 %v565
  %v630 = vunpack.c.l.b16 %v566
  %v631 = vunpack.c.l.b16 %v567
  %v632 = vunpack.c.l.b16 %v568
  %v633 = vpack.c.b16 %v602, %v601
  %v634 = vpack.c.b16 %v604, %v603
  %v635 = vpack.c.b16 %v606, %v605
  %v636 = vpack.c.b16 %v608, %v607
  %v637 = vpack.c.b16 %v610, %v609
  %v638 = vpack.c.b16 %v612, %v611
  %v639 = vpack.c.b16 %v614, %v613
  %v640 = vpack.c.b16 %v616, %v615
  %v641 = vpack.c.b16 %v618, %v617
  %v642 = vpack.c.b16 %v620, %v619
  %v643 = vpack.c.b16 %v622, %v621
  %v644 = vpack.c.b16 %v624, %v623
  %v645 = vpack.c.b16 %v626, %v625
  %v646 = vpack.c.b16 %v628, %v627
  %v647 = vpack.c.b16 %v630, %v629
  %v648 = vpack.c.b16 %v632, %v631
  %665 = vmatpush.bf16.msra.mxu0 %v640
  %666 = vmatpush.bf16.msra.mxu0 %v639
  %667 = vmatpush.bf16.msra.mxu0 %v638
  %668 = vmatpush.bf16.msra.mxu0 %v637
  %669 = vmatpush.bf16.msra.mxu0 %v636
  %670 = vmatpush.bf16.msra.mxu0 %v635
  %671 = vmatpush.bf16.msra.mxu0 %v634
  %672 = vmatpush.bf16.msra.mxu0 %v633
  %673 = vmatmul.bf16.gmra.mxu0 %v129
  %v674 = vpop.f32.mrf.mxu0
  %v675 = vadd.f32 %v36, %v674
  %v676 = vpop.f32.mrf.mxu0
  %v677 = vadd.f32 %v41, %v676
  %678 = vmatmul.bf16.gmra.mxu0 %v131
  %v679 = vpop.f32.mrf.mxu0
  %v680 = vadd.f32 %v46, %v679
  %v681 = vpop.f32.mrf.mxu0
  %v682 = vadd.f32 %v51, %v681
  %683 = vmatmul.bf16.gmra.mxu0 %v133
  %v684 = vpop.f32.mrf.mxu0
  %v685 = vadd.f32 %v56, %v684
  %v686 = vpop.f32.mrf.mxu0
  %v687 = vadd.f32 %v61, %v686
  %688 = vmatmul.bf16.gmra.mxu0 %v135
  %v689 = vpop.f32.mrf.mxu0
  %v690 = vadd.f32 %v66, %v689
  %v691 = vpop.f32.mrf.mxu0
  %v692 = vadd.f32 %v71, %v691
  %693 = vdwg.mxu0
  %694 = vmatpush.bf16.msra.mxu0 %v648
  %695 = vmatpush.bf16.msra.mxu0 %v647
  %696 = vmatpush.bf16.msra.mxu0 %v646
  %697 = vmatpush.bf16.msra.mxu0 %v645
  %698 = vmatpush.bf16.msra.mxu0 %v644
  %699 = vmatpush.bf16.msra.mxu0 %v643
  %700 = vmatpush.bf16.msra.mxu0 %v642
  %701 = vmatpush.bf16.msra.mxu0 %v641
  %702 = vmatmul.bf16.gmra.mxu0 %v130
  %v703 = vpop.f32.mrf.mxu0
  %v704 = vadd.f32 %v675, %v703
  %v705 = vpop.f32.mrf.mxu0
  %v706 = vadd.f32 %v677, %v705
  %707 = vmatmul.bf16.gmra.mxu0 %v132
  %v708 = vpop.f32.mrf.mxu0
  %v709 = vadd.f32 %v680, %v708
  %v710 = vpop.f32.mrf.mxu0
  %v711 = vadd.f32 %v682, %v710
  %712 = vmatmul.bf16.gmra.mxu0 %v134
  %v713 = vpop.f32.mrf.mxu0
  %v714 = vadd.f32 %v685, %v713
  %v715 = vpop.f32.mrf.mxu0
  %v716 = vadd.f32 %v687, %v715
  %717 = vmatmul.bf16.gmra.mxu0 %v136
  %v718 = vpop.f32.mrf.mxu0
  %v719 = vadd.f32 %v690, %v718
  %v720 = vpop.f32.mrf.mxu0
  %v721 = vadd.f32 %v692, %v720
  %722 = vdwg.mxu0
  %s723 = scalar_lea.vmem %s3, 128
  %v724 = vld [vmem:[%s723] sm:$0xff]
  %v725 = vld [vmem:[%s723 + $0x8] sm:$0xff]
  %v726 = vld [vmem:[%s723 + $0x10] sm:$0xff]
  %v727 = vld [vmem:[%s723 + $0x18] sm:$0xff]
  %v728 = vld [vmem:[%s723 + $0x20] sm:$0xff]
  %v729 = vld [vmem:[%s723 + $0x28] sm:$0xff]
  %v730 = vld [vmem:[%s723 + $0x30] sm:$0xff]
  %v731 = vld [vmem:[%s723 + $0x38] sm:$0xff]
  %v732 = vadd.f32 %v704, %v724
  %v733 = vadd.f32 %v706, %v725
  %v734 = vadd.f32 %v709, %v726
  %v735 = vadd.f32 %v711, %v727
  %v736 = vadd.f32 %v714, %v728
  %v737 = vadd.f32 %v716, %v729
  %v738 = vadd.f32 %v719, %v730
  %v739 = vadd.f32 %v721, %v731
  %s740 = scalar_lea.vmem %s4, 128
  %741 = vst [vmem:[%s740] sm:$0xff] %v732
  %742 = vst [vmem:[%s740 + $0x8] sm:$0xff] %v733
  %743 = vst [vmem:[%s740 + $0x10] sm:$0xff] %v734
  %744 = vst [vmem:[%s740 + $0x18] sm:$0xff] %v735
  %745 = vst [vmem:[%s740 + $0x20] sm:$0xff] %v736
  %746 = vst [vmem:[%s740 + $0x28] sm:$0xff] %v737
  %747 = vst [vmem:[%s740 + $0x30] sm:$0xff] %v738
  %748 = vst [vmem:[%s740 + $0x38] sm:$0xff] %v739
  %s749 = scalar_lea.vmem %s0, 384
  %v750 = vld [vmem:[%s749] sm:$0xf]
  %v751 = vld [vmem:[%s749 + $0x4] sm:$0xf]
  %v752 = vld [vmem:[%s749 + $0x8] sm:$0xf]
  %v753 = vld [vmem:[%s749 + $0xc] sm:$0xf]
  %v754 = vld [vmem:[%s749 + $0x10] sm:$0xf]
  %v755 = vld [vmem:[%s749 + $0x14] sm:$0xf]
  %v756 = vld [vmem:[%s749 + $0x18] sm:$0xf]
  %v757 = vld [vmem:[%s749 + $0x1c] sm:$0xf]
  %v758 = vld [vmem:[%s749 + $0x20] sm:$0xf]
  %v759 = vld [vmem:[%s749 + $0x24] sm:$0xf]
  %v760 = vld [vmem:[%s749 + $0x28] sm:$0xf]
  %v761 = vld [vmem:[%s749 + $0x2c] sm:$0xf]
  %v762 = vld [vmem:[%s749 + $0x30] sm:$0xf]
  %v763 = vld [vmem:[%s749 + $0x34] sm:$0xf]
  %v764 = vld [vmem:[%s749 + $0x38] sm:$0xf]
  %v765 = vld [vmem:[%s749 + $0x3c] sm:$0xf]
  %v766 = vld [vmem:[%s749 + $0x40] sm:$0xf]
  %v767 = vld [vmem:[%s749 + $0x44] sm:$0xf]
  %v768 = vld [vmem:[%s749 + $0x48] sm:$0xf]
  %v769 = vld [vmem:[%s749 + $0x4c] sm:$0xf]
  %v770 = vld [vmem:[%s749 + $0x50] sm:$0xf]
  %v771 = vld [vmem:[%s749 + $0x54] sm:$0xf]
  %v772 = vld [vmem:[%s749 + $0x58] sm:$0xf]
  %v773 = vld [vmem:[%s749 + $0x5c] sm:$0xf]
  %v774 = vld [vmem:[%s749 + $0x60] sm:$0xf]
  %v775 = vld [vmem:[%s749 + $0x64] sm:$0xf]
  %v776 = vld [vmem:[%s749 + $0x68] sm:$0xf]
  %v777 = vld [vmem:[%s749 + $0x6c] sm:$0xf]
  %v778 = vld [vmem:[%s749 + $0x70] sm:$0xf]
  %v779 = vld [vmem:[%s749 + $0x74] sm:$0xf]
  %v780 = vld [vmem:[%s749 + $0x78] sm:$0xf]
  %v781 = vld [vmem:[%s749 + $0x7c] sm:$0xf]
  %v814 = vunpack.c.l.b16 %v750
  %v815 = vunpack.c.l.b16 %v751
  %v816 = vunpack.c.l.b16 %v752
  %v817 = vunpack.c.l.b16 %v753
  %v818 = vunpack.c.l.b16 %v754
  %v819 = vunpack.c.l.b16 %v755
  %v820 = vunpack.c.l.b16 %v756
  %v821 = vunpack.c.l.b16 %v757
  %v822 = vunpack.c.l.b16 %v758
  %v823 = vunpack.c.l.b16 %v759
  %v824 = vunpack.c.l.b16 %v760
  %v825 = vunpack.c.l.b16 %v761
  %v826 = vunpack.c.l.b16 %v762
  %v827 = vunpack.c.l.b16 %v763
  %v828 = vunpack.c.l.b16 %v764
  %v829 = vunpack.c.l.b16 %v765
  %v830 = vunpack.c.l.b16 %v766
  %v831 = vunpack.c.l.b16 %v767
  %v832 = vunpack.c.l.b16 %v768
  %v833 = vunpack.c.l.b16 %v769
  %v834 = vunpack.c.l.b16 %v770
  %v835 = vunpack.c.l.b16 %v771
  %v836 = vunpack.c.l.b16 %v772
  %v837 = vunpack.c.l.b16 %v773
  %v838 = vunpack.c.l.b16 %v774
  %v839 = vunpack.c.l.b16 %v775
  %v840 = vunpack.c.l.b16 %v776
  %v841 = vunpack.c.l.b16 %v777
  %v842 = vunpack.c.l.b16 %v778
  %v843 = vunpack.c.l.b16 %v779
  %v844 = vunpack.c.l.b16 %v780
  %v845 = vunpack.c.l.b16 %v781
  %v846 = vpack.c.b16 %v815, %v814
  %v847 = vpack.c.b16 %v817, %v816
  %v848 = vpack.c.b16 %v819, %v818
  %v849 = vpack.c.b16 %v821, %v820
  %v850 = vpack.c.b16 %v823, %v822
  %v851 = vpack.c.b16 %v825, %v824
  %v852 = vpack.c.b16 %v827, %v826
  %v853 = vpack.c.b16 %v829, %v828
  %v854 = vpack.c.b16 %v831, %v830
  %v855 = vpack.c.b16 %v833, %v832
  %v856 = vpack.c.b16 %v835, %v834
  %v857 = vpack.c.b16 %v837, %v836
  %v858 = vpack.c.b16 %v839, %v838
  %v859 = vpack.c.b16 %v841, %v840
  %v860 = vpack.c.b16 %v843, %v842
  %v861 = vpack.c.b16 %v845, %v844
  %878 = vmatpush.bf16.msra.mxu0 %v853
  %879 = vmatpush.bf16.msra.mxu0 %v852
  %880 = vmatpush.bf16.msra.mxu0 %v851
  %881 = vmatpush.bf16.msra.mxu0 %v850
  %882 = vmatpush.bf16.msra.mxu0 %v849
  %883 = vmatpush.bf16.msra.mxu0 %v848
  %884 = vmatpush.bf16.msra.mxu0 %v847
  %885 = vmatpush.bf16.msra.mxu0 %v846
  %886 = vmatmul.bf16.gmra.mxu0 %v129
  %v887 = vpop.f32.mrf.mxu0
  %v888 = vadd.f32 %v36, %v887
  %v889 = vpop.f32.mrf.mxu0
  %v890 = vadd.f32 %v41, %v889
  %891 = vmatmul.bf16.gmra.mxu0 %v131
  %v892 = vpop.f32.mrf.mxu0
  %v893 = vadd.f32 %v46, %v892
  %v894 = vpop.f32.mrf.mxu0
  %v895 = vadd.f32 %v51, %v894
  %896 = vmatmul.bf16.gmra.mxu0 %v133
  %v897 = vpop.f32.mrf.mxu0
  %v898 = vadd.f32 %v56, %v897
  %v899 = vpop.f32.mrf.mxu0
  %v900 = vadd.f32 %v61, %v899
  %901 = vmatmul.bf16.gmra.mxu0 %v135
  %v902 = vpop.f32.mrf.mxu0
  %v903 = vadd.f32 %v66, %v902
  %v904 = vpop.f32.mrf.mxu0
  %v905 = vadd.f32 %v71, %v904
  %906 = vdwg.mxu0
  %907 = vmatpush.bf16.msra.mxu0 %v861
  %908 = vmatpush.bf16.msra.mxu0 %v860
  %909 = vmatpush.bf16.msra.mxu0 %v859
  %910 = vmatpush.bf16.msra.mxu0 %v858
  %911 = vmatpush.bf16.msra.mxu0 %v857
  %912 = vmatpush.bf16.msra.mxu0 %v856
  %913 = vmatpush.bf16.msra.mxu0 %v855
  %914 = vmatpush.bf16.msra.mxu0 %v854
  %915 = vmatmul.bf16.gmra.mxu0 %v130
  %v916 = vpop.f32.mrf.mxu0
  %v917 = vadd.f32 %v888, %v916
  %v918 = vpop.f32.mrf.mxu0
  %v919 = vadd.f32 %v890, %v918
  %920 = vmatmul.bf16.gmra.mxu0 %v132
  %v921 = vpop.f32.mrf.mxu0
  %v922 = vadd.f32 %v893, %v921
  %v923 = vpop.f32.mrf.mxu0
  %v924 = vadd.f32 %v895, %v923
  %925 = vmatmul.bf16.gmra.mxu0 %v134
  %v926 = vpop.f32.mrf.mxu0
  %v927 = vadd.f32 %v898, %v926
  %v928 = vpop.f32.mrf.mxu0
  %v929 = vadd.f32 %v900, %v928
  %930 = vmatmul.bf16.gmra.mxu0 %v136
  %v931 = vpop.f32.mrf.mxu0
  %v932 = vadd.f32 %v903, %v931
  %v933 = vpop.f32.mrf.mxu0
  %v934 = vadd.f32 %v905, %v933
  %935 = vdwg.mxu0
  %s936 = scalar_lea.vmem %s3, 192
  %v937 = vld [vmem:[%s936] sm:$0xff]
  %v938 = vld [vmem:[%s936 + $0x8] sm:$0xff]
  %v939 = vld [vmem:[%s936 + $0x10] sm:$0xff]
  %v940 = vld [vmem:[%s936 + $0x18] sm:$0xff]
  %v941 = vld [vmem:[%s936 + $0x20] sm:$0xff]
  %v942 = vld [vmem:[%s936 + $0x28] sm:$0xff]
  %v943 = vld [vmem:[%s936 + $0x30] sm:$0xff]
  %v944 = vld [vmem:[%s936 + $0x38] sm:$0xff]
  %v945 = vadd.f32 %v917, %v937
  %v946 = vadd.f32 %v919, %v938
  %v947 = vadd.f32 %v922, %v939
  %v948 = vadd.f32 %v924, %v940
  %v949 = vadd.f32 %v927, %v941
  %v950 = vadd.f32 %v929, %v942
  %v951 = vadd.f32 %v932, %v943
  %v952 = vadd.f32 %v934, %v944
  %s953 = scalar_lea.vmem %s4, 192
  %954 = vst [vmem:[%s953] sm:$0xff] %v945
  %955 = vst [vmem:[%s953 + $0x8] sm:$0xff] %v946
  %956 = vst [vmem:[%s953 + $0x10] sm:$0xff] %v947
  %957 = vst [vmem:[%s953 + $0x18] sm:$0xff] %v948
  %958 = vst [vmem:[%s953 + $0x20] sm:$0xff] %v949
  %959 = vst [vmem:[%s953 + $0x28] sm:$0xff] %v950
  %960 = vst [vmem:[%s953 + $0x30] sm:$0xff] %v951
  %961 = vst [vmem:[%s953 + $0x38] sm:$0xff] %v952
  // Predicated region
  $region18: #{_lambda_.9} parent=0 // pred_check
    _
  $region19: #{_lambda_.9} parent=0 // pred_check_branch
    %963 = sbr.rel (0) target = $region21
  $region20: #{_lambda_.9} parent=0 // pred_region
    _
  $region21: #{_lambda_.9} parent=0 // pred_fallthru
    _
  // Predicated region
  $region22: #{_lambda_.9} parent=0 // pred_check
    _
  $region23: #{_lambda_.9} parent=0 // pred_check_branch
    %965 = sbr.rel (0) target = $region25
  $region24: #{_lambda_.9} parent=0 // pred_region
    _
  $region25: #{_lambda_.9} parent=0 // pred_fallthru
    _

// kernel: _lambda_.8
$region0: #{_lambda_.8}
  #allocation0 [shape = 'u32[]', space=smem, size = 0x4, offset = 0x4, fixed_abs, tag = 'smem constant byte address 0x4 - core index']
  #allocation1 [shape = 'u32[72,128]{1,0:T(1,128)}', space=vmem, size = 0x9000, scoped, tag = 'internal scratch']
  %s0 = inlined_call_operand.vmem [shape: f32[4,64,128], index: 0, kind: input, shape index: {}]
  %s1 = inlined_call_operand.vmem [shape: bf16[256,64], index: 1, kind: input, shape index: {}]
  %s2 = inlined_call_operand.vmem [shape: f32[256,1], index: 2, kind: input, shape index: {}]
  %s3 = inlined_call_operand.vmem [shape: bf16[4,256,128], index: 3, kind: output, shape index: {}]
  %s4 = sld [smem:[#allocation0]]
  $region22: #{_lambda_.8} parent=0
    _
  %s6 = ssub.s32 1, %s4
  %s7 = scalar_select 0, %s6, %s4
  // Predicated region
  $region2: #{_lambda_.8} parent=0 // pred_check
    _
  $region3: #{_lambda_.8} parent=0 // pred_check_branch
    %9 = sbr.rel (0) target = $region5
  $region4: #{_lambda_.8} parent=0 // pred_region
    _
  $region5: #{_lambda_.8} parent=0 // pred_fallthru
    _
  // Predicated region
  $region6: #{_lambda_.8} parent=0 // pred_check
    _
  $region7: #{_lambda_.8} parent=0 // pred_check_branch
    %11 = sbr.rel (0) target = $region9
  $region8: #{_lambda_.8} parent=0 // pred_region
    _
  $region9: #{_lambda_.8} parent=0 // pred_fallthru
    _
  // Predicated region
  $region10: #{_lambda_.8} parent=0 // pred_check
    _
  $region11: #{_lambda_.8} parent=0 // pred_check_branch
    %13 = sbr.rel (0) target = $region13
  $region12: #{_lambda_.8} parent=0 // pred_region
    _
  $region13: #{_lambda_.8} parent=0 // pred_fallthru
    _
  %v15 = vld [vmem:[%s1] sm:$0xf]
  %v16 = vld [vmem:[%s1 + $0x4] sm:$0xf]
  %v17 = vld [vmem:[%s1 + $0x8] sm:$0xf]
  %v18 = vld [vmem:[%s1 + $0xc] sm:$0xf]
  %v19 = vld [vmem:[%s1 + $0x10] sm:$0xf]
  %v20 = vld [vmem:[%s1 + $0x14] sm:$0xf]
  %v21 = vld [vmem:[%s1 + $0x18] sm:$0xf]
  %v22 = vld [vmem:[%s1 + $0x1c] sm:$0xf]
  %v23 = vld [vmem:[%s1 + $0x20] sm:$0xf]
  %v24 = vld [vmem:[%s1 + $0x24] sm:$0xf]
  %v25 = vld [vmem:[%s1 + $0x28] sm:$0xf]
  %v26 = vld [vmem:[%s1 + $0x2c] sm:$0xf]
  %v27 = vld [vmem:[%s1 + $0x30] sm:$0xf]
  %v28 = vld [vmem:[%s1 + $0x34] sm:$0xf]
  %v29 = vld [vmem:[%s1 + $0x38] sm:$0xf]
  %v30 = vld [vmem:[%s1 + $0x3c] sm:$0xf]
  %v31 = vld [vmem:[%s1 + $0x40] sm:$0xf]
  %v32 = vld [vmem:[%s1 + $0x44] sm:$0xf]
  %v33 = vld [vmem:[%s1 + $0x48] sm:$0xf]
  %v34 = vld [vmem:[%s1 + $0x4c] sm:$0xf]
  %v35 = vld [vmem:[%s1 + $0x50] sm:$0xf]
  %v36 = vld [vmem:[%s1 + $0x54] sm:$0xf]
  %v37 = vld [vmem:[%s1 + $0x58] sm:$0xf]
  %v38 = vld [vmem:[%s1 + $0x5c] sm:$0xf]
  %v39 = vld [vmem:[%s1 + $0x60] sm:$0xf]
  %v40 = vld [vmem:[%s1 + $0x64] sm:$0xf]
  %v41 = vld [vmem:[%s1 + $0x68] sm:$0xf]
  %v42 = vld [vmem:[%s1 + $0x6c] sm:$0xf]
  %v43 = vld [vmem:[%s1 + $0x70] sm:$0xf]
  %v44 = vld [vmem:[%s1 + $0x74] sm:$0xf]
  %v45 = vld [vmem:[%s1 + $0x78] sm:$0xf]
  %v46 = vld [vmem:[%s1 + $0x7c] sm:$0xf]
  %v47 = vld [vmem:[%s2] sm:$0xff]
  %v48 = vld [vmem:[%s2 + $0x8] sm:$0xff]
  %v49 = vld [vmem:[%s2 + $0x10] sm:$0xff]
  %v50 = vld [vmem:[%s2 + $0x18] sm:$0xff]
  %v51 = vld [vmem:[%s2 + $0x20] sm:$0xff]
  %v52 = vld [vmem:[%s2 + $0x28] sm:$0xff]
  %v53 = vld [vmem:[%s2 + $0x30] sm:$0xff]
  %v54 = vld [vmem:[%s2 + $0x38] sm:$0xff]
  %v55 = vld [vmem:[%s2 + $0x40] sm:$0xff]
  %v56 = vld [vmem:[%s2 + $0x48] sm:$0xff]
  %v57 = vld [vmem:[%s2 + $0x50] sm:$0xff]
  %v58 = vld [vmem:[%s2 + $0x58] sm:$0xff]
  %v59 = vld [vmem:[%s2 + $0x60] sm:$0xff]
  %v60 = vld [vmem:[%s2 + $0x68] sm:$0xff]
  %v61 = vld [vmem:[%s2 + $0x70] sm:$0xff]
  %v62 = vld [vmem:[%s2 + $0x78] sm:$0xff]
  %v63 = vld [vmem:[%s2 + $0x80] sm:$0xff]
  %v64 = vld [vmem:[%s2 + $0x88] sm:$0xff]
  %v65 = vld [vmem:[%s2 + $0x90] sm:$0xff]
  %v66 = vld [vmem:[%s2 + $0x98] sm:$0xff]
  %v67 = vld [vmem:[%s2 + $0xa0] sm:$0xff]
  %v68 = vld [vmem:[%s2 + $0xa8] sm:$0xff]
  %v69 = vld [vmem:[%s2 + $0xb0] sm:$0xff]
  %v70 = vld [vmem:[%s2 + $0xb8] sm:$0xff]
  %v71 = vld [vmem:[%s2 + $0xc0] sm:$0xff]
  %v72 = vld [vmem:[%s2 + $0xc8] sm:$0xff]
  %v73 = vld [vmem:[%s2 + $0xd0] sm:$0xff]
  %v74 = vld [vmem:[%s2 + $0xd8] sm:$0xff]
  %v75 = vld [vmem:[%s2 + $0xe0] sm:$0xff]
  %v76 = vld [vmem:[%s2 + $0xe8] sm:$0xff]
  %v77 = vld [vmem:[%s2 + $0xf0] sm:$0xff]
  %v78 = vld [vmem:[%s2 + $0xf8] sm:$0xff]
  %80 = vset.pattern.permute.xlu0 0
  %81 = vperm.xlu0 %80, %v47
  %v82 = vpop.permute.xlu0 %81
  %85 = vset.pattern.permute.xlu0 0
  %86 = vperm.xlu0 %85, %v48
  %v87 = vpop.permute.xlu0 %86
  %90 = vset.pattern.permute.xlu0 0
  %91 = vperm.xlu0 %90, %v49
  %v92 = vpop.permute.xlu0 %91
  %95 = vset.pattern.permute.xlu0 0
  %96 = vperm.xlu0 %95, %v50
  %v97 = vpop.permute.xlu0 %96
  %100 = vset.pattern.permute.xlu0 0
  %101 = vperm.xlu0 %100, %v51
  %v102 = vpop.permute.xlu0 %101
  %105 = vset.pattern.permute.xlu0 0
  %106 = vperm.xlu0 %105, %v52
  %v107 = vpop.permute.xlu0 %106
  %110 = vset.pattern.permute.xlu0 0
  %111 = vperm.xlu0 %110, %v53
  %v112 = vpop.permute.xlu0 %111
  %115 = vset.pattern.permute.xlu0 0
  %116 = vperm.xlu0 %115, %v54
  %v117 = vpop.permute.xlu0 %116
  %120 = vset.pattern.permute.xlu0 0
  %121 = vperm.xlu0 %120, %v55
  %v122 = vpop.permute.xlu0 %121
  %125 = vset.pattern.permute.xlu0 0
  %126 = vperm.xlu0 %125, %v56
  %v127 = vpop.permute.xlu0 %126
  %130 = vset.pattern.permute.xlu0 0
  %131 = vperm.xlu0 %130, %v57
  %v132 = vpop.permute.xlu0 %131
  %135 = vset.pattern.permute.xlu0 0
  %136 = vperm.xlu0 %135, %v58
  %v137 = vpop.permute.xlu0 %136
  %140 = vset.pattern.permute.xlu0 0
  %141 = vperm.xlu0 %140, %v59
  %v142 = vpop.permute.xlu0 %141
  %145 = vset.pattern.permute.xlu0 0
  %146 = vperm.xlu0 %145, %v60
  %v147 = vpop.permute.xlu0 %146
  %150 = vset.pattern.permute.xlu0 0
  %151 = vperm.xlu0 %150, %v61
  %v152 = vpop.permute.xlu0 %151
  %155 = vset.pattern.permute.xlu0 0
  %156 = vperm.xlu0 %155, %v62
  %v157 = vpop.permute.xlu0 %156
  %160 = vset.pattern.permute.xlu0 0
  %161 = vperm.xlu0 %160, %v63
  %v162 = vpop.permute.xlu0 %161
  %165 = vset.pattern.permute.xlu0 0
  %166 = vperm.xlu0 %165, %v64
  %v167 = vpop.permute.xlu0 %166
  %170 = vset.pattern.permute.xlu0 0
  %171 = vperm.xlu0 %170, %v65
  %v172 = vpop.permute.xlu0 %171
  %175 = vset.pattern.permute.xlu0 0
  %176 = vperm.xlu0 %175, %v66
  %v177 = vpop.permute.xlu0 %176
  %180 = vset.pattern.permute.xlu0 0
  %181 = vperm.xlu0 %180, %v67
  %v182 = vpop.permute.xlu0 %181
  %185 = vset.pattern.permute.xlu0 0
  %186 = vperm.xlu0 %185, %v68
  %v187 = vpop.permute.xlu0 %186
  %190 = vset.pattern.permute.xlu0 0
  %191 = vperm.xlu0 %190, %v69
  %v192 = vpop.permute.xlu0 %191
  %195 = vset.pattern.permute.xlu0 0
  %196 = vperm.xlu0 %195, %v70
  %v197 = vpop.permute.xlu0 %196
  %200 = vset.pattern.permute.xlu0 0
  %201 = vperm.xlu0 %200, %v71
  %v202 = vpop.permute.xlu0 %201
  %205 = vset.pattern.permute.xlu0 0
  %206 = vperm.xlu0 %205, %v72
  %v207 = vpop.permute.xlu0 %206
  %210 = vset.pattern.permute.xlu0 0
  %211 = vperm.xlu0 %210, %v73
  %v212 = vpop.permute.xlu0 %211
  %215 = vset.pattern.permute.xlu0 0
  %216 = vperm.xlu0 %215, %v74
  %v217 = vpop.permute.xlu0 %216
  %220 = vset.pattern.permute.xlu0 0
  %221 = vperm.xlu0 %220, %v75
  %v222 = vpop.permute.xlu0 %221
  %225 = vset.pattern.permute.xlu0 0
  %226 = vperm.xlu0 %225, %v76
  %v227 = vpop.permute.xlu0 %226
  %230 = vset.pattern.permute.xlu0 0
  %231 = vperm.xlu0 %230, %v77
  %v232 = vpop.permute.xlu0 %231
  %235 = vset.pattern.permute.xlu0 0
  %236 = vperm.xlu0 %235, %v78
  %v237 = vpop.permute.xlu0 %236
  %v239 = vld [vmem:[%s0] sm:$0xff]
  %v240 = vld [vmem:[%s0 + $0x8] sm:$0xff]
  %v241 = vld [vmem:[%s0 + $0x10] sm:$0xff]
  %v242 = vld [vmem:[%s0 + $0x18] sm:$0xff]
  %v243 = vld [vmem:[%s0 + $0x20] sm:$0xff]
  %v244 = vld [vmem:[%s0 + $0x28] sm:$0xff]
  %v245 = vld [vmem:[%s0 + $0x30] sm:$0xff]
  %v246 = vld [vmem:[%s0 + $0x38] sm:$0xff]
  %v247 = vmul.f32 %v239, 0.6666667
  %v248 = vmul.f32 %v240, 0.6666667
  %v249 = vmul.f32 %v241, 0.6666667
  %v250 = vmul.f32 %v242, 0.6666667
  %v251 = vmul.f32 %v243, 0.6666667
  %v252 = vmul.f32 %v244, 0.6666667
  %v253 = vmul.f32 %v245, 0.6666667
  %v254 = vmul.f32 %v246, 0.6666667
  %v255 = vadd.f32 %v247, 0.0
  %v256 = vadd.f32 %v248, 0.0
  %v257 = vadd.f32 %v249, 0.0
  %v258 = vadd.f32 %v250, 0.0
  %v259 = vadd.f32 %v251, 0.0
  %v260 = vadd.f32 %v252, 0.0
  %v261 = vadd.f32 %v253, 0.0
  %v262 = vadd.f32 %v254, 0.0
  %vm263 = vcmp.ge.f32.partialorder %v255, 1.0
  %vm264 = vcmp.ge.f32.partialorder %v256, 1.0
  %vm265 = vcmp.ge.f32.partialorder %v257, 1.0
  %vm266 = vcmp.ge.f32.partialorder %v258, 1.0
  %vm267 = vcmp.ge.f32.partialorder %v259, 1.0
  %vm268 = vcmp.ge.f32.partialorder %v260, 1.0
  %vm269 = vcmp.ge.f32.partialorder %v261, 1.0
  %vm270 = vcmp.ge.f32.partialorder %v262, 1.0
  %v271 = vsel %vm263, 1, 0
  %v272 = vsel %vm264, 1, 0
  %v273 = vsel %vm265, 1, 0
  %v274 = vsel %vm266, 1, 0
  %v275 = vsel %vm267, 1, 0
  %v276 = vsel %vm268, 1, 0
  %v277 = vsel %vm269, 1, 0
  %v278 = vsel %vm270, 1, 0
  %v279 = vcvt.s32.f32 %v271
  %v280 = vcvt.s32.f32 %v272
  %v281 = vcvt.s32.f32 %v273
  %v282 = vcvt.s32.f32 %v274
  %v283 = vcvt.s32.f32 %v275
  %v284 = vcvt.s32.f32 %v276
  %v285 = vcvt.s32.f32 %v277
  %v286 = vcvt.s32.f32 %v278
  %v287 = vpack.c.bf16 %v280, %v279
  %v288 = vpack.c.bf16 %v282, %v281
  %v289 = vpack.c.bf16 %v284, %v283
  %v290 = vpack.c.bf16 %v286, %v285
  %v291 = vsel %vm263, 0.0, %v255
  %v292 = vsel %vm264, 0.0, %v256
  %v293 = vsel %vm265, 0.0, %v257
  %v294 = vsel %vm266, 0.0, %v258
  %v295 = vsel %vm267, 0.0, %v259
  %v296 = vsel %vm268, 0.0, %v260
  %v297 = vsel %vm269, 0.0, %v261
  %v298 = vsel %vm270, 0.0, %v262
  %v331 = vunpack.c.l.b16 %v15
  %v332 = vunpack.c.l.b16 %v16
  %v333 = vunpack.c.l.b16 %v17
  %v334 = vunpack.c.l.b16 %v18
  %v335 = vunpack.c.l.b16 %v19
  %v336 = vunpack.c.l.b16 %v20
  %v337 = vunpack.c.l.b16 %v21
  %v338 = vunpack.c.l.b16 %v22
  %v339 = vunpack.c.l.b16 %v23
  %v340 = vunpack.c.l.b16 %v24
  %v341 = vunpack.c.l.b16 %v25
  %v342 = vunpack.c.l.b16 %v26
  %v343 = vunpack.c.l.b16 %v27
  %v344 = vunpack.c.l.b16 %v28
  %v345 = vunpack.c.l.b16 %v29
  %v346 = vunpack.c.l.b16 %v30
  %v347 = vunpack.c.l.b16 %v31
  %v348 = vunpack.c.l.b16 %v32
  %v349 = vunpack.c.l.b16 %v33
  %v350 = vunpack.c.l.b16 %v34
  %v351 = vunpack.c.l.b16 %v35
  %v352 = vunpack.c.l.b16 %v36
  %v353 = vunpack.c.l.b16 %v37
  %v354 = vunpack.c.l.b16 %v38
  %v355 = vunpack.c.l.b16 %v39
  %v356 = vunpack.c.l.b16 %v40
  %v357 = vunpack.c.l.b16 %v41
  %v358 = vunpack.c.l.b16 %v42
  %v359 = vunpack.c.l.b16 %v43
  %v360 = vunpack.c.l.b16 %v44
  %v361 = vunpack.c.l.b16 %v45
  %v362 = vunpack.c.l.b16 %v46
  %v363 = vpack.c.b16 %v332, %v331
  %v364 = vpack.c.b16 %v334, %v333
  %v365 = vpack.c.b16 %v336, %v335
  %v366 = vpack.c.b16 %v338, %v337
  %v367 = vpack.c.b16 %v340, %v339
  %v368 = vpack.c.b16 %v342, %v341
  %v369 = vpack.c.b16 %v344, %v343
  %v370 = vpack.c.b16 %v346, %v345
  %v371 = vpack.c.b16 %v348, %v347
  %v372 = vpack.c.b16 %v350, %v349
  %v373 = vpack.c.b16 %v352, %v351
  %v374 = vpack.c.b16 %v354, %v353
  %v375 = vpack.c.b16 %v356, %v355
  %v376 = vpack.c.b16 %v358, %v357
  %v377 = vpack.c.b16 %v360, %v359
  %v378 = vpack.c.b16 %v362, %v361
  %vm379 = vcmask 523264
  %v381 = vsel %vm379, %v363, 0
  %v384 = vsel %vm379, %v364, 0
  %v387 = vsel %vm379, %v365, 0
  %v390 = vsel %vm379, %v366, 0
  %v393 = vsel %vm379, %v367, 0
  %v396 = vsel %vm379, %v368, 0
  %v399 = vsel %vm379, %v369, 0
  %v402 = vsel %vm379, %v370, 0
  %v405 = vsel %vm379, %v371, 0
  %v408 = vsel %vm379, %v372, 0
  %v411 = vsel %vm379, %v373, 0
  %v414 = vsel %vm379, %v374, 0
  %v417 = vsel %vm379, %v375, 0
  %v420 = vsel %vm379, %v376, 0
  %v423 = vsel %vm379, %v377, 0
  %v426 = vsel %vm379, %v378, 0
  %428 = vmatpush.bf16.msra.mxu0 0
  %429 = vmatpush.bf16.msra.mxu0 0
  %430 = vmatpush.bf16.msra.mxu0 0
  %431 = vmatpush.bf16.msra.mxu0 0
  %432 = vmatpush.bf16.msra.mxu0 %v290
  %433 = vmatpush.bf16.msra.mxu0 %v289
  %434 = vmatpush.bf16.msra.mxu0 %v288
  %435 = vmatpush.bf16.msra.mxu0 %v287
  %436 = vmatmul.bf16.gmra.mxu0 %v381
  %v437 = vpop.f32.mrf.mxu0
  %v438 = vadd.f32 %v82, %v437
  %v439 = vpop.f32.mrf.mxu0
  %v440 = vadd.f32 %v87, %v439
  %441 = vmatmul.bf16.gmra.mxu0 %v384
  %v442 = vpop.f32.mrf.mxu0
  %v443 = vadd.f32 %v92, %v442
  %v444 = vpop.f32.mrf.mxu0
  %v445 = vadd.f32 %v97, %v444
  %446 = vmatmul.bf16.gmra.mxu0 %v387
  %v447 = vpop.f32.mrf.mxu0
  %v448 = vadd.f32 %v102, %v447
  %v449 = vpop.f32.mrf.mxu0
  %v450 = vadd.f32 %v107, %v449
  %451 = vmatmul.bf16.gmra.mxu0 %v390
  %v452 = vpop.f32.mrf.mxu0
  %v453 = vadd.f32 %v112, %v452
  %v454 = vpop.f32.mrf.mxu0
  %v455 = vadd.f32 %v117, %v454
  %456 = vmatmul.bf16.gmra.mxu0 %v393
  %v457 = vpop.f32.mrf.mxu0
  %v458 = vadd.f32 %v122, %v457
  %v459 = vpop.f32.mrf.mxu0
  %v460 = vadd.f32 %v127, %v459
  %461 = vmatmul.bf16.gmra.mxu0 %v396
  %v462 = vpop.f32.mrf.mxu0
  %v463 = vadd.f32 %v132, %v462
  %v464 = vpop.f32.mrf.mxu0
  %v465 = vadd.f32 %v137, %v464
  %466 = vmatmul.bf16.gmra.mxu0 %v399
  %v467 = vpop.f32.mrf.mxu0
  %v468 = vadd.f32 %v142, %v467
  %v469 = vpop.f32.mrf.mxu0
  %v470 = vadd.f32 %v147, %v469
  %471 = vmatmul.bf16.gmra.mxu0 %v402
  %v472 = vpop.f32.mrf.mxu0
  %v473 = vadd.f32 %v152, %v472
  %v474 = vpop.f32.mrf.mxu0
  %v475 = vadd.f32 %v157, %v474
  %476 = vmatmul.bf16.gmra.mxu0 %v405
  %v477 = vpop.f32.mrf.mxu0
  %v478 = vadd.f32 %v162, %v477
  %v479 = vpop.f32.mrf.mxu0
  %v480 = vadd.f32 %v167, %v479
  %481 = vmatmul.bf16.gmra.mxu0 %v408
  %v482 = vpop.f32.mrf.mxu0
  %v483 = vadd.f32 %v172, %v482
  %v484 = vpop.f32.mrf.mxu0
  %v485 = vadd.f32 %v177, %v484
  %486 = vmatmul.bf16.gmra.mxu0 %v411
  %v487 = vpop.f32.mrf.mxu0
  %v488 = vadd.f32 %v182, %v487
  %v489 = vpop.f32.mrf.mxu0
  %v490 = vadd.f32 %v187, %v489
  %491 = vmatmul.bf16.gmra.mxu0 %v414
  %v492 = vpop.f32.mrf.mxu0
  %v493 = vadd.f32 %v192, %v492
  %v494 = vpop.f32.mrf.mxu0
  %v495 = vadd.f32 %v197, %v494
  %496 = vmatmul.bf16.gmra.mxu0 %v417
  %v497 = vpop.f32.mrf.mxu0
  %v498 = vadd.f32 %v202, %v497
  %v499 = vpop.f32.mrf.mxu0
  %v500 = vadd.f32 %v207, %v499
  %501 = vmatmul.bf16.gmra.mxu0 %v420
  %v502 = vpop.f32.mrf.mxu0
  %v503 = vadd.f32 %v212, %v502
  %v504 = vpop.f32.mrf.mxu0
  %v505 = vadd.f32 %v217, %v504
  %506 = vmatmul.bf16.gmra.mxu0 %v423
  %v507 = vpop.f32.mrf.mxu0
  %v508 = vadd.f32 %v222, %v507
  %v509 = vpop.f32.mrf.mxu0
  %v510 = vadd.f32 %v227, %v509
  %511 = vmatmul.bf16.gmra.mxu0 %v426
  %v512 = vpop.f32.mrf.mxu0
  %v513 = vadd.f32 %v232, %v512
  %v514 = vpop.f32.mrf.mxu0
  %v515 = vadd.f32 %v237, %v514
  %516 = vdwg.mxu0
  %v517 = vmul.f32 %v438, 0.6666667
  %v518 = vmul.f32 %v440, 0.6666667
  %v519 = vmul.f32 %v443, 0.6666667
  %v520 = vmul.f32 %v445, 0.6666667
  %v521 = vmul.f32 %v448, 0.6666667
  %v522 = vmul.f32 %v450, 0.6666667
  %v523 = vmul.f32 %v453, 0.6666667
  %v524 = vmul.f32 %v455, 0.6666667
  %v525 = vmul.f32 %v458, 0.6666667
  %v526 = vmul.f32 %v460, 0.6666667
  %v527 = vmul.f32 %v463, 0.6666667
  %v528 = vmul.f32 %v465, 0.6666667
  %v529 = vmul.f32 %v468, 0.6666667
  %v530 = vmul.f32 %v470, 0.6666667
  %v531 = vmul.f32 %v473, 0.6666667
  %v532 = vmul.f32 %v475, 0.6666667
  %v533 = vmul.f32 %v478, 0.6666667
  %v534 = vmul.f32 %v480, 0.6666667
  %v535 = vmul.f32 %v483, 0.6666667
  %v536 = vmul.f32 %v485, 0.6666667
  %v537 = vmul.f32 %v488, 0.6666667
  %v538 = vmul.f32 %v490, 0.6666667
  %v539 = vmul.f32 %v493, 0.6666667
  %v540 = vmul.f32 %v495, 0.6666667
  %v541 = vmul.f32 %v498, 0.6666667
  %v542 = vmul.f32 %v500, 0.6666667
  %v543 = vmul.f32 %v503, 0.6666667
  %v544 = vmul.f32 %v505, 0.6666667
  %v545 = vmul.f32 %v508, 0.6666667
  %v546 = vmul.f32 %v510, 0.6666667
  %v547 = vmul.f32 %v513, 0.6666667
  %v548 = vmul.f32 %v515, 0.6666667
  %v549 = vadd.f32 %v517, 0.0
  %v550 = vadd.f32 %v518, 0.0
  %v551 = vadd.f32 %v519, 0.0
  %v552 = vadd.f32 %v520, 0.0
  %v553 = vadd.f32 %v521, 0.0
  %v554 = vadd.f32 %v522, 0.0
  %v555 = vadd.f32 %v523, 0.0
  %v556 = vadd.f32 %v524, 0.0
  %v557 = vadd.f32 %v525, 0.0
  %v558 = vadd.f32 %v526, 0.0
  %v559 = vadd.f32 %v527, 0.0
  %v560 = vadd.f32 %v528, 0.0
  %v561 = vadd.f32 %v529, 0.0
  %v562 = vadd.f32 %v530, 0.0
  %v563 = vadd.f32 %v531, 0.0
  %v564 = vadd.f32 %v532, 0.0
  %v565 = vadd.f32 %v533, 0.0
  %v566 = vadd.f32 %v534, 0.0
  %v567 = vadd.f32 %v535, 0.0
  %v568 = vadd.f32 %v536, 0.0
  %v569 = vadd.f32 %v537, 0.0
  %v570 = vadd.f32 %v538, 0.0
  %v571 = vadd.f32 %v539, 0.0
  %v572 = vadd.f32 %v540, 0.0
  %v573 = vadd.f32 %v541, 0.0
  %v574 = vadd.f32 %v542, 0.0
  %v575 = vadd.f32 %v543, 0.0
  %v576 = vadd.f32 %v544, 0.0
  %v577 = vadd.f32 %v545, 0.0
  %v578 = vadd.f32 %v546, 0.0
  %v579 = vadd.f32 %v547, 0.0
  %v580 = vadd.f32 %v548, 0.0
  %vm581 = vcmp.ge.f32.partialorder %v549, 1.0
  %vm582 = vcmp.ge.f32.partialorder %v550, 1.0
  %vm583 = vcmp.ge.f32.partialorder %v551, 1.0
  %vm584 = vcmp.ge.f32.partialorder %v552, 1.0
  %vm585 = vcmp.ge.f32.partialorder %v553, 1.0
  %vm586 = vcmp.ge.f32.partialorder %v554, 1.0
  %vm587 = vcmp.ge.f32.partialorder %v555, 1.0
  %vm588 = vcmp.ge.f32.partialorder %v556, 1.0
  %vm589 = vcmp.ge.f32.partialorder %v557, 1.0
  %vm590 = vcmp.ge.f32.partialorder %v558, 1.0
  %vm591 = vcmp.ge.f32.partialorder %v559, 1.0
  %vm592 = vcmp.ge.f32.partialorder %v560, 1.0
  %vm593 = vcmp.ge.f32.partialorder %v561, 1.0
  %vm594 = vcmp.ge.f32.partialorder %v562, 1.0
  %vm595 = vcmp.ge.f32.partialorder %v563, 1.0
  %vm596 = vcmp.ge.f32.partialorder %v564, 1.0
  %vm597 = vcmp.ge.f32.partialorder %v565, 1.0
  %vm598 = vcmp.ge.f32.partialorder %v566, 1.0
  %vm599 = vcmp.ge.f32.partialorder %v567, 1.0
  %vm600 = vcmp.ge.f32.partialorder %v568, 1.0
  %vm601 = vcmp.ge.f32.partialorder %v569, 1.0
  %vm602 = vcmp.ge.f32.partialorder %v570, 1.0
  %vm603 = vcmp.ge.f32.partialorder %v571, 1.0
  %vm604 = vcmp.ge.f32.partialorder %v572, 1.0
  %vm605 = vcmp.ge.f32.partialorder %v573, 1.0
  %vm606 = vcmp.ge.f32.partialorder %v574, 1.0
  %vm607 = vcmp.ge.f32.partialorder %v575, 1.0
  %vm608 = vcmp.ge.f32.partialorder %v576, 1.0
  %vm609 = vcmp.ge.f32.partialorder %v577, 1.0
  %vm610 = vcmp.ge.f32.partialorder %v578, 1.0
  %vm611 = vcmp.ge.f32.partialorder %v579, 1.0
  %vm612 = vcmp.ge.f32.partialorder %v580, 1.0
  %v613 = vsel %vm581, 0.0, %v549
  %v614 = vsel %vm582, 0.0, %v550
  %v615 = vsel %vm583, 0.0, %v551
  %v616 = vsel %vm584, 0.0, %v552
  %v617 = vsel %vm585, 0.0, %v553
  %v618 = vsel %vm586, 0.0, %v554
  %v619 = vsel %vm587, 0.0, %v555
  %v620 = vsel %vm588, 0.0, %v556
  %v621 = vsel %vm589, 0.0, %v557
  %v622 = vsel %vm590, 0.0, %v558
  %v623 = vsel %vm591, 0.0, %v559
  %v624 = vsel %vm592, 0.0, %v560
  %v625 = vsel %vm593, 0.0, %v561
  %v626 = vsel %vm594, 0.0, %v562
  %v627 = vsel %vm595, 0.0, %v563
  %v628 = vsel %vm596, 0.0, %v564
  %v629 = vsel %vm597, 0.0, %v565
  %v630 = vsel %vm598, 0.0, %v566
  %v631 = vsel %vm599, 0.0, %v567
  %v632 = vsel %vm600, 0.0, %v568
  %v633 = vsel %vm601, 0.0, %v569
  %v634 = vsel %vm602, 0.0, %v570
  %v635 = vsel %vm603, 0.0, %v571
  %v636 = vsel %vm604, 0.0, %v572
  %v637 = vsel %vm605, 0.0, %v573
  %v638 = vsel %vm606, 0.0, %v574
  %v639 = vsel %vm607, 0.0, %v575
  %v640 = vsel %vm608, 0.0, %v576
  %v641 = vsel %vm609, 0.0, %v577
  %v642 = vsel %vm610, 0.0, %v578
  %v643 = vsel %vm611, 0.0, %v579
  %v644 = vsel %vm612, 0.0, %v580
  %v645 = vsel %vm581, 1, 0
  %v646 = vsel %vm582, 1, 0
  %v647 = vsel %vm583, 1, 0
  %v648 = vsel %vm584, 1, 0
  %v649 = vsel %vm585, 1, 0
  %v650 = vsel %vm586, 1, 0
  %v651 = vsel %vm587, 1, 0
  %v652 = vsel %vm588, 1, 0
  %v653 = vsel %vm589, 1, 0
  %v654 = vsel %vm590, 1, 0
  %v655 = vsel %vm591, 1, 0
  %v656 = vsel %vm592, 1, 0
  %v657 = vsel %vm593, 1, 0
  %v658 = vsel %vm594, 1, 0
  %v659 = vsel %vm595, 1, 0
  %v660 = vsel %vm596, 1, 0
  %v661 = vsel %vm597, 1, 0
  %v662 = vsel %vm598, 1, 0
  %v663 = vsel %vm599, 1, 0
  %v664 = vsel %vm600, 1, 0
  %v665 = vsel %vm601, 1, 0
  %v666 = vsel %vm602, 1, 0
  %v667 = vsel %vm603, 1, 0
  %v668 = vsel %vm604, 1, 0
  %v669 = vsel %vm605, 1, 0
  %v670 = vsel %vm606, 1, 0
  %v671 = vsel %vm607, 1, 0
  %v672 = vsel %vm608, 1, 0
  %v673 = vsel %vm609, 1, 0
  %v674 = vsel %vm610, 1, 0
  %v675 = vsel %vm611, 1, 0
  %v676 = vsel %vm612, 1, 0
  %v677 = vcvt.s32.f32 %v645
  %v678 = vcvt.s32.f32 %v646
  %v679 = vcvt.s32.f32 %v647
  %v680 = vcvt.s32.f32 %v648
  %v681 = vcvt.s32.f32 %v649
  %v682 = vcvt.s32.f32 %v650
  %v683 = vcvt.s32.f32 %v651
  %v684 = vcvt.s32.f32 %v652
  %v685 = vcvt.s32.f32 %v653
  %v686 = vcvt.s32.f32 %v654
  %v687 = vcvt.s32.f32 %v655
  %v688 = vcvt.s32.f32 %v656
  %v689 = vcvt.s32.f32 %v657
  %v690 = vcvt.s32.f32 %v658
  %v691 = vcvt.s32.f32 %v659
  %v692 = vcvt.s32.f32 %v660
  %v693 = vcvt.s32.f32 %v661
  %v694 = vcvt.s32.f32 %v662
  %v695 = vcvt.s32.f32 %v663
  %v696 = vcvt.s32.f32 %v664
  %v697 = vcvt.s32.f32 %v665
  %v698 = vcvt.s32.f32 %v666
  %v699 = vcvt.s32.f32 %v667
  %v700 = vcvt.s32.f32 %v668
  %v701 = vcvt.s32.f32 %v669
  %v702 = vcvt.s32.f32 %v670
  %v703 = vcvt.s32.f32 %v671
  %v704 = vcvt.s32.f32 %v672
  %v705 = vcvt.s32.f32 %v673
  %v706 = vcvt.s32.f32 %v674
  %v707 = vcvt.s32.f32 %v675
  %v708 = vcvt.s32.f32 %v676
  %v709 = vpack.c.bf16 %v677, %v677
  %v710 = vpack.c.bf16 %v678, %v678
  %v711 = vpack.c.bf16 %v679, %v679
  %v712 = vpack.c.bf16 %v680, %v680
  %v713 = vpack.c.bf16 %v681, %v681
  %v714 = vpack.c.bf16 %v682, %v682
  %v715 = vpack.c.bf16 %v683, %v683
  %v716 = vpack.c.bf16 %v684, %v684
  %v717 = vpack.c.bf16 %v685, %v685
  %v718 = vpack.c.bf16 %v686, %v686
  %v719 = vpack.c.bf16 %v687, %v687
  %v720 = vpack.c.bf16 %v688, %v688
  %v721 = vpack.c.bf16 %v689, %v689
  %v722 = vpack.c.bf16 %v690, %v690
  %v723 = vpack.c.bf16 %v691, %v691
  %v724 = vpack.c.bf16 %v692, %v692
  %v725 = vpack.c.bf16 %v693, %v693
  %v726 = vpack.c.bf16 %v694, %v694
  %v727 = vpack.c.bf16 %v695, %v695
  %v728 = vpack.c.bf16 %v696, %v696
  %v729 = vpack.c.bf16 %v697, %v697
  %v730 = vpack.c.bf16 %v698, %v698
  %v731 = vpack.c.bf16 %v699, %v699
  %v732 = vpack.c.bf16 %v700, %v700
  %v733 = vpack.c.bf16 %v701, %v701
  %v734 = vpack.c.bf16 %v702, %v702
  %v735 = vpack.c.bf16 %v703, %v703
  %v736 = vpack.c.bf16 %v704, %v704
  %v737 = vpack.c.bf16 %v705, %v705
  %v738 = vpack.c.bf16 %v706, %v706
  %v739 = vpack.c.bf16 %v707, %v707
  %v740 = vpack.c.bf16 %v708, %v708
  %741 = vst [vmem:[%s3] sm:$0xf] %v709
  %742 = vst [vmem:[%s3 + $0x4] sm:$0xf] %v710
  %743 = vst [vmem:[%s3 + $0x8] sm:$0xf] %v711
  %744 = vst [vmem:[%s3 + $0xc] sm:$0xf] %v712
  %745 = vst [vmem:[%s3 + $0x10] sm:$0xf] %v713
  %746 = vst [vmem:[%s3 + $0x14] sm:$0xf] %v714
  %747 = vst [vmem:[%s3 + $0x18] sm:$0xf] %v715
  %748 = vst [vmem:[%s3 + $0x1c] sm:$0xf] %v716
  %749 = vst [vmem:[%s3 + $0x20] sm:$0xf] %v717
  %750 = vst [vmem:[%s3 + $0x24] sm:$0xf] %v718
  %751 = vst [vmem:[%s3 + $0x28] sm:$0xf] %v719
  %752 = vst [vmem:[%s3 + $0x2c] sm:$0xf] %v720
  %753 = vst [vmem:[%s3 + $0x30] sm:$0xf] %v721
  %754 = vst [vmem:[%s3 + $0x34] sm:$0xf] %v722
  %755 = vst [vmem:[%s3 + $0x38] sm:$0xf] %v723
  %756 = vst [vmem:[%s3 + $0x3c] sm:$0xf] %v724
  %757 = vst [vmem:[%s3 + $0x40] sm:$0xf] %v725
  %758 = vst [vmem:[%s3 + $0x44] sm:$0xf] %v726
  %759 = vst [vmem:[%s3 + $0x48] sm:$0xf] %v727
  %760 = vst [vmem:[%s3 + $0x4c] sm:$0xf] %v728
  %761 = vst [vmem:[%s3 + $0x50] sm:$0xf] %v729
  %762 = vst [vmem:[%s3 + $0x54] sm:$0xf] %v730
  %763 = vst [vmem:[%s3 + $0x58] sm:$0xf] %v731
  %764 = vst [vmem:[%s3 + $0x5c] sm:$0xf] %v732
  %765 = vst [vmem:[%s3 + $0x60] sm:$0xf] %v733
  %766 = vst [vmem:[%s3 + $0x64] sm:$0xf] %v734
  %767 = vst [vmem:[%s3 + $0x68] sm:$0xf] %v735
  %768 = vst [vmem:[%s3 + $0x6c] sm:$0xf] %v736
  %769 = vst [vmem:[%s3 + $0x70] sm:$0xf] %v737
  %770 = vst [vmem:[%s3 + $0x74] sm:$0xf] %v738
  %771 = vst [vmem:[%s3 + $0x78] sm:$0xf] %v739
  %772 = vst [vmem:[%s3 + $0x7c] sm:$0xf] %v740
  %s773 = scalar_lea.vmem %s0, 64
  %v774 = vld [vmem:[%s773] sm:$0xff]
  %v775 = vld [vmem:[%s773 + $0x8] sm:$0xff]
  %v776 = vld [vmem:[%s773 + $0x10] sm:$0xff]
  %v777 = vld [vmem:[%s773 + $0x18] sm:$0xff]
  %v778 = vld [vmem:[%s773 + $0x20] sm:$0xff]
  %v779 = vld [vmem:[%s773 + $0x28] sm:$0xff]
  %v780 = vld [vmem:[%s773 + $0x30] sm:$0xff]
  %v781 = vld [vmem:[%s773 + $0x38] sm:$0xff]
  %v782 = vsub.f32 %v774, %v291
  %v783 = vsub.f32 %v775, %v292
  %v784 = vsub.f32 %v776, %v293
  %v785 = vsub.f32 %v777, %v294
  %v786 = vsub.f32 %v778, %v295
  %v787 = vsub.f32 %v779, %v296
  %v788 = vsub.f32 %v780, %v297
  %v789 = vsub.f32 %v781, %v298
  %v790 = vmul.f32 %v782, 0.6666667
  %v791 = vmul.f32 %v783, 0.6666667
  %v792 = vmul.f32 %v784, 0.6666667
  %v793 = vmul.f32 %v785, 0.6666667
  %v794 = vmul.f32 %v786, 0.6666667
  %v795 = vmul.f32 %v787, 0.6666667
  %v796 = vmul.f32 %v788, 0.6666667
  %v797 = vmul.f32 %v789, 0.6666667
  %v798 = vadd.f32 %v291, %v790
  %v799 = vadd.f32 %v292, %v791
  %v800 = vadd.f32 %v293, %v792
  %v801 = vadd.f32 %v294, %v793
  %v802 = vadd.f32 %v295, %v794
  %v803 = vadd.f32 %v296, %v795
  %v804 = vadd.f32 %v297, %v796
  %v805 = vadd.f32 %v298, %v797
  %vm806 = vcmp.ge.f32.partialorder %v798, 1.0
  %vm807 = vcmp.ge.f32.partialorder %v799, 1.0
  %vm808 = vcmp.ge.f32.partialorder %v800, 1.0
  %vm809 = vcmp.ge.f32.partialorder %v801, 1.0
  %vm810 = vcmp.ge.f32.partialorder %v802, 1.0
  %vm811 = vcmp.ge.f32.partialorder %v803, 1.0
  %vm812 = vcmp.ge.f32.partialorder %v804, 1.0
  %vm813 = vcmp.ge.f32.partialorder %v805, 1.0
  %v814 = vsel %vm806, 1, 0
  %v815 = vsel %vm807, 1, 0
  %v816 = vsel %vm808, 1, 0
  %v817 = vsel %vm809, 1, 0
  %v818 = vsel %vm810, 1, 0
  %v819 = vsel %vm811, 1, 0
  %v820 = vsel %vm812, 1, 0
  %v821 = vsel %vm813, 1, 0
  %v822 = vcvt.s32.f32 %v814
  %v823 = vcvt.s32.f32 %v815
  %v824 = vcvt.s32.f32 %v816
  %v825 = vcvt.s32.f32 %v817
  %v826 = vcvt.s32.f32 %v818
  %v827 = vcvt.s32.f32 %v819
  %v828 = vcvt.s32.f32 %v820
  %v829 = vcvt.s32.f32 %v821
  %v830 = vpack.c.bf16 %v823, %v822
  %v831 = vpack.c.bf16 %v825, %v824
  %v832 = vpack.c.bf16 %v827, %v826
  %v833 = vpack.c.bf16 %v829, %v828
  %v834 = vsel %vm806, 0.0, %v798
  %v835 = vsel %vm807, 0.0, %v799
  %v836 = vsel %vm808, 0.0, %v800
  %v837 = vsel %vm809, 0.0, %v801
  %v838 = vsel %vm810, 0.0, %v802
  %v839 = vsel %vm811, 0.0, %v803
  %v840 = vsel %vm812, 0.0, %v804
  %v841 = vsel %vm813, 0.0, %v805
  %842 = vmatpush.bf16.msra.mxu0 0
  %843 = vmatpush.bf16.msra.mxu0 0
  %844 = vmatpush.bf16.msra.mxu0 0
  %845 = vmatpush.bf16.msra.mxu0 0
  %846 = vmatpush.bf16.msra.mxu0 %v833
  %847 = vmatpush.bf16.msra.mxu0 %v832
  %848 = vmatpush.bf16.msra.mxu0 %v831
  %849 = vmatpush.bf16.msra.mxu0 %v830
  %850 = vmatmul.bf16.gmra.mxu0 %v381
  %v851 = vpop.f32.mrf.mxu0
  %v852 = vadd.f32 %v82, %v851
  %v853 = vpop.f32.mrf.mxu0
  %v854 = vadd.f32 %v87, %v853
  %855 = vmatmul.bf16.gmra.mxu0 %v384
  %v856 = vpop.f32.mrf.mxu0
  %v857 = vadd.f32 %v92, %v856
  %v858 = vpop.f32.mrf.mxu0
  %v859 = vadd.f32 %v97, %v858
  %860 = vmatmul.bf16.gmra.mxu0 %v387
  %v861 = vpop.f32.mrf.mxu0
  %v862 = vadd.f32 %v102, %v861
  %v863 = vpop.f32.mrf.mxu0
  %v864 = vadd.f32 %v107, %v863
  %865 = vmatmul.bf16.gmra.mxu0 %v390
  %v866 = vpop.f32.mrf.mxu0
  %v867 = vadd.f32 %v112, %v866
  %v868 = vpop.f32.mrf.mxu0
  %v869 = vadd.f32 %v117, %v868
  %870 = vmatmul.bf16.gmra.mxu0 %v393
  %v871 = vpop.f32.mrf.mxu0
  %v872 = vadd.f32 %v122, %v871
  %v873 = vpop.f32.mrf.mxu0
  %v874 = vadd.f32 %v127, %v873
  %875 = vmatmul.bf16.gmra.mxu0 %v396
  %v876 = vpop.f32.mrf.mxu0
  %v877 = vadd.f32 %v132, %v876
  %v878 = vpop.f32.mrf.mxu0
  %v879 = vadd.f32 %v137, %v878
  %880 = vmatmul.bf16.gmra.mxu0 %v399
  %v881 = vpop.f32.mrf.mxu0
  %v882 = vadd.f32 %v142, %v881
  %v883 = vpop.f32.mrf.mxu0
  %v884 = vadd.f32 %v147, %v883
  %885 = vmatmul.bf16.gmra.mxu0 %v402
  %v886 = vpop.f32.mrf.mxu0
  %v887 = vadd.f32 %v152, %v886
  %v888 = vpop.f32.mrf.mxu0
  %v889 = vadd.f32 %v157, %v888
  %890 = vmatmul.bf16.gmra.mxu0 %v405
  %v891 = vpop.f32.mrf.mxu0
  %v892 = vadd.f32 %v162, %v891
  %v893 = vpop.f32.mrf.mxu0
  %v894 = vadd.f32 %v167, %v893
  %895 = vmatmul.bf16.gmra.mxu0 %v408
  %v896 = vpop.f32.mrf.mxu0
  %v897 = vadd.f32 %v172, %v896
  %v898 = vpop.f32.mrf.mxu0
  %v899 = vadd.f32 %v177, %v898
  %900 = vmatmul.bf16.gmra.mxu0 %v411
  %v901 = vpop.f32.mrf.mxu0
  %v902 = vadd.f32 %v182, %v901
  %v903 = vpop.f32.mrf.mxu0
  %v904 = vadd.f32 %v187, %v903
  %905 = vmatmul.bf16.gmra.mxu0 %v414
  %v906 = vpop.f32.mrf.mxu0
  %v907 = vadd.f32 %v192, %v906
  %v908 = vpop.f32.mrf.mxu0
  %v909 = vadd.f32 %v197, %v908
  %910 = vmatmul.bf16.gmra.mxu0 %v417
  %v911 = vpop.f32.mrf.mxu0
  %v912 = vadd.f32 %v202, %v911
  %v913 = vpop.f32.mrf.mxu0
  %v914 = vadd.f32 %v207, %v913
  %915 = vmatmul.bf16.gmra.mxu0 %v420
  %v916 = vpop.f32.mrf.mxu0
  %v917 = vadd.f32 %v212, %v916
  %v918 = vpop.f32.mrf.mxu0
  %v919 = vadd.f32 %v217, %v918
  %920 = vmatmul.bf16.gmra.mxu0 %v423
  %v921 = vpop.f32.mrf.mxu0
  %v922 = vadd.f32 %v222, %v921
  %v923 = vpop.f32.mrf.mxu0
  %v924 = vadd.f32 %v227, %v923
  %925 = vmatmul.bf16.gmra.mxu0 %v426
  %v926 = vpop.f32.mrf.mxu0
  %v927 = vadd.f32 %v232, %v926
  %v928 = vpop.f32.mrf.mxu0
  %v929 = vadd.f32 %v237, %v928
  %930 = vdwg.mxu0
  %v931 = vsub.f32 %v852, %v613
  %v932 = vsub.f32 %v854, %v614
  %v933 = vsub.f32 %v857, %v615
  %v934 = vsub.f32 %v859, %v616
  %v935 = vsub.f32 %v862, %v617
  %v936 = vsub.f32 %v864, %v618
  %v937 = vsub.f32 %v867, %v619
  %v938 = vsub.f32 %v869, %v620
  %v939 = vsub.f32 %v872, %v621
  %v940 = vsub.f32 %v874, %v622
  %v941 = vsub.f32 %v877, %v623
  %v942 = vsub.f32 %v879, %v624
  %v943 = vsub.f32 %v882, %v625
  %v944 = vsub.f32 %v884, %v626
  %v945 = vsub.f32 %v887, %v627
  %v946 = vsub.f32 %v889, %v628
  %v947 = vsub.f32 %v892, %v629
  %v948 = vsub.f32 %v894, %v630
  %v949 = vsub.f32 %v897, %v631
  %v950 = vsub.f32 %v899, %v632
  %v951 = vsub.f32 %v902, %v633
  %v952 = vsub.f32 %v904, %v634
  %v953 = vsub.f32 %v907, %v635
  %v954 = vsub.f32 %v909, %v636
  %v955 = vsub.f32 %v912, %v637
  %v956 = vsub.f32 %v914, %v638
  %v957 = vsub.f32 %v917, %v639
  %v958 = vsub.f32 %v919, %v640
  %v959 = vsub.f32 %v922, %v641
  %v960 = vsub.f32 %v924, %v642
  %v961 = vsub.f32 %v927, %v643
  %v962 = vsub.f32 %v929, %v644
  %v963 = vmul.f32 %v931, 0.6666667
  %v964 = vmul.f32 %v932, 0.6666667
  %v965 = vmul.f32 %v933, 0.6666667
  %v966 = vmul.f32 %v934, 0.6666667
  %v967 = vmul.f32 %v935, 0.6666667
  %v968 = vmul.f32 %v936, 0.6666667
  %v969 = vmul.f32 %v937, 0.6666667
  %v970 = vmul.f32 %v938, 0.6666667
  %v971 = vmul.f32 %v939, 0.6666667
  %v972 = vmul.f32 %v940, 0.6666667
  %v973 = vmul.f32 %v941, 0.6666667
  %v974 = vmul.f32 %v942, 0.6666667
  %v975 = vmul.f32 %v943, 0.6666667
  %v976 = vmul.f32 %v944, 0.6666667
  %v977 = vmul.f32 %v945, 0.6666667
  %v978 = vmul.f32 %v946, 0.6666667
  %v979 = vmul.f32 %v947, 0.6666667
  %v980 = vmul.f32 %v948, 0.6666667
  %v981 = vmul.f32 %v949, 0.6666667
  %v982 = vmul.f32 %v950, 0.6666667
  %v983 = vmul.f32 %v951, 0.6666667
  %v984 = vmul.f32 %v952, 0.6666667
  %v985 = vmul.f32 %v953, 0.6666667
  %v986 = vmul.f32 %v954, 0.6666667
  %v987 = vmul.f32 %v955, 0.6666667
  %v988 = vmul.f32 %v956, 0.6666667
  %v989 = vmul.f32 %v957, 0.6666667
  %v990 = vmul.f32 %v958, 0.6666667
  %v991 = vmul.f32 %v959, 0.6666667
  %v992 = vmul.f32 %v960, 0.6666667
  %v993 = vmul.f32 %v961, 0.6666667
  %v994 = vmul.f32 %v962, 0.6666667
  %v995 = vadd.f32 %v613, %v963
  %v996 = vadd.f32 %v614, %v964
  %v997 = vadd.f32 %v615, %v965
  %v998 = vadd.f32 %v616, %v966
  %v999 = vadd.f32 %v617, %v967
  %v1000 = vadd.f32 %v618, %v968
  %v1001 = vadd.f32 %v619, %v969
  %v1002 = vadd.f32 %v620, %v970
  %v1003 = vadd.f32 %v621, %v971
  %v1004 = vadd.f32 %v622, %v972
  %v1005 = vadd.f32 %v623, %v973
  %v1006 = vadd.f32 %v624, %v974
  %v1007 = vadd.f32 %v625, %v975
  %v1008 = vadd.f32 %v626, %v976
  %v1009 = vadd.f32 %v627, %v977
  %v1010 = vadd.f32 %v628, %v978
  %v1011 = vadd.f32 %v629, %v979
  %v1012 = vadd.f32 %v630, %v980
  %v1013 = vadd.f32 %v631, %v981
  %v1014 = vadd.f32 %v632, %v982
  %v1015 = vadd.f32 %v633, %v983
  %v1016 = vadd.f32 %v634, %v984
  %v1017 = vadd.f32 %v635, %v985
  %v1018 = vadd.f32 %v636, %v986
  %v1019 = vadd.f32 %v637, %v987
  %v1020 = vadd.f32 %v638, %v988
  %v1021 = vadd.f32 %v639, %v989
  %v1022 = vadd.f32 %v640, %v990
  %v1023 = vadd.f32 %v641, %v991
  %v1024 = vadd.f32 %v642, %v992
  %v1025 = vadd.f32 %v643, %v993
  %v1026 = vadd.f32 %v644, %v994
  %vm1027 = vcmp.ge.f32.partialorder %v995, 1.0
  %vm1028 = vcmp.ge.f32.partialorder %v996, 1.0
  %vm1029 = vcmp.ge.f32.partialorder %v997, 1.0
  %vm1030 = vcmp.ge.f32.partialorder %v998, 1.0
  %vm1031 = vcmp.ge.f32.partialorder %v999, 1.0
  %vm1032 = vcmp.ge.f32.partialorder %v1000, 1.0
  %vm1033 = vcmp.ge.f32.partialorder %v1001, 1.0
  %vm1034 = vcmp.ge.f32.partialorder %v1002, 1.0
  %vm1035 = vcmp.ge.f32.partialorder %v1003, 1.0
  %vm1036 = vcmp.ge.f32.partialorder %v1004, 1.0
  %vm1037 = vcmp.ge.f32.partialorder %v1005, 1.0
  %vm1038 = vcmp.ge.f32.partialorder %v1006, 1.0
  %vm1039 = vcmp.ge.f32.partialorder %v1007, 1.0
  %vm1040 = vcmp.ge.f32.partialorder %v1008, 1.0
  %vm1041 = vcmp.ge.f32.partialorder %v1009, 1.0
  %vm1042 = vcmp.ge.f32.partialorder %v1010, 1.0
  %vm1043 = vcmp.ge.f32.partialorder %v1011, 1.0
  %vm1044 = vcmp.ge.f32.partialorder %v1012, 1.0
  %vm1045 = vcmp.ge.f32.partialorder %v1013, 1.0
  %vm1046 = vcmp.ge.f32.partialorder %v1014, 1.0
  %vm1047 = vcmp.ge.f32.partialorder %v1015, 1.0
  %vm1048 = vcmp.ge.f32.partialorder %v1016, 1.0
  %vm1049 = vcmp.ge.f32.partialorder %v1017, 1.0
  %vm1050 = vcmp.ge.f32.partialorder %v1018, 1.0
  %vm1051 = vcmp.ge.f32.partialorder %v1019, 1.0
  %vm1052 = vcmp.ge.f32.partialorder %v1020, 1.0
  %vm1053 = vcmp.ge.f32.partialorder %v1021, 1.0
  %vm1054 = vcmp.ge.f32.partialorder %v1022, 1.0
  %vm1055 = vcmp.ge.f32.partialorder %v1023, 1.0
  %vm1056 = vcmp.ge.f32.partialorder %v1024, 1.0
  %vm1057 = vcmp.ge.f32.partialorder %v1025, 1.0
  %vm1058 = vcmp.ge.f32.partialorder %v1026, 1.0
  %v1059 = vsel %vm1027, 0.0, %v995
  %v1060 = vsel %vm1028, 0.0, %v996
  %v1061 = vsel %vm1029, 0.0, %v997
  %v1062 = vsel %vm1030, 0.0, %v998
  %v1063 = vsel %vm1031, 0.0, %v999
  %v1064 = vsel %vm1032, 0.0, %v1000
  %v1065 = vsel %vm1033, 0.0, %v1001
  %v1066 = vsel %vm1034, 0.0, %v1002
  %v1067 = vsel %vm1035, 0.0, %v1003
  %v1068 = vsel %vm1036, 0.0, %v1004
  %v1069 = vsel %vm1037, 0.0, %v1005
  %v1070 = vsel %vm1038, 0.0, %v1006
  %v1071 = vsel %vm1039, 0.0, %v1007
  %v1072 = vsel %vm1040, 0.0, %v1008
  %v1073 = vsel %vm1041, 0.0, %v1009
  %v1074 = vsel %vm1042, 0.0, %v1010
  %v1075 = vsel %vm1043, 0.0, %v1011
  %v1076 = vsel %vm1044, 0.0, %v1012
  %v1077 = vsel %vm1045, 0.0, %v1013
  %v1078 = vsel %vm1046, 0.0, %v1014
  %v1079 = vsel %vm1047, 0.0, %v1015
  %v1080 = vsel %vm1048, 0.0, %v1016
  %v1081 = vsel %vm1049, 0.0, %v1017
  %v1082 = vsel %vm1050, 0.0, %v1018
  %v1083 = vsel %vm1051, 0.0, %v1019
  %v1084 = vsel %vm1052, 0.0, %v1020
  %v1085 = vsel %vm1053, 0.0, %v1021
  %v1086 = vsel %vm1054, 0.0, %v1022
  %v1087 = vsel %vm1055, 0.0, %v1023
  %v1088 = vsel %vm1056, 0.0, %v1024
  %v1089 = vsel %vm1057, 0.0, %v1025
  %v1090 = vsel %vm1058, 0.0, %v1026
  %v1091 = vsel %vm1027, 1, 0
  %v1092 = vsel %vm1028, 1, 0
  %v1093 = vsel %vm1029, 1, 0
  %v1094 = vsel %vm1030, 1, 0
  %v1095 = vsel %vm1031, 1, 0
  %v1096 = vsel %vm1032, 1, 0
  %v1097 = vsel %vm1033, 1, 0
  %v1098 = vsel %vm1034, 1, 0
  %v1099 = vsel %vm1035, 1, 0
  %v1100 = vsel %vm1036, 1, 0
  %v1101 = vsel %vm1037, 1, 0
  %v1102 = vsel %vm1038, 1, 0
  %v1103 = vsel %vm1039, 1, 0
  %v1104 = vsel %vm1040, 1, 0
  %v1105 = vsel %vm1041, 1, 0
  %v1106 = vsel %vm1042, 1, 0
  %v1107 = vsel %vm1043, 1, 0
  %v1108 = vsel %vm1044, 1, 0
  %v1109 = vsel %vm1045, 1, 0
  %v1110 = vsel %vm1046, 1, 0
  %v1111 = vsel %vm1047, 1, 0
  %v1112 = vsel %vm1048, 1, 0
  %v1113 = vsel %vm1049, 1, 0
  %v1114 = vsel %vm1050, 1, 0
  %v1115 = vsel %vm1051, 1, 0
  %v1116 = vsel %vm1052, 1, 0
  %v1117 = vsel %vm1053, 1, 0
  %v1118 = vsel %vm1054, 1, 0
  %v1119 = vsel %vm1055, 1, 0
  %v1120 = vsel %vm1056, 1, 0
  %v1121 = vsel %vm1057, 1, 0
  %v1122 = vsel %vm1058, 1, 0
  %v1123 = vcvt.s32.f32 %v1091
  %v1124 = vcvt.s32.f32 %v1092
  %v1125 = vcvt.s32.f32 %v1093
  %v1126 = vcvt.s32.f32 %v1094
  %v1127 = vcvt.s32.f32 %v1095
  %v1128 = vcvt.s32.f32 %v1096
  %v1129 = vcvt.s32.f32 %v1097
  %v1130 = vcvt.s32.f32 %v1098
  %v1131 = vcvt.s32.f32 %v1099
  %v1132 = vcvt.s32.f32 %v1100
  %v1133 = vcvt.s32.f32 %v1101
  %v1134 = vcvt.s32.f32 %v1102
  %v1135 = vcvt.s32.f32 %v1103
  %v1136 = vcvt.s32.f32 %v1104
  %v1137 = vcvt.s32.f32 %v1105
  %v1138 = vcvt.s32.f32 %v1106
  %v1139 = vcvt.s32.f32 %v1107
  %v1140 = vcvt.s32.f32 %v1108
  %v1141 = vcvt.s32.f32 %v1109
  %v1142 = vcvt.s32.f32 %v1110
  %v1143 = vcvt.s32.f32 %v1111
  %v1144 = vcvt.s32.f32 %v1112
  %v1145 = vcvt.s32.f32 %v1113
  %v1146 = vcvt.s32.f32 %v1114
  %v1147 = vcvt.s32.f32 %v1115
  %v1148 = vcvt.s32.f32 %v1116
  %v1149 = vcvt.s32.f32 %v1117
  %v1150 = vcvt.s32.f32 %v1118
  %v1151 = vcvt.s32.f32 %v1119
  %v1152 = vcvt.s32.f32 %v1120
  %v1153 = vcvt.s32.f32 %v1121
  %v1154 = vcvt.s32.f32 %v1122
  %v1155 = vpack.c.bf16 %v1123, %v1123
  %v1156 = vpack.c.bf16 %v1124, %v1124
  %v1157 = vpack.c.bf16 %v1125, %v1125
  %v1158 = vpack.c.bf16 %v1126, %v1126
  %v1159 = vpack.c.bf16 %v1127, %v1127
  %v1160 = vpack.c.bf16 %v1128, %v1128
  %v1161 = vpack.c.bf16 %v1129, %v1129
  %v1162 = vpack.c.bf16 %v1130, %v1130
  %v1163 = vpack.c.bf16 %v1131, %v1131
  %v1164 = vpack.c.bf16 %v1132, %v1132
  %v1165 = vpack.c.bf16 %v1133, %v1133
  %v1166 = vpack.c.bf16 %v1134, %v1134
  %v1167 = vpack.c.bf16 %v1135, %v1135
  %v1168 = vpack.c.bf16 %v1136, %v1136
  %v1169 = vpack.c.bf16 %v1137, %v1137
  %v1170 = vpack.c.bf16 %v1138, %v1138
  %v1171 = vpack.c.bf16 %v1139, %v1139
  %v1172 = vpack.c.bf16 %v1140, %v1140
  %v1173 = vpack.c.bf16 %v1141, %v1141
  %v1174 = vpack.c.bf16 %v1142, %v1142
  %v1175 = vpack.c.bf16 %v1143, %v1143
  %v1176 = vpack.c.bf16 %v1144, %v1144
  %v1177 = vpack.c.bf16 %v1145, %v1145
  %v1178 = vpack.c.bf16 %v1146, %v1146
  %v1179 = vpack.c.bf16 %v1147, %v1147
  %v1180 = vpack.c.bf16 %v1148, %v1148
  %v1181 = vpack.c.bf16 %v1149, %v1149
  %v1182 = vpack.c.bf16 %v1150, %v1150
  %v1183 = vpack.c.bf16 %v1151, %v1151
  %v1184 = vpack.c.bf16 %v1152, %v1152
  %v1185 = vpack.c.bf16 %v1153, %v1153
  %v1186 = vpack.c.bf16 %v1154, %v1154
  %s1187 = scalar_lea.vmem %s3, 128
  %1188 = vst [vmem:[%s1187] sm:$0xf] %v1155
  %1189 = vst [vmem:[%s1187 + $0x4] sm:$0xf] %v1156
  %1190 = vst [vmem:[%s1187 + $0x8] sm:$0xf] %v1157
  %1191 = vst [vmem:[%s1187 + $0xc] sm:$0xf] %v1158
  %1192 = vst [vmem:[%s1187 + $0x10] sm:$0xf] %v1159
  %1193 = vst [vmem:[%s1187 + $0x14] sm:$0xf] %v1160
  %1194 = vst [vmem:[%s1187 + $0x18] sm:$0xf] %v1161
  %1195 = vst [vmem:[%s1187 + $0x1c] sm:$0xf] %v1162
  %1196 = vst [vmem:[%s1187 + $0x20] sm:$0xf] %v1163
  %1197 = vst [vmem:[%s1187 + $0x24] sm:$0xf] %v1164
  %1198 = vst [vmem:[%s1187 + $0x28] sm:$0xf] %v1165
  %1199 = vst [vmem:[%s1187 + $0x2c] sm:$0xf] %v1166
  %1200 = vst [vmem:[%s1187 + $0x30] sm:$0xf] %v1167
  %1201 = vst [vmem:[%s1187 + $0x34] sm:$0xf] %v1168
  %1202 = vst [vmem:[%s1187 + $0x38] sm:$0xf] %v1169
  %1203 = vst [vmem:[%s1187 + $0x3c] sm:$0xf] %v1170
  %1204 = vst [vmem:[%s1187 + $0x40] sm:$0xf] %v1171
  %1205 = vst [vmem:[%s1187 + $0x44] sm:$0xf] %v1172
  %1206 = vst [vmem:[%s1187 + $0x48] sm:$0xf] %v1173
  %1207 = vst [vmem:[%s1187 + $0x4c] sm:$0xf] %v1174
  %1208 = vst [vmem:[%s1187 + $0x50] sm:$0xf] %v1175
  %1209 = vst [vmem:[%s1187 + $0x54] sm:$0xf] %v1176
  %1210 = vst [vmem:[%s1187 + $0x58] sm:$0xf] %v1177
  %1211 = vst [vmem:[%s1187 + $0x5c] sm:$0xf] %v1178
  %1212 = vst [vmem:[%s1187 + $0x60] sm:$0xf] %v1179
  %1213 = vst [vmem:[%s1187 + $0x64] sm:$0xf] %v1180
  %1214 = vst [vmem:[%s1187 + $0x68] sm:$0xf] %v1181
  %1215 = vst [vmem:[%s1187 + $0x6c] sm:$0xf] %v1182
  %1216 = vst [vmem:[%s1187 + $0x70] sm:$0xf] %v1183
  %1217 = vst [vmem:[%s1187 + $0x74] sm:$0xf] %v1184
  %1218 = vst [vmem:[%s1187 + $0x78] sm:$0xf] %v1185
  %1219 = vst [vmem:[%s1187 + $0x7c] sm:$0xf] %v1186
  %s1220 = scalar_lea.vmem %s0, 128
  %v1221 = vld [vmem:[%s1220] sm:$0xff]
  %v1222 = vld [vmem:[%s1220 + $0x8] sm:$0xff]
  %v1223 = vld [vmem:[%s1220 + $0x10] sm:$0xff]
  %v1224 = vld [vmem:[%s1220 + $0x18] sm:$0xff]
  %v1225 = vld [vmem:[%s1220 + $0x20] sm:$0xff]
  %v1226 = vld [vmem:[%s1220 + $0x28] sm:$0xff]
  %v1227 = vld [vmem:[%s1220 + $0x30] sm:$0xff]
  %v1228 = vld [vmem:[%s1220 + $0x38] sm:$0xff]
  %v1229 = vsub.f32 %v1221, %v834
  %v1230 = vsub.f32 %v1222, %v835
  %v1231 = vsub.f32 %v1223, %v836
  %v1232 = vsub.f32 %v1224, %v837
  %v1233 = vsub.f32 %v1225, %v838
  %v1234 = vsub.f32 %v1226, %v839
  %v1235 = vsub.f32 %v1227, %v840
  %v1236 = vsub.f32 %v1228, %v841
  %v1237 = vmul.f32 %v1229, 0.6666667
  %v1238 = vmul.f32 %v1230, 0.6666667
  %v1239 = vmul.f32 %v1231, 0.6666667
  %v1240 = vmul.f32 %v1232, 0.6666667
  %v1241 = vmul.f32 %v1233, 0.6666667
  %v1242 = vmul.f32 %v1234, 0.6666667
  %v1243 = vmul.f32 %v1235, 0.6666667
  %v1244 = vmul.f32 %v1236, 0.6666667
  %v1245 = vadd.f32 %v834, %v1237
  %v1246 = vadd.f32 %v835, %v1238
  %v1247 = vadd.f32 %v836, %v1239
  %v1248 = vadd.f32 %v837, %v1240
  %v1249 = vadd.f32 %v838, %v1241
  %v1250 = vadd.f32 %v839, %v1242
  %v1251 = vadd.f32 %v840, %v1243
  %v1252 = vadd.f32 %v841, %v1244
  %vm1253 = vcmp.ge.f32.partialorder %v1245, 1.0
  %vm1254 = vcmp.ge.f32.partialorder %v1246, 1.0
  %vm1255 = vcmp.ge.f32.partialorder %v1247, 1.0
  %vm1256 = vcmp.ge.f32.partialorder %v1248, 1.0
  %vm1257 = vcmp.ge.f32.partialorder %v1249, 1.0
  %vm1258 = vcmp.ge.f32.partialorder %v1250, 1.0
  %vm1259 = vcmp.ge.f32.partialorder %v1251, 1.0
  %vm1260 = vcmp.ge.f32.partialorder %v1252, 1.0
  %v1261 = vsel %vm1253, 1, 0
  %v1262 = vsel %vm1254, 1, 0
  %v1263 = vsel %vm1255, 1, 0
  %v1264 = vsel %vm1256, 1, 0
  %v1265 = vsel %vm1257, 1, 0
  %v1266 = vsel %vm1258, 1, 0
  %v1267 = vsel %vm1259, 1, 0
  %v1268 = vsel %vm1260, 1, 0
  %v1269 = vcvt.s32.f32 %v1261
  %v1270 = vcvt.s32.f32 %v1262
  %v1271 = vcvt.s32.f32 %v1263
  %v1272 = vcvt.s32.f32 %v1264
  %v1273 = vcvt.s32.f32 %v1265
  %v1274 = vcvt.s32.f32 %v1266
  %v1275 = vcvt.s32.f32 %v1267
  %v1276 = vcvt.s32.f32 %v1268
  %v1277 = vpack.c.bf16 %v1270, %v1269
  %v1278 = vpack.c.bf16 %v1272, %v1271
  %v1279 = vpack.c.bf16 %v1274, %v1273
  %v1280 = vpack.c.bf16 %v1276, %v1275
  %v1281 = vsel %vm1253, 0.0, %v1245
  %v1282 = vsel %vm1254, 0.0, %v1246
  %v1283 = vsel %vm1255, 0.0, %v1247
  %v1284 = vsel %vm1256, 0.0, %v1248
  %v1285 = vsel %vm1257, 0.0, %v1249
  %v1286 = vsel %vm1258, 0.0, %v1250
  %v1287 = vsel %vm1259, 0.0, %v1251
  %v1288 = vsel %vm1260, 0.0, %v1252
  %1289 = vmatpush.bf16.msra.mxu0 0
  %1290 = vmatpush.bf16.msra.mxu0 0
  %1291 = vmatpush.bf16.msra.mxu0 0
  %1292 = vmatpush.bf16.msra.mxu0 0
  %1293 = vmatpush.bf16.msra.mxu0 %v1280
  %1294 = vmatpush.bf16.msra.mxu0 %v1279
  %1295 = vmatpush.bf16.msra.mxu0 %v1278
  %1296 = vmatpush.bf16.msra.mxu0 %v1277
  %1297 = vmatmul.bf16.gmra.mxu0 %v381
  %v1298 = vpop.f32.mrf.mxu0
  %v1299 = vadd.f32 %v82, %v1298
  %v1300 = vpop.f32.mrf.mxu0
  %v1301 = vadd.f32 %v87, %v1300
  %1302 = vmatmul.bf16.gmra.mxu0 %v384
  %v1303 = vpop.f32.mrf.mxu0
  %v1304 = vadd.f32 %v92, %v1303
  %v1305 = vpop.f32.mrf.mxu0
  %v1306 = vadd.f32 %v97, %v1305
  %1307 = vmatmul.bf16.gmra.mxu0 %v387
  %v1308 = vpop.f32.mrf.mxu0
  %v1309 = vadd.f32 %v102, %v1308
  %v1310 = vpop.f32.mrf.mxu0
  %v1311 = vadd.f32 %v107, %v1310
  %1312 = vmatmul.bf16.gmra.mxu0 %v390
  %v1313 = vpop.f32.mrf.mxu0
  %v1314 = vadd.f32 %v112, %v1313
  %v1315 = vpop.f32.mrf.mxu0
  %v1316 = vadd.f32 %v117, %v1315
  %1317 = vmatmul.bf16.gmra.mxu0 %v393
  %v1318 = vpop.f32.mrf.mxu0
  %v1319 = vadd.f32 %v122, %v1318
  %v1320 = vpop.f32.mrf.mxu0
  %v1321 = vadd.f32 %v127, %v1320
  %1322 = vmatmul.bf16.gmra.mxu0 %v396
  %v1323 = vpop.f32.mrf.mxu0
  %v1324 = vadd.f32 %v132, %v1323
  %v1325 = vpop.f32.mrf.mxu0
  %v1326 = vadd.f32 %v137, %v1325
  %1327 = vmatmul.bf16.gmra.mxu0 %v399
  %v1328 = vpop.f32.mrf.mxu0
  %v1329 = vadd.f32 %v142, %v1328
  %v1330 = vpop.f32.mrf.mxu0
  %v1331 = vadd.f32 %v147, %v1330
  %1332 = vmatmul.bf16.gmra.mxu0 %v402
  %v1333 = vpop.f32.mrf.mxu0
  %v1334 = vadd.f32 %v152, %v1333
  %v1335 = vpop.f32.mrf.mxu0
  %v1336 = vadd.f32 %v157, %v1335
  %1337 = vmatmul.bf16.gmra.mxu0 %v405
  %v1338 = vpop.f32.mrf.mxu0
  %v1339 = vadd.f32 %v162, %v1338
  %v1340 = vpop.f32.mrf.mxu0
  %v1341 = vadd.f32 %v167, %v1340
  %1342 = vmatmul.bf16.gmra.mxu0 %v408
  %v1343 = vpop.f32.mrf.mxu0
  %v1344 = vadd.f32 %v172, %v1343
  %v1345 = vpop.f32.mrf.mxu0
  %v1346 = vadd.f32 %v177, %v1345
  %1347 = vmatmul.bf16.gmra.mxu0 %v411
  %v1348 = vpop.f32.mrf.mxu0
  %v1349 = vadd.f32 %v182, %v1348
  %v1350 = vpop.f32.mrf.mxu0
  %v1351 = vadd.f32 %v187, %v1350
  %1352 = vmatmul.bf16.gmra.mxu0 %v414
  %v1353 = vpop.f32.mrf.mxu0
  %v1354 = vadd.f32 %v192, %v1353
  %v1355 = vpop.f32.mrf.mxu0
  %v1356 = vadd.f32 %v197, %v1355
  %1357 = vmatmul.bf16.gmra.mxu0 %v417
  %v1358 = vpop.f32.mrf.mxu0
  %v1359 = vadd.f32 %v202, %v1358
  %v1360 = vpop.f32.mrf.mxu0
  %v1361 = vadd.f32 %v207, %v1360
  %1362 = vmatmul.bf16.gmra.mxu0 %v420
  %v1363 = vpop.f32.mrf.mxu0
  %v1364 = vadd.f32 %v212, %v1363
  %v1365 = vpop.f32.mrf.mxu0
  %v1366 = vadd.f32 %v217, %v1365
  %1367 = vmatmul.bf16.gmra.mxu0 %v423
  %v1368 = vpop.f32.mrf.mxu0
  %v1369 = vadd.f32 %v222, %v1368
  %v1370 = vpop.f32.mrf.mxu0
  %v1371 = vadd.f32 %v227, %v1370
  %1372 = vmatmul.bf16.gmra.mxu0 %v426
  %v1373 = vpop.f32.mrf.mxu0
  %v1374 = vadd.f32 %v232, %v1373
  %v1375 = vpop.f32.mrf.mxu0
  %v1376 = vadd.f32 %v237, %v1375
  %1377 = vdwg.mxu0
  %v1378 = vsub.f32 %v1299, %v1059
  %v1379 = vsub.f32 %v1301, %v1060
  %v1380 = vsub.f32 %v1304, %v1061
  %v1381 = vsub.f32 %v1306, %v1062
  %v1382 = vsub.f32 %v1309, %v1063
  %v1383 = vsub.f32 %v1311, %v1064
  %v1384 = vsub.f32 %v1314, %v1065
  %v1385 = vsub.f32 %v1316, %v1066
  %v1386 = vsub.f32 %v1319, %v1067
  %v1387 = vsub.f32 %v1321, %v1068
  %v1388 = vsub.f32 %v1324, %v1069
  %v1389 = vsub.f32 %v1326, %v1070
  %v1390 = vsub.f32 %v1329, %v1071
  %v1391 = vsub.f32 %v1331, %v1072
  %v1392 = vsub.f32 %v1334, %v1073
  %v1393 = vsub.f32 %v1336, %v1074
  %v1394 = vsub.f32 %v1339, %v1075
  %v1395 = vsub.f32 %v1341, %v1076
  %v1396 = vsub.f32 %v1344, %v1077
  %v1397 = vsub.f32 %v1346, %v1078
  %v1398 = vsub.f32 %v1349, %v1079
  %v1399 = vsub.f32 %v1351, %v1080
  %v1400 = vsub.f32 %v1354, %v1081
  %v1401 = vsub.f32 %v1356, %v1082
  %v1402 = vsub.f32 %v1359, %v1083
  %v1403 = vsub.f32 %v1361, %v1084
  %v1404 = vsub.f32 %v1364, %v1085
  %v1405 = vsub.f32 %v1366, %v1086
  %v1406 = vsub.f32 %v1369, %v1087
  %v1407 = vsub.f32 %v1371, %v1088
  %v1408 = vsub.f32 %v1374, %v1089
  %v1409 = vsub.f32 %v1376, %v1090
  %v1410 = vmul.f32 %v1378, 0.6666667
  %v1411 = vmul.f32 %v1379, 0.6666667
  %v1412 = vmul.f32 %v1380, 0.6666667
  %v1413 = vmul.f32 %v1381, 0.6666667
  %v1414 = vmul.f32 %v1382, 0.6666667
  %v1415 = vmul.f32 %v1383, 0.6666667
  %v1416 = vmul.f32 %v1384, 0.6666667
  %v1417 = vmul.f32 %v1385, 0.6666667
  %v1418 = vmul.f32 %v1386, 0.6666667
  %v1419 = vmul.f32 %v1387, 0.6666667
  %v1420 = vmul.f32 %v1388, 0.6666667
  %v1421 = vmul.f32 %v1389, 0.6666667
  %v1422 = vmul.f32 %v1390, 0.6666667
  %v1423 = vmul.f32 %v1391, 0.6666667
  %v1424 = vmul.f32 %v1392, 0.6666667
  %v1425 = vmul.f32 %v1393, 0.6666667
  %v1426 = vmul.f32 %v1394, 0.6666667
  %v1427 = vmul.f32 %v1395, 0.6666667
  %v1428 = vmul.f32 %v1396, 0.6666667
  %v1429 = vmul.f32 %v1397, 0.6666667
  %v1430 = vmul.f32 %v1398, 0.6666667
  %v1431 = vmul.f32 %v1399, 0.6666667
  %v1432 = vmul.f32 %v1400, 0.6666667
  %v1433 = vmul.f32 %v1401, 0.6666667
  %v1434 = vmul.f32 %v1402, 0.6666667
  %v1435 = vmul.f32 %v1403, 0.6666667
  %v1436 = vmul.f32 %v1404, 0.6666667
  %v1437 = vmul.f32 %v1405, 0.6666667
  %v1438 = vmul.f32 %v1406, 0.6666667
  %v1439 = vmul.f32 %v1407, 0.6666667
  %v1440 = vmul.f32 %v1408, 0.6666667
  %v1441 = vmul.f32 %v1409, 0.6666667
  %v1442 = vadd.f32 %v1059, %v1410
  %v1443 = vadd.f32 %v1060, %v1411
  %v1444 = vadd.f32 %v1061, %v1412
  %v1445 = vadd.f32 %v1062, %v1413
  %v1446 = vadd.f32 %v1063, %v1414
  %v1447 = vadd.f32 %v1064, %v1415
  %v1448 = vadd.f32 %v1065, %v1416
  %v1449 = vadd.f32 %v1066, %v1417
  %v1450 = vadd.f32 %v1067, %v1418
  %v1451 = vadd.f32 %v1068, %v1419
  %v1452 = vadd.f32 %v1069, %v1420
  %v1453 = vadd.f32 %v1070, %v1421
  %v1454 = vadd.f32 %v1071, %v1422
  %v1455 = vadd.f32 %v1072, %v1423
  %v1456 = vadd.f32 %v1073, %v1424
  %v1457 = vadd.f32 %v1074, %v1425
  %v1458 = vadd.f32 %v1075, %v1426
  %v1459 = vadd.f32 %v1076, %v1427
  %v1460 = vadd.f32 %v1077, %v1428
  %v1461 = vadd.f32 %v1078, %v1429
  %v1462 = vadd.f32 %v1079, %v1430
  %v1463 = vadd.f32 %v1080, %v1431
  %v1464 = vadd.f32 %v1081, %v1432
  %v1465 = vadd.f32 %v1082, %v1433
  %v1466 = vadd.f32 %v1083, %v1434
  %v1467 = vadd.f32 %v1084, %v1435
  %v1468 = vadd.f32 %v1085, %v1436
  %v1469 = vadd.f32 %v1086, %v1437
  %v1470 = vadd.f32 %v1087, %v1438
  %v1471 = vadd.f32 %v1088, %v1439
  %v1472 = vadd.f32 %v1089, %v1440
  %v1473 = vadd.f32 %v1090, %v1441
  %vm1474 = vcmp.ge.f32.partialorder %v1442, 1.0
  %vm1475 = vcmp.ge.f32.partialorder %v1443, 1.0
  %vm1476 = vcmp.ge.f32.partialorder %v1444, 1.0
  %vm1477 = vcmp.ge.f32.partialorder %v1445, 1.0
  %vm1478 = vcmp.ge.f32.partialorder %v1446, 1.0
  %vm1479 = vcmp.ge.f32.partialorder %v1447, 1.0
  %vm1480 = vcmp.ge.f32.partialorder %v1448, 1.0
  %vm1481 = vcmp.ge.f32.partialorder %v1449, 1.0
  %vm1482 = vcmp.ge.f32.partialorder %v1450, 1.0
  %vm1483 = vcmp.ge.f32.partialorder %v1451, 1.0
  %vm1484 = vcmp.ge.f32.partialorder %v1452, 1.0
  %vm1485 = vcmp.ge.f32.partialorder %v1453, 1.0
  %vm1486 = vcmp.ge.f32.partialorder %v1454, 1.0
  %vm1487 = vcmp.ge.f32.partialorder %v1455, 1.0
  %vm1488 = vcmp.ge.f32.partialorder %v1456, 1.0
  %vm1489 = vcmp.ge.f32.partialorder %v1457, 1.0
  %vm1490 = vcmp.ge.f32.partialorder %v1458, 1.0
  %vm1491 = vcmp.ge.f32.partialorder %v1459, 1.0
  %vm1492 = vcmp.ge.f32.partialorder %v1460, 1.0
  %vm1493 = vcmp.ge.f32.partialorder %v1461, 1.0
  %vm1494 = vcmp.ge.f32.partialorder %v1462, 1.0
  %vm1495 = vcmp.ge.f32.partialorder %v1463, 1.0
  %vm1496 = vcmp.ge.f32.partialorder %v1464, 1.0
  %vm1497 = vcmp.ge.f32.partialorder %v1465, 1.0
  %vm1498 = vcmp.ge.f32.partialorder %v1466, 1.0
  %vm1499 = vcmp.ge.f32.partialorder %v1467, 1.0
  %vm1500 = vcmp.ge.f32.partialorder %v1468, 1.0
  %vm1501 = vcmp.ge.f32.partialorder %v1469, 1.0
  %vm1502 = vcmp.ge.f32.partialorder %v1470, 1.0
  %vm1503 = vcmp.ge.f32.partialorder %v1471, 1.0
  %vm1504 = vcmp.ge.f32.partialorder %v1472, 1.0
  %vm1505 = vcmp.ge.f32.partialorder %v1473, 1.0
  %v1506 = vsel %vm1474, 0.0, %v1442
  %v1507 = vsel %vm1475, 0.0, %v1443
  %v1508 = vsel %vm1476, 0.0, %v1444
  %v1509 = vsel %vm1477, 0.0, %v1445
  %v1510 = vsel %vm1478, 0.0, %v1446
  %v1511 = vsel %vm1479, 0.0, %v1447
  %v1512 = vsel %vm1480, 0.0, %v1448
  %v1513 = vsel %vm1481, 0.0, %v1449
  %v1514 = vsel %vm1482, 0.0, %v1450
  %v1515 = vsel %vm1483, 0.0, %v1451
  %v1516 = vsel %vm1484, 0.0, %v1452
  %v1517 = vsel %vm1485, 0.0, %v1453
  %v1518 = vsel %vm1486, 0.0, %v1454
  %v1519 = vsel %vm1487, 0.0, %v1455
  %v1520 = vsel %vm1488, 0.0, %v1456
  %v1521 = vsel %vm1489, 0.0, %v1457
  %v1522 = vsel %vm1490, 0.0, %v1458
  %v1523 = vsel %vm1491, 0.0, %v1459
  %v1524 = vsel %vm1492, 0.0, %v1460
  %v1525 = vsel %vm1493, 0.0, %v1461
  %v1526 = vsel %vm1494, 0.0, %v1462
  %v1527 = vsel %vm1495, 0.0, %v1463
  %v1528 = vsel %vm1496, 0.0, %v1464
  %v1529 = vsel %vm1497, 0.0, %v1465
  %v1530 = vsel %vm1498, 0.0, %v1466
  %v1531 = vsel %vm1499, 0.0, %v1467
  %v1532 = vsel %vm1500, 0.0, %v1468
  %v1533 = vsel %vm1501, 0.0, %v1469
  %v1534 = vsel %vm1502, 0.0, %v1470
  %v1535 = vsel %vm1503, 0.0, %v1471
  %v1536 = vsel %vm1504, 0.0, %v1472
  %v1537 = vsel %vm1505, 0.0, %v1473
  %v1538 = vsel %vm1474, 1, 0
  %v1539 = vsel %vm1475, 1, 0
  %v1540 = vsel %vm1476, 1, 0
  %v1541 = vsel %vm1477, 1, 0
  %v1542 = vsel %vm1478, 1, 0
  %v1543 = vsel %vm1479, 1, 0
  %v1544 = vsel %vm1480, 1, 0
  %v1545 = vsel %vm1481, 1, 0
  %v1546 = vsel %vm1482, 1, 0
  %v1547 = vsel %vm1483, 1, 0
  %v1548 = vsel %vm1484, 1, 0
  %v1549 = vsel %vm1485, 1, 0
  %v1550 = vsel %vm1486, 1, 0
  %v1551 = vsel %vm1487, 1, 0
  %v1552 = vsel %vm1488, 1, 0
  %v1553 = vsel %vm1489, 1, 0
  %v1554 = vsel %vm1490, 1, 0
  %v1555 = vsel %vm1491, 1, 0
  %v1556 = vsel %vm1492, 1, 0
  %v1557 = vsel %vm1493, 1, 0
  %v1558 = vsel %vm1494, 1, 0
  %v1559 = vsel %vm1495, 1, 0
  %v1560 = vsel %vm1496, 1, 0
  %v1561 = vsel %vm1497, 1, 0
  %v1562 = vsel %vm1498, 1, 0
  %v1563 = vsel %vm1499, 1, 0
  %v1564 = vsel %vm1500, 1, 0
  %v1565 = vsel %vm1501, 1, 0
  %v1566 = vsel %vm1502, 1, 0
  %v1567 = vsel %vm1503, 1, 0
  %v1568 = vsel %vm1504, 1, 0
  %v1569 = vsel %vm1505, 1, 0
  %v1570 = vcvt.s32.f32 %v1538
  %v1571 = vcvt.s32.f32 %v1539
  %v1572 = vcvt.s32.f32 %v1540
  %v1573 = vcvt.s32.f32 %v1541
  %v1574 = vcvt.s32.f32 %v1542
  %v1575 = vcvt.s32.f32 %v1543
  %v1576 = vcvt.s32.f32 %v1544
  %v1577 = vcvt.s32.f32 %v1545
  %v1578 = vcvt.s32.f32 %v1546
  %v1579 = vcvt.s32.f32 %v1547
  %v1580 = vcvt.s32.f32 %v1548
  %v1581 = vcvt.s32.f32 %v1549
  %v1582 = vcvt.s32.f32 %v1550
  %v1583 = vcvt.s32.f32 %v1551
  %v1584 = vcvt.s32.f32 %v1552
  %v1585 = vcvt.s32.f32 %v1553
  %v1586 = vcvt.s32.f32 %v1554
  %v1587 = vcvt.s32.f32 %v1555
  %v1588 = vcvt.s32.f32 %v1556
  %v1589 = vcvt.s32.f32 %v1557
  %v1590 = vcvt.s32.f32 %v1558
  %v1591 = vcvt.s32.f32 %v1559
  %v1592 = vcvt.s32.f32 %v1560
  %v1593 = vcvt.s32.f32 %v1561
  %v1594 = vcvt.s32.f32 %v1562
  %v1595 = vcvt.s32.f32 %v1563
  %v1596 = vcvt.s32.f32 %v1564
  %v1597 = vcvt.s32.f32 %v1565
  %v1598 = vcvt.s32.f32 %v1566
  %v1599 = vcvt.s32.f32 %v1567
  %v1600 = vcvt.s32.f32 %v1568
  %v1601 = vcvt.s32.f32 %v1569
  %v1602 = vpack.c.bf16 %v1570, %v1570
  %v1603 = vpack.c.bf16 %v1571, %v1571
  %v1604 = vpack.c.bf16 %v1572, %v1572
  %v1605 = vpack.c.bf16 %v1573, %v1573
  %v1606 = vpack.c.bf16 %v1574, %v1574
  %v1607 = vpack.c.bf16 %v1575, %v1575
  %v1608 = vpack.c.bf16 %v1576, %v1576
  %v1609 = vpack.c.bf16 %v1577, %v1577
  %v1610 = vpack.c.bf16 %v1578, %v1578
  %v1611 = vpack.c.bf16 %v1579, %v1579
  %v1612 = vpack.c.bf16 %v1580, %v1580
  %v1613 = vpack.c.bf16 %v1581, %v1581
  %v1614 = vpack.c.bf16 %v1582, %v1582
  %v1615 = vpack.c.bf16 %v1583, %v1583
  %v1616 = vpack.c.bf16 %v1584, %v1584
  %v1617 = vpack.c.bf16 %v1585, %v1585
  %v1618 = vpack.c.bf16 %v1586, %v1586
  %v1619 = vpack.c.bf16 %v1587, %v1587
  %v1620 = vpack.c.bf16 %v1588, %v1588
  %v1621 = vpack.c.bf16 %v1589, %v1589
  %v1622 = vpack.c.bf16 %v1590, %v1590
  %v1623 = vpack.c.bf16 %v1591, %v1591
  %v1624 = vpack.c.bf16 %v1592, %v1592
  %v1625 = vpack.c.bf16 %v1593, %v1593
  %v1626 = vpack.c.bf16 %v1594, %v1594
  %v1627 = vpack.c.bf16 %v1595, %v1595
  %v1628 = vpack.c.bf16 %v1596, %v1596
  %v1629 = vpack.c.bf16 %v1597, %v1597
  %v1630 = vpack.c.bf16 %v1598, %v1598
  %v1631 = vpack.c.bf16 %v1599, %v1599
  %v1632 = vpack.c.bf16 %v1600, %v1600
  %v1633 = vpack.c.bf16 %v1601, %v1601
  %s1634 = scalar_lea.vmem %s3, 256
  %1635 = vst [vmem:[%s1634] sm:$0xf] %v1602
  %1636 = vst [vmem:[%s1634 + $0x4] sm:$0xf] %v1603
  %1637 = vst [vmem:[%s1634 + $0x8] sm:$0xf] %v1604
  %1638 = vst [vmem:[%s1634 + $0xc] sm:$0xf] %v1605
  %1639 = vst [vmem:[%s1634 + $0x10] sm:$0xf] %v1606
  %1640 = vst [vmem:[%s1634 + $0x14] sm:$0xf] %v1607
  %1641 = vst [vmem:[%s1634 + $0x18] sm:$0xf] %v1608
  %1642 = vst [vmem:[%s1634 + $0x1c] sm:$0xf] %v1609
  %1643 = vst [vmem:[%s1634 + $0x20] sm:$0xf] %v1610
  %1644 = vst [vmem:[%s1634 + $0x24] sm:$0xf] %v1611
  %1645 = vst [vmem:[%s1634 + $0x28] sm:$0xf] %v1612
  %1646 = vst [vmem:[%s1634 + $0x2c] sm:$0xf] %v1613
  %1647 = vst [vmem:[%s1634 + $0x30] sm:$0xf] %v1614
  %1648 = vst [vmem:[%s1634 + $0x34] sm:$0xf] %v1615
  %1649 = vst [vmem:[%s1634 + $0x38] sm:$0xf] %v1616
  %1650 = vst [vmem:[%s1634 + $0x3c] sm:$0xf] %v1617
  %1651 = vst [vmem:[%s1634 + $0x40] sm:$0xf] %v1618
  %1652 = vst [vmem:[%s1634 + $0x44] sm:$0xf] %v1619
  %1653 = vst [vmem:[%s1634 + $0x48] sm:$0xf] %v1620
  %1654 = vst [vmem:[%s1634 + $0x4c] sm:$0xf] %v1621
  %1655 = vst [vmem:[%s1634 + $0x50] sm:$0xf] %v1622
  %1656 = vst [vmem:[%s1634 + $0x54] sm:$0xf] %v1623
  %1657 = vst [vmem:[%s1634 + $0x58] sm:$0xf] %v1624
  %1658 = vst [vmem:[%s1634 + $0x5c] sm:$0xf] %v1625
  %1659 = vst [vmem:[%s1634 + $0x60] sm:$0xf] %v1626
  %1660 = vst [vmem:[%s1634 + $0x64] sm:$0xf] %v1627
  %1661 = vst [vmem:[%s1634 + $0x68] sm:$0xf] %v1628
  %1662 = vst [vmem:[%s1634 + $0x6c] sm:$0xf] %v1629
  %1663 = vst [vmem:[%s1634 + $0x70] sm:$0xf] %v1630
  %1664 = vst [vmem:[%s1634 + $0x74] sm:$0xf] %v1631
  %1665 = vst [vmem:[%s1634 + $0x78] sm:$0xf] %v1632
  %1666 = vst [vmem:[%s1634 + $0x7c] sm:$0xf] %v1633
  %s1667 = scalar_lea.vmem %s0, 192
  %v1668 = vld [vmem:[%s1667] sm:$0xff]
  %v1669 = vld [vmem:[%s1667 + $0x8] sm:$0xff]
  %v1670 = vld [vmem:[%s1667 + $0x10] sm:$0xff]
  %v1671 = vld [vmem:[%s1667 + $0x18] sm:$0xff]
  %v1672 = vld [vmem:[%s1667 + $0x20] sm:$0xff]
  %v1673 = vld [vmem:[%s1667 + $0x28] sm:$0xff]
  %v1674 = vld [vmem:[%s1667 + $0x30] sm:$0xff]
  %v1675 = vld [vmem:[%s1667 + $0x38] sm:$0xff]
  %v1676 = vsub.f32 %v1668, %v1281
  %v1677 = vsub.f32 %v1669, %v1282
  %v1678 = vsub.f32 %v1670, %v1283
  %v1679 = vsub.f32 %v1671, %v1284
  %v1680 = vsub.f32 %v1672, %v1285
  %v1681 = vsub.f32 %v1673, %v1286
  %v1682 = vsub.f32 %v1674, %v1287
  %v1683 = vsub.f32 %v1675, %v1288
  %v1684 = vmul.f32 %v1676, 0.6666667
  %v1685 = vmul.f32 %v1677, 0.6666667
  %v1686 = vmul.f32 %v1678, 0.6666667
  %v1687 = vmul.f32 %v1679, 0.6666667
  %v1688 = vmul.f32 %v1680, 0.6666667
  %v1689 = vmul.f32 %v1681, 0.6666667
  %v1690 = vmul.f32 %v1682, 0.6666667
  %v1691 = vmul.f32 %v1683, 0.6666667
  %v1692 = vadd.f32 %v1281, %v1684
  %v1693 = vadd.f32 %v1282, %v1685
  %v1694 = vadd.f32 %v1283, %v1686
  %v1695 = vadd.f32 %v1284, %v1687
  %v1696 = vadd.f32 %v1285, %v1688
  %v1697 = vadd.f32 %v1286, %v1689
  %v1698 = vadd.f32 %v1287, %v1690
  %v1699 = vadd.f32 %v1288, %v1691
  %vm1700 = vcmp.ge.f32.partialorder %v1692, 1.0
  %vm1701 = vcmp.ge.f32.partialorder %v1693, 1.0
  %vm1702 = vcmp.ge.f32.partialorder %v1694, 1.0
  %vm1703 = vcmp.ge.f32.partialorder %v1695, 1.0
  %vm1704 = vcmp.ge.f32.partialorder %v1696, 1.0
  %vm1705 = vcmp.ge.f32.partialorder %v1697, 1.0
  %vm1706 = vcmp.ge.f32.partialorder %v1698, 1.0
  %vm1707 = vcmp.ge.f32.partialorder %v1699, 1.0
  %v1708 = vsel %vm1700, 1, 0
  %v1709 = vsel %vm1701, 1, 0
  %v1710 = vsel %vm1702, 1, 0
  %v1711 = vsel %vm1703, 1, 0
  %v1712 = vsel %vm1704, 1, 0
  %v1713 = vsel %vm1705, 1, 0
  %v1714 = vsel %vm1706, 1, 0
  %v1715 = vsel %vm1707, 1, 0
  %v1716 = vcvt.s32.f32 %v1708
  %v1717 = vcvt.s32.f32 %v1709
  %v1718 = vcvt.s32.f32 %v1710
  %v1719 = vcvt.s32.f32 %v1711
  %v1720 = vcvt.s32.f32 %v1712
  %v1721 = vcvt.s32.f32 %v1713
  %v1722 = vcvt.s32.f32 %v1714
  %v1723 = vcvt.s32.f32 %v1715
  %v1724 = vpack.c.bf16 %v1717, %v1716
  %v1725 = vpack.c.bf16 %v1719, %v1718
  %v1726 = vpack.c.bf16 %v1721, %v1720
  %v1727 = vpack.c.bf16 %v1723, %v1722
  %1728 = vmatpush.bf16.msra.mxu0 0
  %1729 = vmatpush.bf16.msra.mxu0 0
  %1730 = vmatpush.bf16.msra.mxu0 0
  %1731 = vmatpush.bf16.msra.mxu0 0
  %1732 = vmatpush.bf16.msra.mxu0 %v1727
  %1733 = vmatpush.bf16.msra.mxu0 %v1726
  %1734 = vmatpush.bf16.msra.mxu0 %v1725
  %1735 = vmatpush.bf16.msra.mxu0 %v1724
  %1736 = vmatmul.bf16.gmra.mxu0 %v381
  %v1737 = vpop.f32.mrf.mxu0
  %v1738 = vadd.f32 %v82, %v1737
  %v1739 = vpop.f32.mrf.mxu0
  %v1740 = vadd.f32 %v87, %v1739
  %1741 = vmatmul.bf16.gmra.mxu0 %v384
  %v1742 = vpop.f32.mrf.mxu0
  %v1743 = vadd.f32 %v92, %v1742
  %v1744 = vpop.f32.mrf.mxu0
  %v1745 = vadd.f32 %v97, %v1744
  %1746 = vmatmul.bf16.gmra.mxu0 %v387
  %v1747 = vpop.f32.mrf.mxu0
  %v1748 = vadd.f32 %v102, %v1747
  %v1749 = vpop.f32.mrf.mxu0
  %v1750 = vadd.f32 %v107, %v1749
  %1751 = vmatmul.bf16.gmra.mxu0 %v390
  %v1752 = vpop.f32.mrf.mxu0
  %v1753 = vadd.f32 %v112, %v1752
  %v1754 = vpop.f32.mrf.mxu0
  %v1755 = vadd.f32 %v117, %v1754
  %1756 = vmatmul.bf16.gmra.mxu0 %v393
  %v1757 = vpop.f32.mrf.mxu0
  %v1758 = vadd.f32 %v122, %v1757
  %v1759 = vpop.f32.mrf.mxu0
  %v1760 = vadd.f32 %v127, %v1759
  %1761 = vmatmul.bf16.gmra.mxu0 %v396
  %v1762 = vpop.f32.mrf.mxu0
  %v1763 = vadd.f32 %v132, %v1762
  %v1764 = vpop.f32.mrf.mxu0
  %v1765 = vadd.f32 %v137, %v1764
  %1766 = vmatmul.bf16.gmra.mxu0 %v399
  %v1767 = vpop.f32.mrf.mxu0
  %v1768 = vadd.f32 %v142, %v1767
  %v1769 = vpop.f32.mrf.mxu0
  %v1770 = vadd.f32 %v147, %v1769
  %1771 = vmatmul.bf16.gmra.mxu0 %v402
  %v1772 = vpop.f32.mrf.mxu0
  %v1773 = vadd.f32 %v152, %v1772
  %v1774 = vpop.f32.mrf.mxu0
  %v1775 = vadd.f32 %v157, %v1774
  %1776 = vmatmul.bf16.gmra.mxu0 %v405
  %v1777 = vpop.f32.mrf.mxu0
  %v1778 = vadd.f32 %v162, %v1777
  %v1779 = vpop.f32.mrf.mxu0
  %v1780 = vadd.f32 %v167, %v1779
  %1781 = vmatmul.bf16.gmra.mxu0 %v408
  %v1782 = vpop.f32.mrf.mxu0
  %v1783 = vadd.f32 %v172, %v1782
  %v1784 = vpop.f32.mrf.mxu0
  %v1785 = vadd.f32 %v177, %v1784
  %1786 = vmatmul.bf16.gmra.mxu0 %v411
  %v1787 = vpop.f32.mrf.mxu0
  %v1788 = vadd.f32 %v182, %v1787
  %v1789 = vpop.f32.mrf.mxu0
  %v1790 = vadd.f32 %v187, %v1789
  %1791 = vmatmul.bf16.gmra.mxu0 %v414
  %v1792 = vpop.f32.mrf.mxu0
  %v1793 = vadd.f32 %v192, %v1792
  %v1794 = vpop.f32.mrf.mxu0
  %v1795 = vadd.f32 %v197, %v1794
  %1796 = vmatmul.bf16.gmra.mxu0 %v417
  %v1797 = vpop.f32.mrf.mxu0
  %v1798 = vadd.f32 %v202, %v1797
  %v1799 = vpop.f32.mrf.mxu0
  %v1800 = vadd.f32 %v207, %v1799
  %1801 = vmatmul.bf16.gmra.mxu0 %v420
  %v1802 = vpop.f32.mrf.mxu0
  %v1803 = vadd.f32 %v212, %v1802
  %v1804 = vpop.f32.mrf.mxu0
  %v1805 = vadd.f32 %v217, %v1804
  %1806 = vmatmul.bf16.gmra.mxu0 %v423
  %v1807 = vpop.f32.mrf.mxu0
  %v1808 = vadd.f32 %v222, %v1807
  %v1809 = vpop.f32.mrf.mxu0
  %v1810 = vadd.f32 %v227, %v1809
  %1811 = vmatmul.bf16.gmra.mxu0 %v426
  %v1812 = vpop.f32.mrf.mxu0
  %v1813 = vadd.f32 %v232, %v1812
  %v1814 = vpop.f32.mrf.mxu0
  %v1815 = vadd.f32 %v237, %v1814
  %1816 = vdwg.mxu0
  %v1817 = vsub.f32 %v1738, %v1506
  %v1818 = vsub.f32 %v1740, %v1507
  %v1819 = vsub.f32 %v1743, %v1508
  %v1820 = vsub.f32 %v1745, %v1509
  %v1821 = vsub.f32 %v1748, %v1510
  %v1822 = vsub.f32 %v1750, %v1511
  %v1823 = vsub.f32 %v1753, %v1512
  %v1824 = vsub.f32 %v1755, %v1513
  %v1825 = vsub.f32 %v1758, %v1514
  %v1826 = vsub.f32 %v1760, %v1515
  %v1827 = vsub.f32 %v1763, %v1516
  %v1828 = vsub.f32 %v1765, %v1517
  %v1829 = vsub.f32 %v1768, %v1518
  %v1830 = vsub.f32 %v1770, %v1519
  %v1831 = vsub.f32 %v1773, %v1520
  %v1832 = vsub.f32 %v1775, %v1521
  %v1833 = vsub.f32 %v1778, %v1522
  %v1834 = vsub.f32 %v1780, %v1523
  %v1835 = vsub.f32 %v1783, %v1524
  %v1836 = vsub.f32 %v1785, %v1525
  %v1837 = vsub.f32 %v1788, %v1526
  %v1838 = vsub.f32 %v1790, %v1527
  %v1839 = vsub.f32 %v1793, %v1528
  %v1840 = vsub.f32 %v1795, %v1529
  %v1841 = vsub.f32 %v1798, %v1530
  %v1842 = vsub.f32 %v1800, %v1531
  %v1843 = vsub.f32 %v1803, %v1532
  %v1844 = vsub.f32 %v1805, %v1533
  %v1845 = vsub.f32 %v1808, %v1534
  %v1846 = vsub.f32 %v1810, %v1535
  %v1847 = vsub.f32 %v1813, %v1536
  %v1848 = vsub.f32 %v1815, %v1537
  %v1849 = vmul.f32 %v1817, 0.6666667
  %v1850 = vmul.f32 %v1818, 0.6666667
  %v1851 = vmul.f32 %v1819, 0.6666667
  %v1852 = vmul.f32 %v1820, 0.6666667
  %v1853 = vmul.f32 %v1821, 0.6666667
  %v1854 = vmul.f32 %v1822, 0.6666667
  %v1855 = vmul.f32 %v1823, 0.6666667
  %v1856 = vmul.f32 %v1824, 0.6666667
  %v1857 = vmul.f32 %v1825, 0.6666667
  %v1858 = vmul.f32 %v1826, 0.6666667
  %v1859 = vmul.f32 %v1827, 0.6666667
  %v1860 = vmul.f32 %v1828, 0.6666667
  %v1861 = vmul.f32 %v1829, 0.6666667
  %v1862 = vmul.f32 %v1830, 0.6666667
  %v1863 = vmul.f32 %v1831, 0.6666667
  %v1864 = vmul.f32 %v1832, 0.6666667
  %v1865 = vmul.f32 %v1833, 0.6666667
  %v1866 = vmul.f32 %v1834, 0.6666667
  %v1867 = vmul.f32 %v1835, 0.6666667
  %v1868 = vmul.f32 %v1836, 0.6666667
  %v1869 = vmul.f32 %v1837, 0.6666667
  %v1870 = vmul.f32 %v1838, 0.6666667
  %v1871 = vmul.f32 %v1839, 0.6666667
  %v1872 = vmul.f32 %v1840, 0.6666667
  %v1873 = vmul.f32 %v1841, 0.6666667
  %v1874 = vmul.f32 %v1842, 0.6666667
  %v1875 = vmul.f32 %v1843, 0.6666667
  %v1876 = vmul.f32 %v1844, 0.6666667
  %v1877 = vmul.f32 %v1845, 0.6666667
  %v1878 = vmul.f32 %v1846, 0.6666667
  %v1879 = vmul.f32 %v1847, 0.6666667
  %v1880 = vmul.f32 %v1848, 0.6666667
  %v1881 = vadd.f32 %v1506, %v1849
  %v1882 = vadd.f32 %v1507, %v1850
  %v1883 = vadd.f32 %v1508, %v1851
  %v1884 = vadd.f32 %v1509, %v1852
  %v1885 = vadd.f32 %v1510, %v1853
  %v1886 = vadd.f32 %v1511, %v1854
  %v1887 = vadd.f32 %v1512, %v1855
  %v1888 = vadd.f32 %v1513, %v1856
  %v1889 = vadd.f32 %v1514, %v1857
  %v1890 = vadd.f32 %v1515, %v1858
  %v1891 = vadd.f32 %v1516, %v1859
  %v1892 = vadd.f32 %v1517, %v1860
  %v1893 = vadd.f32 %v1518, %v1861
  %v1894 = vadd.f32 %v1519, %v1862
  %v1895 = vadd.f32 %v1520, %v1863
  %v1896 = vadd.f32 %v1521, %v1864
  %v1897 = vadd.f32 %v1522, %v1865
  %v1898 = vadd.f32 %v1523, %v1866
  %v1899 = vadd.f32 %v1524, %v1867
  %v1900 = vadd.f32 %v1525, %v1868
  %v1901 = vadd.f32 %v1526, %v1869
  %v1902 = vadd.f32 %v1527, %v1870
  %v1903 = vadd.f32 %v1528, %v1871
  %v1904 = vadd.f32 %v1529, %v1872
  %v1905 = vadd.f32 %v1530, %v1873
  %v1906 = vadd.f32 %v1531, %v1874
  %v1907 = vadd.f32 %v1532, %v1875
  %v1908 = vadd.f32 %v1533, %v1876
  %v1909 = vadd.f32 %v1534, %v1877
  %v1910 = vadd.f32 %v1535, %v1878
  %v1911 = vadd.f32 %v1536, %v1879
  %v1912 = vadd.f32 %v1537, %v1880
  %vm1913 = vcmp.ge.f32.partialorder %v1881, 1.0
  %vm1914 = vcmp.ge.f32.partialorder %v1882, 1.0
  %vm1915 = vcmp.ge.f32.partialorder %v1883, 1.0
  %vm1916 = vcmp.ge.f32.partialorder %v1884, 1.0
  %vm1917 = vcmp.ge.f32.partialorder %v1885, 1.0
  %vm1918 = vcmp.ge.f32.partialorder %v1886, 1.0
  %vm1919 = vcmp.ge.f32.partialorder %v1887, 1.0
  %vm1920 = vcmp.ge.f32.partialorder %v1888, 1.0
  %vm1921 = vcmp.ge.f32.partialorder %v1889, 1.0
  %vm1922 = vcmp.ge.f32.partialorder %v1890, 1.0
  %vm1923 = vcmp.ge.f32.partialorder %v1891, 1.0
  %vm1924 = vcmp.ge.f32.partialorder %v1892, 1.0
  %vm1925 = vcmp.ge.f32.partialorder %v1893, 1.0
  %vm1926 = vcmp.ge.f32.partialorder %v1894, 1.0
  %vm1927 = vcmp.ge.f32.partialorder %v1895, 1.0
  %vm1928 = vcmp.ge.f32.partialorder %v1896, 1.0
  %vm1929 = vcmp.ge.f32.partialorder %v1897, 1.0
  %vm1930 = vcmp.ge.f32.partialorder %v1898, 1.0
  %vm1931 = vcmp.ge.f32.partialorder %v1899, 1.0
  %vm1932 = vcmp.ge.f32.partialorder %v1900, 1.0
  %vm1933 = vcmp.ge.f32.partialorder %v1901, 1.0
  %vm1934 = vcmp.ge.f32.partialorder %v1902, 1.0
  %vm1935 = vcmp.ge.f32.partialorder %v1903, 1.0
  %vm1936 = vcmp.ge.f32.partialorder %v1904, 1.0
  %vm1937 = vcmp.ge.f32.partialorder %v1905, 1.0
  %vm1938 = vcmp.ge.f32.partialorder %v1906, 1.0
  %vm1939 = vcmp.ge.f32.partialorder %v1907, 1.0
  %vm1940 = vcmp.ge.f32.partialorder %v1908, 1.0
  %vm1941 = vcmp.ge.f32.partialorder %v1909, 1.0
  %vm1942 = vcmp.ge.f32.partialorder %v1910, 1.0
  %vm1943 = vcmp.ge.f32.partialorder %v1911, 1.0
  %vm1944 = vcmp.ge.f32.partialorder %v1912, 1.0
  %v1945 = vsel %vm1913, 1, 0
  %v1946 = vsel %vm1914, 1, 0
  %v1947 = vsel %vm1915, 1, 0
  %v1948 = vsel %vm1916, 1, 0
  %v1949 = vsel %vm1917, 1, 0
  %v1950 = vsel %vm1918, 1, 0
  %v1951 = vsel %vm1919, 1, 0
  %v1952 = vsel %vm1920, 1, 0
  %v1953 = vsel %vm1921, 1, 0
  %v1954 = vsel %vm1922, 1, 0
  %v1955 = vsel %vm1923, 1, 0
  %v1956 = vsel %vm1924, 1, 0
  %v1957 = vsel %vm1925, 1, 0
  %v1958 = vsel %vm1926, 1, 0
  %v1959 = vsel %vm1927, 1, 0
  %v1960 = vsel %vm1928, 1, 0
  %v1961 = vsel %vm1929, 1, 0
  %v1962 = vsel %vm1930, 1, 0
  %v1963 = vsel %vm1931, 1, 0
  %v1964 = vsel %vm1932, 1, 0
  %v1965 = vsel %vm1933, 1, 0
  %v1966 = vsel %vm1934, 1, 0
  %v1967 = vsel %vm1935, 1, 0
  %v1968 = vsel %vm1936, 1, 0
  %v1969 = vsel %vm1937, 1, 0
  %v1970 = vsel %vm1938, 1, 0
  %v1971 = vsel %vm1939, 1, 0
  %v1972 = vsel %vm1940, 1, 0
  %v1973 = vsel %vm1941, 1, 0
  %v1974 = vsel %vm1942, 1, 0
  %v1975 = vsel %vm1943, 1, 0
  %v1976 = vsel %vm1944, 1, 0
  %v1977 = vcvt.s32.f32 %v1945
  %v1978 = vcvt.s32.f32 %v1946
  %v1979 = vcvt.s32.f32 %v1947
  %v1980 = vcvt.s32.f32 %v1948
  %v1981 = vcvt.s32.f32 %v1949
  %v1982 = vcvt.s32.f32 %v1950
  %v1983 = vcvt.s32.f32 %v1951
  %v1984 = vcvt.s32.f32 %v1952
  %v1985 = vcvt.s32.f32 %v1953
  %v1986 = vcvt.s32.f32 %v1954
  %v1987 = vcvt.s32.f32 %v1955
  %v1988 = vcvt.s32.f32 %v1956
  %v1989 = vcvt.s32.f32 %v1957
  %v1990 = vcvt.s32.f32 %v1958
  %v1991 = vcvt.s32.f32 %v1959
  %v1992 = vcvt.s32.f32 %v1960
  %v1993 = vcvt.s32.f32 %v1961
  %v1994 = vcvt.s32.f32 %v1962
  %v1995 = vcvt.s32.f32 %v1963
  %v1996 = vcvt.s32.f32 %v1964
  %v1997 = vcvt.s32.f32 %v1965
  %v1998 = vcvt.s32.f32 %v1966
  %v1999 = vcvt.s32.f32 %v1967
  %v2000 = vcvt.s32.f32 %v1968
  %v2001 = vcvt.s32.f32 %v1969
  %v2002 = vcvt.s32.f32 %v1970
  %v2003 = vcvt.s32.f32 %v1971
  %v2004 = vcvt.s32.f32 %v1972
  %v2005 = vcvt.s32.f32 %v1973
  %v2006 = vcvt.s32.f32 %v1974
  %v2007 = vcvt.s32.f32 %v1975
  %v2008 = vcvt.s32.f32 %v1976
  %v2009 = vpack.c.bf16 %v1977, %v1977
  %v2010 = vpack.c.bf16 %v1978, %v1978
  %v2011 = vpack.c.bf16 %v1979, %v1979
  %v2012 = vpack.c.bf16 %v1980, %v1980
  %v2013 = vpack.c.bf16 %v1981, %v1981
  %v2014 = vpack.c.bf16 %v1982, %v1982
  %v2015 = vpack.c.bf16 %v1983, %v1983
  %v2016 = vpack.c.bf16 %v1984, %v1984
  %v2017 = vpack.c.bf16 %v1985, %v1985
  %v2018 = vpack.c.bf16 %v1986, %v1986
  %v2019 = vpack.c.bf16 %v1987, %v1987
  %v2020 = vpack.c.bf16 %v1988, %v1988
  %v2021 = vpack.c.bf16 %v1989, %v1989
  %v2022 = vpack.c.bf16 %v1990, %v1990
  %v2023 = vpack.c.bf16 %v1991, %v1991
  %v2024 = vpack.c.bf16 %v1992, %v1992
  %v2025 = vpack.c.bf16 %v1993, %v1993
  %v2026 = vpack.c.bf16 %v1994, %v1994
  %v2027 = vpack.c.bf16 %v1995, %v1995
  %v2028 = vpack.c.bf16 %v1996, %v1996
  %v2029 = vpack.c.bf16 %v1997, %v1997
  %v2030 = vpack.c.bf16 %v1998, %v1998
  %v2031 = vpack.c.bf16 %v1999, %v1999
  %v2032 = vpack.c.bf16 %v2000, %v2000
  %v2033 = vpack.c.bf16 %v2001, %v2001
  %v2034 = vpack.c.bf16 %v2002, %v2002
  %v2035 = vpack.c.bf16 %v2003, %v2003
  %v2036 = vpack.c.bf16 %v2004, %v2004
  %v2037 = vpack.c.bf16 %v2005, %v2005
  %v2038 = vpack.c.bf16 %v2006, %v2006
  %v2039 = vpack.c.bf16 %v2007, %v2007
  %v2040 = vpack.c.bf16 %v2008, %v2008
  %s2041 = scalar_lea.vmem %s3, 384
  %2042 = vst [vmem:[%s2041] sm:$0xf] %v2009
  %2043 = vst [vmem:[%s2041 + $0x4] sm:$0xf] %v2010
  %2044 = vst [vmem:[%s2041 + $0x8] sm:$0xf] %v2011
  %2045 = vst [vmem:[%s2041 + $0xc] sm:$0xf] %v2012
  %2046 = vst [vmem:[%s2041 + $0x10] sm:$0xf] %v2013
  %2047 = vst [vmem:[%s2041 + $0x14] sm:$0xf] %v2014
  %2048 = vst [vmem:[%s2041 + $0x18] sm:$0xf] %v2015
  %2049 = vst [vmem:[%s2041 + $0x1c] sm:$0xf] %v2016
  %2050 = vst [vmem:[%s2041 + $0x20] sm:$0xf] %v2017
  %2051 = vst [vmem:[%s2041 + $0x24] sm:$0xf] %v2018
  %2052 = vst [vmem:[%s2041 + $0x28] sm:$0xf] %v2019
  %2053 = vst [vmem:[%s2041 + $0x2c] sm:$0xf] %v2020
  %2054 = vst [vmem:[%s2041 + $0x30] sm:$0xf] %v2021
  %2055 = vst [vmem:[%s2041 + $0x34] sm:$0xf] %v2022
  %2056 = vst [vmem:[%s2041 + $0x38] sm:$0xf] %v2023
  %2057 = vst [vmem:[%s2041 + $0x3c] sm:$0xf] %v2024
  %2058 = vst [vmem:[%s2041 + $0x40] sm:$0xf] %v2025
  %2059 = vst [vmem:[%s2041 + $0x44] sm:$0xf] %v2026
  %2060 = vst [vmem:[%s2041 + $0x48] sm:$0xf] %v2027
  %2061 = vst [vmem:[%s2041 + $0x4c] sm:$0xf] %v2028
  %2062 = vst [vmem:[%s2041 + $0x50] sm:$0xf] %v2029
  %2063 = vst [vmem:[%s2041 + $0x54] sm:$0xf] %v2030
  %2064 = vst [vmem:[%s2041 + $0x58] sm:$0xf] %v2031
  %2065 = vst [vmem:[%s2041 + $0x5c] sm:$0xf] %v2032
  %2066 = vst [vmem:[%s2041 + $0x60] sm:$0xf] %v2033
  %2067 = vst [vmem:[%s2041 + $0x64] sm:$0xf] %v2034
  %2068 = vst [vmem:[%s2041 + $0x68] sm:$0xf] %v2035
  %2069 = vst [vmem:[%s2041 + $0x6c] sm:$0xf] %v2036
  %2070 = vst [vmem:[%s2041 + $0x70] sm:$0xf] %v2037
  %2071 = vst [vmem:[%s2041 + $0x74] sm:$0xf] %v2038
  %2072 = vst [vmem:[%s2041 + $0x78] sm:$0xf] %v2039
  %2073 = vst [vmem:[%s2041 + $0x7c] sm:$0xf] %v2040
  // Predicated region
  $region14: #{_lambda_.8} parent=0 // pred_check
    _
  $region15: #{_lambda_.8} parent=0 // pred_check_branch
    %2075 = sbr.rel (0) target = $region17
  $region16: #{_lambda_.8} parent=0 // pred_region
    _
  $region17: #{_lambda_.8} parent=0 // pred_fallthru
    _
  // Predicated region
  $region18: #{_lambda_.8} parent=0 // pred_check
    _
  $region19: #{_lambda_.8} parent=0 // pred_check_branch
    %2077 = sbr.rel (0) target = $region21
  $region20: #{_lambda_.8} parent=0 // pred_region
    _
  $region21: #{_lambda_.8} parent=0 // pred_fallthru
    _

</llo_original>
